<compile_context>
chip_gen: v7x
topology: tpu7x:2x2x1
jax: 0.10.0
libtpu: 0.0.40
codegen_flags: <defaults>
</compile_context>

<pallas_src>
import functools

import jax
import jax.numpy as jnp
import numpy as np
from jax import lax
from jax.experimental import pallas as pl
from jax.experimental.pallas import tpu as pltpu

BETA = 0.9      # membrane decay
V_TH = 1.0      # firing threshold
PACK = 128      # packed lane width (one f32 vreg lane dim / one MXU tile)


# ---------------------------------------------------------------- kernel ----

def snn_wavefront_kernel(x_ref, w_ref, b_ref, out_ref, *, hidden, n_out):
    """Wavefront-scheduled 4-layer LIF net on lane-packed state.

    x_ref  : (T, B, 128) input spikes, pre-placed in lanes [106, 126)
    w_ref  : (128, 128)  block-diagonal packed weights (W1..W4)
    b_ref  : (1, 128)    packed biases [b1|b2|b3|b4|0]
    out_ref: (B, n_out)  spike counts of the output layer
    """
    T, B, _ = x_ref.shape
    H = hidden
    NL = 4                       # number of LIF layers
    out_lo = 3 * H               # 96  : start of layer-4 output lanes
    out_hi = out_lo + n_out      # 106 : end   of layer-4 output lanes

    # Weight / bias stay resident in VMEM for the whole kernel: load once.
    w = w_ref[...]
    b = b_ref[...]               # (1, PACK); sublane-broadcast happens in the add

    # Per-lane wavefront delay: layer l's output lanes become active at
    # wavefront step s = l-1 and stay active for T steps.  Padding lanes get
    # a delay beyond the last step so they are never active.
    lane = lax.broadcasted_iota(jnp.int32, (B, PACK), 1)
    delay = jnp.where(lane < H, 0,
            jnp.where(lane < 2 * H, 1,
            jnp.where(lane < 3 * H, 2,
            jnp.where(lane < out_hi, 3, T + NL))))

    # Lane-packed state: [m1 | m2 | m3 | m4 | pad] -- one (B,128) vreg each.
    m = jnp.zeros((B, PACK), jnp.float32)        # membrane potentials
    spike = jnp.zeros((B, PACK), jnp.float32)    # previous-step spikes
    counts = jnp.zeros((B, PACK), jnp.float32)   # spike counts (all layers)

    # Wavefront loop, fully unrolled: T + 3 = 11 serial packed matmuls.
    for s in range(T + NL - 1):
        # Packed input: previous spikes (lanes 0:96 feed layers 2..4) plus the
        # current x (lanes 106:126 feed layer 1).  Lane sets are disjoint and
        # zero elsewhere, so a single add does the packing.
        u = (spike + x_ref[s]) if s < T else spike
        z = jnp.dot(u, w, preferred_element_type=jnp.float32,
                    precision=lax.Precision.HIGHEST) + b
        v = BETA * m + z
        act = (delay <= s) & (delay > s - T)     # which layer segments are live
        fire = (v >= V_TH) & act
        spike = fire.astype(jnp.float32)
        # Commit membranes only for active lanes; reset-to-zero on spike.
        m = jnp.where(act, jnp.where(fire, 0.0, v), m)
        counts = counts + spike

    # Single store at the end: layer-4 segment only.
    out_ref[...] = counts[:, out_lo:out_hi]


# --------------------------------------------------------------- wrapper ----

@jax.jit
def simple_snn_forward(x_seq, params):
    """x_seq: (T, B, 20) float32 -> spike_counts (B, 10) float32."""
    T, B, IN = x_seq.shape
    (w1, b1), (w2, b2), (w3, b3), (w4, b4) = params
    H = w1.shape[1]                      # 32
    OUT = w4.shape[1]                    # 10
    x_lo = 3 * H + OUT                   # 106: x rows sit past the layer-4 lanes
    assert x_lo + IN <= PACK, "packed layout does not fit in 128 lanes"

    # One block-diagonal packed weight.  Row index = where the driving signal
    # lives in the packed (B,128) vector; column index = where the layer's
    # pre-activation lands.  Everything else (incl. the layer-4 spike rows and
    # all padding) is exactly zero.
    w_pack = jnp.zeros((PACK, PACK), jnp.float32)
    w_pack = w_pack.at[x_lo:x_lo + IN, 0:H].set(w1)              # x   -> layer 1
    w_pack = w_pack.at[0:H, H:2 * H].set(w2)                     # h1  -> layer 2
    w_pack = w_pack.at[H:2 * H, 2 * H:3 * H].set(w3)             # h2  -> layer 3
    w_pack = w_pack.at[2 * H:3 * H, 3 * H:3 * H + OUT].set(w4)   # h3  -> layer 4

    b_pack = jnp.zeros((1, PACK), jnp.float32)
    b_pack = b_pack.at[:, 0:H].set(b1)
    b_pack = b_pack.at[:, H:2 * H].set(b2)
    b_pack = b_pack.at[:, 2 * H:3 * H].set(b3)
    b_pack = b_pack.at[:, 3 * H:3 * H + OUT].set(b4)

    # Input placed into its packed row lanes; lane-dense (last dim 128).
    x_pad = jnp.zeros((T, B, PACK), jnp.float32)
    x_pad = x_pad.at[:, :, x_lo:x_lo + IN].set(x_seq)

    kernel = functools.partial(snn_wavefront_kernel, hidden=H, n_out=OUT)
    return pl.pallas_call(
        kernel,
        out_shape=jax.ShapeDtypeStruct((B, OUT), jnp.float32),
        in_specs=[
            pl.BlockSpec(memory_space=pltpu.MemorySpace.VMEM),
            pl.BlockSpec(memory_space=pltpu.MemorySpace.VMEM),
            pl.BlockSpec(memory_space=pltpu.MemorySpace.VMEM),
        ],
        out_specs=pl.BlockSpec(memory_space=pltpu.MemorySpace.VMEM),
    )(x_pad, w_pack, b_pack)


# ------------------------------------------------------------- reference ----

def simple_snn_reference(x_seq, params):
    """Pure-JAX reference of the same semantics (for the correctness check)."""
    T, B, _ = x_seq.shape
    mems = [jnp.zeros((B, w.shape[1]), jnp.float32) for (w, _) in params]
    counts = jnp.zeros((B, params[-1][0].shape[1]), jnp.float32)
    for t in range(T):
        h = x_seq[t]
        new_mems = []
        for (w, b), mem in zip(params, mems):
            v = BETA * mem + (jnp.dot(h, w, precision=lax.Precision.HIGHEST) + b)
            s = (v >= V_TH).astype(jnp.float32)
            new_mems.append(v * (1.0 - s))     # reset-to-zero on spike
            h = s
        mems = new_mems
        counts = counts + h
    return counts


# ------------------------------------------------------------------ main ----

def make_params(key):
    """Deterministic nn.Linear-style init (uniform +/- 1/sqrt(fan_in))."""
    dims = [(20, 32), (32, 32), (32, 32), (32, 10)]
    params = []
    for (fi, fo) in dims:
        key, kw, kb = jax.random.split(key, 3)
        bound = 1.0 / np.sqrt(fi)
        w = jax.random.uniform(kw, (fi, fo), jnp.float32, -bound, bound)
        b = jax.random.uniform(kb, (1, fo), jnp.float32, -bound, bound)
        params.append((w, b))
    return params


if __name__ == "__main__":
    key = jax.random.PRNGKey(0)
    k_in, k_par = jax.random.split(key)

    T, B, IN = 8, 8, 20
    # Poisson-like binary input spikes, deterministic from PRNGKey(0)
    x_seq = (jax.random.uniform(k_in, (T, B, IN)) < 0.5).astype(jnp.float32)
    params = make_params(k_par)

    out = simple_snn_forward(x_seq, params)
    out = jax.block_until_ready(out)

    ref = simple_snn_reference(x_seq, params)
    np.testing.assert_allclose(np.asarray(out), np.asarray(ref),
                               rtol=1e-5, atol=1e-5)

    print("KERNEL_OK")
</pallas_src>

<mosaic_0001>
module attributes {stable_mosaic.version = 11 : i64} {
  func.func @snn_wavefront_kernel(%arg0: memref<8x8x128xf32, #tpu.memory_space<vmem>>, %arg1: memref<128x128xf32, #tpu.memory_space<vmem>>, %arg2: memref<1x128xf32, #tpu.memory_space<vmem>>, %arg3: memref<8x10xf32, #tpu.memory_space<vmem>>) attributes {dimension_semantics = [], scalar_prefetch = 0 : i64, scratch_operands = 0 : i64, tpu.core_type = #tpu.core_type<tc>} {
    %c0 = arith.constant 0 : index
    %c0_0 = arith.constant 0 : index
    %0 = vector.load %arg1[%c0, %c0_0] : memref<128x128xf32, #tpu.memory_space<vmem>>, vector<128x128xf32>
    %c0_1 = arith.constant 0 : index
    %c0_2 = arith.constant 0 : index
    %1 = vector.load %arg2[%c0_1, %c0_2] : memref<1x128xf32, #tpu.memory_space<vmem>>, vector<1x128xf32>
    %2 = tpu.iota {dimensions = array<i32: 1>} : vector<8x128xi32>
    %c32_i32 = arith.constant 32 : i32
    %3 = vector.broadcast %c32_i32 : i32 to vector<8x128xi32>
    %4 = arith.cmpi slt, %2, %3 : vector<8x128xi32>
    %c64_i32 = arith.constant 64 : i32
    %5 = vector.broadcast %c64_i32 : i32 to vector<8x128xi32>
    %6 = arith.cmpi slt, %2, %5 : vector<8x128xi32>
    %c96_i32 = arith.constant 96 : i32
    %7 = vector.broadcast %c96_i32 : i32 to vector<8x128xi32>
    %8 = arith.cmpi slt, %2, %7 : vector<8x128xi32>
    %c106_i32 = arith.constant 106 : i32
    %9 = vector.broadcast %c106_i32 : i32 to vector<8x128xi32>
    %10 = arith.cmpi slt, %2, %9 : vector<8x128xi32>
    %c3_i32 = arith.constant 3 : i32
    %c12_i32 = arith.constant 12 : i32
    %11 = vector.broadcast %c3_i32 : i32 to vector<8x128xi32>
    %12 = vector.broadcast %c12_i32 : i32 to vector<8x128xi32>
    %13 = arith.select %10, %11, %12 : vector<8x128xi1>, vector<8x128xi32>
    %c2_i32 = arith.constant 2 : i32
    %14 = vector.broadcast %c2_i32 : i32 to vector<8x128xi32>
    %15 = arith.select %8, %14, %13 : vector<8x128xi1>, vector<8x128xi32>
    %c1_i32 = arith.constant 1 : i32
    %16 = vector.broadcast %c1_i32 : i32 to vector<8x128xi32>
    %17 = arith.select %6, %16, %15 : vector<8x128xi1>, vector<8x128xi32>
    %c0_i32 = arith.constant 0 : i32
    %18 = vector.broadcast %c0_i32 : i32 to vector<8x128xi32>
    %19 = arith.select %4, %18, %17 : vector<8x128xi1>, vector<8x128xi32>
    %cst = arith.constant 0.000000e+00 : f32
    %20 = vector.broadcast %cst : f32 to vector<8x128xf32>
    %cst_3 = arith.constant 0.000000e+00 : f32
    %21 = vector.broadcast %cst_3 : f32 to vector<8x128xf32>
    %cst_4 = arith.constant 0.000000e+00 : f32
    %22 = vector.broadcast %cst_4 : f32 to vector<8x128xf32>
    %c0_5 = arith.constant 0 : index
    %c0_6 = arith.constant 0 : index
    %c0_7 = arith.constant 0 : index
    %23 = vector.load %arg0[%c0_5, %c0_6, %c0_7] : memref<8x8x128xf32, #tpu.memory_space<vmem>>, vector<1x8x128xf32>
    %24 = vector.shape_cast %23 : vector<1x8x128xf32> to vector<8x128xf32>
    %25 = arith.addf %21, %24 : vector<8x128xf32>
    %cst_8 = arith.constant dense<0.000000e+00> : vector<8x128xf32>
    %26 = tpu.matmul %25, %0, %cst_8 {dimension_numbers = #tpu.dot_dimension_numbers<[1], [0], [0], [1], [0, 0, 1, 1], [], []>, precision = #tpu.contract_precision<fp32>} : vector<8x128xf32>, vector<128x128xf32>, vector<8x128xf32> -> vector<8x128xf32>
    %27 = vector.broadcast %1 : vector<1x128xf32> to vector<8x128xf32>
    %28 = arith.addf %26, %27 : vector<8x128xf32>
    %cst_9 = arith.constant 0.899999976 : f32
    %29 = vector.broadcast %cst_9 : f32 to vector<8x128xf32>
    %30 = arith.mulf %29, %20 : vector<8x128xf32>
    %31 = arith.addf %30, %28 : vector<8x128xf32>
    %c0_i32_10 = arith.constant 0 : i32
    %32 = vector.broadcast %c0_i32_10 : i32 to vector<8x128xi32>
    %33 = arith.cmpi sle, %19, %32 : vector<8x128xi32>
    %c-8_i32 = arith.constant -8 : i32
    %34 = vector.broadcast %c-8_i32 : i32 to vector<8x128xi32>
    %35 = arith.cmpi sgt, %19, %34 : vector<8x128xi32>
    %36 = arith.andi %33, %35 : vector<8x128xi1>
    %cst_11 = arith.constant 1.000000e+00 : f32
    %37 = vector.broadcast %cst_11 : f32 to vector<8x128xf32>
    %38 = arith.cmpf oge, %31, %37 : vector<8x128xf32>
    %39 = arith.andi %38, %36 : vector<8x128xi1>
    %40 = arith.extui %39 : vector<8x128xi1> to vector<8x128xi32>
    %41 = arith.sitofp %40 : vector<8x128xi32> to vector<8x128xf32>
    %cst_12 = arith.constant 0.000000e+00 : f32
    %42 = vector.broadcast %cst_12 : f32 to vector<8x128xf32>
    %43 = arith.select %39, %42, %31 : vector<8x128xi1>, vector<8x128xf32>
    %44 = arith.select %36, %43, %20 : vector<8x128xi1>, vector<8x128xf32>
    %45 = arith.addf %22, %41 : vector<8x128xf32>
    %c1 = arith.constant 1 : index
    %c0_13 = arith.constant 0 : index
    %c0_14 = arith.constant 0 : index
    %46 = vector.load %arg0[%c1, %c0_13, %c0_14] : memref<8x8x128xf32, #tpu.memory_space<vmem>>, vector<1x8x128xf32>
    %47 = vector.shape_cast %46 : vector<1x8x128xf32> to vector<8x128xf32>
    %48 = arith.addf %41, %47 : vector<8x128xf32>
    %cst_15 = arith.constant dense<0.000000e+00> : vector<8x128xf32>
    %49 = tpu.matmul %48, %0, %cst_15 {dimension_numbers = #tpu.dot_dimension_numbers<[1], [0], [0], [1], [0, 0, 1, 1], [], []>, precision = #tpu.contract_precision<fp32>} : vector<8x128xf32>, vector<128x128xf32>, vector<8x128xf32> -> vector<8x128xf32>
    %50 = vector.broadcast %1 : vector<1x128xf32> to vector<8x128xf32>
    %51 = arith.addf %49, %50 : vector<8x128xf32>
    %cst_16 = arith.constant 0.899999976 : f32
    %52 = vector.broadcast %cst_16 : f32 to vector<8x128xf32>
    %53 = arith.mulf %52, %44 : vector<8x128xf32>
    %54 = arith.addf %53, %51 : vector<8x128xf32>
    %c1_i32_17 = arith.constant 1 : i32
    %55 = vector.broadcast %c1_i32_17 : i32 to vector<8x128xi32>
    %56 = arith.cmpi sle, %19, %55 : vector<8x128xi32>
    %c-7_i32 = arith.constant -7 : i32
    %57 = vector.broadcast %c-7_i32 : i32 to vector<8x128xi32>
    %58 = arith.cmpi sgt, %19, %57 : vector<8x128xi32>
    %59 = arith.andi %56, %58 : vector<8x128xi1>
    %cst_18 = arith.constant 1.000000e+00 : f32
    %60 = vector.broadcast %cst_18 : f32 to vector<8x128xf32>
    %61 = arith.cmpf oge, %54, %60 : vector<8x128xf32>
    %62 = arith.andi %61, %59 : vector<8x128xi1>
    %63 = arith.extui %62 : vector<8x128xi1> to vector<8x128xi32>
    %64 = arith.sitofp %63 : vector<8x128xi32> to vector<8x128xf32>
    %cst_19 = arith.constant 0.000000e+00 : f32
    %65 = vector.broadcast %cst_19 : f32 to vector<8x128xf32>
    %66 = arith.select %62, %65, %54 : vector<8x128xi1>, vector<8x128xf32>
    %67 = arith.select %59, %66, %44 : vector<8x128xi1>, vector<8x128xf32>
    %68 = arith.addf %45, %64 : vector<8x128xf32>
    %c2 = arith.constant 2 : index
    %c0_20 = arith.constant 0 : index
    %c0_21 = arith.constant 0 : index
    %69 = vector.load %arg0[%c2, %c0_20, %c0_21] : memref<8x8x128xf32, #tpu.memory_space<vmem>>, vector<1x8x128xf32>
    %70 = vector.shape_cast %69 : vector<1x8x128xf32> to vector<8x128xf32>
    %71 = arith.addf %64, %70 : vector<8x128xf32>
    %cst_22 = arith.constant dense<0.000000e+00> : vector<8x128xf32>
    %72 = tpu.matmul %71, %0, %cst_22 {dimension_numbers = #tpu.dot_dimension_numbers<[1], [0], [0], [1], [0, 0, 1, 1], [], []>, precision = #tpu.contract_precision<fp32>} : vector<8x128xf32>, vector<128x128xf32>, vector<8x128xf32> -> vector<8x128xf32>
    %73 = vector.broadcast %1 : vector<1x128xf32> to vector<8x128xf32>
    %74 = arith.addf %72, %73 : vector<8x128xf32>
    %cst_23 = arith.constant 0.899999976 : f32
    %75 = vector.broadcast %cst_23 : f32 to vector<8x128xf32>
    %76 = arith.mulf %75, %67 : vector<8x128xf32>
    %77 = arith.addf %76, %74 : vector<8x128xf32>
    %c2_i32_24 = arith.constant 2 : i32
    %78 = vector.broadcast %c2_i32_24 : i32 to vector<8x128xi32>
    %79 = arith.cmpi sle, %19, %78 : vector<8x128xi32>
    %c-6_i32 = arith.constant -6 : i32
    %80 = vector.broadcast %c-6_i32 : i32 to vector<8x128xi32>
    %81 = arith.cmpi sgt, %19, %80 : vector<8x128xi32>
    %82 = arith.andi %79, %81 : vector<8x128xi1>
    %cst_25 = arith.constant 1.000000e+00 : f32
    %83 = vector.broadcast %cst_25 : f32 to vector<8x128xf32>
    %84 = arith.cmpf oge, %77, %83 : vector<8x128xf32>
    %85 = arith.andi %84, %82 : vector<8x128xi1>
    %86 = arith.extui %85 : vector<8x128xi1> to vector<8x128xi32>
    %87 = arith.sitofp %86 : vector<8x128xi32> to vector<8x128xf32>
    %cst_26 = arith.constant 0.000000e+00 : f32
    %88 = vector.broadcast %cst_26 : f32 to vector<8x128xf32>
    %89 = arith.select %85, %88, %77 : vector<8x128xi1>, vector<8x128xf32>
    %90 = arith.select %82, %89, %67 : vector<8x128xi1>, vector<8x128xf32>
    %91 = arith.addf %68, %87 : vector<8x128xf32>
    %c3 = arith.constant 3 : index
    %c0_27 = arith.constant 0 : index
    %c0_28 = arith.constant 0 : index
    %92 = vector.load %arg0[%c3, %c0_27, %c0_28] : memref<8x8x128xf32, #tpu.memory_space<vmem>>, vector<1x8x128xf32>
    %93 = vector.shape_cast %92 : vector<1x8x128xf32> to vector<8x128xf32>
    %94 = arith.addf %87, %93 : vector<8x128xf32>
    %cst_29 = arith.constant dense<0.000000e+00> : vector<8x128xf32>
    %95 = tpu.matmul %94, %0, %cst_29 {dimension_numbers = #tpu.dot_dimension_numbers<[1], [0], [0], [1], [0, 0, 1, 1], [], []>, precision = #tpu.contract_precision<fp32>} : vector<8x128xf32>, vector<128x128xf32>, vector<8x128xf32> -> vector<8x128xf32>
    %96 = vector.broadcast %1 : vector<1x128xf32> to vector<8x128xf32>
    %97 = arith.addf %95, %96 : vector<8x128xf32>
    %cst_30 = arith.constant 0.899999976 : f32
    %98 = vector.broadcast %cst_30 : f32 to vector<8x128xf32>
    %99 = arith.mulf %98, %90 : vector<8x128xf32>
    %100 = arith.addf %99, %97 : vector<8x128xf32>
    %c3_i32_31 = arith.constant 3 : i32
    %101 = vector.broadcast %c3_i32_31 : i32 to vector<8x128xi32>
    %102 = arith.cmpi sle, %19, %101 : vector<8x128xi32>
    %c-5_i32 = arith.constant -5 : i32
    %103 = vector.broadcast %c-5_i32 : i32 to vector<8x128xi32>
    %104 = arith.cmpi sgt, %19, %103 : vector<8x128xi32>
    %105 = arith.andi %102, %104 : vector<8x128xi1>
    %cst_32 = arith.constant 1.000000e+00 : f32
    %106 = vector.broadcast %cst_32 : f32 to vector<8x128xf32>
    %107 = arith.cmpf oge, %100, %106 : vector<8x128xf32>
    %108 = arith.andi %107, %105 : vector<8x128xi1>
    %109 = arith.extui %108 : vector<8x128xi1> to vector<8x128xi32>
    %110 = arith.sitofp %109 : vector<8x128xi32> to vector<8x128xf32>
    %cst_33 = arith.constant 0.000000e+00 : f32
    %111 = vector.broadcast %cst_33 : f32 to vector<8x128xf32>
    %112 = arith.select %108, %111, %100 : vector<8x128xi1>, vector<8x128xf32>
    %113 = arith.select %105, %112, %90 : vector<8x128xi1>, vector<8x128xf32>
    %114 = arith.addf %91, %110 : vector<8x128xf32>
    %c4 = arith.constant 4 : index
    %c0_34 = arith.constant 0 : index
    %c0_35 = arith.constant 0 : index
    %115 = vector.load %arg0[%c4, %c0_34, %c0_35] : memref<8x8x128xf32, #tpu.memory_space<vmem>>, vector<1x8x128xf32>
    %116 = vector.shape_cast %115 : vector<1x8x128xf32> to vector<8x128xf32>
    %117 = arith.addf %110, %116 : vector<8x128xf32>
    %cst_36 = arith.constant dense<0.000000e+00> : vector<8x128xf32>
    %118 = tpu.matmul %117, %0, %cst_36 {dimension_numbers = #tpu.dot_dimension_numbers<[1], [0], [0], [1], [0, 0, 1, 1], [], []>, precision = #tpu.contract_precision<fp32>} : vector<8x128xf32>, vector<128x128xf32>, vector<8x128xf32> -> vector<8x128xf32>
    %119 = vector.broadcast %1 : vector<1x128xf32> to vector<8x128xf32>
    %120 = arith.addf %118, %119 : vector<8x128xf32>
    %cst_37 = arith.constant 0.899999976 : f32
    %121 = vector.broadcast %cst_37 : f32 to vector<8x128xf32>
    %122 = arith.mulf %121, %113 : vector<8x128xf32>
    %123 = arith.addf %122, %120 : vector<8x128xf32>
    %c4_i32 = arith.constant 4 : i32
    %124 = vector.broadcast %c4_i32 : i32 to vector<8x128xi32>
    %125 = arith.cmpi sle, %19, %124 : vector<8x128xi32>
    %c-4_i32 = arith.constant -4 : i32
    %126 = vector.broadcast %c-4_i32 : i32 to vector<8x128xi32>
    %127 = arith.cmpi sgt, %19, %126 : vector<8x128xi32>
    %128 = arith.andi %125, %127 : vector<8x128xi1>
    %cst_38 = arith.constant 1.000000e+00 : f32
    %129 = vector.broadcast %cst_38 : f32 to vector<8x128xf32>
    %130 = arith.cmpf oge, %123, %129 : vector<8x128xf32>
    %131 = arith.andi %130, %128 : vector<8x128xi1>
    %132 = arith.extui %131 : vector<8x128xi1> to vector<8x128xi32>
    %133 = arith.sitofp %132 : vector<8x128xi32> to vector<8x128xf32>
    %cst_39 = arith.constant 0.000000e+00 : f32
    %134 = vector.broadcast %cst_39 : f32 to vector<8x128xf32>
    %135 = arith.select %131, %134, %123 : vector<8x128xi1>, vector<8x128xf32>
    %136 = arith.select %128, %135, %113 : vector<8x128xi1>, vector<8x128xf32>
    %137 = arith.addf %114, %133 : vector<8x128xf32>
    %c5 = arith.constant 5 : index
    %c0_40 = arith.constant 0 : index
    %c0_41 = arith.constant 0 : index
    %138 = vector.load %arg0[%c5, %c0_40, %c0_41] : memref<8x8x128xf32, #tpu.memory_space<vmem>>, vector<1x8x128xf32>
    %139 = vector.shape_cast %138 : vector<1x8x128xf32> to vector<8x128xf32>
    %140 = arith.addf %133, %139 : vector<8x128xf32>
    %cst_42 = arith.constant dense<0.000000e+00> : vector<8x128xf32>
    %141 = tpu.matmul %140, %0, %cst_42 {dimension_numbers = #tpu.dot_dimension_numbers<[1], [0], [0], [1], [0, 0, 1, 1], [], []>, precision = #tpu.contract_precision<fp32>} : vector<8x128xf32>, vector<128x128xf32>, vector<8x128xf32> -> vector<8x128xf32>
    %142 = vector.broadcast %1 : vector<1x128xf32> to vector<8x128xf32>
    %143 = arith.addf %141, %142 : vector<8x128xf32>
    %cst_43 = arith.constant 0.899999976 : f32
    %144 = vector.broadcast %cst_43 : f32 to vector<8x128xf32>
    %145 = arith.mulf %144, %136 : vector<8x128xf32>
    %146 = arith.addf %145, %143 : vector<8x128xf32>
    %c5_i32 = arith.constant 5 : i32
    %147 = vector.broadcast %c5_i32 : i32 to vector<8x128xi32>
    %148 = arith.cmpi sle, %19, %147 : vector<8x128xi32>
    %c-3_i32 = arith.constant -3 : i32
    %149 = vector.broadcast %c-3_i32 : i32 to vector<8x128xi32>
    %150 = arith.cmpi sgt, %19, %149 : vector<8x128xi32>
    %151 = arith.andi %148, %150 : vector<8x128xi1>
    %cst_44 = arith.constant 1.000000e+00 : f32
    %152 = vector.broadcast %cst_44 : f32 to vector<8x128xf32>
    %153 = arith.cmpf oge, %146, %152 : vector<8x128xf32>
    %154 = arith.andi %153, %151 : vector<8x128xi1>
    %155 = arith.extui %154 : vector<8x128xi1> to vector<8x128xi32>
    %156 = arith.sitofp %155 : vector<8x128xi32> to vector<8x128xf32>
    %cst_45 = arith.constant 0.000000e+00 : f32
    %157 = vector.broadcast %cst_45 : f32 to vector<8x128xf32>
    %158 = arith.select %154, %157, %146 : vector<8x128xi1>, vector<8x128xf32>
    %159 = arith.select %151, %158, %136 : vector<8x128xi1>, vector<8x128xf32>
    %160 = arith.addf %137, %156 : vector<8x128xf32>
    %c6 = arith.constant 6 : index
    %c0_46 = arith.constant 0 : index
    %c0_47 = arith.constant 0 : index
    %161 = vector.load %arg0[%c6, %c0_46, %c0_47] : memref<8x8x128xf32, #tpu.memory_space<vmem>>, vector<1x8x128xf32>
    %162 = vector.shape_cast %161 : vector<1x8x128xf32> to vector<8x128xf32>
    %163 = arith.addf %156, %162 : vector<8x128xf32>
    %cst_48 = arith.constant dense<0.000000e+00> : vector<8x128xf32>
    %164 = tpu.matmul %163, %0, %cst_48 {dimension_numbers = #tpu.dot_dimension_numbers<[1], [0], [0], [1], [0, 0, 1, 1], [], []>, precision = #tpu.contract_precision<fp32>} : vector<8x128xf32>, vector<128x128xf32>, vector<8x128xf32> -> vector<8x128xf32>
    %165 = vector.broadcast %1 : vector<1x128xf32> to vector<8x128xf32>
    %166 = arith.addf %164, %165 : vector<8x128xf32>
    %cst_49 = arith.constant 0.899999976 : f32
    %167 = vector.broadcast %cst_49 : f32 to vector<8x128xf32>
    %168 = arith.mulf %167, %159 : vector<8x128xf32>
    %169 = arith.addf %168, %166 : vector<8x128xf32>
    %c6_i32 = arith.constant 6 : i32
    %170 = vector.broadcast %c6_i32 : i32 to vector<8x128xi32>
    %171 = arith.cmpi sle, %19, %170 : vector<8x128xi32>
    %c-2_i32 = arith.constant -2 : i32
    %172 = vector.broadcast %c-2_i32 : i32 to vector<8x128xi32>
    %173 = arith.cmpi sgt, %19, %172 : vector<8x128xi32>
    %174 = arith.andi %171, %173 : vector<8x128xi1>
    %cst_50 = arith.constant 1.000000e+00 : f32
    %175 = vector.broadcast %cst_50 : f32 to vector<8x128xf32>
    %176 = arith.cmpf oge, %169, %175 : vector<8x128xf32>
    %177 = arith.andi %176, %174 : vector<8x128xi1>
    %178 = arith.extui %177 : vector<8x128xi1> to vector<8x128xi32>
    %179 = arith.sitofp %178 : vector<8x128xi32> to vector<8x128xf32>
    %cst_51 = arith.constant 0.000000e+00 : f32
    %180 = vector.broadcast %cst_51 : f32 to vector<8x128xf32>
    %181 = arith.select %177, %180, %169 : vector<8x128xi1>, vector<8x128xf32>
    %182 = arith.select %174, %181, %159 : vector<8x128xi1>, vector<8x128xf32>
    %183 = arith.addf %160, %179 : vector<8x128xf32>
    %c7 = arith.constant 7 : index
    %c0_52 = arith.constant 0 : index
    %c0_53 = arith.constant 0 : index
    %184 = vector.load %arg0[%c7, %c0_52, %c0_53] : memref<8x8x128xf32, #tpu.memory_space<vmem>>, vector<1x8x128xf32>
    %185 = vector.shape_cast %184 : vector<1x8x128xf32> to vector<8x128xf32>
    %186 = arith.addf %179, %185 : vector<8x128xf32>
    %cst_54 = arith.constant dense<0.000000e+00> : vector<8x128xf32>
    %187 = tpu.matmul %186, %0, %cst_54 {dimension_numbers = #tpu.dot_dimension_numbers<[1], [0], [0], [1], [0, 0, 1, 1], [], []>, precision = #tpu.contract_precision<fp32>} : vector<8x128xf32>, vector<128x128xf32>, vector<8x128xf32> -> vector<8x128xf32>
    %188 = vector.broadcast %1 : vector<1x128xf32> to vector<8x128xf32>
    %189 = arith.addf %187, %188 : vector<8x128xf32>
    %cst_55 = arith.constant 0.899999976 : f32
    %190 = vector.broadcast %cst_55 : f32 to vector<8x128xf32>
    %191 = arith.mulf %190, %182 : vector<8x128xf32>
    %192 = arith.addf %191, %189 : vector<8x128xf32>
    %c7_i32 = arith.constant 7 : i32
    %193 = vector.broadcast %c7_i32 : i32 to vector<8x128xi32>
    %194 = arith.cmpi sle, %19, %193 : vector<8x128xi32>
    %c-1_i32 = arith.constant -1 : i32
    %195 = vector.broadcast %c-1_i32 : i32 to vector<8x128xi32>
    %196 = arith.cmpi sgt, %19, %195 : vector<8x128xi32>
    %197 = arith.andi %194, %196 : vector<8x128xi1>
    %cst_56 = arith.constant 1.000000e+00 : f32
    %198 = vector.broadcast %cst_56 : f32 to vector<8x128xf32>
    %199 = arith.cmpf oge, %192, %198 : vector<8x128xf32>
    %200 = arith.andi %199, %197 : vector<8x128xi1>
    %201 = arith.extui %200 : vector<8x128xi1> to vector<8x128xi32>
    %202 = arith.sitofp %201 : vector<8x128xi32> to vector<8x128xf32>
    %cst_57 = arith.constant 0.000000e+00 : f32
    %203 = vector.broadcast %cst_57 : f32 to vector<8x128xf32>
    %204 = arith.select %200, %203, %192 : vector<8x128xi1>, vector<8x128xf32>
    %205 = arith.select %197, %204, %182 : vector<8x128xi1>, vector<8x128xf32>
    %206 = arith.addf %183, %202 : vector<8x128xf32>
    %cst_58 = arith.constant dense<0.000000e+00> : vector<8x128xf32>
    %207 = tpu.matmul %202, %0, %cst_58 {dimension_numbers = #tpu.dot_dimension_numbers<[1], [0], [0], [1], [0, 0, 1, 1], [], []>, precision = #tpu.contract_precision<fp32>} : vector<8x128xf32>, vector<128x128xf32>, vector<8x128xf32> -> vector<8x128xf32>
    %208 = vector.broadcast %1 : vector<1x128xf32> to vector<8x128xf32>
    %209 = arith.addf %207, %208 : vector<8x128xf32>
    %cst_59 = arith.constant 0.899999976 : f32
    %210 = vector.broadcast %cst_59 : f32 to vector<8x128xf32>
    %211 = arith.mulf %210, %205 : vector<8x128xf32>
    %212 = arith.addf %211, %209 : vector<8x128xf32>
    %c8_i32 = arith.constant 8 : i32
    %213 = vector.broadcast %c8_i32 : i32 to vector<8x128xi32>
    %214 = arith.cmpi sle, %19, %213 : vector<8x128xi32>
    %c0_i32_60 = arith.constant 0 : i32
    %215 = vector.broadcast %c0_i32_60 : i32 to vector<8x128xi32>
    %216 = arith.cmpi sgt, %19, %215 : vector<8x128xi32>
    %217 = arith.andi %214, %216 : vector<8x128xi1>
    %cst_61 = arith.constant 1.000000e+00 : f32
    %218 = vector.broadcast %cst_61 : f32 to vector<8x128xf32>
    %219 = arith.cmpf oge, %212, %218 : vector<8x128xf32>
    %220 = arith.andi %219, %217 : vector<8x128xi1>
    %221 = arith.extui %220 : vector<8x128xi1> to vector<8x128xi32>
    %222 = arith.sitofp %221 : vector<8x128xi32> to vector<8x128xf32>
    %cst_62 = arith.constant 0.000000e+00 : f32
    %223 = vector.broadcast %cst_62 : f32 to vector<8x128xf32>
    %224 = arith.select %220, %223, %212 : vector<8x128xi1>, vector<8x128xf32>
    %225 = arith.select %217, %224, %205 : vector<8x128xi1>, vector<8x128xf32>
    %226 = arith.addf %206, %222 : vector<8x128xf32>
    %cst_63 = arith.constant dense<0.000000e+00> : vector<8x128xf32>
    %227 = tpu.matmul %222, %0, %cst_63 {dimension_numbers = #tpu.dot_dimension_numbers<[1], [0], [0], [1], [0, 0, 1, 1], [], []>, precision = #tpu.contract_precision<fp32>} : vector<8x128xf32>, vector<128x128xf32>, vector<8x128xf32> -> vector<8x128xf32>
    %228 = vector.broadcast %1 : vector<1x128xf32> to vector<8x128xf32>
    %229 = arith.addf %227, %228 : vector<8x128xf32>
    %cst_64 = arith.constant 0.899999976 : f32
    %230 = vector.broadcast %cst_64 : f32 to vector<8x128xf32>
    %231 = arith.mulf %230, %225 : vector<8x128xf32>
    %232 = arith.addf %231, %229 : vector<8x128xf32>
    %c9_i32 = arith.constant 9 : i32
    %233 = vector.broadcast %c9_i32 : i32 to vector<8x128xi32>
    %234 = arith.cmpi sle, %19, %233 : vector<8x128xi32>
    %c1_i32_65 = arith.constant 1 : i32
    %235 = vector.broadcast %c1_i32_65 : i32 to vector<8x128xi32>
    %236 = arith.cmpi sgt, %19, %235 : vector<8x128xi32>
    %237 = arith.andi %234, %236 : vector<8x128xi1>
    %cst_66 = arith.constant 1.000000e+00 : f32
    %238 = vector.broadcast %cst_66 : f32 to vector<8x128xf32>
    %239 = arith.cmpf oge, %232, %238 : vector<8x128xf32>
    %240 = arith.andi %239, %237 : vector<8x128xi1>
    %241 = arith.extui %240 : vector<8x128xi1> to vector<8x128xi32>
    %242 = arith.sitofp %241 : vector<8x128xi32> to vector<8x128xf32>
    %cst_67 = arith.constant 0.000000e+00 : f32
    %243 = vector.broadcast %cst_67 : f32 to vector<8x128xf32>
    %244 = arith.select %240, %243, %232 : vector<8x128xi1>, vector<8x128xf32>
    %245 = arith.select %237, %244, %225 : vector<8x128xi1>, vector<8x128xf32>
    %246 = arith.addf %226, %242 : vector<8x128xf32>
    %cst_68 = arith.constant dense<0.000000e+00> : vector<8x128xf32>
    %247 = tpu.matmul %242, %0, %cst_68 {dimension_numbers = #tpu.dot_dimension_numbers<[1], [0], [0], [1], [0, 0, 1, 1], [], []>, precision = #tpu.contract_precision<fp32>} : vector<8x128xf32>, vector<128x128xf32>, vector<8x128xf32> -> vector<8x128xf32>
    %248 = vector.broadcast %1 : vector<1x128xf32> to vector<8x128xf32>
    %249 = arith.addf %247, %248 : vector<8x128xf32>
    %cst_69 = arith.constant 0.899999976 : f32
    %250 = vector.broadcast %cst_69 : f32 to vector<8x128xf32>
    %251 = arith.mulf %250, %245 : vector<8x128xf32>
    %252 = arith.addf %251, %249 : vector<8x128xf32>
    %c10_i32 = arith.constant 10 : i32
    %253 = vector.broadcast %c10_i32 : i32 to vector<8x128xi32>
    %254 = arith.cmpi sle, %19, %253 : vector<8x128xi32>
    %c2_i32_70 = arith.constant 2 : i32
    %255 = vector.broadcast %c2_i32_70 : i32 to vector<8x128xi32>
    %256 = arith.cmpi sgt, %19, %255 : vector<8x128xi32>
    %257 = arith.andi %254, %256 : vector<8x128xi1>
    %cst_71 = arith.constant 1.000000e+00 : f32
    %258 = vector.broadcast %cst_71 : f32 to vector<8x128xf32>
    %259 = arith.cmpf oge, %252, %258 : vector<8x128xf32>
    %260 = arith.andi %259, %257 : vector<8x128xi1>
    %261 = arith.extui %260 : vector<8x128xi1> to vector<8x128xi32>
    %262 = arith.sitofp %261 : vector<8x128xi32> to vector<8x128xf32>
    %263 = arith.addf %246, %262 : vector<8x128xf32>
    %264 = vector.extract_strided_slice %263 {offsets = [0, 96], sizes = [8, 10], strides = [1, 1]} : vector<8x128xf32> to vector<8x10xf32>
    %c0_72 = arith.constant 0 : index
    %c0_73 = arith.constant 0 : index
    %265 = vector.load %arg3[%c0_72, %c0_73] : memref<8x10xf32, #tpu.memory_space<vmem>>, vector<8x10xf32>
    tpu.vector_store %arg3[%c0_72, %c0_73], %264 {strides = array<i32>} : memref<8x10xf32, #tpu.memory_space<vmem>>, vector<8x10xf32>,
    return
  }
}

</mosaic_0001>

<llo_original>
// kernel: simple_snn_forward.1
$region0: #{simple_snn_forward.1}
  #allocation0 [shape = 'u32[]', space=smem, size = 0x4, offset = 0x4, fixed_abs, tag = 'smem constant byte address 0x4 - core index']
  #allocation1 [shape = 'u32[144,128]{1,0:T(1,128)}', space=vmem, size = 0x12000, scoped, tag = 'internal scratch']
  %s0 = inlined_call_operand.vmem [shape: f32[8,8,128], index: 0, kind: input, shape index: {}]
  %s1 = inlined_call_operand.vmem [shape: f32[128,128], index: 1, kind: input, shape index: {}]
  %s2 = inlined_call_operand.vmem [shape: f32[1,128], index: 2, kind: input, shape index: {}]
  %s3 = inlined_call_operand.hbm [shape: f32[8,10], index: 3, kind: output, shape index: {}]
  %s4 = sld [smem:[#allocation0]]
  $region22: #{simple_snn_forward.1} parent=0
    _
  %s6 = ssub.s32 1, %s4
  %s7 = scalar_select 0, %s6, %s4
  $region1: #{simple_snn_forward.1} parent=0
    #allocation2 [shape = 'u8[4096]{0}', space=vmem, size = 0x1000, scoped, tag = 'output window, operand 0, single buffered']
    #allocation3 [shape = 's32[1]{0}', space=sflag, size = 0x4, scoped, tag = 'scoped memory for simple_snn_forward.1']
    %8 = vsyncpa [#allocation3], 0
    // Predicated region
    $region2: #{simple_snn_forward.1} parent=1 // pred_check
      _
    $region3: #{simple_snn_forward.1} parent=1 // pred_check_branch
      %10 = sbr.rel (0) target = $region5
    $region4: #{simple_snn_forward.1} parent=1 // pred_region
      _
    $region5: #{simple_snn_forward.1} parent=1 // pred_fallthru
      _
    // Predicated region
    $region6: #{simple_snn_forward.1} parent=1 // pred_check
      _
    $region7: #{simple_snn_forward.1} parent=1 // pred_check_branch
      %12 = sbr.rel (0) target = $region9
    $region8: #{simple_snn_forward.1} parent=1 // pred_region
      _
    $region9: #{simple_snn_forward.1} parent=1 // pred_fallthru
      _
    // Predicated region
    $region10: #{simple_snn_forward.1} parent=1 // pred_check
      _
    $region11: #{simple_snn_forward.1} parent=1 // pred_check_branch
      %14 = sbr.rel (0) target = $region13
    $region12: #{simple_snn_forward.1} parent=1 // pred_region
      _
    $region13: #{simple_snn_forward.1} parent=1 // pred_fallthru
      _
    %v15 = vld [vmem:[%s1] sm:$0xff]
    %v16 = vld [vmem:[%s1 + $0x8] sm:$0xff]
    %v17 = vld [vmem:[%s1 + $0x10] sm:$0xff]
    %v18 = vld [vmem:[%s1 + $0x18] sm:$0xff]
    %v19 = vld [vmem:[%s1 + $0x20] sm:$0xff]
    %v20 = vld [vmem:[%s1 + $0x28] sm:$0xff]
    %v21 = vld [vmem:[%s1 + $0x30] sm:$0xff]
    %v22 = vld [vmem:[%s1 + $0x38] sm:$0xff]
    %v23 = vld [vmem:[%s1 + $0x40] sm:$0xff]
    %v24 = vld [vmem:[%s1 + $0x48] sm:$0xff]
    %v25 = vld [vmem:[%s1 + $0x50] sm:$0xff]
    %v26 = vld [vmem:[%s1 + $0x58] sm:$0xff]
    %v27 = vld [vmem:[%s1 + $0x60] sm:$0xff]
    %v28 = vld [vmem:[%s1 + $0x68] sm:$0xff]
    %v29 = vld [vmem:[%s1 + $0x70] sm:$0xff]
    %v30 = vld [vmem:[%s1 + $0x78] sm:$0xff]
    %v31 = vld [vmem:[%s2] sm:$0x1]
    %v32 = vlaneseq
    %v33 = vand.u32 %v32, 127
    %vm34 = vcmp.lt.s32.totalorder %v33, 32
    %vm35 = vcmp.lt.s32.totalorder %v33, 64
    %vm36 = vcmp.lt.s32.totalorder %v33, 96
    %vm37 = vcmp.lt.s32.totalorder %v33, 106
    %v38 = vsel %vm37, 3, 12
    %v39 = vsel %vm36, 2, %v38
    %v40 = vsel %vm35, 1, %v39
    %v41 = vsel %vm34, 0, %v40
    %v42 = vld [vmem:[%s0] sm:$0xff]
    %v43 = vadd.f32 %v42, 0.0
    %v45 = vlaneseq
    %v46 = vshrl.u32 %v45, 7
    %v47 = vsub.s32 0, %v46
    %v48 = vrot.slane %v31, %v47
    %50 = vmatprep.subr.mxu0 0.0
    %v51 = vand.u32 %v15, 4294901760
    %52 = vmatpush1.msra.mxu0 %v51
    %53 = vmatprep.subr.mxu0 0.0
    %v54 = vand.u32 %v16, 4294901760
    %55 = vmatpush1.msra.mxu0 %v54
    %56 = vmatprep.subr.mxu0 0.0
    %v57 = vand.u32 %v17, 4294901760
    %58 = vmatpush1.msra.mxu0 %v57
    %59 = vmatprep.subr.mxu0 0.0
    %v60 = vand.u32 %v18, 4294901760
    %61 = vmatpush1.msra.mxu0 %v60
    %62 = vmatprep.subr.mxu0 0.0
    %v63 = vand.u32 %v19, 4294901760
    %64 = vmatpush1.msra.mxu0 %v63
    %65 = vmatprep.subr.mxu0 0.0
    %v66 = vand.u32 %v20, 4294901760
    %67 = vmatpush1.msra.mxu0 %v66
    %68 = vmatprep.subr.mxu0 0.0
    %v69 = vand.u32 %v21, 4294901760
    %70 = vmatpush1.msra.mxu0 %v69
    %71 = vmatprep.subr.mxu0 0.0
    %v72 = vand.u32 %v22, 4294901760
    %73 = vmatpush1.msra.mxu0 %v72
    %74 = vmatprep.subr.mxu0 0.0
    %v75 = vand.u32 %v23, 4294901760
    %76 = vmatpush1.msra.mxu0 %v75
    %77 = vmatprep.subr.mxu0 0.0
    %v78 = vand.u32 %v24, 4294901760
    %79 = vmatpush1.msra.mxu0 %v78
    %80 = vmatprep.subr.mxu0 0.0
    %v81 = vand.u32 %v25, 4294901760
    %82 = vmatpush1.msra.mxu0 %v81
    %83 = vmatprep.subr.mxu0 0.0
    %v84 = vand.u32 %v26, 4294901760
    %85 = vmatpush1.msra.mxu0 %v84
    %86 = vmatprep.subr.mxu0 0.0
    %v87 = vand.u32 %v27, 4294901760
    %88 = vmatpush1.msra.mxu0 %v87
    %89 = vmatprep.subr.mxu0 0.0
    %v90 = vand.u32 %v28, 4294901760
    %91 = vmatpush1.msra.mxu0 %v90
    %92 = vmatprep.subr.mxu0 0.0
    %v93 = vand.u32 %v29, 4294901760
    %94 = vmatpush1.msra.mxu0 %v93
    %95 = vmatprep.subr.mxu0 0.0
    %v96 = vand.u32 %v30, 4294901760
    %97 = vmatpush1.msra.mxu0 %v96
    %98 = vmatprep.subr.mxu0 0.0
    %99 = vmatpush1.msra.mxu0 0.0
    %100 = vmatprep.subr.mxu0 0.0
    %101 = vmatpush1.msra.mxu0 0.0
    %102 = vmatprep.subr.mxu0 0.0
    %103 = vmatpush1.msra.mxu0 0.0
    %104 = vmatprep.subr.mxu0 0.0
    %105 = vmatpush1.msra.mxu0 0.0
    %106 = vmatprep.subr.mxu0 0.0
    %107 = vmatpush1.msra.mxu0 0.0
    %108 = vmatprep.subr.mxu0 0.0
    %109 = vmatpush1.msra.mxu0 0.0
    %110 = vmatprep.subr.mxu0 0.0
    %111 = vmatpush1.msra.mxu0 0.0
    %112 = vmatprep.subr.mxu0 0.0
    %113 = vmatpush1.msra.mxu0 0.0
    %114 = vmatprep.subr.mxu0 0.0
    %115 = vmatpush1.msra.mxu0 0.0
    %116 = vmatprep.subr.mxu0 0.0
    %117 = vmatpush1.msra.mxu0 0.0
    %118 = vmatprep.subr.mxu0 0.0
    %119 = vmatpush1.msra.mxu0 0.0
    %120 = vmatprep.subr.mxu0 0.0
    %121 = vmatpush1.msra.mxu0 0.0
    %122 = vmatprep.subr.mxu0 0.0
    %123 = vmatpush1.msra.mxu0 0.0
    %124 = vmatprep.subr.mxu0 0.0
    %125 = vmatpush1.msra.mxu0 0.0
    %126 = vmatprep.subr.mxu0 0.0
    %127 = vmatpush1.msra.mxu0 0.0
    %128 = vmatprep.subr.mxu0 0.0
    %129 = vmatpush1.msra.mxu0 0.0
    %130 = vmatprep.mubr.f32.mxu0 0.0
    %v131 = vand.u32 %v43, 4294901760
    %v132 = vsub.f32 %v43, %v131
    %v133 = vand.u32 %v132, 4294901760
    %v134 = vsub.f32 %v132, %v133
    %v135 = vand.u32 %v134, 4294901760
    %136 = vmatmul.mubr.f32.gmra.mrb[0].mxu0 %v135
    %v137 = vpop.f32.mrb[0].mxu0
    %v138 = vadd.f32 %v48, %v137
    %v139 = vpop.f32.mrb[0].mxu0
    %140 = vdwg.mxu0
    %141 = vmatprep.subr.mxu0 0.0
    %v142 = vand.u32 %v15, 4294901760
    %v143 = vsub.f32 %v15, %v142
    %v144 = vand.u32 %v143, 4294901760
    %v145 = vsub.f32 %v143, %v144
    %v146 = vand.u32 %v145, 4294901760
    %147 = vmatpush1.msra.mxu0 %v146
    %148 = vmatprep.subr.mxu0 0.0
    %v149 = vand.u32 %v16, 4294901760
    %v150 = vsub.f32 %v16, %v149
    %v151 = vand.u32 %v150, 4294901760
    %v152 = vsub.f32 %v150, %v151
    %v153 = vand.u32 %v152, 4294901760
    %154 = vmatpush1.msra.mxu0 %v153
    %155 = vmatprep.subr.mxu0 0.0
    %v156 = vand.u32 %v17, 4294901760
    %v157 = vsub.f32 %v17, %v156
    %v158 = vand.u32 %v157, 4294901760
    %v159 = vsub.f32 %v157, %v158
    %v160 = vand.u32 %v159, 4294901760
    %161 = vmatpush1.msra.mxu0 %v160
    %162 = vmatprep.subr.mxu0 0.0
    %v163 = vand.u32 %v18, 4294901760
    %v164 = vsub.f32 %v18, %v163
    %v165 = vand.u32 %v164, 4294901760
    %v166 = vsub.f32 %v164, %v165
    %v167 = vand.u32 %v166, 4294901760
    %168 = vmatpush1.msra.mxu0 %v167
    %169 = vmatprep.subr.mxu0 0.0
    %v170 = vand.u32 %v19, 4294901760
    %v171 = vsub.f32 %v19, %v170
    %v172 = vand.u32 %v171, 4294901760
    %v173 = vsub.f32 %v171, %v172
    %v174 = vand.u32 %v173, 4294901760
    %175 = vmatpush1.msra.mxu0 %v174
    %176 = vmatprep.subr.mxu0 0.0
    %v177 = vand.u32 %v20, 4294901760
    %v178 = vsub.f32 %v20, %v177
    %v179 = vand.u32 %v178, 4294901760
    %v180 = vsub.f32 %v178, %v179
    %v181 = vand.u32 %v180, 4294901760
    %182 = vmatpush1.msra.mxu0 %v181
    %183 = vmatprep.subr.mxu0 0.0
    %v184 = vand.u32 %v21, 4294901760
    %v185 = vsub.f32 %v21, %v184
    %v186 = vand.u32 %v185, 4294901760
    %v187 = vsub.f32 %v185, %v186
    %v188 = vand.u32 %v187, 4294901760
    %189 = vmatpush1.msra.mxu0 %v188
    %190 = vmatprep.subr.mxu0 0.0
    %v191 = vand.u32 %v22, 4294901760
    %v192 = vsub.f32 %v22, %v191
    %v193 = vand.u32 %v192, 4294901760
    %v194 = vsub.f32 %v192, %v193
    %v195 = vand.u32 %v194, 4294901760
    %196 = vmatpush1.msra.mxu0 %v195
    %197 = vmatprep.subr.mxu0 0.0
    %v198 = vand.u32 %v23, 4294901760
    %v199 = vsub.f32 %v23, %v198
    %v200 = vand.u32 %v199, 4294901760
    %v201 = vsub.f32 %v199, %v200
    %v202 = vand.u32 %v201, 4294901760
    %203 = vmatpush1.msra.mxu0 %v202
    %204 = vmatprep.subr.mxu0 0.0
    %v205 = vand.u32 %v24, 4294901760
    %v206 = vsub.f32 %v24, %v205
    %v207 = vand.u32 %v206, 4294901760
    %v208 = vsub.f32 %v206, %v207
    %v209 = vand.u32 %v208, 4294901760
    %210 = vmatpush1.msra.mxu0 %v209
    %211 = vmatprep.subr.mxu0 0.0
    %v212 = vand.u32 %v25, 4294901760
    %v213 = vsub.f32 %v25, %v212
    %v214 = vand.u32 %v213, 4294901760
    %v215 = vsub.f32 %v213, %v214
    %v216 = vand.u32 %v215, 4294901760
    %217 = vmatpush1.msra.mxu0 %v216
    %218 = vmatprep.subr.mxu0 0.0
    %v219 = vand.u32 %v26, 4294901760
    %v220 = vsub.f32 %v26, %v219
    %v221 = vand.u32 %v220, 4294901760
    %v222 = vsub.f32 %v220, %v221
    %v223 = vand.u32 %v222, 4294901760
    %224 = vmatpush1.msra.mxu0 %v223
    %225 = vmatprep.subr.mxu0 0.0
    %v226 = vand.u32 %v27, 4294901760
    %v227 = vsub.f32 %v27, %v226
    %v228 = vand.u32 %v227, 4294901760
    %v229 = vsub.f32 %v227, %v228
    %v230 = vand.u32 %v229, 4294901760
    %231 = vmatpush1.msra.mxu0 %v230
    %232 = vmatprep.subr.mxu0 0.0
    %v233 = vand.u32 %v28, 4294901760
    %v234 = vsub.f32 %v28, %v233
    %v235 = vand.u32 %v234, 4294901760
    %v236 = vsub.f32 %v234, %v235
    %v237 = vand.u32 %v236, 4294901760
    %238 = vmatpush1.msra.mxu0 %v237
    %239 = vmatprep.subr.mxu0 0.0
    %v240 = vand.u32 %v29, 4294901760
    %v241 = vsub.f32 %v29, %v240
    %v242 = vand.u32 %v241, 4294901760
    %v243 = vsub.f32 %v241, %v242
    %v244 = vand.u32 %v243, 4294901760
    %245 = vmatpush1.msra.mxu0 %v244
    %246 = vmatprep.subr.mxu0 0.0
    %v247 = vand.u32 %v30, 4294901760
    %v248 = vsub.f32 %v30, %v247
    %v249 = vand.u32 %v248, 4294901760
    %v250 = vsub.f32 %v248, %v249
    %v251 = vand.u32 %v250, 4294901760
    %252 = vmatpush1.msra.mxu0 %v251
    %253 = vmatprep.subr.mxu0 0.0
    %254 = vmatpush1.msra.mxu0 0.0
    %255 = vmatprep.subr.mxu0 0.0
    %256 = vmatpush1.msra.mxu0 0.0
    %257 = vmatprep.subr.mxu0 0.0
    %258 = vmatpush1.msra.mxu0 0.0
    %259 = vmatprep.subr.mxu0 0.0
    %260 = vmatpush1.msra.mxu0 0.0
    %261 = vmatprep.subr.mxu0 0.0
    %262 = vmatpush1.msra.mxu0 0.0
    %263 = vmatprep.subr.mxu0 0.0
    %264 = vmatpush1.msra.mxu0 0.0
    %265 = vmatprep.subr.mxu0 0.0
    %266 = vmatpush1.msra.mxu0 0.0
    %267 = vmatprep.subr.mxu0 0.0
    %268 = vmatpush1.msra.mxu0 0.0
    %269 = vmatprep.subr.mxu0 0.0
    %270 = vmatpush1.msra.mxu0 0.0
    %271 = vmatprep.subr.mxu0 0.0
    %272 = vmatpush1.msra.mxu0 0.0
    %273 = vmatprep.subr.mxu0 0.0
    %274 = vmatpush1.msra.mxu0 0.0
    %275 = vmatprep.subr.mxu0 0.0
    %276 = vmatpush1.msra.mxu0 0.0
    %277 = vmatprep.subr.mxu0 0.0
    %278 = vmatpush1.msra.mxu0 0.0
    %279 = vmatprep.subr.mxu0 0.0
    %280 = vmatpush1.msra.mxu0 0.0
    %281 = vmatprep.subr.mxu0 0.0
    %282 = vmatpush1.msra.mxu0 0.0
    %283 = vmatprep.subr.mxu0 0.0
    %284 = vmatpush1.msra.mxu0 0.0
    %285 = vmatprep.mubr.f32.mxu0 0.0
    %v286 = vand.u32 %v43, 4294901760
    %287 = vmatmul.mubr.f32.gmra.mrb[0].mxu0 %v286
    %v288 = vpop.f32.mrb[0].mxu0
    %v289 = vadd.f32 %v138, %v288
    %v290 = vpop.f32.mrb[0].mxu0
    %291 = vdwg.mxu0
    %292 = vmatprep.subr.mxu0 0.0
    %v293 = vand.u32 %v15, 4294901760
    %v294 = vsub.f32 %v15, %v293
    %295 = vmatpush1.msra.mxu0 %v294
    %296 = vmatprep.subr.mxu0 0.0
    %v297 = vand.u32 %v16, 4294901760
    %v298 = vsub.f32 %v16, %v297
    %299 = vmatpush1.msra.mxu0 %v298
    %300 = vmatprep.subr.mxu0 0.0
    %v301 = vand.u32 %v17, 4294901760
    %v302 = vsub.f32 %v17, %v301
    %303 = vmatpush1.msra.mxu0 %v302
    %304 = vmatprep.subr.mxu0 0.0
    %v305 = vand.u32 %v18, 4294901760
    %v306 = vsub.f32 %v18, %v305
    %307 = vmatpush1.msra.mxu0 %v306
    %308 = vmatprep.subr.mxu0 0.0
    %v309 = vand.u32 %v19, 4294901760
    %v310 = vsub.f32 %v19, %v309
    %311 = vmatpush1.msra.mxu0 %v310
    %312 = vmatprep.subr.mxu0 0.0
    %v313 = vand.u32 %v20, 4294901760
    %v314 = vsub.f32 %v20, %v313
    %315 = vmatpush1.msra.mxu0 %v314
    %316 = vmatprep.subr.mxu0 0.0
    %v317 = vand.u32 %v21, 4294901760
    %v318 = vsub.f32 %v21, %v317
    %319 = vmatpush1.msra.mxu0 %v318
    %320 = vmatprep.subr.mxu0 0.0
    %v321 = vand.u32 %v22, 4294901760
    %v322 = vsub.f32 %v22, %v321
    %323 = vmatpush1.msra.mxu0 %v322
    %324 = vmatprep.subr.mxu0 0.0
    %v325 = vand.u32 %v23, 4294901760
    %v326 = vsub.f32 %v23, %v325
    %327 = vmatpush1.msra.mxu0 %v326
    %328 = vmatprep.subr.mxu0 0.0
    %v329 = vand.u32 %v24, 4294901760
    %v330 = vsub.f32 %v24, %v329
    %331 = vmatpush1.msra.mxu0 %v330
    %332 = vmatprep.subr.mxu0 0.0
    %v333 = vand.u32 %v25, 4294901760
    %v334 = vsub.f32 %v25, %v333
    %335 = vmatpush1.msra.mxu0 %v334
    %336 = vmatprep.subr.mxu0 0.0
    %v337 = vand.u32 %v26, 4294901760
    %v338 = vsub.f32 %v26, %v337
    %339 = vmatpush1.msra.mxu0 %v338
    %340 = vmatprep.subr.mxu0 0.0
    %v341 = vand.u32 %v27, 4294901760
    %v342 = vsub.f32 %v27, %v341
    %343 = vmatpush1.msra.mxu0 %v342
    %344 = vmatprep.subr.mxu0 0.0
    %v345 = vand.u32 %v28, 4294901760
    %v346 = vsub.f32 %v28, %v345
    %347 = vmatpush1.msra.mxu0 %v346
    %348 = vmatprep.subr.mxu0 0.0
    %v349 = vand.u32 %v29, 4294901760
    %v350 = vsub.f32 %v29, %v349
    %351 = vmatpush1.msra.mxu0 %v350
    %352 = vmatprep.subr.mxu0 0.0
    %v353 = vand.u32 %v30, 4294901760
    %v354 = vsub.f32 %v30, %v353
    %355 = vmatpush1.msra.mxu0 %v354
    %356 = vmatprep.subr.mxu0 0.0
    %357 = vmatpush1.msra.mxu0 0.0
    %358 = vmatprep.subr.mxu0 0.0
    %359 = vmatpush1.msra.mxu0 0.0
    %360 = vmatprep.subr.mxu0 0.0
    %361 = vmatpush1.msra.mxu0 0.0
    %362 = vmatprep.subr.mxu0 0.0
    %363 = vmatpush1.msra.mxu0 0.0
    %364 = vmatprep.subr.mxu0 0.0
    %365 = vmatpush1.msra.mxu0 0.0
    %366 = vmatprep.subr.mxu0 0.0
    %367 = vmatpush1.msra.mxu0 0.0
    %368 = vmatprep.subr.mxu0 0.0
    %369 = vmatpush1.msra.mxu0 0.0
    %370 = vmatprep.subr.mxu0 0.0
    %371 = vmatpush1.msra.mxu0 0.0
    %372 = vmatprep.subr.mxu0 0.0
    %373 = vmatpush1.msra.mxu0 0.0
    %374 = vmatprep.subr.mxu0 0.0
    %375 = vmatpush1.msra.mxu0 0.0
    %376 = vmatprep.subr.mxu0 0.0
    %377 = vmatpush1.msra.mxu0 0.0
    %378 = vmatprep.subr.mxu0 0.0
    %379 = vmatpush1.msra.mxu0 0.0
    %380 = vmatprep.subr.mxu0 0.0
    %381 = vmatpush1.msra.mxu0 0.0
    %382 = vmatprep.subr.mxu0 0.0
    %383 = vmatpush1.msra.mxu0 0.0
    %384 = vmatprep.subr.mxu0 0.0
    %385 = vmatpush1.msra.mxu0 0.0
    %386 = vmatprep.subr.mxu0 0.0
    %387 = vmatpush1.msra.mxu0 0.0
    %388 = vmatprep.mubr.f32.mxu0 0.0
    %v389 = vand.u32 %v43, 4294901760
    %v390 = vsub.f32 %v43, %v389
    %391 = vmatmul.mubr.f32.gmra.mrb[0].mxu0 %v390
    %v392 = vpop.f32.mrb[0].mxu0
    %v393 = vadd.f32 %v289, %v392
    %v394 = vpop.f32.mrb[0].mxu0
    %395 = vdwg.mxu0
    %396 = vmatprep.subr.mxu0 0.0
    %v397 = vand.u32 %v15, 4294901760
    %398 = vmatpush1.msra.mxu0 %v397
    %399 = vmatprep.subr.mxu0 0.0
    %v400 = vand.u32 %v16, 4294901760
    %401 = vmatpush1.msra.mxu0 %v400
    %402 = vmatprep.subr.mxu0 0.0
    %v403 = vand.u32 %v17, 4294901760
    %404 = vmatpush1.msra.mxu0 %v403
    %405 = vmatprep.subr.mxu0 0.0
    %v406 = vand.u32 %v18, 4294901760
    %407 = vmatpush1.msra.mxu0 %v406
    %408 = vmatprep.subr.mxu0 0.0
    %v409 = vand.u32 %v19, 4294901760
    %410 = vmatpush1.msra.mxu0 %v409
    %411 = vmatprep.subr.mxu0 0.0
    %v412 = vand.u32 %v20, 4294901760
    %413 = vmatpush1.msra.mxu0 %v412
    %414 = vmatprep.subr.mxu0 0.0
    %v415 = vand.u32 %v21, 4294901760
    %416 = vmatpush1.msra.mxu0 %v415
    %417 = vmatprep.subr.mxu0 0.0
    %v418 = vand.u32 %v22, 4294901760
    %419 = vmatpush1.msra.mxu0 %v418
    %420 = vmatprep.subr.mxu0 0.0
    %v421 = vand.u32 %v23, 4294901760
    %422 = vmatpush1.msra.mxu0 %v421
    %423 = vmatprep.subr.mxu0 0.0
    %v424 = vand.u32 %v24, 4294901760
    %425 = vmatpush1.msra.mxu0 %v424
    %426 = vmatprep.subr.mxu0 0.0
    %v427 = vand.u32 %v25, 4294901760
    %428 = vmatpush1.msra.mxu0 %v427
    %429 = vmatprep.subr.mxu0 0.0
    %v430 = vand.u32 %v26, 4294901760
    %431 = vmatpush1.msra.mxu0 %v430
    %432 = vmatprep.subr.mxu0 0.0
    %v433 = vand.u32 %v27, 4294901760
    %434 = vmatpush1.msra.mxu0 %v433
    %435 = vmatprep.subr.mxu0 0.0
    %v436 = vand.u32 %v28, 4294901760
    %437 = vmatpush1.msra.mxu0 %v436
    %438 = vmatprep.subr.mxu0 0.0
    %v439 = vand.u32 %v29, 4294901760
    %440 = vmatpush1.msra.mxu0 %v439
    %441 = vmatprep.subr.mxu0 0.0
    %v442 = vand.u32 %v30, 4294901760
    %443 = vmatpush1.msra.mxu0 %v442
    %444 = vmatprep.subr.mxu0 0.0
    %445 = vmatpush1.msra.mxu0 0.0
    %446 = vmatprep.subr.mxu0 0.0
    %447 = vmatpush1.msra.mxu0 0.0
    %448 = vmatprep.subr.mxu0 0.0
    %449 = vmatpush1.msra.mxu0 0.0
    %450 = vmatprep.subr.mxu0 0.0
    %451 = vmatpush1.msra.mxu0 0.0
    %452 = vmatprep.subr.mxu0 0.0
    %453 = vmatpush1.msra.mxu0 0.0
    %454 = vmatprep.subr.mxu0 0.0
    %455 = vmatpush1.msra.mxu0 0.0
    %456 = vmatprep.subr.mxu0 0.0
    %457 = vmatpush1.msra.mxu0 0.0
    %458 = vmatprep.subr.mxu0 0.0
    %459 = vmatpush1.msra.mxu0 0.0
    %460 = vmatprep.subr.mxu0 0.0
    %461 = vmatpush1.msra.mxu0 0.0
    %462 = vmatprep.subr.mxu0 0.0
    %463 = vmatpush1.msra.mxu0 0.0
    %464 = vmatprep.subr.mxu0 0.0
    %465 = vmatpush1.msra.mxu0 0.0
    %466 = vmatprep.subr.mxu0 0.0
    %467 = vmatpush1.msra.mxu0 0.0
    %468 = vmatprep.subr.mxu0 0.0
    %469 = vmatpush1.msra.mxu0 0.0
    %470 = vmatprep.subr.mxu0 0.0
    %471 = vmatpush1.msra.mxu0 0.0
    %472 = vmatprep.subr.mxu0 0.0
    %473 = vmatpush1.msra.mxu0 0.0
    %474 = vmatprep.subr.mxu0 0.0
    %475 = vmatpush1.msra.mxu0 0.0
    %476 = vmatprep.mubr.f32.mxu0 0.0
    %v477 = vand.u32 %v43, 4294901760
    %v478 = vsub.f32 %v43, %v477
    %v479 = vand.u32 %v478, 4294901760
    %480 = vmatmul.mubr.f32.gmra.mrb[0].mxu0 %v479
    %v481 = vpop.f32.mrb[0].mxu0
    %v482 = vadd.f32 %v393, %v481
    %v483 = vpop.f32.mrb[0].mxu0
    %484 = vdwg.mxu0
    %485 = vmatprep.subr.mxu0 0.0
    %v486 = vand.u32 %v15, 4294901760
    %v487 = vsub.f32 %v15, %v486
    %v488 = vand.u32 %v487, 4294901760
    %489 = vmatpush1.msra.mxu0 %v488
    %490 = vmatprep.subr.mxu0 0.0
    %v491 = vand.u32 %v16, 4294901760
    %v492 = vsub.f32 %v16, %v491
    %v493 = vand.u32 %v492, 4294901760
    %494 = vmatpush1.msra.mxu0 %v493
    %495 = vmatprep.subr.mxu0 0.0
    %v496 = vand.u32 %v17, 4294901760
    %v497 = vsub.f32 %v17, %v496
    %v498 = vand.u32 %v497, 4294901760
    %499 = vmatpush1.msra.mxu0 %v498
    %500 = vmatprep.subr.mxu0 0.0
    %v501 = vand.u32 %v18, 4294901760
    %v502 = vsub.f32 %v18, %v501
    %v503 = vand.u32 %v502, 4294901760
    %504 = vmatpush1.msra.mxu0 %v503
    %505 = vmatprep.subr.mxu0 0.0
    %v506 = vand.u32 %v19, 4294901760
    %v507 = vsub.f32 %v19, %v506
    %v508 = vand.u32 %v507, 4294901760
    %509 = vmatpush1.msra.mxu0 %v508
    %510 = vmatprep.subr.mxu0 0.0
    %v511 = vand.u32 %v20, 4294901760
    %v512 = vsub.f32 %v20, %v511
    %v513 = vand.u32 %v512, 4294901760
    %514 = vmatpush1.msra.mxu0 %v513
    %515 = vmatprep.subr.mxu0 0.0
    %v516 = vand.u32 %v21, 4294901760
    %v517 = vsub.f32 %v21, %v516
    %v518 = vand.u32 %v517, 4294901760
    %519 = vmatpush1.msra.mxu0 %v518
    %520 = vmatprep.subr.mxu0 0.0
    %v521 = vand.u32 %v22, 4294901760
    %v522 = vsub.f32 %v22, %v521
    %v523 = vand.u32 %v522, 4294901760
    %524 = vmatpush1.msra.mxu0 %v523
    %525 = vmatprep.subr.mxu0 0.0
    %v526 = vand.u32 %v23, 4294901760
    %v527 = vsub.f32 %v23, %v526
    %v528 = vand.u32 %v527, 4294901760
    %529 = vmatpush1.msra.mxu0 %v528
    %530 = vmatprep.subr.mxu0 0.0
    %v531 = vand.u32 %v24, 4294901760
    %v532 = vsub.f32 %v24, %v531
    %v533 = vand.u32 %v532, 4294901760
    %534 = vmatpush1.msra.mxu0 %v533
    %535 = vmatprep.subr.mxu0 0.0
    %v536 = vand.u32 %v25, 4294901760
    %v537 = vsub.f32 %v25, %v536
    %v538 = vand.u32 %v537, 4294901760
    %539 = vmatpush1.msra.mxu0 %v538
    %540 = vmatprep.subr.mxu0 0.0
    %v541 = vand.u32 %v26, 4294901760
    %v542 = vsub.f32 %v26, %v541
    %v543 = vand.u32 %v542, 4294901760
    %544 = vmatpush1.msra.mxu0 %v543
    %545 = vmatprep.subr.mxu0 0.0
    %v546 = vand.u32 %v27, 4294901760
    %v547 = vsub.f32 %v27, %v546
    %v548 = vand.u32 %v547, 4294901760
    %549 = vmatpush1.msra.mxu0 %v548
    %550 = vmatprep.subr.mxu0 0.0
    %v551 = vand.u32 %v28, 4294901760
    %v552 = vsub.f32 %v28, %v551
    %v553 = vand.u32 %v552, 4294901760
    %554 = vmatpush1.msra.mxu0 %v553
    %555 = vmatprep.subr.mxu0 0.0
    %v556 = vand.u32 %v29, 4294901760
    %v557 = vsub.f32 %v29, %v556
    %v558 = vand.u32 %v557, 4294901760
    %559 = vmatpush1.msra.mxu0 %v558
    %560 = vmatprep.subr.mxu0 0.0
    %v561 = vand.u32 %v30, 4294901760
    %v562 = vsub.f32 %v30, %v561
    %v563 = vand.u32 %v562, 4294901760
    %564 = vmatpush1.msra.mxu0 %v563
    %565 = vmatprep.subr.mxu0 0.0
    %566 = vmatpush1.msra.mxu0 0.0
    %567 = vmatprep.subr.mxu0 0.0
    %568 = vmatpush1.msra.mxu0 0.0
    %569 = vmatprep.subr.mxu0 0.0
    %570 = vmatpush1.msra.mxu0 0.0
    %571 = vmatprep.subr.mxu0 0.0
    %572 = vmatpush1.msra.mxu0 0.0
    %573 = vmatprep.subr.mxu0 0.0
    %574 = vmatpush1.msra.mxu0 0.0
    %575 = vmatprep.subr.mxu0 0.0
    %576 = vmatpush1.msra.mxu0 0.0
    %577 = vmatprep.subr.mxu0 0.0
    %578 = vmatpush1.msra.mxu0 0.0
    %579 = vmatprep.subr.mxu0 0.0
    %580 = vmatpush1.msra.mxu0 0.0
    %581 = vmatprep.subr.mxu0 0.0
    %582 = vmatpush1.msra.mxu0 0.0
    %583 = vmatprep.subr.mxu0 0.0
    %584 = vmatpush1.msra.mxu0 0.0
    %585 = vmatprep.subr.mxu0 0.0
    %586 = vmatpush1.msra.mxu0 0.0
    %587 = vmatprep.subr.mxu0 0.0
    %588 = vmatpush1.msra.mxu0 0.0
    %589 = vmatprep.subr.mxu0 0.0
    %590 = vmatpush1.msra.mxu0 0.0
    %591 = vmatprep.subr.mxu0 0.0
    %592 = vmatpush1.msra.mxu0 0.0
    %593 = vmatprep.subr.mxu0 0.0
    %594 = vmatpush1.msra.mxu0 0.0
    %595 = vmatprep.subr.mxu0 0.0
    %596 = vmatpush1.msra.mxu0 0.0
    %597 = vmatprep.mubr.f32.mxu0 0.0
    %v598 = vand.u32 %v43, 4294901760
    %599 = vmatmul.mubr.f32.gmra.mrb[0].mxu0 %v598
    %v600 = vpop.f32.mrb[0].mxu0
    %v601 = vadd.f32 %v482, %v600
    %v602 = vpop.f32.mrb[0].mxu0
    %603 = vdwg.mxu0
    %604 = vmatprep.subr.mxu0 0.0
    %v605 = vand.u32 %v15, 4294901760
    %606 = vmatpush1.msra.mxu0 %v605
    %607 = vmatprep.subr.mxu0 0.0
    %v608 = vand.u32 %v16, 4294901760
    %609 = vmatpush1.msra.mxu0 %v608
    %610 = vmatprep.subr.mxu0 0.0
    %v611 = vand.u32 %v17, 4294901760
    %612 = vmatpush1.msra.mxu0 %v611
    %613 = vmatprep.subr.mxu0 0.0
    %v614 = vand.u32 %v18, 4294901760
    %615 = vmatpush1.msra.mxu0 %v614
    %616 = vmatprep.subr.mxu0 0.0
    %v617 = vand.u32 %v19, 4294901760
    %618 = vmatpush1.msra.mxu0 %v617
    %619 = vmatprep.subr.mxu0 0.0
    %v620 = vand.u32 %v20, 4294901760
    %621 = vmatpush1.msra.mxu0 %v620
    %622 = vmatprep.subr.mxu0 0.0
    %v623 = vand.u32 %v21, 4294901760
    %624 = vmatpush1.msra.mxu0 %v623
    %625 = vmatprep.subr.mxu0 0.0
    %v626 = vand.u32 %v22, 4294901760
    %627 = vmatpush1.msra.mxu0 %v626
    %628 = vmatprep.subr.mxu0 0.0
    %v629 = vand.u32 %v23, 4294901760
    %630 = vmatpush1.msra.mxu0 %v629
    %631 = vmatprep.subr.mxu0 0.0
    %v632 = vand.u32 %v24, 4294901760
    %633 = vmatpush1.msra.mxu0 %v632
    %634 = vmatprep.subr.mxu0 0.0
    %v635 = vand.u32 %v25, 4294901760
    %636 = vmatpush1.msra.mxu0 %v635
    %637 = vmatprep.subr.mxu0 0.0
    %v638 = vand.u32 %v26, 4294901760
    %639 = vmatpush1.msra.mxu0 %v638
    %640 = vmatprep.subr.mxu0 0.0
    %v641 = vand.u32 %v27, 4294901760
    %642 = vmatpush1.msra.mxu0 %v641
    %643 = vmatprep.subr.mxu0 0.0
    %v644 = vand.u32 %v28, 4294901760
    %645 = vmatpush1.msra.mxu0 %v644
    %646 = vmatprep.subr.mxu0 0.0
    %v647 = vand.u32 %v29, 4294901760
    %648 = vmatpush1.msra.mxu0 %v647
    %649 = vmatprep.subr.mxu0 0.0
    %v650 = vand.u32 %v30, 4294901760
    %651 = vmatpush1.msra.mxu0 %v650
    %652 = vmatprep.subr.mxu0 0.0
    %653 = vmatpush1.msra.mxu0 0.0
    %654 = vmatprep.subr.mxu0 0.0
    %655 = vmatpush1.msra.mxu0 0.0
    %656 = vmatprep.subr.mxu0 0.0
    %657 = vmatpush1.msra.mxu0 0.0
    %658 = vmatprep.subr.mxu0 0.0
    %659 = vmatpush1.msra.mxu0 0.0
    %660 = vmatprep.subr.mxu0 0.0
    %661 = vmatpush1.msra.mxu0 0.0
    %662 = vmatprep.subr.mxu0 0.0
    %663 = vmatpush1.msra.mxu0 0.0
    %664 = vmatprep.subr.mxu0 0.0
    %665 = vmatpush1.msra.mxu0 0.0
    %666 = vmatprep.subr.mxu0 0.0
    %667 = vmatpush1.msra.mxu0 0.0
    %668 = vmatprep.subr.mxu0 0.0
    %669 = vmatpush1.msra.mxu0 0.0
    %670 = vmatprep.subr.mxu0 0.0
    %671 = vmatpush1.msra.mxu0 0.0
    %672 = vmatprep.subr.mxu0 0.0
    %673 = vmatpush1.msra.mxu0 0.0
    %674 = vmatprep.subr.mxu0 0.0
    %675 = vmatpush1.msra.mxu0 0.0
    %676 = vmatprep.subr.mxu0 0.0
    %677 = vmatpush1.msra.mxu0 0.0
    %678 = vmatprep.subr.mxu0 0.0
    %679 = vmatpush1.msra.mxu0 0.0
    %680 = vmatprep.subr.mxu0 0.0
    %681 = vmatpush1.msra.mxu0 0.0
    %682 = vmatprep.subr.mxu0 0.0
    %683 = vmatpush1.msra.mxu0 0.0
    %684 = vmatprep.mubr.f32.mxu0 0.0
    %v685 = vand.u32 %v43, 4294901760
    %686 = vmatmul.mubr.f32.gmra.mrb[0].mxu0 %v685
    %v687 = vpop.f32.mrb[0].mxu0
    %v688 = vadd.f32 %v601, %v687
    %v689 = vpop.f32.mrb[0].mxu0
    %690 = vdwg.mxu0
    %v691 = vadd.f32 %v688, 0.0
    %vm692 = vcmp.le.s32.totalorder %v41, 0
    %vm693 = vcmp.gt.s32.totalorder %v41, 4294967288
    %vm694 = vmand %vm692, %vm693
    %vm695 = vcmp.ge.f32.partialorder %v691, 1.0
    %vm696 = vmand %vm695, %vm694
    %v697 = vsel %vm696, 1, 0
    %v698 = vcvt.s32.f32 %v697
    %v699 = vsel %vm696, 0.0, %v691
    %v700 = vsel %vm694, %v699, 0.0
    %v701 = vadd.f32 %v698, 0.0
    %s702 = scalar_lea.vmem %s0, 8
    %v703 = vld [vmem:[%s702] sm:$0xff]
    %v704 = vadd.f32 %v698, %v703
    %705 = vmatprep.subr.mxu0 0.0
    %v706 = vand.u32 %v15, 4294901760
    %707 = vmatpush1.msra.mxu0 %v706
    %708 = vmatprep.subr.mxu0 0.0
    %v709 = vand.u32 %v16, 4294901760
    %710 = vmatpush1.msra.mxu0 %v709
    %711 = vmatprep.subr.mxu0 0.0
    %v712 = vand.u32 %v17, 4294901760
    %713 = vmatpush1.msra.mxu0 %v712
    %714 = vmatprep.subr.mxu0 0.0
    %v715 = vand.u32 %v18, 4294901760
    %716 = vmatpush1.msra.mxu0 %v715
    %717 = vmatprep.subr.mxu0 0.0
    %v718 = vand.u32 %v19, 4294901760
    %719 = vmatpush1.msra.mxu0 %v718
    %720 = vmatprep.subr.mxu0 0.0
    %v721 = vand.u32 %v20, 4294901760
    %722 = vmatpush1.msra.mxu0 %v721
    %723 = vmatprep.subr.mxu0 0.0
    %v724 = vand.u32 %v21, 4294901760
    %725 = vmatpush1.msra.mxu0 %v724
    %726 = vmatprep.subr.mxu0 0.0
    %v727 = vand.u32 %v22, 4294901760
    %728 = vmatpush1.msra.mxu0 %v727
    %729 = vmatprep.subr.mxu0 0.0
    %v730 = vand.u32 %v23, 4294901760
    %731 = vmatpush1.msra.mxu0 %v730
    %732 = vmatprep.subr.mxu0 0.0
    %v733 = vand.u32 %v24, 4294901760
    %734 = vmatpush1.msra.mxu0 %v733
    %735 = vmatprep.subr.mxu0 0.0
    %v736 = vand.u32 %v25, 4294901760
    %737 = vmatpush1.msra.mxu0 %v736
    %738 = vmatprep.subr.mxu0 0.0
    %v739 = vand.u32 %v26, 4294901760
    %740 = vmatpush1.msra.mxu0 %v739
    %741 = vmatprep.subr.mxu0 0.0
    %v742 = vand.u32 %v27, 4294901760
    %743 = vmatpush1.msra.mxu0 %v742
    %744 = vmatprep.subr.mxu0 0.0
    %v745 = vand.u32 %v28, 4294901760
    %746 = vmatpush1.msra.mxu0 %v745
    %747 = vmatprep.subr.mxu0 0.0
    %v748 = vand.u32 %v29, 4294901760
    %749 = vmatpush1.msra.mxu0 %v748
    %750 = vmatprep.subr.mxu0 0.0
    %v751 = vand.u32 %v30, 4294901760
    %752 = vmatpush1.msra.mxu0 %v751
    %753 = vmatprep.subr.mxu0 0.0
    %754 = vmatpush1.msra.mxu0 0.0
    %755 = vmatprep.subr.mxu0 0.0
    %756 = vmatpush1.msra.mxu0 0.0
    %757 = vmatprep.subr.mxu0 0.0
    %758 = vmatpush1.msra.mxu0 0.0
    %759 = vmatprep.subr.mxu0 0.0
    %760 = vmatpush1.msra.mxu0 0.0
    %761 = vmatprep.subr.mxu0 0.0
    %762 = vmatpush1.msra.mxu0 0.0
    %763 = vmatprep.subr.mxu0 0.0
    %764 = vmatpush1.msra.mxu0 0.0
    %765 = vmatprep.subr.mxu0 0.0
    %766 = vmatpush1.msra.mxu0 0.0
    %767 = vmatprep.subr.mxu0 0.0
    %768 = vmatpush1.msra.mxu0 0.0
    %769 = vmatprep.subr.mxu0 0.0
    %770 = vmatpush1.msra.mxu0 0.0
    %771 = vmatprep.subr.mxu0 0.0
    %772 = vmatpush1.msra.mxu0 0.0
    %773 = vmatprep.subr.mxu0 0.0
    %774 = vmatpush1.msra.mxu0 0.0
    %775 = vmatprep.subr.mxu0 0.0
    %776 = vmatpush1.msra.mxu0 0.0
    %777 = vmatprep.subr.mxu0 0.0
    %778 = vmatpush1.msra.mxu0 0.0
    %779 = vmatprep.subr.mxu0 0.0
    %780 = vmatpush1.msra.mxu0 0.0
    %781 = vmatprep.subr.mxu0 0.0
    %782 = vmatpush1.msra.mxu0 0.0
    %783 = vmatprep.subr.mxu0 0.0
    %784 = vmatpush1.msra.mxu0 0.0
    %785 = vmatprep.mubr.f32.mxu0 0.0
    %v786 = vand.u32 %v704, 4294901760
    %v787 = vsub.f32 %v704, %v786
    %v788 = vand.u32 %v787, 4294901760
    %v789 = vsub.f32 %v787, %v788
    %v790 = vand.u32 %v789, 4294901760
    %791 = vmatmul.mubr.f32.gmra.mrb[0].mxu0 %v790
    %v792 = vpop.f32.mrb[0].mxu0
    %v793 = vadd.f32 %v48, %v792
    %v794 = vpop.f32.mrb[0].mxu0
    %795 = vdwg.mxu0
    %796 = vmatprep.subr.mxu0 0.0
    %v797 = vand.u32 %v15, 4294901760
    %v798 = vsub.f32 %v15, %v797
    %v799 = vand.u32 %v798, 4294901760
    %v800 = vsub.f32 %v798, %v799
    %v801 = vand.u32 %v800, 4294901760
    %802 = vmatpush1.msra.mxu0 %v801
    %803 = vmatprep.subr.mxu0 0.0
    %v804 = vand.u32 %v16, 4294901760
    %v805 = vsub.f32 %v16, %v804
    %v806 = vand.u32 %v805, 4294901760
    %v807 = vsub.f32 %v805, %v806
    %v808 = vand.u32 %v807, 4294901760
    %809 = vmatpush1.msra.mxu0 %v808
    %810 = vmatprep.subr.mxu0 0.0
    %v811 = vand.u32 %v17, 4294901760
    %v812 = vsub.f32 %v17, %v811
    %v813 = vand.u32 %v812, 4294901760
    %v814 = vsub.f32 %v812, %v813
    %v815 = vand.u32 %v814, 4294901760
    %816 = vmatpush1.msra.mxu0 %v815
    %817 = vmatprep.subr.mxu0 0.0
    %v818 = vand.u32 %v18, 4294901760
    %v819 = vsub.f32 %v18, %v818
    %v820 = vand.u32 %v819, 4294901760
    %v821 = vsub.f32 %v819, %v820
    %v822 = vand.u32 %v821, 4294901760
    %823 = vmatpush1.msra.mxu0 %v822
    %824 = vmatprep.subr.mxu0 0.0
    %v825 = vand.u32 %v19, 4294901760
    %v826 = vsub.f32 %v19, %v825
    %v827 = vand.u32 %v826, 4294901760
    %v828 = vsub.f32 %v826, %v827
    %v829 = vand.u32 %v828, 4294901760
    %830 = vmatpush1.msra.mxu0 %v829
    %831 = vmatprep.subr.mxu0 0.0
    %v832 = vand.u32 %v20, 4294901760
    %v833 = vsub.f32 %v20, %v832
    %v834 = vand.u32 %v833, 4294901760
    %v835 = vsub.f32 %v833, %v834
    %v836 = vand.u32 %v835, 4294901760
    %837 = vmatpush1.msra.mxu0 %v836
    %838 = vmatprep.subr.mxu0 0.0
    %v839 = vand.u32 %v21, 4294901760
    %v840 = vsub.f32 %v21, %v839
    %v841 = vand.u32 %v840, 4294901760
    %v842 = vsub.f32 %v840, %v841
    %v843 = vand.u32 %v842, 4294901760
    %844 = vmatpush1.msra.mxu0 %v843
    %845 = vmatprep.subr.mxu0 0.0
    %v846 = vand.u32 %v22, 4294901760
    %v847 = vsub.f32 %v22, %v846
    %v848 = vand.u32 %v847, 4294901760
    %v849 = vsub.f32 %v847, %v848
    %v850 = vand.u32 %v849, 4294901760
    %851 = vmatpush1.msra.mxu0 %v850
    %852 = vmatprep.subr.mxu0 0.0
    %v853 = vand.u32 %v23, 4294901760
    %v854 = vsub.f32 %v23, %v853
    %v855 = vand.u32 %v854, 4294901760
    %v856 = vsub.f32 %v854, %v855
    %v857 = vand.u32 %v856, 4294901760
    %858 = vmatpush1.msra.mxu0 %v857
    %859 = vmatprep.subr.mxu0 0.0
    %v860 = vand.u32 %v24, 4294901760
    %v861 = vsub.f32 %v24, %v860
    %v862 = vand.u32 %v861, 4294901760
    %v863 = vsub.f32 %v861, %v862
    %v864 = vand.u32 %v863, 4294901760
    %865 = vmatpush1.msra.mxu0 %v864
    %866 = vmatprep.subr.mxu0 0.0
    %v867 = vand.u32 %v25, 4294901760
    %v868 = vsub.f32 %v25, %v867
    %v869 = vand.u32 %v868, 4294901760
    %v870 = vsub.f32 %v868, %v869
    %v871 = vand.u32 %v870, 4294901760
    %872 = vmatpush1.msra.mxu0 %v871
    %873 = vmatprep.subr.mxu0 0.0
    %v874 = vand.u32 %v26, 4294901760
    %v875 = vsub.f32 %v26, %v874
    %v876 = vand.u32 %v875, 4294901760
    %v877 = vsub.f32 %v875, %v876
    %v878 = vand.u32 %v877, 4294901760
    %879 = vmatpush1.msra.mxu0 %v878
    %880 = vmatprep.subr.mxu0 0.0
    %v881 = vand.u32 %v27, 4294901760
    %v882 = vsub.f32 %v27, %v881
    %v883 = vand.u32 %v882, 4294901760
    %v884 = vsub.f32 %v882, %v883
    %v885 = vand.u32 %v884, 4294901760
    %886 = vmatpush1.msra.mxu0 %v885
    %887 = vmatprep.subr.mxu0 0.0
    %v888 = vand.u32 %v28, 4294901760
    %v889 = vsub.f32 %v28, %v888
    %v890 = vand.u32 %v889, 4294901760
    %v891 = vsub.f32 %v889, %v890
    %v892 = vand.u32 %v891, 4294901760
    %893 = vmatpush1.msra.mxu0 %v892
    %894 = vmatprep.subr.mxu0 0.0
    %v895 = vand.u32 %v29, 4294901760
    %v896 = vsub.f32 %v29, %v895
    %v897 = vand.u32 %v896, 4294901760
    %v898 = vsub.f32 %v896, %v897
    %v899 = vand.u32 %v898, 4294901760
    %900 = vmatpush1.msra.mxu0 %v899
    %901 = vmatprep.subr.mxu0 0.0
    %v902 = vand.u32 %v30, 4294901760
    %v903 = vsub.f32 %v30, %v902
    %v904 = vand.u32 %v903, 4294901760
    %v905 = vsub.f32 %v903, %v904
    %v906 = vand.u32 %v905, 4294901760
    %907 = vmatpush1.msra.mxu0 %v906
    %908 = vmatprep.subr.mxu0 0.0
    %909 = vmatpush1.msra.mxu0 0.0
    %910 = vmatprep.subr.mxu0 0.0
    %911 = vmatpush1.msra.mxu0 0.0
    %912 = vmatprep.subr.mxu0 0.0
    %913 = vmatpush1.msra.mxu0 0.0
    %914 = vmatprep.subr.mxu0 0.0
    %915 = vmatpush1.msra.mxu0 0.0
    %916 = vmatprep.subr.mxu0 0.0
    %917 = vmatpush1.msra.mxu0 0.0
    %918 = vmatprep.subr.mxu0 0.0
    %919 = vmatpush1.msra.mxu0 0.0
    %920 = vmatprep.subr.mxu0 0.0
    %921 = vmatpush1.msra.mxu0 0.0
    %922 = vmatprep.subr.mxu0 0.0
    %923 = vmatpush1.msra.mxu0 0.0
    %924 = vmatprep.subr.mxu0 0.0
    %925 = vmatpush1.msra.mxu0 0.0
    %926 = vmatprep.subr.mxu0 0.0
    %927 = vmatpush1.msra.mxu0 0.0
    %928 = vmatprep.subr.mxu0 0.0
    %929 = vmatpush1.msra.mxu0 0.0
    %930 = vmatprep.subr.mxu0 0.0
    %931 = vmatpush1.msra.mxu0 0.0
    %932 = vmatprep.subr.mxu0 0.0
    %933 = vmatpush1.msra.mxu0 0.0
    %934 = vmatprep.subr.mxu0 0.0
    %935 = vmatpush1.msra.mxu0 0.0
    %936 = vmatprep.subr.mxu0 0.0
    %937 = vmatpush1.msra.mxu0 0.0
    %938 = vmatprep.subr.mxu0 0.0
    %939 = vmatpush1.msra.mxu0 0.0
    %940 = vmatprep.mubr.f32.mxu0 0.0
    %v941 = vand.u32 %v704, 4294901760
    %942 = vmatmul.mubr.f32.gmra.mrb[0].mxu0 %v941
    %v943 = vpop.f32.mrb[0].mxu0
    %v944 = vadd.f32 %v793, %v943
    %v945 = vpop.f32.mrb[0].mxu0
    %946 = vdwg.mxu0
    %947 = vmatprep.subr.mxu0 0.0
    %v948 = vand.u32 %v15, 4294901760
    %v949 = vsub.f32 %v15, %v948
    %950 = vmatpush1.msra.mxu0 %v949
    %951 = vmatprep.subr.mxu0 0.0
    %v952 = vand.u32 %v16, 4294901760
    %v953 = vsub.f32 %v16, %v952
    %954 = vmatpush1.msra.mxu0 %v953
    %955 = vmatprep.subr.mxu0 0.0
    %v956 = vand.u32 %v17, 4294901760
    %v957 = vsub.f32 %v17, %v956
    %958 = vmatpush1.msra.mxu0 %v957
    %959 = vmatprep.subr.mxu0 0.0
    %v960 = vand.u32 %v18, 4294901760
    %v961 = vsub.f32 %v18, %v960
    %962 = vmatpush1.msra.mxu0 %v961
    %963 = vmatprep.subr.mxu0 0.0
    %v964 = vand.u32 %v19, 4294901760
    %v965 = vsub.f32 %v19, %v964
    %966 = vmatpush1.msra.mxu0 %v965
    %967 = vmatprep.subr.mxu0 0.0
    %v968 = vand.u32 %v20, 4294901760
    %v969 = vsub.f32 %v20, %v968
    %970 = vmatpush1.msra.mxu0 %v969
    %971 = vmatprep.subr.mxu0 0.0
    %v972 = vand.u32 %v21, 4294901760
    %v973 = vsub.f32 %v21, %v972
    %974 = vmatpush1.msra.mxu0 %v973
    %975 = vmatprep.subr.mxu0 0.0
    %v976 = vand.u32 %v22, 4294901760
    %v977 = vsub.f32 %v22, %v976
    %978 = vmatpush1.msra.mxu0 %v977
    %979 = vmatprep.subr.mxu0 0.0
    %v980 = vand.u32 %v23, 4294901760
    %v981 = vsub.f32 %v23, %v980
    %982 = vmatpush1.msra.mxu0 %v981
    %983 = vmatprep.subr.mxu0 0.0
    %v984 = vand.u32 %v24, 4294901760
    %v985 = vsub.f32 %v24, %v984
    %986 = vmatpush1.msra.mxu0 %v985
    %987 = vmatprep.subr.mxu0 0.0
    %v988 = vand.u32 %v25, 4294901760
    %v989 = vsub.f32 %v25, %v988
    %990 = vmatpush1.msra.mxu0 %v989
    %991 = vmatprep.subr.mxu0 0.0
    %v992 = vand.u32 %v26, 4294901760
    %v993 = vsub.f32 %v26, %v992
    %994 = vmatpush1.msra.mxu0 %v993
    %995 = vmatprep.subr.mxu0 0.0
    %v996 = vand.u32 %v27, 4294901760
    %v997 = vsub.f32 %v27, %v996
    %998 = vmatpush1.msra.mxu0 %v997
    %999 = vmatprep.subr.mxu0 0.0
    %v1000 = vand.u32 %v28, 4294901760
    %v1001 = vsub.f32 %v28, %v1000
    %1002 = vmatpush1.msra.mxu0 %v1001
    %1003 = vmatprep.subr.mxu0 0.0
    %v1004 = vand.u32 %v29, 4294901760
    %v1005 = vsub.f32 %v29, %v1004
    %1006 = vmatpush1.msra.mxu0 %v1005
    %1007 = vmatprep.subr.mxu0 0.0
    %v1008 = vand.u32 %v30, 4294901760
    %v1009 = vsub.f32 %v30, %v1008
    %1010 = vmatpush1.msra.mxu0 %v1009
    %1011 = vmatprep.subr.mxu0 0.0
    %1012 = vmatpush1.msra.mxu0 0.0
    %1013 = vmatprep.subr.mxu0 0.0
    %1014 = vmatpush1.msra.mxu0 0.0
    %1015 = vmatprep.subr.mxu0 0.0
    %1016 = vmatpush1.msra.mxu0 0.0
    %1017 = vmatprep.subr.mxu0 0.0
    %1018 = vmatpush1.msra.mxu0 0.0
    %1019 = vmatprep.subr.mxu0 0.0
    %1020 = vmatpush1.msra.mxu0 0.0
    %1021 = vmatprep.subr.mxu0 0.0
    %1022 = vmatpush1.msra.mxu0 0.0
    %1023 = vmatprep.subr.mxu0 0.0
    %1024 = vmatpush1.msra.mxu0 0.0
    %1025 = vmatprep.subr.mxu0 0.0
    %1026 = vmatpush1.msra.mxu0 0.0
    %1027 = vmatprep.subr.mxu0 0.0
    %1028 = vmatpush1.msra.mxu0 0.0
    %1029 = vmatprep.subr.mxu0 0.0
    %1030 = vmatpush1.msra.mxu0 0.0
    %1031 = vmatprep.subr.mxu0 0.0
    %1032 = vmatpush1.msra.mxu0 0.0
    %1033 = vmatprep.subr.mxu0 0.0
    %1034 = vmatpush1.msra.mxu0 0.0
    %1035 = vmatprep.subr.mxu0 0.0
    %1036 = vmatpush1.msra.mxu0 0.0
    %1037 = vmatprep.subr.mxu0 0.0
    %1038 = vmatpush1.msra.mxu0 0.0
    %1039 = vmatprep.subr.mxu0 0.0
    %1040 = vmatpush1.msra.mxu0 0.0
    %1041 = vmatprep.subr.mxu0 0.0
    %1042 = vmatpush1.msra.mxu0 0.0
    %1043 = vmatprep.mubr.f32.mxu0 0.0
    %v1044 = vand.u32 %v704, 4294901760
    %v1045 = vsub.f32 %v704, %v1044
    %1046 = vmatmul.mubr.f32.gmra.mrb[0].mxu0 %v1045
    %v1047 = vpop.f32.mrb[0].mxu0
    %v1048 = vadd.f32 %v944, %v1047
    %v1049 = vpop.f32.mrb[0].mxu0
    %1050 = vdwg.mxu0
    %1051 = vmatprep.subr.mxu0 0.0
    %v1052 = vand.u32 %v15, 4294901760
    %1053 = vmatpush1.msra.mxu0 %v1052
    %1054 = vmatprep.subr.mxu0 0.0
    %v1055 = vand.u32 %v16, 4294901760
    %1056 = vmatpush1.msra.mxu0 %v1055
    %1057 = vmatprep.subr.mxu0 0.0
    %v1058 = vand.u32 %v17, 4294901760
    %1059 = vmatpush1.msra.mxu0 %v1058
    %1060 = vmatprep.subr.mxu0 0.0
    %v1061 = vand.u32 %v18, 4294901760
    %1062 = vmatpush1.msra.mxu0 %v1061
    %1063 = vmatprep.subr.mxu0 0.0
    %v1064 = vand.u32 %v19, 4294901760
    %1065 = vmatpush1.msra.mxu0 %v1064
    %1066 = vmatprep.subr.mxu0 0.0
    %v1067 = vand.u32 %v20, 4294901760
    %1068 = vmatpush1.msra.mxu0 %v1067
    %1069 = vmatprep.subr.mxu0 0.0
    %v1070 = vand.u32 %v21, 4294901760
    %1071 = vmatpush1.msra.mxu0 %v1070
    %1072 = vmatprep.subr.mxu0 0.0
    %v1073 = vand.u32 %v22, 4294901760
    %1074 = vmatpush1.msra.mxu0 %v1073
    %1075 = vmatprep.subr.mxu0 0.0
    %v1076 = vand.u32 %v23, 4294901760
    %1077 = vmatpush1.msra.mxu0 %v1076
    %1078 = vmatprep.subr.mxu0 0.0
    %v1079 = vand.u32 %v24, 4294901760
    %1080 = vmatpush1.msra.mxu0 %v1079
    %1081 = vmatprep.subr.mxu0 0.0
    %v1082 = vand.u32 %v25, 4294901760
    %1083 = vmatpush1.msra.mxu0 %v1082
    %1084 = vmatprep.subr.mxu0 0.0
    %v1085 = vand.u32 %v26, 4294901760
    %1086 = vmatpush1.msra.mxu0 %v1085
    %1087 = vmatprep.subr.mxu0 0.0
    %v1088 = vand.u32 %v27, 4294901760
    %1089 = vmatpush1.msra.mxu0 %v1088
    %1090 = vmatprep.subr.mxu0 0.0
    %v1091 = vand.u32 %v28, 4294901760
    %1092 = vmatpush1.msra.mxu0 %v1091
    %1093 = vmatprep.subr.mxu0 0.0
    %v1094 = vand.u32 %v29, 4294901760
    %1095 = vmatpush1.msra.mxu0 %v1094
    %1096 = vmatprep.subr.mxu0 0.0
    %v1097 = vand.u32 %v30, 4294901760
    %1098 = vmatpush1.msra.mxu0 %v1097
    %1099 = vmatprep.subr.mxu0 0.0
    %1100 = vmatpush1.msra.mxu0 0.0
    %1101 = vmatprep.subr.mxu0 0.0
    %1102 = vmatpush1.msra.mxu0 0.0
    %1103 = vmatprep.subr.mxu0 0.0
    %1104 = vmatpush1.msra.mxu0 0.0
    %1105 = vmatprep.subr.mxu0 0.0
    %1106 = vmatpush1.msra.mxu0 0.0
    %1107 = vmatprep.subr.mxu0 0.0
    %1108 = vmatpush1.msra.mxu0 0.0
    %1109 = vmatprep.subr.mxu0 0.0
    %1110 = vmatpush1.msra.mxu0 0.0
    %1111 = vmatprep.subr.mxu0 0.0
    %1112 = vmatpush1.msra.mxu0 0.0
    %1113 = vmatprep.subr.mxu0 0.0
    %1114 = vmatpush1.msra.mxu0 0.0
    %1115 = vmatprep.subr.mxu0 0.0
    %1116 = vmatpush1.msra.mxu0 0.0
    %1117 = vmatprep.subr.mxu0 0.0
    %1118 = vmatpush1.msra.mxu0 0.0
    %1119 = vmatprep.subr.mxu0 0.0
    %1120 = vmatpush1.msra.mxu0 0.0
    %1121 = vmatprep.subr.mxu0 0.0
    %1122 = vmatpush1.msra.mxu0 0.0
    %1123 = vmatprep.subr.mxu0 0.0
    %1124 = vmatpush1.msra.mxu0 0.0
    %1125 = vmatprep.subr.mxu0 0.0
    %1126 = vmatpush1.msra.mxu0 0.0
    %1127 = vmatprep.subr.mxu0 0.0
    %1128 = vmatpush1.msra.mxu0 0.0
    %1129 = vmatprep.subr.mxu0 0.0
    %1130 = vmatpush1.msra.mxu0 0.0
    %1131 = vmatprep.mubr.f32.mxu0 0.0
    %v1132 = vand.u32 %v704, 4294901760
    %v1133 = vsub.f32 %v704, %v1132
    %v1134 = vand.u32 %v1133, 4294901760
    %1135 = vmatmul.mubr.f32.gmra.mrb[0].mxu0 %v1134
    %v1136 = vpop.f32.mrb[0].mxu0
    %v1137 = vadd.f32 %v1048, %v1136
    %v1138 = vpop.f32.mrb[0].mxu0
    %1139 = vdwg.mxu0
    %1140 = vmatprep.subr.mxu0 0.0
    %v1141 = vand.u32 %v15, 4294901760
    %v1142 = vsub.f32 %v15, %v1141
    %v1143 = vand.u32 %v1142, 4294901760
    %1144 = vmatpush1.msra.mxu0 %v1143
    %1145 = vmatprep.subr.mxu0 0.0
    %v1146 = vand.u32 %v16, 4294901760
    %v1147 = vsub.f32 %v16, %v1146
    %v1148 = vand.u32 %v1147, 4294901760
    %1149 = vmatpush1.msra.mxu0 %v1148
    %1150 = vmatprep.subr.mxu0 0.0
    %v1151 = vand.u32 %v17, 4294901760
    %v1152 = vsub.f32 %v17, %v1151
    %v1153 = vand.u32 %v1152, 4294901760
    %1154 = vmatpush1.msra.mxu0 %v1153
    %1155 = vmatprep.subr.mxu0 0.0
    %v1156 = vand.u32 %v18, 4294901760
    %v1157 = vsub.f32 %v18, %v1156
    %v1158 = vand.u32 %v1157, 4294901760
    %1159 = vmatpush1.msra.mxu0 %v1158
    %1160 = vmatprep.subr.mxu0 0.0
    %v1161 = vand.u32 %v19, 4294901760
    %v1162 = vsub.f32 %v19, %v1161
    %v1163 = vand.u32 %v1162, 4294901760
    %1164 = vmatpush1.msra.mxu0 %v1163
    %1165 = vmatprep.subr.mxu0 0.0
    %v1166 = vand.u32 %v20, 4294901760
    %v1167 = vsub.f32 %v20, %v1166
    %v1168 = vand.u32 %v1167, 4294901760
    %1169 = vmatpush1.msra.mxu0 %v1168
    %1170 = vmatprep.subr.mxu0 0.0
    %v1171 = vand.u32 %v21, 4294901760
    %v1172 = vsub.f32 %v21, %v1171
    %v1173 = vand.u32 %v1172, 4294901760
    %1174 = vmatpush1.msra.mxu0 %v1173
    %1175 = vmatprep.subr.mxu0 0.0
    %v1176 = vand.u32 %v22, 4294901760
    %v1177 = vsub.f32 %v22, %v1176
    %v1178 = vand.u32 %v1177, 4294901760
    %1179 = vmatpush1.msra.mxu0 %v1178
    %1180 = vmatprep.subr.mxu0 0.0
    %v1181 = vand.u32 %v23, 4294901760
    %v1182 = vsub.f32 %v23, %v1181
    %v1183 = vand.u32 %v1182, 4294901760
    %1184 = vmatpush1.msra.mxu0 %v1183
    %1185 = vmatprep.subr.mxu0 0.0
    %v1186 = vand.u32 %v24, 4294901760
    %v1187 = vsub.f32 %v24, %v1186
    %v1188 = vand.u32 %v1187, 4294901760
    %1189 = vmatpush1.msra.mxu0 %v1188
    %1190 = vmatprep.subr.mxu0 0.0
    %v1191 = vand.u32 %v25, 4294901760
    %v1192 = vsub.f32 %v25, %v1191
    %v1193 = vand.u32 %v1192, 4294901760
    %1194 = vmatpush1.msra.mxu0 %v1193
    %1195 = vmatprep.subr.mxu0 0.0
    %v1196 = vand.u32 %v26, 4294901760
    %v1197 = vsub.f32 %v26, %v1196
    %v1198 = vand.u32 %v1197, 4294901760
    %1199 = vmatpush1.msra.mxu0 %v1198
    %1200 = vmatprep.subr.mxu0 0.0
    %v1201 = vand.u32 %v27, 4294901760
    %v1202 = vsub.f32 %v27, %v1201
    %v1203 = vand.u32 %v1202, 4294901760
    %1204 = vmatpush1.msra.mxu0 %v1203
    %1205 = vmatprep.subr.mxu0 0.0
    %v1206 = vand.u32 %v28, 4294901760
    %v1207 = vsub.f32 %v28, %v1206
    %v1208 = vand.u32 %v1207, 4294901760
    %1209 = vmatpush1.msra.mxu0 %v1208
    %1210 = vmatprep.subr.mxu0 0.0
    %v1211 = vand.u32 %v29, 4294901760
    %v1212 = vsub.f32 %v29, %v1211
    %v1213 = vand.u32 %v1212, 4294901760
    %1214 = vmatpush1.msra.mxu0 %v1213
    %1215 = vmatprep.subr.mxu0 0.0
    %v1216 = vand.u32 %v30, 4294901760
    %v1217 = vsub.f32 %v30, %v1216
    %v1218 = vand.u32 %v1217, 4294901760
    %1219 = vmatpush1.msra.mxu0 %v1218
    %1220 = vmatprep.subr.mxu0 0.0
    %1221 = vmatpush1.msra.mxu0 0.0
    %1222 = vmatprep.subr.mxu0 0.0
    %1223 = vmatpush1.msra.mxu0 0.0
    %1224 = vmatprep.subr.mxu0 0.0
    %1225 = vmatpush1.msra.mxu0 0.0
    %1226 = vmatprep.subr.mxu0 0.0
    %1227 = vmatpush1.msra.mxu0 0.0
    %1228 = vmatprep.subr.mxu0 0.0
    %1229 = vmatpush1.msra.mxu0 0.0
    %1230 = vmatprep.subr.mxu0 0.0
    %1231 = vmatpush1.msra.mxu0 0.0
    %1232 = vmatprep.subr.mxu0 0.0
    %1233 = vmatpush1.msra.mxu0 0.0
    %1234 = vmatprep.subr.mxu0 0.0
    %1235 = vmatpush1.msra.mxu0 0.0
    %1236 = vmatprep.subr.mxu0 0.0
    %1237 = vmatpush1.msra.mxu0 0.0
    %1238 = vmatprep.subr.mxu0 0.0
    %1239 = vmatpush1.msra.mxu0 0.0
    %1240 = vmatprep.subr.mxu0 0.0
    %1241 = vmatpush1.msra.mxu0 0.0
    %1242 = vmatprep.subr.mxu0 0.0
    %1243 = vmatpush1.msra.mxu0 0.0
    %1244 = vmatprep.subr.mxu0 0.0
    %1245 = vmatpush1.msra.mxu0 0.0
    %1246 = vmatprep.subr.mxu0 0.0
    %1247 = vmatpush1.msra.mxu0 0.0
    %1248 = vmatprep.subr.mxu0 0.0
    %1249 = vmatpush1.msra.mxu0 0.0
    %1250 = vmatprep.subr.mxu0 0.0
    %1251 = vmatpush1.msra.mxu0 0.0
    %1252 = vmatprep.mubr.f32.mxu0 0.0
    %v1253 = vand.u32 %v704, 4294901760
    %1254 = vmatmul.mubr.f32.gmra.mrb[0].mxu0 %v1253
    %v1255 = vpop.f32.mrb[0].mxu0
    %v1256 = vadd.f32 %v1137, %v1255
    %v1257 = vpop.f32.mrb[0].mxu0
    %1258 = vdwg.mxu0
    %1259 = vmatprep.subr.mxu0 0.0
    %v1260 = vand.u32 %v15, 4294901760
    %1261 = vmatpush1.msra.mxu0 %v1260
    %1262 = vmatprep.subr.mxu0 0.0
    %v1263 = vand.u32 %v16, 4294901760
    %1264 = vmatpush1.msra.mxu0 %v1263
    %1265 = vmatprep.subr.mxu0 0.0
    %v1266 = vand.u32 %v17, 4294901760
    %1267 = vmatpush1.msra.mxu0 %v1266
    %1268 = vmatprep.subr.mxu0 0.0
    %v1269 = vand.u32 %v18, 4294901760
    %1270 = vmatpush1.msra.mxu0 %v1269
    %1271 = vmatprep.subr.mxu0 0.0
    %v1272 = vand.u32 %v19, 4294901760
    %1273 = vmatpush1.msra.mxu0 %v1272
    %1274 = vmatprep.subr.mxu0 0.0
    %v1275 = vand.u32 %v20, 4294901760
    %1276 = vmatpush1.msra.mxu0 %v1275
    %1277 = vmatprep.subr.mxu0 0.0
    %v1278 = vand.u32 %v21, 4294901760
    %1279 = vmatpush1.msra.mxu0 %v1278
    %1280 = vmatprep.subr.mxu0 0.0
    %v1281 = vand.u32 %v22, 4294901760
    %1282 = vmatpush1.msra.mxu0 %v1281
    %1283 = vmatprep.subr.mxu0 0.0
    %v1284 = vand.u32 %v23, 4294901760
    %1285 = vmatpush1.msra.mxu0 %v1284
    %1286 = vmatprep.subr.mxu0 0.0
    %v1287 = vand.u32 %v24, 4294901760
    %1288 = vmatpush1.msra.mxu0 %v1287
    %1289 = vmatprep.subr.mxu0 0.0
    %v1290 = vand.u32 %v25, 4294901760
    %1291 = vmatpush1.msra.mxu0 %v1290
    %1292 = vmatprep.subr.mxu0 0.0
    %v1293 = vand.u32 %v26, 4294901760
    %1294 = vmatpush1.msra.mxu0 %v1293
    %1295 = vmatprep.subr.mxu0 0.0
    %v1296 = vand.u32 %v27, 4294901760
    %1297 = vmatpush1.msra.mxu0 %v1296
    %1298 = vmatprep.subr.mxu0 0.0
    %v1299 = vand.u32 %v28, 4294901760
    %1300 = vmatpush1.msra.mxu0 %v1299
    %1301 = vmatprep.subr.mxu0 0.0
    %v1302 = vand.u32 %v29, 4294901760
    %1303 = vmatpush1.msra.mxu0 %v1302
    %1304 = vmatprep.subr.mxu0 0.0
    %v1305 = vand.u32 %v30, 4294901760
    %1306 = vmatpush1.msra.mxu0 %v1305
    %1307 = vmatprep.subr.mxu0 0.0
    %1308 = vmatpush1.msra.mxu0 0.0
    %1309 = vmatprep.subr.mxu0 0.0
    %1310 = vmatpush1.msra.mxu0 0.0
    %1311 = vmatprep.subr.mxu0 0.0
    %1312 = vmatpush1.msra.mxu0 0.0
    %1313 = vmatprep.subr.mxu0 0.0
    %1314 = vmatpush1.msra.mxu0 0.0
    %1315 = vmatprep.subr.mxu0 0.0
    %1316 = vmatpush1.msra.mxu0 0.0
    %1317 = vmatprep.subr.mxu0 0.0
    %1318 = vmatpush1.msra.mxu0 0.0
    %1319 = vmatprep.subr.mxu0 0.0
    %1320 = vmatpush1.msra.mxu0 0.0
    %1321 = vmatprep.subr.mxu0 0.0
    %1322 = vmatpush1.msra.mxu0 0.0
    %1323 = vmatprep.subr.mxu0 0.0
    %1324 = vmatpush1.msra.mxu0 0.0
    %1325 = vmatprep.subr.mxu0 0.0
    %1326 = vmatpush1.msra.mxu0 0.0
    %1327 = vmatprep.subr.mxu0 0.0
    %1328 = vmatpush1.msra.mxu0 0.0
    %1329 = vmatprep.subr.mxu0 0.0
    %1330 = vmatpush1.msra.mxu0 0.0
    %1331 = vmatprep.subr.mxu0 0.0
    %1332 = vmatpush1.msra.mxu0 0.0
    %1333 = vmatprep.subr.mxu0 0.0
    %1334 = vmatpush1.msra.mxu0 0.0
    %1335 = vmatprep.subr.mxu0 0.0
    %1336 = vmatpush1.msra.mxu0 0.0
    %1337 = vmatprep.subr.mxu0 0.0
    %1338 = vmatpush1.msra.mxu0 0.0
    %1339 = vmatprep.mubr.f32.mxu0 0.0
    %v1340 = vand.u32 %v704, 4294901760
    %1341 = vmatmul.mubr.f32.gmra.mrb[0].mxu0 %v1340
    %v1342 = vpop.f32.mrb[0].mxu0
    %v1343 = vadd.f32 %v1256, %v1342
    %v1344 = vpop.f32.mrb[0].mxu0
    %1345 = vdwg.mxu0
    %v1346 = vmul.f32 %v700, 0.9
    %v1347 = vadd.f32 %v1346, %v1343
    %vm1348 = vcmp.le.s32.totalorder %v41, 1
    %vm1349 = vcmp.gt.s32.totalorder %v41, 4294967289
    %vm1350 = vmand %vm1348, %vm1349
    %vm1351 = vcmp.ge.f32.partialorder %v1347, 1.0
    %vm1352 = vmand %vm1351, %vm1350
    %v1353 = vsel %vm1352, 1, 0
    %v1354 = vcvt.s32.f32 %v1353
    %v1355 = vsel %vm1352, 0.0, %v1347
    %v1356 = vsel %vm1350, %v1355, %v700
    %v1357 = vadd.f32 %v701, %v1354
    %s1358 = scalar_lea.vmem %s0, 16
    %v1359 = vld [vmem:[%s1358] sm:$0xff]
    %v1360 = vadd.f32 %v1354, %v1359
    %1361 = vmatprep.subr.mxu0 0.0
    %v1362 = vand.u32 %v15, 4294901760
    %1363 = vmatpush1.msra.mxu0 %v1362
    %1364 = vmatprep.subr.mxu0 0.0
    %v1365 = vand.u32 %v16, 4294901760
    %1366 = vmatpush1.msra.mxu0 %v1365
    %1367 = vmatprep.subr.mxu0 0.0
    %v1368 = vand.u32 %v17, 4294901760
    %1369 = vmatpush1.msra.mxu0 %v1368
    %1370 = vmatprep.subr.mxu0 0.0
    %v1371 = vand.u32 %v18, 4294901760
    %1372 = vmatpush1.msra.mxu0 %v1371
    %1373 = vmatprep.subr.mxu0 0.0
    %v1374 = vand.u32 %v19, 4294901760
    %1375 = vmatpush1.msra.mxu0 %v1374
    %1376 = vmatprep.subr.mxu0 0.0
    %v1377 = vand.u32 %v20, 4294901760
    %1378 = vmatpush1.msra.mxu0 %v1377
    %1379 = vmatprep.subr.mxu0 0.0
    %v1380 = vand.u32 %v21, 4294901760
    %1381 = vmatpush1.msra.mxu0 %v1380
    %1382 = vmatprep.subr.mxu0 0.0
    %v1383 = vand.u32 %v22, 4294901760
    %1384 = vmatpush1.msra.mxu0 %v1383
    %1385 = vmatprep.subr.mxu0 0.0
    %v1386 = vand.u32 %v23, 4294901760
    %1387 = vmatpush1.msra.mxu0 %v1386
    %1388 = vmatprep.subr.mxu0 0.0
    %v1389 = vand.u32 %v24, 4294901760
    %1390 = vmatpush1.msra.mxu0 %v1389
    %1391 = vmatprep.subr.mxu0 0.0
    %v1392 = vand.u32 %v25, 4294901760
    %1393 = vmatpush1.msra.mxu0 %v1392
    %1394 = vmatprep.subr.mxu0 0.0
    %v1395 = vand.u32 %v26, 4294901760
    %1396 = vmatpush1.msra.mxu0 %v1395
    %1397 = vmatprep.subr.mxu0 0.0
    %v1398 = vand.u32 %v27, 4294901760
    %1399 = vmatpush1.msra.mxu0 %v1398
    %1400 = vmatprep.subr.mxu0 0.0
    %v1401 = vand.u32 %v28, 4294901760
    %1402 = vmatpush1.msra.mxu0 %v1401
    %1403 = vmatprep.subr.mxu0 0.0
    %v1404 = vand.u32 %v29, 4294901760
    %1405 = vmatpush1.msra.mxu0 %v1404
    %1406 = vmatprep.subr.mxu0 0.0
    %v1407 = vand.u32 %v30, 4294901760
    %1408 = vmatpush1.msra.mxu0 %v1407
    %1409 = vmatprep.subr.mxu0 0.0
    %1410 = vmatpush1.msra.mxu0 0.0
    %1411 = vmatprep.subr.mxu0 0.0
    %1412 = vmatpush1.msra.mxu0 0.0
    %1413 = vmatprep.subr.mxu0 0.0
    %1414 = vmatpush1.msra.mxu0 0.0
    %1415 = vmatprep.subr.mxu0 0.0
    %1416 = vmatpush1.msra.mxu0 0.0
    %1417 = vmatprep.subr.mxu0 0.0
    %1418 = vmatpush1.msra.mxu0 0.0
    %1419 = vmatprep.subr.mxu0 0.0
    %1420 = vmatpush1.msra.mxu0 0.0
    %1421 = vmatprep.subr.mxu0 0.0
    %1422 = vmatpush1.msra.mxu0 0.0
    %1423 = vmatprep.subr.mxu0 0.0
    %1424 = vmatpush1.msra.mxu0 0.0
    %1425 = vmatprep.subr.mxu0 0.0
    %1426 = vmatpush1.msra.mxu0 0.0
    %1427 = vmatprep.subr.mxu0 0.0
    %1428 = vmatpush1.msra.mxu0 0.0
    %1429 = vmatprep.subr.mxu0 0.0
    %1430 = vmatpush1.msra.mxu0 0.0
    %1431 = vmatprep.subr.mxu0 0.0
    %1432 = vmatpush1.msra.mxu0 0.0
    %1433 = vmatprep.subr.mxu0 0.0
    %1434 = vmatpush1.msra.mxu0 0.0
    %1435 = vmatprep.subr.mxu0 0.0
    %1436 = vmatpush1.msra.mxu0 0.0
    %1437 = vmatprep.subr.mxu0 0.0
    %1438 = vmatpush1.msra.mxu0 0.0
    %1439 = vmatprep.subr.mxu0 0.0
    %1440 = vmatpush1.msra.mxu0 0.0
    %1441 = vmatprep.mubr.f32.mxu0 0.0
    %v1442 = vand.u32 %v1360, 4294901760
    %v1443 = vsub.f32 %v1360, %v1442
    %v1444 = vand.u32 %v1443, 4294901760
    %v1445 = vsub.f32 %v1443, %v1444
    %v1446 = vand.u32 %v1445, 4294901760
    %1447 = vmatmul.mubr.f32.gmra.mrb[0].mxu0 %v1446
    %v1448 = vpop.f32.mrb[0].mxu0
    %v1449 = vadd.f32 %v48, %v1448
    %v1450 = vpop.f32.mrb[0].mxu0
    %1451 = vdwg.mxu0
    %1452 = vmatprep.subr.mxu0 0.0
    %v1453 = vand.u32 %v15, 4294901760
    %v1454 = vsub.f32 %v15, %v1453
    %v1455 = vand.u32 %v1454, 4294901760
    %v1456 = vsub.f32 %v1454, %v1455
    %v1457 = vand.u32 %v1456, 4294901760
    %1458 = vmatpush1.msra.mxu0 %v1457
    %1459 = vmatprep.subr.mxu0 0.0
    %v1460 = vand.u32 %v16, 4294901760
    %v1461 = vsub.f32 %v16, %v1460
    %v1462 = vand.u32 %v1461, 4294901760
    %v1463 = vsub.f32 %v1461, %v1462
    %v1464 = vand.u32 %v1463, 4294901760
    %1465 = vmatpush1.msra.mxu0 %v1464
    %1466 = vmatprep.subr.mxu0 0.0
    %v1467 = vand.u32 %v17, 4294901760
    %v1468 = vsub.f32 %v17, %v1467
    %v1469 = vand.u32 %v1468, 4294901760
    %v1470 = vsub.f32 %v1468, %v1469
    %v1471 = vand.u32 %v1470, 4294901760
    %1472 = vmatpush1.msra.mxu0 %v1471
    %1473 = vmatprep.subr.mxu0 0.0
    %v1474 = vand.u32 %v18, 4294901760
    %v1475 = vsub.f32 %v18, %v1474
    %v1476 = vand.u32 %v1475, 4294901760
    %v1477 = vsub.f32 %v1475, %v1476
    %v1478 = vand.u32 %v1477, 4294901760
    %1479 = vmatpush1.msra.mxu0 %v1478
    %1480 = vmatprep.subr.mxu0 0.0
    %v1481 = vand.u32 %v19, 4294901760
    %v1482 = vsub.f32 %v19, %v1481
    %v1483 = vand.u32 %v1482, 4294901760
    %v1484 = vsub.f32 %v1482, %v1483
    %v1485 = vand.u32 %v1484, 4294901760
    %1486 = vmatpush1.msra.mxu0 %v1485
    %1487 = vmatprep.subr.mxu0 0.0
    %v1488 = vand.u32 %v20, 4294901760
    %v1489 = vsub.f32 %v20, %v1488
    %v1490 = vand.u32 %v1489, 4294901760
    %v1491 = vsub.f32 %v1489, %v1490
    %v1492 = vand.u32 %v1491, 4294901760
    %1493 = vmatpush1.msra.mxu0 %v1492
    %1494 = vmatprep.subr.mxu0 0.0
    %v1495 = vand.u32 %v21, 4294901760
    %v1496 = vsub.f32 %v21, %v1495
    %v1497 = vand.u32 %v1496, 4294901760
    %v1498 = vsub.f32 %v1496, %v1497
    %v1499 = vand.u32 %v1498, 4294901760
    %1500 = vmatpush1.msra.mxu0 %v1499
    %1501 = vmatprep.subr.mxu0 0.0
    %v1502 = vand.u32 %v22, 4294901760
    %v1503 = vsub.f32 %v22, %v1502
    %v1504 = vand.u32 %v1503, 4294901760
    %v1505 = vsub.f32 %v1503, %v1504
    %v1506 = vand.u32 %v1505, 4294901760
    %1507 = vmatpush1.msra.mxu0 %v1506
    %1508 = vmatprep.subr.mxu0 0.0
    %v1509 = vand.u32 %v23, 4294901760
    %v1510 = vsub.f32 %v23, %v1509
    %v1511 = vand.u32 %v1510, 4294901760
    %v1512 = vsub.f32 %v1510, %v1511
    %v1513 = vand.u32 %v1512, 4294901760
    %1514 = vmatpush1.msra.mxu0 %v1513
    %1515 = vmatprep.subr.mxu0 0.0
    %v1516 = vand.u32 %v24, 4294901760
    %v1517 = vsub.f32 %v24, %v1516
    %v1518 = vand.u32 %v1517, 4294901760
    %v1519 = vsub.f32 %v1517, %v1518
    %v1520 = vand.u32 %v1519, 4294901760
    %1521 = vmatpush1.msra.mxu0 %v1520
    %1522 = vmatprep.subr.mxu0 0.0
    %v1523 = vand.u32 %v25, 4294901760
    %v1524 = vsub.f32 %v25, %v1523
    %v1525 = vand.u32 %v1524, 4294901760
    %v1526 = vsub.f32 %v1524, %v1525
    %v1527 = vand.u32 %v1526, 4294901760
    %1528 = vmatpush1.msra.mxu0 %v1527
    %1529 = vmatprep.subr.mxu0 0.0
    %v1530 = vand.u32 %v26, 4294901760
    %v1531 = vsub.f32 %v26, %v1530
    %v1532 = vand.u32 %v1531, 4294901760
    %v1533 = vsub.f32 %v1531, %v1532
    %v1534 = vand.u32 %v1533, 4294901760
    %1535 = vmatpush1.msra.mxu0 %v1534
    %1536 = vmatprep.subr.mxu0 0.0
    %v1537 = vand.u32 %v27, 4294901760
    %v1538 = vsub.f32 %v27, %v1537
    %v1539 = vand.u32 %v1538, 4294901760
    %v1540 = vsub.f32 %v1538, %v1539
    %v1541 = vand.u32 %v1540, 4294901760
    %1542 = vmatpush1.msra.mxu0 %v1541
    %1543 = vmatprep.subr.mxu0 0.0
    %v1544 = vand.u32 %v28, 4294901760
    %v1545 = vsub.f32 %v28, %v1544
    %v1546 = vand.u32 %v1545, 4294901760
    %v1547 = vsub.f32 %v1545, %v1546
    %v1548 = vand.u32 %v1547, 4294901760
    %1549 = vmatpush1.msra.mxu0 %v1548
    %1550 = vmatprep.subr.mxu0 0.0
    %v1551 = vand.u32 %v29, 4294901760
    %v1552 = vsub.f32 %v29, %v1551
    %v1553 = vand.u32 %v1552, 4294901760
    %v1554 = vsub.f32 %v1552, %v1553
    %v1555 = vand.u32 %v1554, 4294901760
    %1556 = vmatpush1.msra.mxu0 %v1555
    %1557 = vmatprep.subr.mxu0 0.0
    %v1558 = vand.u32 %v30, 4294901760
    %v1559 = vsub.f32 %v30, %v1558
    %v1560 = vand.u32 %v1559, 4294901760
    %v1561 = vsub.f32 %v1559, %v1560
    %v1562 = vand.u32 %v1561, 4294901760
    %1563 = vmatpush1.msra.mxu0 %v1562
    %1564 = vmatprep.subr.mxu0 0.0
    %1565 = vmatpush1.msra.mxu0 0.0
    %1566 = vmatprep.subr.mxu0 0.0
    %1567 = vmatpush1.msra.mxu0 0.0
    %1568 = vmatprep.subr.mxu0 0.0
    %1569 = vmatpush1.msra.mxu0 0.0
    %1570 = vmatprep.subr.mxu0 0.0
    %1571 = vmatpush1.msra.mxu0 0.0
    %1572 = vmatprep.subr.mxu0 0.0
    %1573 = vmatpush1.msra.mxu0 0.0
    %1574 = vmatprep.subr.mxu0 0.0
    %1575 = vmatpush1.msra.mxu0 0.0
    %1576 = vmatprep.subr.mxu0 0.0
    %1577 = vmatpush1.msra.mxu0 0.0
    %1578 = vmatprep.subr.mxu0 0.0
    %1579 = vmatpush1.msra.mxu0 0.0
    %1580 = vmatprep.subr.mxu0 0.0
    %1581 = vmatpush1.msra.mxu0 0.0
    %1582 = vmatprep.subr.mxu0 0.0
    %1583 = vmatpush1.msra.mxu0 0.0
    %1584 = vmatprep.subr.mxu0 0.0
    %1585 = vmatpush1.msra.mxu0 0.0
    %1586 = vmatprep.subr.mxu0 0.0
    %1587 = vmatpush1.msra.mxu0 0.0
    %1588 = vmatprep.subr.mxu0 0.0
    %1589 = vmatpush1.msra.mxu0 0.0
    %1590 = vmatprep.subr.mxu0 0.0
    %1591 = vmatpush1.msra.mxu0 0.0
    %1592 = vmatprep.subr.mxu0 0.0
    %1593 = vmatpush1.msra.mxu0 0.0
    %1594 = vmatprep.subr.mxu0 0.0
    %1595 = vmatpush1.msra.mxu0 0.0
    %1596 = vmatprep.mubr.f32.mxu0 0.0
    %v1597 = vand.u32 %v1360, 4294901760
    %1598 = vmatmul.mubr.f32.gmra.mrb[0].mxu0 %v1597
    %v1599 = vpop.f32.mrb[0].mxu0
    %v1600 = vadd.f32 %v1449, %v1599
    %v1601 = vpop.f32.mrb[0].mxu0
    %1602 = vdwg.mxu0
    %1603 = vmatprep.subr.mxu0 0.0
    %v1604 = vand.u32 %v15, 4294901760
    %v1605 = vsub.f32 %v15, %v1604
    %1606 = vmatpush1.msra.mxu0 %v1605
    %1607 = vmatprep.subr.mxu0 0.0
    %v1608 = vand.u32 %v16, 4294901760
    %v1609 = vsub.f32 %v16, %v1608
    %1610 = vmatpush1.msra.mxu0 %v1609
    %1611 = vmatprep.subr.mxu0 0.0
    %v1612 = vand.u32 %v17, 4294901760
    %v1613 = vsub.f32 %v17, %v1612
    %1614 = vmatpush1.msra.mxu0 %v1613
    %1615 = vmatprep.subr.mxu0 0.0
    %v1616 = vand.u32 %v18, 4294901760
    %v1617 = vsub.f32 %v18, %v1616
    %1618 = vmatpush1.msra.mxu0 %v1617
    %1619 = vmatprep.subr.mxu0 0.0
    %v1620 = vand.u32 %v19, 4294901760
    %v1621 = vsub.f32 %v19, %v1620
    %1622 = vmatpush1.msra.mxu0 %v1621
    %1623 = vmatprep.subr.mxu0 0.0
    %v1624 = vand.u32 %v20, 4294901760
    %v1625 = vsub.f32 %v20, %v1624
    %1626 = vmatpush1.msra.mxu0 %v1625
    %1627 = vmatprep.subr.mxu0 0.0
    %v1628 = vand.u32 %v21, 4294901760
    %v1629 = vsub.f32 %v21, %v1628
    %1630 = vmatpush1.msra.mxu0 %v1629
    %1631 = vmatprep.subr.mxu0 0.0
    %v1632 = vand.u32 %v22, 4294901760
    %v1633 = vsub.f32 %v22, %v1632
    %1634 = vmatpush1.msra.mxu0 %v1633
    %1635 = vmatprep.subr.mxu0 0.0
    %v1636 = vand.u32 %v23, 4294901760
    %v1637 = vsub.f32 %v23, %v1636
    %1638 = vmatpush1.msra.mxu0 %v1637
    %1639 = vmatprep.subr.mxu0 0.0
    %v1640 = vand.u32 %v24, 4294901760
    %v1641 = vsub.f32 %v24, %v1640
    %1642 = vmatpush1.msra.mxu0 %v1641
    %1643 = vmatprep.subr.mxu0 0.0
    %v1644 = vand.u32 %v25, 4294901760
    %v1645 = vsub.f32 %v25, %v1644
    %1646 = vmatpush1.msra.mxu0 %v1645
    %1647 = vmatprep.subr.mxu0 0.0
    %v1648 = vand.u32 %v26, 4294901760
    %v1649 = vsub.f32 %v26, %v1648
    %1650 = vmatpush1.msra.mxu0 %v1649
    %1651 = vmatprep.subr.mxu0 0.0
    %v1652 = vand.u32 %v27, 4294901760
    %v1653 = vsub.f32 %v27, %v1652
    %1654 = vmatpush1.msra.mxu0 %v1653
    %1655 = vmatprep.subr.mxu0 0.0
    %v1656 = vand.u32 %v28, 4294901760
    %v1657 = vsub.f32 %v28, %v1656
    %1658 = vmatpush1.msra.mxu0 %v1657
    %1659 = vmatprep.subr.mxu0 0.0
    %v1660 = vand.u32 %v29, 4294901760
    %v1661 = vsub.f32 %v29, %v1660
    %1662 = vmatpush1.msra.mxu0 %v1661
    %1663 = vmatprep.subr.mxu0 0.0
    %v1664 = vand.u32 %v30, 4294901760
    %v1665 = vsub.f32 %v30, %v1664
    %1666 = vmatpush1.msra.mxu0 %v1665
    %1667 = vmatprep.subr.mxu0 0.0
    %1668 = vmatpush1.msra.mxu0 0.0
    %1669 = vmatprep.subr.mxu0 0.0
    %1670 = vmatpush1.msra.mxu0 0.0
    %1671 = vmatprep.subr.mxu0 0.0
    %1672 = vmatpush1.msra.mxu0 0.0
    %1673 = vmatprep.subr.mxu0 0.0
    %1674 = vmatpush1.msra.mxu0 0.0
    %1675 = vmatprep.subr.mxu0 0.0
    %1676 = vmatpush1.msra.mxu0 0.0
    %1677 = vmatprep.subr.mxu0 0.0
    %1678 = vmatpush1.msra.mxu0 0.0
    %1679 = vmatprep.subr.mxu0 0.0
    %1680 = vmatpush1.msra.mxu0 0.0
    %1681 = vmatprep.subr.mxu0 0.0
    %1682 = vmatpush1.msra.mxu0 0.0
    %1683 = vmatprep.subr.mxu0 0.0
    %1684 = vmatpush1.msra.mxu0 0.0
    %1685 = vmatprep.subr.mxu0 0.0
    %1686 = vmatpush1.msra.mxu0 0.0
    %1687 = vmatprep.subr.mxu0 0.0
    %1688 = vmatpush1.msra.mxu0 0.0
    %1689 = vmatprep.subr.mxu0 0.0
    %1690 = vmatpush1.msra.mxu0 0.0
    %1691 = vmatprep.subr.mxu0 0.0
    %1692 = vmatpush1.msra.mxu0 0.0
    %1693 = vmatprep.subr.mxu0 0.0
    %1694 = vmatpush1.msra.mxu0 0.0
    %1695 = vmatprep.subr.mxu0 0.0
    %1696 = vmatpush1.msra.mxu0 0.0
    %1697 = vmatprep.subr.mxu0 0.0
    %1698 = vmatpush1.msra.mxu0 0.0
    %1699 = vmatprep.mubr.f32.mxu0 0.0
    %v1700 = vand.u32 %v1360, 4294901760
    %v1701 = vsub.f32 %v1360, %v1700
    %1702 = vmatmul.mubr.f32.gmra.mrb[0].mxu0 %v1701
    %v1703 = vpop.f32.mrb[0].mxu0
    %v1704 = vadd.f32 %v1600, %v1703
    %v1705 = vpop.f32.mrb[0].mxu0
    %1706 = vdwg.mxu0
    %1707 = vmatprep.subr.mxu0 0.0
    %v1708 = vand.u32 %v15, 4294901760
    %1709 = vmatpush1.msra.mxu0 %v1708
    %1710 = vmatprep.subr.mxu0 0.0
    %v1711 = vand.u32 %v16, 4294901760
    %1712 = vmatpush1.msra.mxu0 %v1711
    %1713 = vmatprep.subr.mxu0 0.0
    %v1714 = vand.u32 %v17, 4294901760
    %1715 = vmatpush1.msra.mxu0 %v1714
    %1716 = vmatprep.subr.mxu0 0.0
    %v1717 = vand.u32 %v18, 4294901760
    %1718 = vmatpush1.msra.mxu0 %v1717
    %1719 = vmatprep.subr.mxu0 0.0
    %v1720 = vand.u32 %v19, 4294901760
    %1721 = vmatpush1.msra.mxu0 %v1720
    %1722 = vmatprep.subr.mxu0 0.0
    %v1723 = vand.u32 %v20, 4294901760
    %1724 = vmatpush1.msra.mxu0 %v1723
    %1725 = vmatprep.subr.mxu0 0.0
    %v1726 = vand.u32 %v21, 4294901760
    %1727 = vmatpush1.msra.mxu0 %v1726
    %1728 = vmatprep.subr.mxu0 0.0
    %v1729 = vand.u32 %v22, 4294901760
    %1730 = vmatpush1.msra.mxu0 %v1729
    %1731 = vmatprep.subr.mxu0 0.0
    %v1732 = vand.u32 %v23, 4294901760
    %1733 = vmatpush1.msra.mxu0 %v1732
    %1734 = vmatprep.subr.mxu0 0.0
    %v1735 = vand.u32 %v24, 4294901760
    %1736 = vmatpush1.msra.mxu0 %v1735
    %1737 = vmatprep.subr.mxu0 0.0
    %v1738 = vand.u32 %v25, 4294901760
    %1739 = vmatpush1.msra.mxu0 %v1738
    %1740 = vmatprep.subr.mxu0 0.0
    %v1741 = vand.u32 %v26, 4294901760
    %1742 = vmatpush1.msra.mxu0 %v1741
    %1743 = vmatprep.subr.mxu0 0.0
    %v1744 = vand.u32 %v27, 4294901760
    %1745 = vmatpush1.msra.mxu0 %v1744
    %1746 = vmatprep.subr.mxu0 0.0
    %v1747 = vand.u32 %v28, 4294901760
    %1748 = vmatpush1.msra.mxu0 %v1747
    %1749 = vmatprep.subr.mxu0 0.0
    %v1750 = vand.u32 %v29, 4294901760
    %1751 = vmatpush1.msra.mxu0 %v1750
    %1752 = vmatprep.subr.mxu0 0.0
    %v1753 = vand.u32 %v30, 4294901760
    %1754 = vmatpush1.msra.mxu0 %v1753
    %1755 = vmatprep.subr.mxu0 0.0
    %1756 = vmatpush1.msra.mxu0 0.0
    %1757 = vmatprep.subr.mxu0 0.0
    %1758 = vmatpush1.msra.mxu0 0.0
    %1759 = vmatprep.subr.mxu0 0.0
    %1760 = vmatpush1.msra.mxu0 0.0
    %1761 = vmatprep.subr.mxu0 0.0
    %1762 = vmatpush1.msra.mxu0 0.0
    %1763 = vmatprep.subr.mxu0 0.0
    %1764 = vmatpush1.msra.mxu0 0.0
    %1765 = vmatprep.subr.mxu0 0.0
    %1766 = vmatpush1.msra.mxu0 0.0
    %1767 = vmatprep.subr.mxu0 0.0
    %1768 = vmatpush1.msra.mxu0 0.0
    %1769 = vmatprep.subr.mxu0 0.0
    %1770 = vmatpush1.msra.mxu0 0.0
    %1771 = vmatprep.subr.mxu0 0.0
    %1772 = vmatpush1.msra.mxu0 0.0
    %1773 = vmatprep.subr.mxu0 0.0
    %1774 = vmatpush1.msra.mxu0 0.0
    %1775 = vmatprep.subr.mxu0 0.0
    %1776 = vmatpush1.msra.mxu0 0.0
    %1777 = vmatprep.subr.mxu0 0.0
    %1778 = vmatpush1.msra.mxu0 0.0
    %1779 = vmatprep.subr.mxu0 0.0
    %1780 = vmatpush1.msra.mxu0 0.0
    %1781 = vmatprep.subr.mxu0 0.0
    %1782 = vmatpush1.msra.mxu0 0.0
    %1783 = vmatprep.subr.mxu0 0.0
    %1784 = vmatpush1.msra.mxu0 0.0
    %1785 = vmatprep.subr.mxu0 0.0
    %1786 = vmatpush1.msra.mxu0 0.0
    %1787 = vmatprep.mubr.f32.mxu0 0.0
    %v1788 = vand.u32 %v1360, 4294901760
    %v1789 = vsub.f32 %v1360, %v1788
    %v1790 = vand.u32 %v1789, 4294901760
    %1791 = vmatmul.mubr.f32.gmra.mrb[0].mxu0 %v1790
    %v1792 = vpop.f32.mrb[0].mxu0
    %v1793 = vadd.f32 %v1704, %v1792
    %v1794 = vpop.f32.mrb[0].mxu0
    %1795 = vdwg.mxu0
    %1796 = vmatprep.subr.mxu0 0.0
    %v1797 = vand.u32 %v15, 4294901760
    %v1798 = vsub.f32 %v15, %v1797
    %v1799 = vand.u32 %v1798, 4294901760
    %1800 = vmatpush1.msra.mxu0 %v1799
    %1801 = vmatprep.subr.mxu0 0.0
    %v1802 = vand.u32 %v16, 4294901760
    %v1803 = vsub.f32 %v16, %v1802
    %v1804 = vand.u32 %v1803, 4294901760
    %1805 = vmatpush1.msra.mxu0 %v1804
    %1806 = vmatprep.subr.mxu0 0.0
    %v1807 = vand.u32 %v17, 4294901760
    %v1808 = vsub.f32 %v17, %v1807
    %v1809 = vand.u32 %v1808, 4294901760
    %1810 = vmatpush1.msra.mxu0 %v1809
    %1811 = vmatprep.subr.mxu0 0.0
    %v1812 = vand.u32 %v18, 4294901760
    %v1813 = vsub.f32 %v18, %v1812
    %v1814 = vand.u32 %v1813, 4294901760
    %1815 = vmatpush1.msra.mxu0 %v1814
    %1816 = vmatprep.subr.mxu0 0.0
    %v1817 = vand.u32 %v19, 4294901760
    %v1818 = vsub.f32 %v19, %v1817
    %v1819 = vand.u32 %v1818, 4294901760
    %1820 = vmatpush1.msra.mxu0 %v1819
    %1821 = vmatprep.subr.mxu0 0.0
    %v1822 = vand.u32 %v20, 4294901760
    %v1823 = vsub.f32 %v20, %v1822
    %v1824 = vand.u32 %v1823, 4294901760
    %1825 = vmatpush1.msra.mxu0 %v1824
    %1826 = vmatprep.subr.mxu0 0.0
    %v1827 = vand.u32 %v21, 4294901760
    %v1828 = vsub.f32 %v21, %v1827
    %v1829 = vand.u32 %v1828, 4294901760
    %1830 = vmatpush1.msra.mxu0 %v1829
    %1831 = vmatprep.subr.mxu0 0.0
    %v1832 = vand.u32 %v22, 4294901760
    %v1833 = vsub.f32 %v22, %v1832
    %v1834 = vand.u32 %v1833, 4294901760
    %1835 = vmatpush1.msra.mxu0 %v1834
    %1836 = vmatprep.subr.mxu0 0.0
    %v1837 = vand.u32 %v23, 4294901760
    %v1838 = vsub.f32 %v23, %v1837
    %v1839 = vand.u32 %v1838, 4294901760
    %1840 = vmatpush1.msra.mxu0 %v1839
    %1841 = vmatprep.subr.mxu0 0.0
    %v1842 = vand.u32 %v24, 4294901760
    %v1843 = vsub.f32 %v24, %v1842
    %v1844 = vand.u32 %v1843, 4294901760
    %1845 = vmatpush1.msra.mxu0 %v1844
    %1846 = vmatprep.subr.mxu0 0.0
    %v1847 = vand.u32 %v25, 4294901760
    %v1848 = vsub.f32 %v25, %v1847
    %v1849 = vand.u32 %v1848, 4294901760
    %1850 = vmatpush1.msra.mxu0 %v1849
    %1851 = vmatprep.subr.mxu0 0.0
    %v1852 = vand.u32 %v26, 4294901760
    %v1853 = vsub.f32 %v26, %v1852
    %v1854 = vand.u32 %v1853, 4294901760
    %1855 = vmatpush1.msra.mxu0 %v1854
    %1856 = vmatprep.subr.mxu0 0.0
    %v1857 = vand.u32 %v27, 4294901760
    %v1858 = vsub.f32 %v27, %v1857
    %v1859 = vand.u32 %v1858, 4294901760
    %1860 = vmatpush1.msra.mxu0 %v1859
    %1861 = vmatprep.subr.mxu0 0.0
    %v1862 = vand.u32 %v28, 4294901760
    %v1863 = vsub.f32 %v28, %v1862
    %v1864 = vand.u32 %v1863, 4294901760
    %1865 = vmatpush1.msra.mxu0 %v1864
    %1866 = vmatprep.subr.mxu0 0.0
    %v1867 = vand.u32 %v29, 4294901760
    %v1868 = vsub.f32 %v29, %v1867
    %v1869 = vand.u32 %v1868, 4294901760
    %1870 = vmatpush1.msra.mxu0 %v1869
    %1871 = vmatprep.subr.mxu0 0.0
    %v1872 = vand.u32 %v30, 4294901760
    %v1873 = vsub.f32 %v30, %v1872
    %v1874 = vand.u32 %v1873, 4294901760
    %1875 = vmatpush1.msra.mxu0 %v1874
    %1876 = vmatprep.subr.mxu0 0.0
    %1877 = vmatpush1.msra.mxu0 0.0
    %1878 = vmatprep.subr.mxu0 0.0
    %1879 = vmatpush1.msra.mxu0 0.0
    %1880 = vmatprep.subr.mxu0 0.0
    %1881 = vmatpush1.msra.mxu0 0.0
    %1882 = vmatprep.subr.mxu0 0.0
    %1883 = vmatpush1.msra.mxu0 0.0
    %1884 = vmatprep.subr.mxu0 0.0
    %1885 = vmatpush1.msra.mxu0 0.0
    %1886 = vmatprep.subr.mxu0 0.0
    %1887 = vmatpush1.msra.mxu0 0.0
    %1888 = vmatprep.subr.mxu0 0.0
    %1889 = vmatpush1.msra.mxu0 0.0
    %1890 = vmatprep.subr.mxu0 0.0
    %1891 = vmatpush1.msra.mxu0 0.0
    %1892 = vmatprep.subr.mxu0 0.0
    %1893 = vmatpush1.msra.mxu0 0.0
    %1894 = vmatprep.subr.mxu0 0.0
    %1895 = vmatpush1.msra.mxu0 0.0
    %1896 = vmatprep.subr.mxu0 0.0
    %1897 = vmatpush1.msra.mxu0 0.0
    %1898 = vmatprep.subr.mxu0 0.0
    %1899 = vmatpush1.msra.mxu0 0.0
    %1900 = vmatprep.subr.mxu0 0.0
    %1901 = vmatpush1.msra.mxu0 0.0
    %1902 = vmatprep.subr.mxu0 0.0
    %1903 = vmatpush1.msra.mxu0 0.0
    %1904 = vmatprep.subr.mxu0 0.0
    %1905 = vmatpush1.msra.mxu0 0.0
    %1906 = vmatprep.subr.mxu0 0.0
    %1907 = vmatpush1.msra.mxu0 0.0
    %1908 = vmatprep.mubr.f32.mxu0 0.0
    %v1909 = vand.u32 %v1360, 4294901760
    %1910 = vmatmul.mubr.f32.gmra.mrb[0].mxu0 %v1909
    %v1911 = vpop.f32.mrb[0].mxu0
    %v1912 = vadd.f32 %v1793, %v1911
    %v1913 = vpop.f32.mrb[0].mxu0
    %1914 = vdwg.mxu0
    %1915 = vmatprep.subr.mxu0 0.0
    %v1916 = vand.u32 %v15, 4294901760
    %1917 = vmatpush1.msra.mxu0 %v1916
    %1918 = vmatprep.subr.mxu0 0.0
    %v1919 = vand.u32 %v16, 4294901760
    %1920 = vmatpush1.msra.mxu0 %v1919
    %1921 = vmatprep.subr.mxu0 0.0
    %v1922 = vand.u32 %v17, 4294901760
    %1923 = vmatpush1.msra.mxu0 %v1922
    %1924 = vmatprep.subr.mxu0 0.0
    %v1925 = vand.u32 %v18, 4294901760
    %1926 = vmatpush1.msra.mxu0 %v1925
    %1927 = vmatprep.subr.mxu0 0.0
    %v1928 = vand.u32 %v19, 4294901760
    %1929 = vmatpush1.msra.mxu0 %v1928
    %1930 = vmatprep.subr.mxu0 0.0
    %v1931 = vand.u32 %v20, 4294901760
    %1932 = vmatpush1.msra.mxu0 %v1931
    %1933 = vmatprep.subr.mxu0 0.0
    %v1934 = vand.u32 %v21, 4294901760
    %1935 = vmatpush1.msra.mxu0 %v1934
    %1936 = vmatprep.subr.mxu0 0.0
    %v1937 = vand.u32 %v22, 4294901760
    %1938 = vmatpush1.msra.mxu0 %v1937
    %1939 = vmatprep.subr.mxu0 0.0
    %v1940 = vand.u32 %v23, 4294901760
    %1941 = vmatpush1.msra.mxu0 %v1940
    %1942 = vmatprep.subr.mxu0 0.0
    %v1943 = vand.u32 %v24, 4294901760
    %1944 = vmatpush1.msra.mxu0 %v1943
    %1945 = vmatprep.subr.mxu0 0.0
    %v1946 = vand.u32 %v25, 4294901760
    %1947 = vmatpush1.msra.mxu0 %v1946
    %1948 = vmatprep.subr.mxu0 0.0
    %v1949 = vand.u32 %v26, 4294901760
    %1950 = vmatpush1.msra.mxu0 %v1949
    %1951 = vmatprep.subr.mxu0 0.0
    %v1952 = vand.u32 %v27, 4294901760
    %1953 = vmatpush1.msra.mxu0 %v1952
    %1954 = vmatprep.subr.mxu0 0.0
    %v1955 = vand.u32 %v28, 4294901760
    %1956 = vmatpush1.msra.mxu0 %v1955
    %1957 = vmatprep.subr.mxu0 0.0
    %v1958 = vand.u32 %v29, 4294901760
    %1959 = vmatpush1.msra.mxu0 %v1958
    %1960 = vmatprep.subr.mxu0 0.0
    %v1961 = vand.u32 %v30, 4294901760
    %1962 = vmatpush1.msra.mxu0 %v1961
    %1963 = vmatprep.subr.mxu0 0.0
    %1964 = vmatpush1.msra.mxu0 0.0
    %1965 = vmatprep.subr.mxu0 0.0
    %1966 = vmatpush1.msra.mxu0 0.0
    %1967 = vmatprep.subr.mxu0 0.0
    %1968 = vmatpush1.msra.mxu0 0.0
    %1969 = vmatprep.subr.mxu0 0.0
    %1970 = vmatpush1.msra.mxu0 0.0
    %1971 = vmatprep.subr.mxu0 0.0
    %1972 = vmatpush1.msra.mxu0 0.0
    %1973 = vmatprep.subr.mxu0 0.0
    %1974 = vmatpush1.msra.mxu0 0.0
    %1975 = vmatprep.subr.mxu0 0.0
    %1976 = vmatpush1.msra.mxu0 0.0
    %1977 = vmatprep.subr.mxu0 0.0
    %1978 = vmatpush1.msra.mxu0 0.0
    %1979 = vmatprep.subr.mxu0 0.0
    %1980 = vmatpush1.msra.mxu0 0.0
    %1981 = vmatprep.subr.mxu0 0.0
    %1982 = vmatpush1.msra.mxu0 0.0
    %1983 = vmatprep.subr.mxu0 0.0
    %1984 = vmatpush1.msra.mxu0 0.0
    %1985 = vmatprep.subr.mxu0 0.0
    %1986 = vmatpush1.msra.mxu0 0.0
    %1987 = vmatprep.subr.mxu0 0.0
    %1988 = vmatpush1.msra.mxu0 0.0
    %1989 = vmatprep.subr.mxu0 0.0
    %1990 = vmatpush1.msra.mxu0 0.0
    %1991 = vmatprep.subr.mxu0 0.0
    %1992 = vmatpush1.msra.mxu0 0.0
    %1993 = vmatprep.subr.mxu0 0.0
    %1994 = vmatpush1.msra.mxu0 0.0
    %1995 = vmatprep.mubr.f32.mxu0 0.0
    %v1996 = vand.u32 %v1360, 4294901760
    %1997 = vmatmul.mubr.f32.gmra.mrb[0].mxu0 %v1996
    %v1998 = vpop.f32.mrb[0].mxu0
    %v1999 = vadd.f32 %v1912, %v1998
    %v2000 = vpop.f32.mrb[0].mxu0
    %2001 = vdwg.mxu0
    %v2002 = vmul.f32 %v1356, 0.9
    %v2003 = vadd.f32 %v2002, %v1999
    %vm2004 = vcmp.le.s32.totalorder %v41, 2
    %vm2005 = vcmp.gt.s32.totalorder %v41, 4294967290
    %vm2006 = vmand %vm2004, %vm2005
    %vm2007 = vcmp.ge.f32.partialorder %v2003, 1.0
    %vm2008 = vmand %vm2007, %vm2006
    %v2009 = vsel %vm2008, 1, 0
    %v2010 = vcvt.s32.f32 %v2009
    %v2011 = vsel %vm2008, 0.0, %v2003
    %v2012 = vsel %vm2006, %v2011, %v1356
    %v2013 = vadd.f32 %v1357, %v2010
    %s2014 = scalar_lea.vmem %s0, 24
    %v2015 = vld [vmem:[%s2014] sm:$0xff]
    %v2016 = vadd.f32 %v2010, %v2015
    %2017 = vmatprep.subr.mxu0 0.0
    %v2018 = vand.u32 %v15, 4294901760
    %2019 = vmatpush1.msra.mxu0 %v2018
    %2020 = vmatprep.subr.mxu0 0.0
    %v2021 = vand.u32 %v16, 4294901760
    %2022 = vmatpush1.msra.mxu0 %v2021
    %2023 = vmatprep.subr.mxu0 0.0
    %v2024 = vand.u32 %v17, 4294901760
    %2025 = vmatpush1.msra.mxu0 %v2024
    %2026 = vmatprep.subr.mxu0 0.0
    %v2027 = vand.u32 %v18, 4294901760
    %2028 = vmatpush1.msra.mxu0 %v2027
    %2029 = vmatprep.subr.mxu0 0.0
    %v2030 = vand.u32 %v19, 4294901760
    %2031 = vmatpush1.msra.mxu0 %v2030
    %2032 = vmatprep.subr.mxu0 0.0
    %v2033 = vand.u32 %v20, 4294901760
    %2034 = vmatpush1.msra.mxu0 %v2033
    %2035 = vmatprep.subr.mxu0 0.0
    %v2036 = vand.u32 %v21, 4294901760
    %2037 = vmatpush1.msra.mxu0 %v2036
    %2038 = vmatprep.subr.mxu0 0.0
    %v2039 = vand.u32 %v22, 4294901760
    %2040 = vmatpush1.msra.mxu0 %v2039
    %2041 = vmatprep.subr.mxu0 0.0
    %v2042 = vand.u32 %v23, 4294901760
    %2043 = vmatpush1.msra.mxu0 %v2042
    %2044 = vmatprep.subr.mxu0 0.0
    %v2045 = vand.u32 %v24, 4294901760
    %2046 = vmatpush1.msra.mxu0 %v2045
    %2047 = vmatprep.subr.mxu0 0.0
    %v2048 = vand.u32 %v25, 4294901760
    %2049 = vmatpush1.msra.mxu0 %v2048
    %2050 = vmatprep.subr.mxu0 0.0
    %v2051 = vand.u32 %v26, 4294901760
    %2052 = vmatpush1.msra.mxu0 %v2051
    %2053 = vmatprep.subr.mxu0 0.0
    %v2054 = vand.u32 %v27, 4294901760
    %2055 = vmatpush1.msra.mxu0 %v2054
    %2056 = vmatprep.subr.mxu0 0.0
    %v2057 = vand.u32 %v28, 4294901760
    %2058 = vmatpush1.msra.mxu0 %v2057
    %2059 = vmatprep.subr.mxu0 0.0
    %v2060 = vand.u32 %v29, 4294901760
    %2061 = vmatpush1.msra.mxu0 %v2060
    %2062 = vmatprep.subr.mxu0 0.0
    %v2063 = vand.u32 %v30, 4294901760
    %2064 = vmatpush1.msra.mxu0 %v2063
    %2065 = vmatprep.subr.mxu0 0.0
    %2066 = vmatpush1.msra.mxu0 0.0
    %2067 = vmatprep.subr.mxu0 0.0
    %2068 = vmatpush1.msra.mxu0 0.0
    %2069 = vmatprep.subr.mxu0 0.0
    %2070 = vmatpush1.msra.mxu0 0.0
    %2071 = vmatprep.subr.mxu0 0.0
    %2072 = vmatpush1.msra.mxu0 0.0
    %2073 = vmatprep.subr.mxu0 0.0
    %2074 = vmatpush1.msra.mxu0 0.0
    %2075 = vmatprep.subr.mxu0 0.0
    %2076 = vmatpush1.msra.mxu0 0.0
    %2077 = vmatprep.subr.mxu0 0.0
    %2078 = vmatpush1.msra.mxu0 0.0
    %2079 = vmatprep.subr.mxu0 0.0
    %2080 = vmatpush1.msra.mxu0 0.0
    %2081 = vmatprep.subr.mxu0 0.0
    %2082 = vmatpush1.msra.mxu0 0.0
    %2083 = vmatprep.subr.mxu0 0.0
    %2084 = vmatpush1.msra.mxu0 0.0
    %2085 = vmatprep.subr.mxu0 0.0
    %2086 = vmatpush1.msra.mxu0 0.0
    %2087 = vmatprep.subr.mxu0 0.0
    %2088 = vmatpush1.msra.mxu0 0.0
    %2089 = vmatprep.subr.mxu0 0.0
    %2090 = vmatpush1.msra.mxu0 0.0
    %2091 = vmatprep.subr.mxu0 0.0
    %2092 = vmatpush1.msra.mxu0 0.0
    %2093 = vmatprep.subr.mxu0 0.0
    %2094 = vmatpush1.msra.mxu0 0.0
    %2095 = vmatprep.subr.mxu0 0.0
    %2096 = vmatpush1.msra.mxu0 0.0
    %2097 = vmatprep.mubr.f32.mxu0 0.0
    %v2098 = vand.u32 %v2016, 4294901760
    %v2099 = vsub.f32 %v2016, %v2098
    %v2100 = vand.u32 %v2099, 4294901760
    %v2101 = vsub.f32 %v2099, %v2100
    %v2102 = vand.u32 %v2101, 4294901760
    %2103 = vmatmul.mubr.f32.gmra.mrb[0].mxu0 %v2102
    %v2104 = vpop.f32.mrb[0].mxu0
    %v2105 = vadd.f32 %v48, %v2104
    %v2106 = vpop.f32.mrb[0].mxu0
    %2107 = vdwg.mxu0
    %2108 = vmatprep.subr.mxu0 0.0
    %v2109 = vand.u32 %v15, 4294901760
    %v2110 = vsub.f32 %v15, %v2109
    %v2111 = vand.u32 %v2110, 4294901760
    %v2112 = vsub.f32 %v2110, %v2111
    %v2113 = vand.u32 %v2112, 4294901760
    %2114 = vmatpush1.msra.mxu0 %v2113
    %2115 = vmatprep.subr.mxu0 0.0
    %v2116 = vand.u32 %v16, 4294901760
    %v2117 = vsub.f32 %v16, %v2116
    %v2118 = vand.u32 %v2117, 4294901760
    %v2119 = vsub.f32 %v2117, %v2118
    %v2120 = vand.u32 %v2119, 4294901760
    %2121 = vmatpush1.msra.mxu0 %v2120
    %2122 = vmatprep.subr.mxu0 0.0
    %v2123 = vand.u32 %v17, 4294901760
    %v2124 = vsub.f32 %v17, %v2123
    %v2125 = vand.u32 %v2124, 4294901760
    %v2126 = vsub.f32 %v2124, %v2125
    %v2127 = vand.u32 %v2126, 4294901760
    %2128 = vmatpush1.msra.mxu0 %v2127
    %2129 = vmatprep.subr.mxu0 0.0
    %v2130 = vand.u32 %v18, 4294901760
    %v2131 = vsub.f32 %v18, %v2130
    %v2132 = vand.u32 %v2131, 4294901760
    %v2133 = vsub.f32 %v2131, %v2132
    %v2134 = vand.u32 %v2133, 4294901760
    %2135 = vmatpush1.msra.mxu0 %v2134
    %2136 = vmatprep.subr.mxu0 0.0
    %v2137 = vand.u32 %v19, 4294901760
    %v2138 = vsub.f32 %v19, %v2137
    %v2139 = vand.u32 %v2138, 4294901760
    %v2140 = vsub.f32 %v2138, %v2139
    %v2141 = vand.u32 %v2140, 4294901760
    %2142 = vmatpush1.msra.mxu0 %v2141
    %2143 = vmatprep.subr.mxu0 0.0
    %v2144 = vand.u32 %v20, 4294901760
    %v2145 = vsub.f32 %v20, %v2144
    %v2146 = vand.u32 %v2145, 4294901760
    %v2147 = vsub.f32 %v2145, %v2146
    %v2148 = vand.u32 %v2147, 4294901760
    %2149 = vmatpush1.msra.mxu0 %v2148
    %2150 = vmatprep.subr.mxu0 0.0
    %v2151 = vand.u32 %v21, 4294901760
    %v2152 = vsub.f32 %v21, %v2151
    %v2153 = vand.u32 %v2152, 4294901760
    %v2154 = vsub.f32 %v2152, %v2153
    %v2155 = vand.u32 %v2154, 4294901760
    %2156 = vmatpush1.msra.mxu0 %v2155
    %2157 = vmatprep.subr.mxu0 0.0
    %v2158 = vand.u32 %v22, 4294901760
    %v2159 = vsub.f32 %v22, %v2158
    %v2160 = vand.u32 %v2159, 4294901760
    %v2161 = vsub.f32 %v2159, %v2160
    %v2162 = vand.u32 %v2161, 4294901760
    %2163 = vmatpush1.msra.mxu0 %v2162
    %2164 = vmatprep.subr.mxu0 0.0
    %v2165 = vand.u32 %v23, 4294901760
    %v2166 = vsub.f32 %v23, %v2165
    %v2167 = vand.u32 %v2166, 4294901760
    %v2168 = vsub.f32 %v2166, %v2167
    %v2169 = vand.u32 %v2168, 4294901760
    %2170 = vmatpush1.msra.mxu0 %v2169
    %2171 = vmatprep.subr.mxu0 0.0
    %v2172 = vand.u32 %v24, 4294901760
    %v2173 = vsub.f32 %v24, %v2172
    %v2174 = vand.u32 %v2173, 4294901760
    %v2175 = vsub.f32 %v2173, %v2174
    %v2176 = vand.u32 %v2175, 4294901760
    %2177 = vmatpush1.msra.mxu0 %v2176
    %2178 = vmatprep.subr.mxu0 0.0
    %v2179 = vand.u32 %v25, 4294901760
    %v2180 = vsub.f32 %v25, %v2179
    %v2181 = vand.u32 %v2180, 4294901760
    %v2182 = vsub.f32 %v2180, %v2181
    %v2183 = vand.u32 %v2182, 4294901760
    %2184 = vmatpush1.msra.mxu0 %v2183
    %2185 = vmatprep.subr.mxu0 0.0
    %v2186 = vand.u32 %v26, 4294901760
    %v2187 = vsub.f32 %v26, %v2186
    %v2188 = vand.u32 %v2187, 4294901760
    %v2189 = vsub.f32 %v2187, %v2188
    %v2190 = vand.u32 %v2189, 4294901760
    %2191 = vmatpush1.msra.mxu0 %v2190
    %2192 = vmatprep.subr.mxu0 0.0
    %v2193 = vand.u32 %v27, 4294901760
    %v2194 = vsub.f32 %v27, %v2193
    %v2195 = vand.u32 %v2194, 4294901760
    %v2196 = vsub.f32 %v2194, %v2195
    %v2197 = vand.u32 %v2196, 4294901760
    %2198 = vmatpush1.msra.mxu0 %v2197
    %2199 = vmatprep.subr.mxu0 0.0
    %v2200 = vand.u32 %v28, 4294901760
    %v2201 = vsub.f32 %v28, %v2200
    %v2202 = vand.u32 %v2201, 4294901760
    %v2203 = vsub.f32 %v2201, %v2202
    %v2204 = vand.u32 %v2203, 4294901760
    %2205 = vmatpush1.msra.mxu0 %v2204
    %2206 = vmatprep.subr.mxu0 0.0
    %v2207 = vand.u32 %v29, 4294901760
    %v2208 = vsub.f32 %v29, %v2207
    %v2209 = vand.u32 %v2208, 4294901760
    %v2210 = vsub.f32 %v2208, %v2209
    %v2211 = vand.u32 %v2210, 4294901760
    %2212 = vmatpush1.msra.mxu0 %v2211
    %2213 = vmatprep.subr.mxu0 0.0
    %v2214 = vand.u32 %v30, 4294901760
    %v2215 = vsub.f32 %v30, %v2214
    %v2216 = vand.u32 %v2215, 4294901760
    %v2217 = vsub.f32 %v2215, %v2216
    %v2218 = vand.u32 %v2217, 4294901760
    %2219 = vmatpush1.msra.mxu0 %v2218
    %2220 = vmatprep.subr.mxu0 0.0
    %2221 = vmatpush1.msra.mxu0 0.0
    %2222 = vmatprep.subr.mxu0 0.0
    %2223 = vmatpush1.msra.mxu0 0.0
    %2224 = vmatprep.subr.mxu0 0.0
    %2225 = vmatpush1.msra.mxu0 0.0
    %2226 = vmatprep.subr.mxu0 0.0
    %2227 = vmatpush1.msra.mxu0 0.0
    %2228 = vmatprep.subr.mxu0 0.0
    %2229 = vmatpush1.msra.mxu0 0.0
    %2230 = vmatprep.subr.mxu0 0.0
    %2231 = vmatpush1.msra.mxu0 0.0
    %2232 = vmatprep.subr.mxu0 0.0
    %2233 = vmatpush1.msra.mxu0 0.0
    %2234 = vmatprep.subr.mxu0 0.0
    %2235 = vmatpush1.msra.mxu0 0.0
    %2236 = vmatprep.subr.mxu0 0.0
    %2237 = vmatpush1.msra.mxu0 0.0
    %2238 = vmatprep.subr.mxu0 0.0
    %2239 = vmatpush1.msra.mxu0 0.0
    %2240 = vmatprep.subr.mxu0 0.0
    %2241 = vmatpush1.msra.mxu0 0.0
    %2242 = vmatprep.subr.mxu0 0.0
    %2243 = vmatpush1.msra.mxu0 0.0
    %2244 = vmatprep.subr.mxu0 0.0
    %2245 = vmatpush1.msra.mxu0 0.0
    %2246 = vmatprep.subr.mxu0 0.0
    %2247 = vmatpush1.msra.mxu0 0.0
    %2248 = vmatprep.subr.mxu0 0.0
    %2249 = vmatpush1.msra.mxu0 0.0
    %2250 = vmatprep.subr.mxu0 0.0
    %2251 = vmatpush1.msra.mxu0 0.0
    %2252 = vmatprep.mubr.f32.mxu0 0.0
    %v2253 = vand.u32 %v2016, 4294901760
    %2254 = vmatmul.mubr.f32.gmra.mrb[0].mxu0 %v2253
    %v2255 = vpop.f32.mrb[0].mxu0
    %v2256 = vadd.f32 %v2105, %v2255
    %v2257 = vpop.f32.mrb[0].mxu0
    %2258 = vdwg.mxu0
    %2259 = vmatprep.subr.mxu0 0.0
    %v2260 = vand.u32 %v15, 4294901760
    %v2261 = vsub.f32 %v15, %v2260
    %2262 = vmatpush1.msra.mxu0 %v2261
    %2263 = vmatprep.subr.mxu0 0.0
    %v2264 = vand.u32 %v16, 4294901760
    %v2265 = vsub.f32 %v16, %v2264
    %2266 = vmatpush1.msra.mxu0 %v2265
    %2267 = vmatprep.subr.mxu0 0.0
    %v2268 = vand.u32 %v17, 4294901760
    %v2269 = vsub.f32 %v17, %v2268
    %2270 = vmatpush1.msra.mxu0 %v2269
    %2271 = vmatprep.subr.mxu0 0.0
    %v2272 = vand.u32 %v18, 4294901760
    %v2273 = vsub.f32 %v18, %v2272
    %2274 = vmatpush1.msra.mxu0 %v2273
    %2275 = vmatprep.subr.mxu0 0.0
    %v2276 = vand.u32 %v19, 4294901760
    %v2277 = vsub.f32 %v19, %v2276
    %2278 = vmatpush1.msra.mxu0 %v2277
    %2279 = vmatprep.subr.mxu0 0.0
    %v2280 = vand.u32 %v20, 4294901760
    %v2281 = vsub.f32 %v20, %v2280
    %2282 = vmatpush1.msra.mxu0 %v2281
    %2283 = vmatprep.subr.mxu0 0.0
    %v2284 = vand.u32 %v21, 4294901760
    %v2285 = vsub.f32 %v21, %v2284
    %2286 = vmatpush1.msra.mxu0 %v2285
    %2287 = vmatprep.subr.mxu0 0.0
    %v2288 = vand.u32 %v22, 4294901760
    %v2289 = vsub.f32 %v22, %v2288
    %2290 = vmatpush1.msra.mxu0 %v2289
    %2291 = vmatprep.subr.mxu0 0.0
    %v2292 = vand.u32 %v23, 4294901760
    %v2293 = vsub.f32 %v23, %v2292
    %2294 = vmatpush1.msra.mxu0 %v2293
    %2295 = vmatprep.subr.mxu0 0.0
    %v2296 = vand.u32 %v24, 4294901760
    %v2297 = vsub.f32 %v24, %v2296
    %2298 = vmatpush1.msra.mxu0 %v2297
    %2299 = vmatprep.subr.mxu0 0.0
    %v2300 = vand.u32 %v25, 4294901760
    %v2301 = vsub.f32 %v25, %v2300
    %2302 = vmatpush1.msra.mxu0 %v2301
    %2303 = vmatprep.subr.mxu0 0.0
    %v2304 = vand.u32 %v26, 4294901760
    %v2305 = vsub.f32 %v26, %v2304
    %2306 = vmatpush1.msra.mxu0 %v2305
    %2307 = vmatprep.subr.mxu0 0.0
    %v2308 = vand.u32 %v27, 4294901760
    %v2309 = vsub.f32 %v27, %v2308
    %2310 = vmatpush1.msra.mxu0 %v2309
    %2311 = vmatprep.subr.mxu0 0.0
    %v2312 = vand.u32 %v28, 4294901760
    %v2313 = vsub.f32 %v28, %v2312
    %2314 = vmatpush1.msra.mxu0 %v2313
    %2315 = vmatprep.subr.mxu0 0.0
    %v2316 = vand.u32 %v29, 4294901760
    %v2317 = vsub.f32 %v29, %v2316
    %2318 = vmatpush1.msra.mxu0 %v2317
    %2319 = vmatprep.subr.mxu0 0.0
    %v2320 = vand.u32 %v30, 4294901760
    %v2321 = vsub.f32 %v30, %v2320
    %2322 = vmatpush1.msra.mxu0 %v2321
    %2323 = vmatprep.subr.mxu0 0.0
    %2324 = vmatpush1.msra.mxu0 0.0
    %2325 = vmatprep.subr.mxu0 0.0
    %2326 = vmatpush1.msra.mxu0 0.0
    %2327 = vmatprep.subr.mxu0 0.0
    %2328 = vmatpush1.msra.mxu0 0.0
    %2329 = vmatprep.subr.mxu0 0.0
    %2330 = vmatpush1.msra.mxu0 0.0
    %2331 = vmatprep.subr.mxu0 0.0
    %2332 = vmatpush1.msra.mxu0 0.0
    %2333 = vmatprep.subr.mxu0 0.0
    %2334 = vmatpush1.msra.mxu0 0.0
    %2335 = vmatprep.subr.mxu0 0.0
    %2336 = vmatpush1.msra.mxu0 0.0
    %2337 = vmatprep.subr.mxu0 0.0
    %2338 = vmatpush1.msra.mxu0 0.0
    %2339 = vmatprep.subr.mxu0 0.0
    %2340 = vmatpush1.msra.mxu0 0.0
    %2341 = vmatprep.subr.mxu0 0.0
    %2342 = vmatpush1.msra.mxu0 0.0
    %2343 = vmatprep.subr.mxu0 0.0
    %2344 = vmatpush1.msra.mxu0 0.0
    %2345 = vmatprep.subr.mxu0 0.0
    %2346 = vmatpush1.msra.mxu0 0.0
    %2347 = vmatprep.subr.mxu0 0.0
    %2348 = vmatpush1.msra.mxu0 0.0
    %2349 = vmatprep.subr.mxu0 0.0
    %2350 = vmatpush1.msra.mxu0 0.0
    %2351 = vmatprep.subr.mxu0 0.0
    %2352 = vmatpush1.msra.mxu0 0.0
    %2353 = vmatprep.subr.mxu0 0.0
    %2354 = vmatpush1.msra.mxu0 0.0
    %2355 = vmatprep.mubr.f32.mxu0 0.0
    %v2356 = vand.u32 %v2016, 4294901760
    %v2357 = vsub.f32 %v2016, %v2356
    %2358 = vmatmul.mubr.f32.gmra.mrb[0].mxu0 %v2357
    %v2359 = vpop.f32.mrb[0].mxu0
    %v2360 = vadd.f32 %v2256, %v2359
    %v2361 = vpop.f32.mrb[0].mxu0
    %2362 = vdwg.mxu0
    %2363 = vmatprep.subr.mxu0 0.0
    %v2364 = vand.u32 %v15, 4294901760
    %2365 = vmatpush1.msra.mxu0 %v2364
    %2366 = vmatprep.subr.mxu0 0.0
    %v2367 = vand.u32 %v16, 4294901760
    %2368 = vmatpush1.msra.mxu0 %v2367
    %2369 = vmatprep.subr.mxu0 0.0
    %v2370 = vand.u32 %v17, 4294901760
    %2371 = vmatpush1.msra.mxu0 %v2370
    %2372 = vmatprep.subr.mxu0 0.0
    %v2373 = vand.u32 %v18, 4294901760
    %2374 = vmatpush1.msra.mxu0 %v2373
    %2375 = vmatprep.subr.mxu0 0.0
    %v2376 = vand.u32 %v19, 4294901760
    %2377 = vmatpush1.msra.mxu0 %v2376
    %2378 = vmatprep.subr.mxu0 0.0
    %v2379 = vand.u32 %v20, 4294901760
    %2380 = vmatpush1.msra.mxu0 %v2379
    %2381 = vmatprep.subr.mxu0 0.0
    %v2382 = vand.u32 %v21, 4294901760
    %2383 = vmatpush1.msra.mxu0 %v2382
    %2384 = vmatprep.subr.mxu0 0.0
    %v2385 = vand.u32 %v22, 4294901760
    %2386 = vmatpush1.msra.mxu0 %v2385
    %2387 = vmatprep.subr.mxu0 0.0
    %v2388 = vand.u32 %v23, 4294901760
    %2389 = vmatpush1.msra.mxu0 %v2388
    %2390 = vmatprep.subr.mxu0 0.0
    %v2391 = vand.u32 %v24, 4294901760
    %2392 = vmatpush1.msra.mxu0 %v2391
    %2393 = vmatprep.subr.mxu0 0.0
    %v2394 = vand.u32 %v25, 4294901760
    %2395 = vmatpush1.msra.mxu0 %v2394
    %2396 = vmatprep.subr.mxu0 0.0
    %v2397 = vand.u32 %v26, 4294901760
    %2398 = vmatpush1.msra.mxu0 %v2397
    %2399 = vmatprep.subr.mxu0 0.0
    %v2400 = vand.u32 %v27, 4294901760
    %2401 = vmatpush1.msra.mxu0 %v2400
    %2402 = vmatprep.subr.mxu0 0.0
    %v2403 = vand.u32 %v28, 4294901760
    %2404 = vmatpush1.msra.mxu0 %v2403
    %2405 = vmatprep.subr.mxu0 0.0
    %v2406 = vand.u32 %v29, 4294901760
    %2407 = vmatpush1.msra.mxu0 %v2406
    %2408 = vmatprep.subr.mxu0 0.0
    %v2409 = vand.u32 %v30, 4294901760
    %2410 = vmatpush1.msra.mxu0 %v2409
    %2411 = vmatprep.subr.mxu0 0.0
    %2412 = vmatpush1.msra.mxu0 0.0
    %2413 = vmatprep.subr.mxu0 0.0
    %2414 = vmatpush1.msra.mxu0 0.0
    %2415 = vmatprep.subr.mxu0 0.0
    %2416 = vmatpush1.msra.mxu0 0.0
    %2417 = vmatprep.subr.mxu0 0.0
    %2418 = vmatpush1.msra.mxu0 0.0
    %2419 = vmatprep.subr.mxu0 0.0
    %2420 = vmatpush1.msra.mxu0 0.0
    %2421 = vmatprep.subr.mxu0 0.0
    %2422 = vmatpush1.msra.mxu0 0.0
    %2423 = vmatprep.subr.mxu0 0.0
    %2424 = vmatpush1.msra.mxu0 0.0
    %2425 = vmatprep.subr.mxu0 0.0
    %2426 = vmatpush1.msra.mxu0 0.0
    %2427 = vmatprep.subr.mxu0 0.0
    %2428 = vmatpush1.msra.mxu0 0.0
    %2429 = vmatprep.subr.mxu0 0.0
    %2430 = vmatpush1.msra.mxu0 0.0
    %2431 = vmatprep.subr.mxu0 0.0
    %2432 = vmatpush1.msra.mxu0 0.0
    %2433 = vmatprep.subr.mxu0 0.0
    %2434 = vmatpush1.msra.mxu0 0.0
    %2435 = vmatprep.subr.mxu0 0.0
    %2436 = vmatpush1.msra.mxu0 0.0
    %2437 = vmatprep.subr.mxu0 0.0
    %2438 = vmatpush1.msra.mxu0 0.0
    %2439 = vmatprep.subr.mxu0 0.0
    %2440 = vmatpush1.msra.mxu0 0.0
    %2441 = vmatprep.subr.mxu0 0.0
    %2442 = vmatpush1.msra.mxu0 0.0
    %2443 = vmatprep.mubr.f32.mxu0 0.0
    %v2444 = vand.u32 %v2016, 4294901760
    %v2445 = vsub.f32 %v2016, %v2444
    %v2446 = vand.u32 %v2445, 4294901760
    %2447 = vmatmul.mubr.f32.gmra.mrb[0].mxu0 %v2446
    %v2448 = vpop.f32.mrb[0].mxu0
    %v2449 = vadd.f32 %v2360, %v2448
    %v2450 = vpop.f32.mrb[0].mxu0
    %2451 = vdwg.mxu0
    %2452 = vmatprep.subr.mxu0 0.0
    %v2453 = vand.u32 %v15, 4294901760
    %v2454 = vsub.f32 %v15, %v2453
    %v2455 = vand.u32 %v2454, 4294901760
    %2456 = vmatpush1.msra.mxu0 %v2455
    %2457 = vmatprep.subr.mxu0 0.0
    %v2458 = vand.u32 %v16, 4294901760
    %v2459 = vsub.f32 %v16, %v2458
    %v2460 = vand.u32 %v2459, 4294901760
    %2461 = vmatpush1.msra.mxu0 %v2460
    %2462 = vmatprep.subr.mxu0 0.0
    %v2463 = vand.u32 %v17, 4294901760
    %v2464 = vsub.f32 %v17, %v2463
    %v2465 = vand.u32 %v2464, 4294901760
    %2466 = vmatpush1.msra.mxu0 %v2465
    %2467 = vmatprep.subr.mxu0 0.0
    %v2468 = vand.u32 %v18, 4294901760
    %v2469 = vsub.f32 %v18, %v2468
    %v2470 = vand.u32 %v2469, 4294901760
    %2471 = vmatpush1.msra.mxu0 %v2470
    %2472 = vmatprep.subr.mxu0 0.0
    %v2473 = vand.u32 %v19, 4294901760
    %v2474 = vsub.f32 %v19, %v2473
    %v2475 = vand.u32 %v2474, 4294901760
    %2476 = vmatpush1.msra.mxu0 %v2475
    %2477 = vmatprep.subr.mxu0 0.0
    %v2478 = vand.u32 %v20, 4294901760
    %v2479 = vsub.f32 %v20, %v2478
    %v2480 = vand.u32 %v2479, 4294901760
    %2481 = vmatpush1.msra.mxu0 %v2480
    %2482 = vmatprep.subr.mxu0 0.0
    %v2483 = vand.u32 %v21, 4294901760
    %v2484 = vsub.f32 %v21, %v2483
    %v2485 = vand.u32 %v2484, 4294901760
    %2486 = vmatpush1.msra.mxu0 %v2485
    %2487 = vmatprep.subr.mxu0 0.0
    %v2488 = vand.u32 %v22, 4294901760
    %v2489 = vsub.f32 %v22, %v2488
    %v2490 = vand.u32 %v2489, 4294901760
    %2491 = vmatpush1.msra.mxu0 %v2490
    %2492 = vmatprep.subr.mxu0 0.0
    %v2493 = vand.u32 %v23, 4294901760
    %v2494 = vsub.f32 %v23, %v2493
    %v2495 = vand.u32 %v2494, 4294901760
    %2496 = vmatpush1.msra.mxu0 %v2495
    %2497 = vmatprep.subr.mxu0 0.0
    %v2498 = vand.u32 %v24, 4294901760
    %v2499 = vsub.f32 %v24, %v2498
    %v2500 = vand.u32 %v2499, 4294901760
    %2501 = vmatpush1.msra.mxu0 %v2500
    %2502 = vmatprep.subr.mxu0 0.0
    %v2503 = vand.u32 %v25, 4294901760
    %v2504 = vsub.f32 %v25, %v2503
    %v2505 = vand.u32 %v2504, 4294901760
    %2506 = vmatpush1.msra.mxu0 %v2505
    %2507 = vmatprep.subr.mxu0 0.0
    %v2508 = vand.u32 %v26, 4294901760
    %v2509 = vsub.f32 %v26, %v2508
    %v2510 = vand.u32 %v2509, 4294901760
    %2511 = vmatpush1.msra.mxu0 %v2510
    %2512 = vmatprep.subr.mxu0 0.0
    %v2513 = vand.u32 %v27, 4294901760
    %v2514 = vsub.f32 %v27, %v2513
    %v2515 = vand.u32 %v2514, 4294901760
    %2516 = vmatpush1.msra.mxu0 %v2515
    %2517 = vmatprep.subr.mxu0 0.0
    %v2518 = vand.u32 %v28, 4294901760
    %v2519 = vsub.f32 %v28, %v2518
    %v2520 = vand.u32 %v2519, 4294901760
    %2521 = vmatpush1.msra.mxu0 %v2520
    %2522 = vmatprep.subr.mxu0 0.0
    %v2523 = vand.u32 %v29, 4294901760
    %v2524 = vsub.f32 %v29, %v2523
    %v2525 = vand.u32 %v2524, 4294901760
    %2526 = vmatpush1.msra.mxu0 %v2525
    %2527 = vmatprep.subr.mxu0 0.0
    %v2528 = vand.u32 %v30, 4294901760
    %v2529 = vsub.f32 %v30, %v2528
    %v2530 = vand.u32 %v2529, 4294901760
    %2531 = vmatpush1.msra.mxu0 %v2530
    %2532 = vmatprep.subr.mxu0 0.0
    %2533 = vmatpush1.msra.mxu0 0.0
    %2534 = vmatprep.subr.mxu0 0.0
    %2535 = vmatpush1.msra.mxu0 0.0
    %2536 = vmatprep.subr.mxu0 0.0
    %2537 = vmatpush1.msra.mxu0 0.0
    %2538 = vmatprep.subr.mxu0 0.0
    %2539 = vmatpush1.msra.mxu0 0.0
    %2540 = vmatprep.subr.mxu0 0.0
    %2541 = vmatpush1.msra.mxu0 0.0
    %2542 = vmatprep.subr.mxu0 0.0
    %2543 = vmatpush1.msra.mxu0 0.0
    %2544 = vmatprep.subr.mxu0 0.0
    %2545 = vmatpush1.msra.mxu0 0.0
    %2546 = vmatprep.subr.mxu0 0.0
    %2547 = vmatpush1.msra.mxu0 0.0
    %2548 = vmatprep.subr.mxu0 0.0
    %2549 = vmatpush1.msra.mxu0 0.0
    %2550 = vmatprep.subr.mxu0 0.0
    %2551 = vmatpush1.msra.mxu0 0.0
    %2552 = vmatprep.subr.mxu0 0.0
    %2553 = vmatpush1.msra.mxu0 0.0
    %2554 = vmatprep.subr.mxu0 0.0
    %2555 = vmatpush1.msra.mxu0 0.0
    %2556 = vmatprep.subr.mxu0 0.0
    %2557 = vmatpush1.msra.mxu0 0.0
    %2558 = vmatprep.subr.mxu0 0.0
    %2559 = vmatpush1.msra.mxu0 0.0
    %2560 = vmatprep.subr.mxu0 0.0
    %2561 = vmatpush1.msra.mxu0 0.0
    %2562 = vmatprep.subr.mxu0 0.0
    %2563 = vmatpush1.msra.mxu0 0.0
    %2564 = vmatprep.mubr.f32.mxu0 0.0
    %v2565 = vand.u32 %v2016, 4294901760
    %2566 = vmatmul.mubr.f32.gmra.mrb[0].mxu0 %v2565
    %v2567 = vpop.f32.mrb[0].mxu0
    %v2568 = vadd.f32 %v2449, %v2567
    %v2569 = vpop.f32.mrb[0].mxu0
    %2570 = vdwg.mxu0
    %2571 = vmatprep.subr.mxu0 0.0
    %v2572 = vand.u32 %v15, 4294901760
    %2573 = vmatpush1.msra.mxu0 %v2572
    %2574 = vmatprep.subr.mxu0 0.0
    %v2575 = vand.u32 %v16, 4294901760
    %2576 = vmatpush1.msra.mxu0 %v2575
    %2577 = vmatprep.subr.mxu0 0.0
    %v2578 = vand.u32 %v17, 4294901760
    %2579 = vmatpush1.msra.mxu0 %v2578
    %2580 = vmatprep.subr.mxu0 0.0
    %v2581 = vand.u32 %v18, 4294901760
    %2582 = vmatpush1.msra.mxu0 %v2581
    %2583 = vmatprep.subr.mxu0 0.0
    %v2584 = vand.u32 %v19, 4294901760
    %2585 = vmatpush1.msra.mxu0 %v2584
    %2586 = vmatprep.subr.mxu0 0.0
    %v2587 = vand.u32 %v20, 4294901760
    %2588 = vmatpush1.msra.mxu0 %v2587
    %2589 = vmatprep.subr.mxu0 0.0
    %v2590 = vand.u32 %v21, 4294901760
    %2591 = vmatpush1.msra.mxu0 %v2590
    %2592 = vmatprep.subr.mxu0 0.0
    %v2593 = vand.u32 %v22, 4294901760
    %2594 = vmatpush1.msra.mxu0 %v2593
    %2595 = vmatprep.subr.mxu0 0.0
    %v2596 = vand.u32 %v23, 4294901760
    %2597 = vmatpush1.msra.mxu0 %v2596
    %2598 = vmatprep.subr.mxu0 0.0
    %v2599 = vand.u32 %v24, 4294901760
    %2600 = vmatpush1.msra.mxu0 %v2599
    %2601 = vmatprep.subr.mxu0 0.0
    %v2602 = vand.u32 %v25, 4294901760
    %2603 = vmatpush1.msra.mxu0 %v2602
    %2604 = vmatprep.subr.mxu0 0.0
    %v2605 = vand.u32 %v26, 4294901760
    %2606 = vmatpush1.msra.mxu0 %v2605
    %2607 = vmatprep.subr.mxu0 0.0
    %v2608 = vand.u32 %v27, 4294901760
    %2609 = vmatpush1.msra.mxu0 %v2608
    %2610 = vmatprep.subr.mxu0 0.0
    %v2611 = vand.u32 %v28, 4294901760
    %2612 = vmatpush1.msra.mxu0 %v2611
    %2613 = vmatprep.subr.mxu0 0.0
    %v2614 = vand.u32 %v29, 4294901760
    %2615 = vmatpush1.msra.mxu0 %v2614
    %2616 = vmatprep.subr.mxu0 0.0
    %v2617 = vand.u32 %v30, 4294901760
    %2618 = vmatpush1.msra.mxu0 %v2617
    %2619 = vmatprep.subr.mxu0 0.0
    %2620 = vmatpush1.msra.mxu0 0.0
    %2621 = vmatprep.subr.mxu0 0.0
    %2622 = vmatpush1.msra.mxu0 0.0
    %2623 = vmatprep.subr.mxu0 0.0
    %2624 = vmatpush1.msra.mxu0 0.0
    %2625 = vmatprep.subr.mxu0 0.0
    %2626 = vmatpush1.msra.mxu0 0.0
    %2627 = vmatprep.subr.mxu0 0.0
    %2628 = vmatpush1.msra.mxu0 0.0
    %2629 = vmatprep.subr.mxu0 0.0
    %2630 = vmatpush1.msra.mxu0 0.0
    %2631 = vmatprep.subr.mxu0 0.0
    %2632 = vmatpush1.msra.mxu0 0.0
    %2633 = vmatprep.subr.mxu0 0.0
    %2634 = vmatpush1.msra.mxu0 0.0
    %2635 = vmatprep.subr.mxu0 0.0
    %2636 = vmatpush1.msra.mxu0 0.0
    %2637 = vmatprep.subr.mxu0 0.0
    %2638 = vmatpush1.msra.mxu0 0.0
    %2639 = vmatprep.subr.mxu0 0.0
    %2640 = vmatpush1.msra.mxu0 0.0
    %2641 = vmatprep.subr.mxu0 0.0
    %2642 = vmatpush1.msra.mxu0 0.0
    %2643 = vmatprep.subr.mxu0 0.0
    %2644 = vmatpush1.msra.mxu0 0.0
    %2645 = vmatprep.subr.mxu0 0.0
    %2646 = vmatpush1.msra.mxu0 0.0
    %2647 = vmatprep.subr.mxu0 0.0
    %2648 = vmatpush1.msra.mxu0 0.0
    %2649 = vmatprep.subr.mxu0 0.0
    %2650 = vmatpush1.msra.mxu0 0.0
    %2651 = vmatprep.mubr.f32.mxu0 0.0
    %v2652 = vand.u32 %v2016, 4294901760
    %2653 = vmatmul.mubr.f32.gmra.mrb[0].mxu0 %v2652
    %v2654 = vpop.f32.mrb[0].mxu0
    %v2655 = vadd.f32 %v2568, %v2654
    %v2656 = vpop.f32.mrb[0].mxu0
    %2657 = vdwg.mxu0
    %v2658 = vmul.f32 %v2012, 0.9
    %v2659 = vadd.f32 %v2658, %v2655
    %vm2660 = vcmp.le.s32.totalorder %v41, 3
    %vm2661 = vcmp.gt.s32.totalorder %v41, 4294967291
    %vm2662 = vmand %vm2660, %vm2661
    %vm2663 = vcmp.ge.f32.partialorder %v2659, 1.0
    %vm2664 = vmand %vm2663, %vm2662
    %v2665 = vsel %vm2664, 1, 0
    %v2666 = vcvt.s32.f32 %v2665
    %v2667 = vsel %vm2664, 0.0, %v2659
    %v2668 = vsel %vm2662, %v2667, %v2012
    %v2669 = vadd.f32 %v2013, %v2666
    %s2670 = scalar_lea.vmem %s0, 32
    %v2671 = vld [vmem:[%s2670] sm:$0xff]
    %v2672 = vadd.f32 %v2666, %v2671
    %2673 = vmatprep.subr.mxu0 0.0
    %v2674 = vand.u32 %v15, 4294901760
    %2675 = vmatpush1.msra.mxu0 %v2674
    %2676 = vmatprep.subr.mxu0 0.0
    %v2677 = vand.u32 %v16, 4294901760
    %2678 = vmatpush1.msra.mxu0 %v2677
    %2679 = vmatprep.subr.mxu0 0.0
    %v2680 = vand.u32 %v17, 4294901760
    %2681 = vmatpush1.msra.mxu0 %v2680
    %2682 = vmatprep.subr.mxu0 0.0
    %v2683 = vand.u32 %v18, 4294901760
    %2684 = vmatpush1.msra.mxu0 %v2683
    %2685 = vmatprep.subr.mxu0 0.0
    %v2686 = vand.u32 %v19, 4294901760
    %2687 = vmatpush1.msra.mxu0 %v2686
    %2688 = vmatprep.subr.mxu0 0.0
    %v2689 = vand.u32 %v20, 4294901760
    %2690 = vmatpush1.msra.mxu0 %v2689
    %2691 = vmatprep.subr.mxu0 0.0
    %v2692 = vand.u32 %v21, 4294901760
    %2693 = vmatpush1.msra.mxu0 %v2692
    %2694 = vmatprep.subr.mxu0 0.0
    %v2695 = vand.u32 %v22, 4294901760
    %2696 = vmatpush1.msra.mxu0 %v2695
    %2697 = vmatprep.subr.mxu0 0.0
    %v2698 = vand.u32 %v23, 4294901760
    %2699 = vmatpush1.msra.mxu0 %v2698
    %2700 = vmatprep.subr.mxu0 0.0
    %v2701 = vand.u32 %v24, 4294901760
    %2702 = vmatpush1.msra.mxu0 %v2701
    %2703 = vmatprep.subr.mxu0 0.0
    %v2704 = vand.u32 %v25, 4294901760
    %2705 = vmatpush1.msra.mxu0 %v2704
    %2706 = vmatprep.subr.mxu0 0.0
    %v2707 = vand.u32 %v26, 4294901760
    %2708 = vmatpush1.msra.mxu0 %v2707
    %2709 = vmatprep.subr.mxu0 0.0
    %v2710 = vand.u32 %v27, 4294901760
    %2711 = vmatpush1.msra.mxu0 %v2710
    %2712 = vmatprep.subr.mxu0 0.0
    %v2713 = vand.u32 %v28, 4294901760
    %2714 = vmatpush1.msra.mxu0 %v2713
    %2715 = vmatprep.subr.mxu0 0.0
    %v2716 = vand.u32 %v29, 4294901760
    %2717 = vmatpush1.msra.mxu0 %v2716
    %2718 = vmatprep.subr.mxu0 0.0
    %v2719 = vand.u32 %v30, 4294901760
    %2720 = vmatpush1.msra.mxu0 %v2719
    %2721 = vmatprep.subr.mxu0 0.0
    %2722 = vmatpush1.msra.mxu0 0.0
    %2723 = vmatprep.subr.mxu0 0.0
    %2724 = vmatpush1.msra.mxu0 0.0
    %2725 = vmatprep.subr.mxu0 0.0
    %2726 = vmatpush1.msra.mxu0 0.0
    %2727 = vmatprep.subr.mxu0 0.0
    %2728 = vmatpush1.msra.mxu0 0.0
    %2729 = vmatprep.subr.mxu0 0.0
    %2730 = vmatpush1.msra.mxu0 0.0
    %2731 = vmatprep.subr.mxu0 0.0
    %2732 = vmatpush1.msra.mxu0 0.0
    %2733 = vmatprep.subr.mxu0 0.0
    %2734 = vmatpush1.msra.mxu0 0.0
    %2735 = vmatprep.subr.mxu0 0.0
    %2736 = vmatpush1.msra.mxu0 0.0
    %2737 = vmatprep.subr.mxu0 0.0
    %2738 = vmatpush1.msra.mxu0 0.0
    %2739 = vmatprep.subr.mxu0 0.0
    %2740 = vmatpush1.msra.mxu0 0.0
    %2741 = vmatprep.subr.mxu0 0.0
    %2742 = vmatpush1.msra.mxu0 0.0
    %2743 = vmatprep.subr.mxu0 0.0
    %2744 = vmatpush1.msra.mxu0 0.0
    %2745 = vmatprep.subr.mxu0 0.0
    %2746 = vmatpush1.msra.mxu0 0.0
    %2747 = vmatprep.subr.mxu0 0.0
    %2748 = vmatpush1.msra.mxu0 0.0
    %2749 = vmatprep.subr.mxu0 0.0
    %2750 = vmatpush1.msra.mxu0 0.0
    %2751 = vmatprep.subr.mxu0 0.0
    %2752 = vmatpush1.msra.mxu0 0.0
    %2753 = vmatprep.mubr.f32.mxu0 0.0
    %v2754 = vand.u32 %v2672, 4294901760
    %v2755 = vsub.f32 %v2672, %v2754
    %v2756 = vand.u32 %v2755, 4294901760
    %v2757 = vsub.f32 %v2755, %v2756
    %v2758 = vand.u32 %v2757, 4294901760
    %2759 = vmatmul.mubr.f32.gmra.mrb[0].mxu0 %v2758
    %v2760 = vpop.f32.mrb[0].mxu0
    %v2761 = vadd.f32 %v48, %v2760
    %v2762 = vpop.f32.mrb[0].mxu0
    %2763 = vdwg.mxu0
    %2764 = vmatprep.subr.mxu0 0.0
    %v2765 = vand.u32 %v15, 4294901760
    %v2766 = vsub.f32 %v15, %v2765
    %v2767 = vand.u32 %v2766, 4294901760
    %v2768 = vsub.f32 %v2766, %v2767
    %v2769 = vand.u32 %v2768, 4294901760
    %2770 = vmatpush1.msra.mxu0 %v2769
    %2771 = vmatprep.subr.mxu0 0.0
    %v2772 = vand.u32 %v16, 4294901760
    %v2773 = vsub.f32 %v16, %v2772
    %v2774 = vand.u32 %v2773, 4294901760
    %v2775 = vsub.f32 %v2773, %v2774
    %v2776 = vand.u32 %v2775, 4294901760
    %2777 = vmatpush1.msra.mxu0 %v2776
    %2778 = vmatprep.subr.mxu0 0.0
    %v2779 = vand.u32 %v17, 4294901760
    %v2780 = vsub.f32 %v17, %v2779
    %v2781 = vand.u32 %v2780, 4294901760
    %v2782 = vsub.f32 %v2780, %v2781
    %v2783 = vand.u32 %v2782, 4294901760
    %2784 = vmatpush1.msra.mxu0 %v2783
    %2785 = vmatprep.subr.mxu0 0.0
    %v2786 = vand.u32 %v18, 4294901760
    %v2787 = vsub.f32 %v18, %v2786
    %v2788 = vand.u32 %v2787, 4294901760
    %v2789 = vsub.f32 %v2787, %v2788
    %v2790 = vand.u32 %v2789, 4294901760
    %2791 = vmatpush1.msra.mxu0 %v2790
    %2792 = vmatprep.subr.mxu0 0.0
    %v2793 = vand.u32 %v19, 4294901760
    %v2794 = vsub.f32 %v19, %v2793
    %v2795 = vand.u32 %v2794, 4294901760
    %v2796 = vsub.f32 %v2794, %v2795
    %v2797 = vand.u32 %v2796, 4294901760
    %2798 = vmatpush1.msra.mxu0 %v2797
    %2799 = vmatprep.subr.mxu0 0.0
    %v2800 = vand.u32 %v20, 4294901760
    %v2801 = vsub.f32 %v20, %v2800
    %v2802 = vand.u32 %v2801, 4294901760
    %v2803 = vsub.f32 %v2801, %v2802
    %v2804 = vand.u32 %v2803, 4294901760
    %2805 = vmatpush1.msra.mxu0 %v2804
    %2806 = vmatprep.subr.mxu0 0.0
    %v2807 = vand.u32 %v21, 4294901760
    %v2808 = vsub.f32 %v21, %v2807
    %v2809 = vand.u32 %v2808, 4294901760
    %v2810 = vsub.f32 %v2808, %v2809
    %v2811 = vand.u32 %v2810, 4294901760
    %2812 = vmatpush1.msra.mxu0 %v2811
    %2813 = vmatprep.subr.mxu0 0.0
    %v2814 = vand.u32 %v22, 4294901760
    %v2815 = vsub.f32 %v22, %v2814
    %v2816 = vand.u32 %v2815, 4294901760
    %v2817 = vsub.f32 %v2815, %v2816
    %v2818 = vand.u32 %v2817, 4294901760
    %2819 = vmatpush1.msra.mxu0 %v2818
    %2820 = vmatprep.subr.mxu0 0.0
    %v2821 = vand.u32 %v23, 4294901760
    %v2822 = vsub.f32 %v23, %v2821
    %v2823 = vand.u32 %v2822, 4294901760
    %v2824 = vsub.f32 %v2822, %v2823
    %v2825 = vand.u32 %v2824, 4294901760
    %2826 = vmatpush1.msra.mxu0 %v2825
    %2827 = vmatprep.subr.mxu0 0.0
    %v2828 = vand.u32 %v24, 4294901760
    %v2829 = vsub.f32 %v24, %v2828
    %v2830 = vand.u32 %v2829, 4294901760
    %v2831 = vsub.f32 %v2829, %v2830
    %v2832 = vand.u32 %v2831, 4294901760
    %2833 = vmatpush1.msra.mxu0 %v2832
    %2834 = vmatprep.subr.mxu0 0.0
    %v2835 = vand.u32 %v25, 4294901760
    %v2836 = vsub.f32 %v25, %v2835
    %v2837 = vand.u32 %v2836, 4294901760
    %v2838 = vsub.f32 %v2836, %v2837
    %v2839 = vand.u32 %v2838, 4294901760
    %2840 = vmatpush1.msra.mxu0 %v2839
    %2841 = vmatprep.subr.mxu0 0.0
    %v2842 = vand.u32 %v26, 4294901760
    %v2843 = vsub.f32 %v26, %v2842
    %v2844 = vand.u32 %v2843, 4294901760
    %v2845 = vsub.f32 %v2843, %v2844
    %v2846 = vand.u32 %v2845, 4294901760
    %2847 = vmatpush1.msra.mxu0 %v2846
    %2848 = vmatprep.subr.mxu0 0.0
    %v2849 = vand.u32 %v27, 4294901760
    %v2850 = vsub.f32 %v27, %v2849
    %v2851 = vand.u32 %v2850, 4294901760
    %v2852 = vsub.f32 %v2850, %v2851
    %v2853 = vand.u32 %v2852, 4294901760
    %2854 = vmatpush1.msra.mxu0 %v2853
    %2855 = vmatprep.subr.mxu0 0.0
    %v2856 = vand.u32 %v28, 4294901760
    %v2857 = vsub.f32 %v28, %v2856
    %v2858 = vand.u32 %v2857, 4294901760
    %v2859 = vsub.f32 %v2857, %v2858
    %v2860 = vand.u32 %v2859, 4294901760
    %2861 = vmatpush1.msra.mxu0 %v2860
    %2862 = vmatprep.subr.mxu0 0.0
    %v2863 = vand.u32 %v29, 4294901760
    %v2864 = vsub.f32 %v29, %v2863
    %v2865 = vand.u32 %v2864, 4294901760
    %v2866 = vsub.f32 %v2864, %v2865
    %v2867 = vand.u32 %v2866, 4294901760
    %2868 = vmatpush1.msra.mxu0 %v2867
    %2869 = vmatprep.subr.mxu0 0.0
    %v2870 = vand.u32 %v30, 4294901760
    %v2871 = vsub.f32 %v30, %v2870
    %v2872 = vand.u32 %v2871, 4294901760
    %v2873 = vsub.f32 %v2871, %v2872
    %v2874 = vand.u32 %v2873, 4294901760
    %2875 = vmatpush1.msra.mxu0 %v2874
    %2876 = vmatprep.subr.mxu0 0.0
    %2877 = vmatpush1.msra.mxu0 0.0
    %2878 = vmatprep.subr.mxu0 0.0
    %2879 = vmatpush1.msra.mxu0 0.0
    %2880 = vmatprep.subr.mxu0 0.0
    %2881 = vmatpush1.msra.mxu0 0.0
    %2882 = vmatprep.subr.mxu0 0.0
    %2883 = vmatpush1.msra.mxu0 0.0
    %2884 = vmatprep.subr.mxu0 0.0
    %2885 = vmatpush1.msra.mxu0 0.0
    %2886 = vmatprep.subr.mxu0 0.0
    %2887 = vmatpush1.msra.mxu0 0.0
    %2888 = vmatprep.subr.mxu0 0.0
    %2889 = vmatpush1.msra.mxu0 0.0
    %2890 = vmatprep.subr.mxu0 0.0
    %2891 = vmatpush1.msra.mxu0 0.0
    %2892 = vmatprep.subr.mxu0 0.0
    %2893 = vmatpush1.msra.mxu0 0.0
    %2894 = vmatprep.subr.mxu0 0.0
    %2895 = vmatpush1.msra.mxu0 0.0
    %2896 = vmatprep.subr.mxu0 0.0
    %2897 = vmatpush1.msra.mxu0 0.0
    %2898 = vmatprep.subr.mxu0 0.0
    %2899 = vmatpush1.msra.mxu0 0.0
    %2900 = vmatprep.subr.mxu0 0.0
    %2901 = vmatpush1.msra.mxu0 0.0
    %2902 = vmatprep.subr.mxu0 0.0
    %2903 = vmatpush1.msra.mxu0 0.0
    %2904 = vmatprep.subr.mxu0 0.0
    %2905 = vmatpush1.msra.mxu0 0.0
    %2906 = vmatprep.subr.mxu0 0.0
    %2907 = vmatpush1.msra.mxu0 0.0
    %2908 = vmatprep.mubr.f32.mxu0 0.0
    %v2909 = vand.u32 %v2672, 4294901760
    %2910 = vmatmul.mubr.f32.gmra.mrb[0].mxu0 %v2909
    %v2911 = vpop.f32.mrb[0].mxu0
    %v2912 = vadd.f32 %v2761, %v2911
    %v2913 = vpop.f32.mrb[0].mxu0
    %2914 = vdwg.mxu0
    %2915 = vmatprep.subr.mxu0 0.0
    %v2916 = vand.u32 %v15, 4294901760
    %v2917 = vsub.f32 %v15, %v2916
    %2918 = vmatpush1.msra.mxu0 %v2917
    %2919 = vmatprep.subr.mxu0 0.0
    %v2920 = vand.u32 %v16, 4294901760
    %v2921 = vsub.f32 %v16, %v2920
    %2922 = vmatpush1.msra.mxu0 %v2921
    %2923 = vmatprep.subr.mxu0 0.0
    %v2924 = vand.u32 %v17, 4294901760
    %v2925 = vsub.f32 %v17, %v2924
    %2926 = vmatpush1.msra.mxu0 %v2925
    %2927 = vmatprep.subr.mxu0 0.0
    %v2928 = vand.u32 %v18, 4294901760
    %v2929 = vsub.f32 %v18, %v2928
    %2930 = vmatpush1.msra.mxu0 %v2929
    %2931 = vmatprep.subr.mxu0 0.0
    %v2932 = vand.u32 %v19, 4294901760
    %v2933 = vsub.f32 %v19, %v2932
    %2934 = vmatpush1.msra.mxu0 %v2933
    %2935 = vmatprep.subr.mxu0 0.0
    %v2936 = vand.u32 %v20, 4294901760
    %v2937 = vsub.f32 %v20, %v2936
    %2938 = vmatpush1.msra.mxu0 %v2937
    %2939 = vmatprep.subr.mxu0 0.0
    %v2940 = vand.u32 %v21, 4294901760
    %v2941 = vsub.f32 %v21, %v2940
    %2942 = vmatpush1.msra.mxu0 %v2941
    %2943 = vmatprep.subr.mxu0 0.0
    %v2944 = vand.u32 %v22, 4294901760
    %v2945 = vsub.f32 %v22, %v2944
    %2946 = vmatpush1.msra.mxu0 %v2945
    %2947 = vmatprep.subr.mxu0 0.0
    %v2948 = vand.u32 %v23, 4294901760
    %v2949 = vsub.f32 %v23, %v2948
    %2950 = vmatpush1.msra.mxu0 %v2949
    %2951 = vmatprep.subr.mxu0 0.0
    %v2952 = vand.u32 %v24, 4294901760
    %v2953 = vsub.f32 %v24, %v2952
    %2954 = vmatpush1.msra.mxu0 %v2953
    %2955 = vmatprep.subr.mxu0 0.0
    %v2956 = vand.u32 %v25, 4294901760
    %v2957 = vsub.f32 %v25, %v2956
    %2958 = vmatpush1.msra.mxu0 %v2957
    %2959 = vmatprep.subr.mxu0 0.0
    %v2960 = vand.u32 %v26, 4294901760
    %v2961 = vsub.f32 %v26, %v2960
    %2962 = vmatpush1.msra.mxu0 %v2961
    %2963 = vmatprep.subr.mxu0 0.0
    %v2964 = vand.u32 %v27, 4294901760
    %v2965 = vsub.f32 %v27, %v2964
    %2966 = vmatpush1.msra.mxu0 %v2965
    %2967 = vmatprep.subr.mxu0 0.0
    %v2968 = vand.u32 %v28, 4294901760
    %v2969 = vsub.f32 %v28, %v2968
    %2970 = vmatpush1.msra.mxu0 %v2969
    %2971 = vmatprep.subr.mxu0 0.0
    %v2972 = vand.u32 %v29, 4294901760
    %v2973 = vsub.f32 %v29, %v2972
    %2974 = vmatpush1.msra.mxu0 %v2973
    %2975 = vmatprep.subr.mxu0 0.0
    %v2976 = vand.u32 %v30, 4294901760
    %v2977 = vsub.f32 %v30, %v2976
    %2978 = vmatpush1.msra.mxu0 %v2977
    %2979 = vmatprep.subr.mxu0 0.0
    %2980 = vmatpush1.msra.mxu0 0.0
    %2981 = vmatprep.subr.mxu0 0.0
    %2982 = vmatpush1.msra.mxu0 0.0
    %2983 = vmatprep.subr.mxu0 0.0
    %2984 = vmatpush1.msra.mxu0 0.0
    %2985 = vmatprep.subr.mxu0 0.0
    %2986 = vmatpush1.msra.mxu0 0.0
    %2987 = vmatprep.subr.mxu0 0.0
    %2988 = vmatpush1.msra.mxu0 0.0
    %2989 = vmatprep.subr.mxu0 0.0
    %2990 = vmatpush1.msra.mxu0 0.0
    %2991 = vmatprep.subr.mxu0 0.0
    %2992 = vmatpush1.msra.mxu0 0.0
    %2993 = vmatprep.subr.mxu0 0.0
    %2994 = vmatpush1.msra.mxu0 0.0
    %2995 = vmatprep.subr.mxu0 0.0
    %2996 = vmatpush1.msra.mxu0 0.0
    %2997 = vmatprep.subr.mxu0 0.0
    %2998 = vmatpush1.msra.mxu0 0.0
    %2999 = vmatprep.subr.mxu0 0.0
    %3000 = vmatpush1.msra.mxu0 0.0
    %3001 = vmatprep.subr.mxu0 0.0
    %3002 = vmatpush1.msra.mxu0 0.0
    %3003 = vmatprep.subr.mxu0 0.0
    %3004 = vmatpush1.msra.mxu0 0.0
    %3005 = vmatprep.subr.mxu0 0.0
    %3006 = vmatpush1.msra.mxu0 0.0
    %3007 = vmatprep.subr.mxu0 0.0
    %3008 = vmatpush1.msra.mxu0 0.0
    %3009 = vmatprep.subr.mxu0 0.0
    %3010 = vmatpush1.msra.mxu0 0.0
    %3011 = vmatprep.mubr.f32.mxu0 0.0
    %v3012 = vand.u32 %v2672, 4294901760
    %v3013 = vsub.f32 %v2672, %v3012
    %3014 = vmatmul.mubr.f32.gmra.mrb[0].mxu0 %v3013
    %v3015 = vpop.f32.mrb[0].mxu0
    %v3016 = vadd.f32 %v2912, %v3015
    %v3017 = vpop.f32.mrb[0].mxu0
    %3018 = vdwg.mxu0
    %3019 = vmatprep.subr.mxu0 0.0
    %v3020 = vand.u32 %v15, 4294901760
    %3021 = vmatpush1.msra.mxu0 %v3020
    %3022 = vmatprep.subr.mxu0 0.0
    %v3023 = vand.u32 %v16, 4294901760
    %3024 = vmatpush1.msra.mxu0 %v3023
    %3025 = vmatprep.subr.mxu0 0.0
    %v3026 = vand.u32 %v17, 4294901760
    %3027 = vmatpush1.msra.mxu0 %v3026
    %3028 = vmatprep.subr.mxu0 0.0
    %v3029 = vand.u32 %v18, 4294901760
    %3030 = vmatpush1.msra.mxu0 %v3029
    %3031 = vmatprep.subr.mxu0 0.0
    %v3032 = vand.u32 %v19, 4294901760
    %3033 = vmatpush1.msra.mxu0 %v3032
    %3034 = vmatprep.subr.mxu0 0.0
    %v3035 = vand.u32 %v20, 4294901760
    %3036 = vmatpush1.msra.mxu0 %v3035
    %3037 = vmatprep.subr.mxu0 0.0
    %v3038 = vand.u32 %v21, 4294901760
    %3039 = vmatpush1.msra.mxu0 %v3038
    %3040 = vmatprep.subr.mxu0 0.0
    %v3041 = vand.u32 %v22, 4294901760
    %3042 = vmatpush1.msra.mxu0 %v3041
    %3043 = vmatprep.subr.mxu0 0.0
    %v3044 = vand.u32 %v23, 4294901760
    %3045 = vmatpush1.msra.mxu0 %v3044
    %3046 = vmatprep.subr.mxu0 0.0
    %v3047 = vand.u32 %v24, 4294901760
    %3048 = vmatpush1.msra.mxu0 %v3047
    %3049 = vmatprep.subr.mxu0 0.0
    %v3050 = vand.u32 %v25, 4294901760
    %3051 = vmatpush1.msra.mxu0 %v3050
    %3052 = vmatprep.subr.mxu0 0.0
    %v3053 = vand.u32 %v26, 4294901760
    %3054 = vmatpush1.msra.mxu0 %v3053
    %3055 = vmatprep.subr.mxu0 0.0
    %v3056 = vand.u32 %v27, 4294901760
    %3057 = vmatpush1.msra.mxu0 %v3056
    %3058 = vmatprep.subr.mxu0 0.0
    %v3059 = vand.u32 %v28, 4294901760
    %3060 = vmatpush1.msra.mxu0 %v3059
    %3061 = vmatprep.subr.mxu0 0.0
    %v3062 = vand.u32 %v29, 4294901760
    %3063 = vmatpush1.msra.mxu0 %v3062
    %3064 = vmatprep.subr.mxu0 0.0
    %v3065 = vand.u32 %v30, 4294901760
    %3066 = vmatpush1.msra.mxu0 %v3065
    %3067 = vmatprep.subr.mxu0 0.0
    %3068 = vmatpush1.msra.mxu0 0.0
    %3069 = vmatprep.subr.mxu0 0.0
    %3070 = vmatpush1.msra.mxu0 0.0
    %3071 = vmatprep.subr.mxu0 0.0
    %3072 = vmatpush1.msra.mxu0 0.0
    %3073 = vmatprep.subr.mxu0 0.0
    %3074 = vmatpush1.msra.mxu0 0.0
    %3075 = vmatprep.subr.mxu0 0.0
    %3076 = vmatpush1.msra.mxu0 0.0
    %3077 = vmatprep.subr.mxu0 0.0
    %3078 = vmatpush1.msra.mxu0 0.0
    %3079 = vmatprep.subr.mxu0 0.0
    %3080 = vmatpush1.msra.mxu0 0.0
    %3081 = vmatprep.subr.mxu0 0.0
    %3082 = vmatpush1.msra.mxu0 0.0
    %3083 = vmatprep.subr.mxu0 0.0
    %3084 = vmatpush1.msra.mxu0 0.0
    %3085 = vmatprep.subr.mxu0 0.0
    %3086 = vmatpush1.msra.mxu0 0.0
    %3087 = vmatprep.subr.mxu0 0.0
    %3088 = vmatpush1.msra.mxu0 0.0
    %3089 = vmatprep.subr.mxu0 0.0
    %3090 = vmatpush1.msra.mxu0 0.0
    %3091 = vmatprep.subr.mxu0 0.0
    %3092 = vmatpush1.msra.mxu0 0.0
    %3093 = vmatprep.subr.mxu0 0.0
    %3094 = vmatpush1.msra.mxu0 0.0
    %3095 = vmatprep.subr.mxu0 0.0
    %3096 = vmatpush1.msra.mxu0 0.0
    %3097 = vmatprep.subr.mxu0 0.0
    %3098 = vmatpush1.msra.mxu0 0.0
    %3099 = vmatprep.mubr.f32.mxu0 0.0
    %v3100 = vand.u32 %v2672, 4294901760
    %v3101 = vsub.f32 %v2672, %v3100
    %v3102 = vand.u32 %v3101, 4294901760
    %3103 = vmatmul.mubr.f32.gmra.mrb[0].mxu0 %v3102
    %v3104 = vpop.f32.mrb[0].mxu0
    %v3105 = vadd.f32 %v3016, %v3104
    %v3106 = vpop.f32.mrb[0].mxu0
    %3107 = vdwg.mxu0
    %3108 = vmatprep.subr.mxu0 0.0
    %v3109 = vand.u32 %v15, 4294901760
    %v3110 = vsub.f32 %v15, %v3109
    %v3111 = vand.u32 %v3110, 4294901760
    %3112 = vmatpush1.msra.mxu0 %v3111
    %3113 = vmatprep.subr.mxu0 0.0
    %v3114 = vand.u32 %v16, 4294901760
    %v3115 = vsub.f32 %v16, %v3114
    %v3116 = vand.u32 %v3115, 4294901760
    %3117 = vmatpush1.msra.mxu0 %v3116
    %3118 = vmatprep.subr.mxu0 0.0
    %v3119 = vand.u32 %v17, 4294901760
    %v3120 = vsub.f32 %v17, %v3119
    %v3121 = vand.u32 %v3120, 4294901760
    %3122 = vmatpush1.msra.mxu0 %v3121
    %3123 = vmatprep.subr.mxu0 0.0
    %v3124 = vand.u32 %v18, 4294901760
    %v3125 = vsub.f32 %v18, %v3124
    %v3126 = vand.u32 %v3125, 4294901760
    %3127 = vmatpush1.msra.mxu0 %v3126
    %3128 = vmatprep.subr.mxu0 0.0
    %v3129 = vand.u32 %v19, 4294901760
    %v3130 = vsub.f32 %v19, %v3129
    %v3131 = vand.u32 %v3130, 4294901760
    %3132 = vmatpush1.msra.mxu0 %v3131
    %3133 = vmatprep.subr.mxu0 0.0
    %v3134 = vand.u32 %v20, 4294901760
    %v3135 = vsub.f32 %v20, %v3134
    %v3136 = vand.u32 %v3135, 4294901760
    %3137 = vmatpush1.msra.mxu0 %v3136
    %3138 = vmatprep.subr.mxu0 0.0
    %v3139 = vand.u32 %v21, 4294901760
    %v3140 = vsub.f32 %v21, %v3139
    %v3141 = vand.u32 %v3140, 4294901760
    %3142 = vmatpush1.msra.mxu0 %v3141
    %3143 = vmatprep.subr.mxu0 0.0
    %v3144 = vand.u32 %v22, 4294901760
    %v3145 = vsub.f32 %v22, %v3144
    %v3146 = vand.u32 %v3145, 4294901760
    %3147 = vmatpush1.msra.mxu0 %v3146
    %3148 = vmatprep.subr.mxu0 0.0
    %v3149 = vand.u32 %v23, 4294901760
    %v3150 = vsub.f32 %v23, %v3149
    %v3151 = vand.u32 %v3150, 4294901760
    %3152 = vmatpush1.msra.mxu0 %v3151
    %3153 = vmatprep.subr.mxu0 0.0
    %v3154 = vand.u32 %v24, 4294901760
    %v3155 = vsub.f32 %v24, %v3154
    %v3156 = vand.u32 %v3155, 4294901760
    %3157 = vmatpush1.msra.mxu0 %v3156
    %3158 = vmatprep.subr.mxu0 0.0
    %v3159 = vand.u32 %v25, 4294901760
    %v3160 = vsub.f32 %v25, %v3159
    %v3161 = vand.u32 %v3160, 4294901760
    %3162 = vmatpush1.msra.mxu0 %v3161
    %3163 = vmatprep.subr.mxu0 0.0
    %v3164 = vand.u32 %v26, 4294901760
    %v3165 = vsub.f32 %v26, %v3164
    %v3166 = vand.u32 %v3165, 4294901760
    %3167 = vmatpush1.msra.mxu0 %v3166
    %3168 = vmatprep.subr.mxu0 0.0
    %v3169 = vand.u32 %v27, 4294901760
    %v3170 = vsub.f32 %v27, %v3169
    %v3171 = vand.u32 %v3170, 4294901760
    %3172 = vmatpush1.msra.mxu0 %v3171
    %3173 = vmatprep.subr.mxu0 0.0
    %v3174 = vand.u32 %v28, 4294901760
    %v3175 = vsub.f32 %v28, %v3174
    %v3176 = vand.u32 %v3175, 4294901760
    %3177 = vmatpush1.msra.mxu0 %v3176
    %3178 = vmatprep.subr.mxu0 0.0
    %v3179 = vand.u32 %v29, 4294901760
    %v3180 = vsub.f32 %v29, %v3179
    %v3181 = vand.u32 %v3180, 4294901760
    %3182 = vmatpush1.msra.mxu0 %v3181
    %3183 = vmatprep.subr.mxu0 0.0
    %v3184 = vand.u32 %v30, 4294901760
    %v3185 = vsub.f32 %v30, %v3184
    %v3186 = vand.u32 %v3185, 4294901760
    %3187 = vmatpush1.msra.mxu0 %v3186
    %3188 = vmatprep.subr.mxu0 0.0
    %3189 = vmatpush1.msra.mxu0 0.0
    %3190 = vmatprep.subr.mxu0 0.0
    %3191 = vmatpush1.msra.mxu0 0.0
    %3192 = vmatprep.subr.mxu0 0.0
    %3193 = vmatpush1.msra.mxu0 0.0
    %3194 = vmatprep.subr.mxu0 0.0
    %3195 = vmatpush1.msra.mxu0 0.0
    %3196 = vmatprep.subr.mxu0 0.0
    %3197 = vmatpush1.msra.mxu0 0.0
    %3198 = vmatprep.subr.mxu0 0.0
    %3199 = vmatpush1.msra.mxu0 0.0
    %3200 = vmatprep.subr.mxu0 0.0
    %3201 = vmatpush1.msra.mxu0 0.0
    %3202 = vmatprep.subr.mxu0 0.0
    %3203 = vmatpush1.msra.mxu0 0.0
    %3204 = vmatprep.subr.mxu0 0.0
    %3205 = vmatpush1.msra.mxu0 0.0
    %3206 = vmatprep.subr.mxu0 0.0
    %3207 = vmatpush1.msra.mxu0 0.0
    %3208 = vmatprep.subr.mxu0 0.0
    %3209 = vmatpush1.msra.mxu0 0.0
    %3210 = vmatprep.subr.mxu0 0.0
    %3211 = vmatpush1.msra.mxu0 0.0
    %3212 = vmatprep.subr.mxu0 0.0
    %3213 = vmatpush1.msra.mxu0 0.0
    %3214 = vmatprep.subr.mxu0 0.0
    %3215 = vmatpush1.msra.mxu0 0.0
    %3216 = vmatprep.subr.mxu0 0.0
    %3217 = vmatpush1.msra.mxu0 0.0
    %3218 = vmatprep.subr.mxu0 0.0
    %3219 = vmatpush1.msra.mxu0 0.0
    %3220 = vmatprep.mubr.f32.mxu0 0.0
    %v3221 = vand.u32 %v2672, 4294901760
    %3222 = vmatmul.mubr.f32.gmra.mrb[0].mxu0 %v3221
    %v3223 = vpop.f32.mrb[0].mxu0
    %v3224 = vadd.f32 %v3105, %v3223
    %v3225 = vpop.f32.mrb[0].mxu0
    %3226 = vdwg.mxu0
    %3227 = vmatprep.subr.mxu0 0.0
    %v3228 = vand.u32 %v15, 4294901760
    %3229 = vmatpush1.msra.mxu0 %v3228
    %3230 = vmatprep.subr.mxu0 0.0
    %v3231 = vand.u32 %v16, 4294901760
    %3232 = vmatpush1.msra.mxu0 %v3231
    %3233 = vmatprep.subr.mxu0 0.0
    %v3234 = vand.u32 %v17, 4294901760
    %3235 = vmatpush1.msra.mxu0 %v3234
    %3236 = vmatprep.subr.mxu0 0.0
    %v3237 = vand.u32 %v18, 4294901760
    %3238 = vmatpush1.msra.mxu0 %v3237
    %3239 = vmatprep.subr.mxu0 0.0
    %v3240 = vand.u32 %v19, 4294901760
    %3241 = vmatpush1.msra.mxu0 %v3240
    %3242 = vmatprep.subr.mxu0 0.0
    %v3243 = vand.u32 %v20, 4294901760
    %3244 = vmatpush1.msra.mxu0 %v3243
    %3245 = vmatprep.subr.mxu0 0.0
    %v3246 = vand.u32 %v21, 4294901760
    %3247 = vmatpush1.msra.mxu0 %v3246
    %3248 = vmatprep.subr.mxu0 0.0
    %v3249 = vand.u32 %v22, 4294901760
    %3250 = vmatpush1.msra.mxu0 %v3249
    %3251 = vmatprep.subr.mxu0 0.0
    %v3252 = vand.u32 %v23, 4294901760
    %3253 = vmatpush1.msra.mxu0 %v3252
    %3254 = vmatprep.subr.mxu0 0.0
    %v3255 = vand.u32 %v24, 4294901760
    %3256 = vmatpush1.msra.mxu0 %v3255
    %3257 = vmatprep.subr.mxu0 0.0
    %v3258 = vand.u32 %v25, 4294901760
    %3259 = vmatpush1.msra.mxu0 %v3258
    %3260 = vmatprep.subr.mxu0 0.0
    %v3261 = vand.u32 %v26, 4294901760
    %3262 = vmatpush1.msra.mxu0 %v3261
    %3263 = vmatprep.subr.mxu0 0.0
    %v3264 = vand.u32 %v27, 4294901760
    %3265 = vmatpush1.msra.mxu0 %v3264
    %3266 = vmatprep.subr.mxu0 0.0
    %v3267 = vand.u32 %v28, 4294901760
    %3268 = vmatpush1.msra.mxu0 %v3267
    %3269 = vmatprep.subr.mxu0 0.0
    %v3270 = vand.u32 %v29, 4294901760
    %3271 = vmatpush1.msra.mxu0 %v3270
    %3272 = vmatprep.subr.mxu0 0.0
    %v3273 = vand.u32 %v30, 4294901760
    %3274 = vmatpush1.msra.mxu0 %v3273
    %3275 = vmatprep.subr.mxu0 0.0
    %3276 = vmatpush1.msra.mxu0 0.0
    %3277 = vmatprep.subr.mxu0 0.0
    %3278 = vmatpush1.msra.mxu0 0.0
    %3279 = vmatprep.subr.mxu0 0.0
    %3280 = vmatpush1.msra.mxu0 0.0
    %3281 = vmatprep.subr.mxu0 0.0
    %3282 = vmatpush1.msra.mxu0 0.0
    %3283 = vmatprep.subr.mxu0 0.0
    %3284 = vmatpush1.msra.mxu0 0.0
    %3285 = vmatprep.subr.mxu0 0.0
    %3286 = vmatpush1.msra.mxu0 0.0
    %3287 = vmatprep.subr.mxu0 0.0
    %3288 = vmatpush1.msra.mxu0 0.0
    %3289 = vmatprep.subr.mxu0 0.0
    %3290 = vmatpush1.msra.mxu0 0.0
    %3291 = vmatprep.subr.mxu0 0.0
    %3292 = vmatpush1.msra.mxu0 0.0
    %3293 = vmatprep.subr.mxu0 0.0
    %3294 = vmatpush1.msra.mxu0 0.0
    %3295 = vmatprep.subr.mxu0 0.0
    %3296 = vmatpush1.msra.mxu0 0.0
    %3297 = vmatprep.subr.mxu0 0.0
    %3298 = vmatpush1.msra.mxu0 0.0
    %3299 = vmatprep.subr.mxu0 0.0
    %3300 = vmatpush1.msra.mxu0 0.0
    %3301 = vmatprep.subr.mxu0 0.0
    %3302 = vmatpush1.msra.mxu0 0.0
    %3303 = vmatprep.subr.mxu0 0.0
    %3304 = vmatpush1.msra.mxu0 0.0
    %3305 = vmatprep.subr.mxu0 0.0
    %3306 = vmatpush1.msra.mxu0 0.0
    %3307 = vmatprep.mubr.f32.mxu0 0.0
    %v3308 = vand.u32 %v2672, 4294901760
    %3309 = vmatmul.mubr.f32.gmra.mrb[0].mxu0 %v3308
    %v3310 = vpop.f32.mrb[0].mxu0
    %v3311 = vadd.f32 %v3224, %v3310
    %v3312 = vpop.f32.mrb[0].mxu0
    %3313 = vdwg.mxu0
    %v3314 = vmul.f32 %v2668, 0.9
    %v3315 = vadd.f32 %v3314, %v3311
    %vm3316 = vcmp.le.s32.totalorder %v41, 4
    %vm3317 = vcmp.gt.s32.totalorder %v41, 4294967292
    %vm3318 = vmand %vm3316, %vm3317
    %vm3319 = vcmp.ge.f32.partialorder %v3315, 1.0
    %vm3320 = vmand %vm3319, %vm3318
    %v3321 = vsel %vm3320, 1, 0
    %v3322 = vcvt.s32.f32 %v3321
    %v3323 = vsel %vm3320, 0.0, %v3315
    %v3324 = vsel %vm3318, %v3323, %v2668
    %v3325 = vadd.f32 %v2669, %v3322
    %s3326 = scalar_lea.vmem %s0, 40
    %v3327 = vld [vmem:[%s3326] sm:$0xff]
    %v3328 = vadd.f32 %v3322, %v3327
    %3329 = vmatprep.subr.mxu0 0.0
    %v3330 = vand.u32 %v15, 4294901760
    %3331 = vmatpush1.msra.mxu0 %v3330
    %3332 = vmatprep.subr.mxu0 0.0
    %v3333 = vand.u32 %v16, 4294901760
    %3334 = vmatpush1.msra.mxu0 %v3333
    %3335 = vmatprep.subr.mxu0 0.0
    %v3336 = vand.u32 %v17, 4294901760
    %3337 = vmatpush1.msra.mxu0 %v3336
    %3338 = vmatprep.subr.mxu0 0.0
    %v3339 = vand.u32 %v18, 4294901760
    %3340 = vmatpush1.msra.mxu0 %v3339
    %3341 = vmatprep.subr.mxu0 0.0
    %v3342 = vand.u32 %v19, 4294901760
    %3343 = vmatpush1.msra.mxu0 %v3342
    %3344 = vmatprep.subr.mxu0 0.0
    %v3345 = vand.u32 %v20, 4294901760
    %3346 = vmatpush1.msra.mxu0 %v3345
    %3347 = vmatprep.subr.mxu0 0.0
    %v3348 = vand.u32 %v21, 4294901760
    %3349 = vmatpush1.msra.mxu0 %v3348
    %3350 = vmatprep.subr.mxu0 0.0
    %v3351 = vand.u32 %v22, 4294901760
    %3352 = vmatpush1.msra.mxu0 %v3351
    %3353 = vmatprep.subr.mxu0 0.0
    %v3354 = vand.u32 %v23, 4294901760
    %3355 = vmatpush1.msra.mxu0 %v3354
    %3356 = vmatprep.subr.mxu0 0.0
    %v3357 = vand.u32 %v24, 4294901760
    %3358 = vmatpush1.msra.mxu0 %v3357
    %3359 = vmatprep.subr.mxu0 0.0
    %v3360 = vand.u32 %v25, 4294901760
    %3361 = vmatpush1.msra.mxu0 %v3360
    %3362 = vmatprep.subr.mxu0 0.0
    %v3363 = vand.u32 %v26, 4294901760
    %3364 = vmatpush1.msra.mxu0 %v3363
    %3365 = vmatprep.subr.mxu0 0.0
    %v3366 = vand.u32 %v27, 4294901760
    %3367 = vmatpush1.msra.mxu0 %v3366
    %3368 = vmatprep.subr.mxu0 0.0
    %v3369 = vand.u32 %v28, 4294901760
    %3370 = vmatpush1.msra.mxu0 %v3369
    %3371 = vmatprep.subr.mxu0 0.0
    %v3372 = vand.u32 %v29, 4294901760
    %3373 = vmatpush1.msra.mxu0 %v3372
    %3374 = vmatprep.subr.mxu0 0.0
    %v3375 = vand.u32 %v30, 4294901760
    %3376 = vmatpush1.msra.mxu0 %v3375
    %3377 = vmatprep.subr.mxu0 0.0
    %3378 = vmatpush1.msra.mxu0 0.0
    %3379 = vmatprep.subr.mxu0 0.0
    %3380 = vmatpush1.msra.mxu0 0.0
    %3381 = vmatprep.subr.mxu0 0.0
    %3382 = vmatpush1.msra.mxu0 0.0
    %3383 = vmatprep.subr.mxu0 0.0
    %3384 = vmatpush1.msra.mxu0 0.0
    %3385 = vmatprep.subr.mxu0 0.0
    %3386 = vmatpush1.msra.mxu0 0.0
    %3387 = vmatprep.subr.mxu0 0.0
    %3388 = vmatpush1.msra.mxu0 0.0
    %3389 = vmatprep.subr.mxu0 0.0
    %3390 = vmatpush1.msra.mxu0 0.0
    %3391 = vmatprep.subr.mxu0 0.0
    %3392 = vmatpush1.msra.mxu0 0.0
    %3393 = vmatprep.subr.mxu0 0.0
    %3394 = vmatpush1.msra.mxu0 0.0
    %3395 = vmatprep.subr.mxu0 0.0
    %3396 = vmatpush1.msra.mxu0 0.0
    %3397 = vmatprep.subr.mxu0 0.0
    %3398 = vmatpush1.msra.mxu0 0.0
    %3399 = vmatprep.subr.mxu0 0.0
    %3400 = vmatpush1.msra.mxu0 0.0
    %3401 = vmatprep.subr.mxu0 0.0
    %3402 = vmatpush1.msra.mxu0 0.0
    %3403 = vmatprep.subr.mxu0 0.0
    %3404 = vmatpush1.msra.mxu0 0.0
    %3405 = vmatprep.subr.mxu0 0.0
    %3406 = vmatpush1.msra.mxu0 0.0
    %3407 = vmatprep.subr.mxu0 0.0
    %3408 = vmatpush1.msra.mxu0 0.0
    %3409 = vmatprep.mubr.f32.mxu0 0.0
    %v3410 = vand.u32 %v3328, 4294901760
    %v3411 = vsub.f32 %v3328, %v3410
    %v3412 = vand.u32 %v3411, 4294901760
    %v3413 = vsub.f32 %v3411, %v3412
    %v3414 = vand.u32 %v3413, 4294901760
    %3415 = vmatmul.mubr.f32.gmra.mrb[0].mxu0 %v3414
    %v3416 = vpop.f32.mrb[0].mxu0
    %v3417 = vadd.f32 %v48, %v3416
    %v3418 = vpop.f32.mrb[0].mxu0
    %3419 = vdwg.mxu0
    %3420 = vmatprep.subr.mxu0 0.0
    %v3421 = vand.u32 %v15, 4294901760
    %v3422 = vsub.f32 %v15, %v3421
    %v3423 = vand.u32 %v3422, 4294901760
    %v3424 = vsub.f32 %v3422, %v3423
    %v3425 = vand.u32 %v3424, 4294901760
    %3426 = vmatpush1.msra.mxu0 %v3425
    %3427 = vmatprep.subr.mxu0 0.0
    %v3428 = vand.u32 %v16, 4294901760
    %v3429 = vsub.f32 %v16, %v3428
    %v3430 = vand.u32 %v3429, 4294901760
    %v3431 = vsub.f32 %v3429, %v3430
    %v3432 = vand.u32 %v3431, 4294901760
    %3433 = vmatpush1.msra.mxu0 %v3432
    %3434 = vmatprep.subr.mxu0 0.0
    %v3435 = vand.u32 %v17, 4294901760
    %v3436 = vsub.f32 %v17, %v3435
    %v3437 = vand.u32 %v3436, 4294901760
    %v3438 = vsub.f32 %v3436, %v3437
    %v3439 = vand.u32 %v3438, 4294901760
    %3440 = vmatpush1.msra.mxu0 %v3439
    %3441 = vmatprep.subr.mxu0 0.0
    %v3442 = vand.u32 %v18, 4294901760
    %v3443 = vsub.f32 %v18, %v3442
    %v3444 = vand.u32 %v3443, 4294901760
    %v3445 = vsub.f32 %v3443, %v3444
    %v3446 = vand.u32 %v3445, 4294901760
    %3447 = vmatpush1.msra.mxu0 %v3446
    %3448 = vmatprep.subr.mxu0 0.0
    %v3449 = vand.u32 %v19, 4294901760
    %v3450 = vsub.f32 %v19, %v3449
    %v3451 = vand.u32 %v3450, 4294901760
    %v3452 = vsub.f32 %v3450, %v3451
    %v3453 = vand.u32 %v3452, 4294901760
    %3454 = vmatpush1.msra.mxu0 %v3453
    %3455 = vmatprep.subr.mxu0 0.0
    %v3456 = vand.u32 %v20, 4294901760
    %v3457 = vsub.f32 %v20, %v3456
    %v3458 = vand.u32 %v3457, 4294901760
    %v3459 = vsub.f32 %v3457, %v3458
    %v3460 = vand.u32 %v3459, 4294901760
    %3461 = vmatpush1.msra.mxu0 %v3460
    %3462 = vmatprep.subr.mxu0 0.0
    %v3463 = vand.u32 %v21, 4294901760
    %v3464 = vsub.f32 %v21, %v3463
    %v3465 = vand.u32 %v3464, 4294901760
    %v3466 = vsub.f32 %v3464, %v3465
    %v3467 = vand.u32 %v3466, 4294901760
    %3468 = vmatpush1.msra.mxu0 %v3467
    %3469 = vmatprep.subr.mxu0 0.0
    %v3470 = vand.u32 %v22, 4294901760
    %v3471 = vsub.f32 %v22, %v3470
    %v3472 = vand.u32 %v3471, 4294901760
    %v3473 = vsub.f32 %v3471, %v3472
    %v3474 = vand.u32 %v3473, 4294901760
    %3475 = vmatpush1.msra.mxu0 %v3474
    %3476 = vmatprep.subr.mxu0 0.0
    %v3477 = vand.u32 %v23, 4294901760
    %v3478 = vsub.f32 %v23, %v3477
    %v3479 = vand.u32 %v3478, 4294901760
    %v3480 = vsub.f32 %v3478, %v3479
    %v3481 = vand.u32 %v3480, 4294901760
    %3482 = vmatpush1.msra.mxu0 %v3481
    %3483 = vmatprep.subr.mxu0 0.0
    %v3484 = vand.u32 %v24, 4294901760
    %v3485 = vsub.f32 %v24, %v3484
    %v3486 = vand.u32 %v3485, 4294901760
    %v3487 = vsub.f32 %v3485, %v3486
    %v3488 = vand.u32 %v3487, 4294901760
    %3489 = vmatpush1.msra.mxu0 %v3488
    %3490 = vmatprep.subr.mxu0 0.0
    %v3491 = vand.u32 %v25, 4294901760
    %v3492 = vsub.f32 %v25, %v3491
    %v3493 = vand.u32 %v3492, 4294901760
    %v3494 = vsub.f32 %v3492, %v3493
    %v3495 = vand.u32 %v3494, 4294901760
    %3496 = vmatpush1.msra.mxu0 %v3495
    %3497 = vmatprep.subr.mxu0 0.0
    %v3498 = vand.u32 %v26, 4294901760
    %v3499 = vsub.f32 %v26, %v3498
    %v3500 = vand.u32 %v3499, 4294901760
    %v3501 = vsub.f32 %v3499, %v3500
    %v3502 = vand.u32 %v3501, 4294901760
    %3503 = vmatpush1.msra.mxu0 %v3502
    %3504 = vmatprep.subr.mxu0 0.0
    %v3505 = vand.u32 %v27, 4294901760
    %v3506 = vsub.f32 %v27, %v3505
    %v3507 = vand.u32 %v3506, 4294901760
    %v3508 = vsub.f32 %v3506, %v3507
    %v3509 = vand.u32 %v3508, 4294901760
    %3510 = vmatpush1.msra.mxu0 %v3509
    %3511 = vmatprep.subr.mxu0 0.0
    %v3512 = vand.u32 %v28, 4294901760
    %v3513 = vsub.f32 %v28, %v3512
    %v3514 = vand.u32 %v3513, 4294901760
    %v3515 = vsub.f32 %v3513, %v3514
    %v3516 = vand.u32 %v3515, 4294901760
    %3517 = vmatpush1.msra.mxu0 %v3516
    %3518 = vmatprep.subr.mxu0 0.0
    %v3519 = vand.u32 %v29, 4294901760
    %v3520 = vsub.f32 %v29, %v3519
    %v3521 = vand.u32 %v3520, 4294901760
    %v3522 = vsub.f32 %v3520, %v3521
    %v3523 = vand.u32 %v3522, 4294901760
    %3524 = vmatpush1.msra.mxu0 %v3523
    %3525 = vmatprep.subr.mxu0 0.0
    %v3526 = vand.u32 %v30, 4294901760
    %v3527 = vsub.f32 %v30, %v3526
    %v3528 = vand.u32 %v3527, 4294901760
    %v3529 = vsub.f32 %v3527, %v3528
    %v3530 = vand.u32 %v3529, 4294901760
    %3531 = vmatpush1.msra.mxu0 %v3530
    %3532 = vmatprep.subr.mxu0 0.0
    %3533 = vmatpush1.msra.mxu0 0.0
    %3534 = vmatprep.subr.mxu0 0.0
    %3535 = vmatpush1.msra.mxu0 0.0
    %3536 = vmatprep.subr.mxu0 0.0
    %3537 = vmatpush1.msra.mxu0 0.0
    %3538 = vmatprep.subr.mxu0 0.0
    %3539 = vmatpush1.msra.mxu0 0.0
    %3540 = vmatprep.subr.mxu0 0.0
    %3541 = vmatpush1.msra.mxu0 0.0
    %3542 = vmatprep.subr.mxu0 0.0
    %3543 = vmatpush1.msra.mxu0 0.0
    %3544 = vmatprep.subr.mxu0 0.0
    %3545 = vmatpush1.msra.mxu0 0.0
    %3546 = vmatprep.subr.mxu0 0.0
    %3547 = vmatpush1.msra.mxu0 0.0
    %3548 = vmatprep.subr.mxu0 0.0
    %3549 = vmatpush1.msra.mxu0 0.0
    %3550 = vmatprep.subr.mxu0 0.0
    %3551 = vmatpush1.msra.mxu0 0.0
    %3552 = vmatprep.subr.mxu0 0.0
    %3553 = vmatpush1.msra.mxu0 0.0
    %3554 = vmatprep.subr.mxu0 0.0
    %3555 = vmatpush1.msra.mxu0 0.0
    %3556 = vmatprep.subr.mxu0 0.0
    %3557 = vmatpush1.msra.mxu0 0.0
    %3558 = vmatprep.subr.mxu0 0.0
    %3559 = vmatpush1.msra.mxu0 0.0
    %3560 = vmatprep.subr.mxu0 0.0
    %3561 = vmatpush1.msra.mxu0 0.0
    %3562 = vmatprep.subr.mxu0 0.0
    %3563 = vmatpush1.msra.mxu0 0.0
    %3564 = vmatprep.mubr.f32.mxu0 0.0
    %v3565 = vand.u32 %v3328, 4294901760
    %3566 = vmatmul.mubr.f32.gmra.mrb[0].mxu0 %v3565
    %v3567 = vpop.f32.mrb[0].mxu0
    %v3568 = vadd.f32 %v3417, %v3567
    %v3569 = vpop.f32.mrb[0].mxu0
    %3570 = vdwg.mxu0
    %3571 = vmatprep.subr.mxu0 0.0
    %v3572 = vand.u32 %v15, 4294901760
    %v3573 = vsub.f32 %v15, %v3572
    %3574 = vmatpush1.msra.mxu0 %v3573
    %3575 = vmatprep.subr.mxu0 0.0
    %v3576 = vand.u32 %v16, 4294901760
    %v3577 = vsub.f32 %v16, %v3576
    %3578 = vmatpush1.msra.mxu0 %v3577
    %3579 = vmatprep.subr.mxu0 0.0
    %v3580 = vand.u32 %v17, 4294901760
    %v3581 = vsub.f32 %v17, %v3580
    %3582 = vmatpush1.msra.mxu0 %v3581
    %3583 = vmatprep.subr.mxu0 0.0
    %v3584 = vand.u32 %v18, 4294901760
    %v3585 = vsub.f32 %v18, %v3584
    %3586 = vmatpush1.msra.mxu0 %v3585
    %3587 = vmatprep.subr.mxu0 0.0
    %v3588 = vand.u32 %v19, 4294901760
    %v3589 = vsub.f32 %v19, %v3588
    %3590 = vmatpush1.msra.mxu0 %v3589
    %3591 = vmatprep.subr.mxu0 0.0
    %v3592 = vand.u32 %v20, 4294901760
    %v3593 = vsub.f32 %v20, %v3592
    %3594 = vmatpush1.msra.mxu0 %v3593
    %3595 = vmatprep.subr.mxu0 0.0
    %v3596 = vand.u32 %v21, 4294901760
    %v3597 = vsub.f32 %v21, %v3596
    %3598 = vmatpush1.msra.mxu0 %v3597
    %3599 = vmatprep.subr.mxu0 0.0
    %v3600 = vand.u32 %v22, 4294901760
    %v3601 = vsub.f32 %v22, %v3600
    %3602 = vmatpush1.msra.mxu0 %v3601
    %3603 = vmatprep.subr.mxu0 0.0
    %v3604 = vand.u32 %v23, 4294901760
    %v3605 = vsub.f32 %v23, %v3604
    %3606 = vmatpush1.msra.mxu0 %v3605
    %3607 = vmatprep.subr.mxu0 0.0
    %v3608 = vand.u32 %v24, 4294901760
    %v3609 = vsub.f32 %v24, %v3608
    %3610 = vmatpush1.msra.mxu0 %v3609
    %3611 = vmatprep.subr.mxu0 0.0
    %v3612 = vand.u32 %v25, 4294901760
    %v3613 = vsub.f32 %v25, %v3612
    %3614 = vmatpush1.msra.mxu0 %v3613
    %3615 = vmatprep.subr.mxu0 0.0
    %v3616 = vand.u32 %v26, 4294901760
    %v3617 = vsub.f32 %v26, %v3616
    %3618 = vmatpush1.msra.mxu0 %v3617
    %3619 = vmatprep.subr.mxu0 0.0
    %v3620 = vand.u32 %v27, 4294901760
    %v3621 = vsub.f32 %v27, %v3620
    %3622 = vmatpush1.msra.mxu0 %v3621
    %3623 = vmatprep.subr.mxu0 0.0
    %v3624 = vand.u32 %v28, 4294901760
    %v3625 = vsub.f32 %v28, %v3624
    %3626 = vmatpush1.msra.mxu0 %v3625
    %3627 = vmatprep.subr.mxu0 0.0
    %v3628 = vand.u32 %v29, 4294901760
    %v3629 = vsub.f32 %v29, %v3628
    %3630 = vmatpush1.msra.mxu0 %v3629
    %3631 = vmatprep.subr.mxu0 0.0
    %v3632 = vand.u32 %v30, 4294901760
    %v3633 = vsub.f32 %v30, %v3632
    %3634 = vmatpush1.msra.mxu0 %v3633
    %3635 = vmatprep.subr.mxu0 0.0
    %3636 = vmatpush1.msra.mxu0 0.0
    %3637 = vmatprep.subr.mxu0 0.0
    %3638 = vmatpush1.msra.mxu0 0.0
    %3639 = vmatprep.subr.mxu0 0.0
    %3640 = vmatpush1.msra.mxu0 0.0
    %3641 = vmatprep.subr.mxu0 0.0
    %3642 = vmatpush1.msra.mxu0 0.0
    %3643 = vmatprep.subr.mxu0 0.0
    %3644 = vmatpush1.msra.mxu0 0.0
    %3645 = vmatprep.subr.mxu0 0.0
    %3646 = vmatpush1.msra.mxu0 0.0
    %3647 = vmatprep.subr.mxu0 0.0
    %3648 = vmatpush1.msra.mxu0 0.0
    %3649 = vmatprep.subr.mxu0 0.0
    %3650 = vmatpush1.msra.mxu0 0.0
    %3651 = vmatprep.subr.mxu0 0.0
    %3652 = vmatpush1.msra.mxu0 0.0
    %3653 = vmatprep.subr.mxu0 0.0
    %3654 = vmatpush1.msra.mxu0 0.0
    %3655 = vmatprep.subr.mxu0 0.0
    %3656 = vmatpush1.msra.mxu0 0.0
    %3657 = vmatprep.subr.mxu0 0.0
    %3658 = vmatpush1.msra.mxu0 0.0
    %3659 = vmatprep.subr.mxu0 0.0
    %3660 = vmatpush1.msra.mxu0 0.0
    %3661 = vmatprep.subr.mxu0 0.0
    %3662 = vmatpush1.msra.mxu0 0.0
    %3663 = vmatprep.subr.mxu0 0.0
    %3664 = vmatpush1.msra.mxu0 0.0
    %3665 = vmatprep.subr.mxu0 0.0
    %3666 = vmatpush1.msra.mxu0 0.0
    %3667 = vmatprep.mubr.f32.mxu0 0.0
    %v3668 = vand.u32 %v3328, 4294901760
    %v3669 = vsub.f32 %v3328, %v3668
    %3670 = vmatmul.mubr.f32.gmra.mrb[0].mxu0 %v3669
    %v3671 = vpop.f32.mrb[0].mxu0
    %v3672 = vadd.f32 %v3568, %v3671
    %v3673 = vpop.f32.mrb[0].mxu0
    %3674 = vdwg.mxu0
    %3675 = vmatprep.subr.mxu0 0.0
    %v3676 = vand.u32 %v15, 4294901760
    %3677 = vmatpush1.msra.mxu0 %v3676
    %3678 = vmatprep.subr.mxu0 0.0
    %v3679 = vand.u32 %v16, 4294901760
    %3680 = vmatpush1.msra.mxu0 %v3679
    %3681 = vmatprep.subr.mxu0 0.0
    %v3682 = vand.u32 %v17, 4294901760
    %3683 = vmatpush1.msra.mxu0 %v3682
    %3684 = vmatprep.subr.mxu0 0.0
    %v3685 = vand.u32 %v18, 4294901760
    %3686 = vmatpush1.msra.mxu0 %v3685
    %3687 = vmatprep.subr.mxu0 0.0
    %v3688 = vand.u32 %v19, 4294901760
    %3689 = vmatpush1.msra.mxu0 %v3688
    %3690 = vmatprep.subr.mxu0 0.0
    %v3691 = vand.u32 %v20, 4294901760
    %3692 = vmatpush1.msra.mxu0 %v3691
    %3693 = vmatprep.subr.mxu0 0.0
    %v3694 = vand.u32 %v21, 4294901760
    %3695 = vmatpush1.msra.mxu0 %v3694
    %3696 = vmatprep.subr.mxu0 0.0
    %v3697 = vand.u32 %v22, 4294901760
    %3698 = vmatpush1.msra.mxu0 %v3697
    %3699 = vmatprep.subr.mxu0 0.0
    %v3700 = vand.u32 %v23, 4294901760
    %3701 = vmatpush1.msra.mxu0 %v3700
    %3702 = vmatprep.subr.mxu0 0.0
    %v3703 = vand.u32 %v24, 4294901760
    %3704 = vmatpush1.msra.mxu0 %v3703
    %3705 = vmatprep.subr.mxu0 0.0
    %v3706 = vand.u32 %v25, 4294901760
    %3707 = vmatpush1.msra.mxu0 %v3706
    %3708 = vmatprep.subr.mxu0 0.0
    %v3709 = vand.u32 %v26, 4294901760
    %3710 = vmatpush1.msra.mxu0 %v3709
    %3711 = vmatprep.subr.mxu0 0.0
    %v3712 = vand.u32 %v27, 4294901760
    %3713 = vmatpush1.msra.mxu0 %v3712
    %3714 = vmatprep.subr.mxu0 0.0
    %v3715 = vand.u32 %v28, 4294901760
    %3716 = vmatpush1.msra.mxu0 %v3715
    %3717 = vmatprep.subr.mxu0 0.0
    %v3718 = vand.u32 %v29, 4294901760
    %3719 = vmatpush1.msra.mxu0 %v3718
    %3720 = vmatprep.subr.mxu0 0.0
    %v3721 = vand.u32 %v30, 4294901760
    %3722 = vmatpush1.msra.mxu0 %v3721
    %3723 = vmatprep.subr.mxu0 0.0
    %3724 = vmatpush1.msra.mxu0 0.0
    %3725 = vmatprep.subr.mxu0 0.0
    %3726 = vmatpush1.msra.mxu0 0.0
    %3727 = vmatprep.subr.mxu0 0.0
    %3728 = vmatpush1.msra.mxu0 0.0
    %3729 = vmatprep.subr.mxu0 0.0
    %3730 = vmatpush1.msra.mxu0 0.0
    %3731 = vmatprep.subr.mxu0 0.0
    %3732 = vmatpush1.msra.mxu0 0.0
    %3733 = vmatprep.subr.mxu0 0.0
    %3734 = vmatpush1.msra.mxu0 0.0
    %3735 = vmatprep.subr.mxu0 0.0
    %3736 = vmatpush1.msra.mxu0 0.0
    %3737 = vmatprep.subr.mxu0 0.0
    %3738 = vmatpush1.msra.mxu0 0.0
    %3739 = vmatprep.subr.mxu0 0.0
    %3740 = vmatpush1.msra.mxu0 0.0
    %3741 = vmatprep.subr.mxu0 0.0
    %3742 = vmatpush1.msra.mxu0 0.0
    %3743 = vmatprep.subr.mxu0 0.0
    %3744 = vmatpush1.msra.mxu0 0.0
    %3745 = vmatprep.subr.mxu0 0.0
    %3746 = vmatpush1.msra.mxu0 0.0
    %3747 = vmatprep.subr.mxu0 0.0
    %3748 = vmatpush1.msra.mxu0 0.0
    %3749 = vmatprep.subr.mxu0 0.0
    %3750 = vmatpush1.msra.mxu0 0.0
    %3751 = vmatprep.subr.mxu0 0.0
    %3752 = vmatpush1.msra.mxu0 0.0
    %3753 = vmatprep.subr.mxu0 0.0
    %3754 = vmatpush1.msra.mxu0 0.0
    %3755 = vmatprep.mubr.f32.mxu0 0.0
    %v3756 = vand.u32 %v3328, 4294901760
    %v3757 = vsub.f32 %v3328, %v3756
    %v3758 = vand.u32 %v3757, 4294901760
    %3759 = vmatmul.mubr.f32.gmra.mrb[0].mxu0 %v3758
    %v3760 = vpop.f32.mrb[0].mxu0
    %v3761 = vadd.f32 %v3672, %v3760
    %v3762 = vpop.f32.mrb[0].mxu0
    %3763 = vdwg.mxu0
    %3764 = vmatprep.subr.mxu0 0.0
    %v3765 = vand.u32 %v15, 4294901760
    %v3766 = vsub.f32 %v15, %v3765
    %v3767 = vand.u32 %v3766, 4294901760
    %3768 = vmatpush1.msra.mxu0 %v3767
    %3769 = vmatprep.subr.mxu0 0.0
    %v3770 = vand.u32 %v16, 4294901760
    %v3771 = vsub.f32 %v16, %v3770
    %v3772 = vand.u32 %v3771, 4294901760
    %3773 = vmatpush1.msra.mxu0 %v3772
    %3774 = vmatprep.subr.mxu0 0.0
    %v3775 = vand.u32 %v17, 4294901760
    %v3776 = vsub.f32 %v17, %v3775
    %v3777 = vand.u32 %v3776, 4294901760
    %3778 = vmatpush1.msra.mxu0 %v3777
    %3779 = vmatprep.subr.mxu0 0.0
    %v3780 = vand.u32 %v18, 4294901760
    %v3781 = vsub.f32 %v18, %v3780
    %v3782 = vand.u32 %v3781, 4294901760
    %3783 = vmatpush1.msra.mxu0 %v3782
    %3784 = vmatprep.subr.mxu0 0.0
    %v3785 = vand.u32 %v19, 4294901760
    %v3786 = vsub.f32 %v19, %v3785
    %v3787 = vand.u32 %v3786, 4294901760
    %3788 = vmatpush1.msra.mxu0 %v3787
    %3789 = vmatprep.subr.mxu0 0.0
    %v3790 = vand.u32 %v20, 4294901760
    %v3791 = vsub.f32 %v20, %v3790
    %v3792 = vand.u32 %v3791, 4294901760
    %3793 = vmatpush1.msra.mxu0 %v3792
    %3794 = vmatprep.subr.mxu0 0.0
    %v3795 = vand.u32 %v21, 4294901760
    %v3796 = vsub.f32 %v21, %v3795
    %v3797 = vand.u32 %v3796, 4294901760
    %3798 = vmatpush1.msra.mxu0 %v3797
    %3799 = vmatprep.subr.mxu0 0.0
    %v3800 = vand.u32 %v22, 4294901760
    %v3801 = vsub.f32 %v22, %v3800
    %v3802 = vand.u32 %v3801, 4294901760
    %3803 = vmatpush1.msra.mxu0 %v3802
    %3804 = vmatprep.subr.mxu0 0.0
    %v3805 = vand.u32 %v23, 4294901760
    %v3806 = vsub.f32 %v23, %v3805
    %v3807 = vand.u32 %v3806, 4294901760
    %3808 = vmatpush1.msra.mxu0 %v3807
    %3809 = vmatprep.subr.mxu0 0.0
    %v3810 = vand.u32 %v24, 4294901760
    %v3811 = vsub.f32 %v24, %v3810
    %v3812 = vand.u32 %v3811, 4294901760
    %3813 = vmatpush1.msra.mxu0 %v3812
    %3814 = vmatprep.subr.mxu0 0.0
    %v3815 = vand.u32 %v25, 4294901760
    %v3816 = vsub.f32 %v25, %v3815
    %v3817 = vand.u32 %v3816, 4294901760
    %3818 = vmatpush1.msra.mxu0 %v3817
    %3819 = vmatprep.subr.mxu0 0.0
    %v3820 = vand.u32 %v26, 4294901760
    %v3821 = vsub.f32 %v26, %v3820
    %v3822 = vand.u32 %v3821, 4294901760
    %3823 = vmatpush1.msra.mxu0 %v3822
    %3824 = vmatprep.subr.mxu0 0.0
    %v3825 = vand.u32 %v27, 4294901760
    %v3826 = vsub.f32 %v27, %v3825
    %v3827 = vand.u32 %v3826, 4294901760
    %3828 = vmatpush1.msra.mxu0 %v3827
    %3829 = vmatprep.subr.mxu0 0.0
    %v3830 = vand.u32 %v28, 4294901760
    %v3831 = vsub.f32 %v28, %v3830
    %v3832 = vand.u32 %v3831, 4294901760
    %3833 = vmatpush1.msra.mxu0 %v3832
    %3834 = vmatprep.subr.mxu0 0.0
    %v3835 = vand.u32 %v29, 4294901760
    %v3836 = vsub.f32 %v29, %v3835
    %v3837 = vand.u32 %v3836, 4294901760
    %3838 = vmatpush1.msra.mxu0 %v3837
    %3839 = vmatprep.subr.mxu0 0.0
    %v3840 = vand.u32 %v30, 4294901760
    %v3841 = vsub.f32 %v30, %v3840
    %v3842 = vand.u32 %v3841, 4294901760
    %3843 = vmatpush1.msra.mxu0 %v3842
    %3844 = vmatprep.subr.mxu0 0.0
    %3845 = vmatpush1.msra.mxu0 0.0
    %3846 = vmatprep.subr.mxu0 0.0
    %3847 = vmatpush1.msra.mxu0 0.0
    %3848 = vmatprep.subr.mxu0 0.0
    %3849 = vmatpush1.msra.mxu0 0.0
    %3850 = vmatprep.subr.mxu0 0.0
    %3851 = vmatpush1.msra.mxu0 0.0
    %3852 = vmatprep.subr.mxu0 0.0
    %3853 = vmatpush1.msra.mxu0 0.0
    %3854 = vmatprep.subr.mxu0 0.0
    %3855 = vmatpush1.msra.mxu0 0.0
    %3856 = vmatprep.subr.mxu0 0.0
    %3857 = vmatpush1.msra.mxu0 0.0
    %3858 = vmatprep.subr.mxu0 0.0
    %3859 = vmatpush1.msra.mxu0 0.0
    %3860 = vmatprep.subr.mxu0 0.0
    %3861 = vmatpush1.msra.mxu0 0.0
    %3862 = vmatprep.subr.mxu0 0.0
    %3863 = vmatpush1.msra.mxu0 0.0
    %3864 = vmatprep.subr.mxu0 0.0
    %3865 = vmatpush1.msra.mxu0 0.0
    %3866 = vmatprep.subr.mxu0 0.0
    %3867 = vmatpush1.msra.mxu0 0.0
    %3868 = vmatprep.subr.mxu0 0.0
    %3869 = vmatpush1.msra.mxu0 0.0
    %3870 = vmatprep.subr.mxu0 0.0
    %3871 = vmatpush1.msra.mxu0 0.0
    %3872 = vmatprep.subr.mxu0 0.0
    %3873 = vmatpush1.msra.mxu0 0.0
    %3874 = vmatprep.subr.mxu0 0.0
    %3875 = vmatpush1.msra.mxu0 0.0
    %3876 = vmatprep.mubr.f32.mxu0 0.0
    %v3877 = vand.u32 %v3328, 4294901760
    %3878 = vmatmul.mubr.f32.gmra.mrb[0].mxu0 %v3877
    %v3879 = vpop.f32.mrb[0].mxu0
    %v3880 = vadd.f32 %v3761, %v3879
    %v3881 = vpop.f32.mrb[0].mxu0
    %3882 = vdwg.mxu0
    %3883 = vmatprep.subr.mxu0 0.0
    %v3884 = vand.u32 %v15, 4294901760
    %3885 = vmatpush1.msra.mxu0 %v3884
    %3886 = vmatprep.subr.mxu0 0.0
    %v3887 = vand.u32 %v16, 4294901760
    %3888 = vmatpush1.msra.mxu0 %v3887
    %3889 = vmatprep.subr.mxu0 0.0
    %v3890 = vand.u32 %v17, 4294901760
    %3891 = vmatpush1.msra.mxu0 %v3890
    %3892 = vmatprep.subr.mxu0 0.0
    %v3893 = vand.u32 %v18, 4294901760
    %3894 = vmatpush1.msra.mxu0 %v3893
    %3895 = vmatprep.subr.mxu0 0.0
    %v3896 = vand.u32 %v19, 4294901760
    %3897 = vmatpush1.msra.mxu0 %v3896
    %3898 = vmatprep.subr.mxu0 0.0
    %v3899 = vand.u32 %v20, 4294901760
    %3900 = vmatpush1.msra.mxu0 %v3899
    %3901 = vmatprep.subr.mxu0 0.0
    %v3902 = vand.u32 %v21, 4294901760
    %3903 = vmatpush1.msra.mxu0 %v3902
    %3904 = vmatprep.subr.mxu0 0.0
    %v3905 = vand.u32 %v22, 4294901760
    %3906 = vmatpush1.msra.mxu0 %v3905
    %3907 = vmatprep.subr.mxu0 0.0
    %v3908 = vand.u32 %v23, 4294901760
    %3909 = vmatpush1.msra.mxu0 %v3908
    %3910 = vmatprep.subr.mxu0 0.0
    %v3911 = vand.u32 %v24, 4294901760
    %3912 = vmatpush1.msra.mxu0 %v3911
    %3913 = vmatprep.subr.mxu0 0.0
    %v3914 = vand.u32 %v25, 4294901760
    %3915 = vmatpush1.msra.mxu0 %v3914
    %3916 = vmatprep.subr.mxu0 0.0
    %v3917 = vand.u32 %v26, 4294901760
    %3918 = vmatpush1.msra.mxu0 %v3917
    %3919 = vmatprep.subr.mxu0 0.0
    %v3920 = vand.u32 %v27, 4294901760
    %3921 = vmatpush1.msra.mxu0 %v3920
    %3922 = vmatprep.subr.mxu0 0.0
    %v3923 = vand.u32 %v28, 4294901760
    %3924 = vmatpush1.msra.mxu0 %v3923
    %3925 = vmatprep.subr.mxu0 0.0
    %v3926 = vand.u32 %v29, 4294901760
    %3927 = vmatpush1.msra.mxu0 %v3926
    %3928 = vmatprep.subr.mxu0 0.0
    %v3929 = vand.u32 %v30, 4294901760
    %3930 = vmatpush1.msra.mxu0 %v3929
    %3931 = vmatprep.subr.mxu0 0.0
    %3932 = vmatpush1.msra.mxu0 0.0
    %3933 = vmatprep.subr.mxu0 0.0
    %3934 = vmatpush1.msra.mxu0 0.0
    %3935 = vmatprep.subr.mxu0 0.0
    %3936 = vmatpush1.msra.mxu0 0.0
    %3937 = vmatprep.subr.mxu0 0.0
    %3938 = vmatpush1.msra.mxu0 0.0
    %3939 = vmatprep.subr.mxu0 0.0
    %3940 = vmatpush1.msra.mxu0 0.0
    %3941 = vmatprep.subr.mxu0 0.0
    %3942 = vmatpush1.msra.mxu0 0.0
    %3943 = vmatprep.subr.mxu0 0.0
    %3944 = vmatpush1.msra.mxu0 0.0
    %3945 = vmatprep.subr.mxu0 0.0
    %3946 = vmatpush1.msra.mxu0 0.0
    %3947 = vmatprep.subr.mxu0 0.0
    %3948 = vmatpush1.msra.mxu0 0.0
    %3949 = vmatprep.subr.mxu0 0.0
    %3950 = vmatpush1.msra.mxu0 0.0
    %3951 = vmatprep.subr.mxu0 0.0
    %3952 = vmatpush1.msra.mxu0 0.0
    %3953 = vmatprep.subr.mxu0 0.0
    %3954 = vmatpush1.msra.mxu0 0.0
    %3955 = vmatprep.subr.mxu0 0.0
    %3956 = vmatpush1.msra.mxu0 0.0
    %3957 = vmatprep.subr.mxu0 0.0
    %3958 = vmatpush1.msra.mxu0 0.0
    %3959 = vmatprep.subr.mxu0 0.0
    %3960 = vmatpush1.msra.mxu0 0.0
    %3961 = vmatprep.subr.mxu0 0.0
    %3962 = vmatpush1.msra.mxu0 0.0
    %3963 = vmatprep.mubr.f32.mxu0 0.0
    %v3964 = vand.u32 %v3328, 4294901760
    %3965 = vmatmul.mubr.f32.gmra.mrb[0].mxu0 %v3964
    %v3966 = vpop.f32.mrb[0].mxu0
    %v3967 = vadd.f32 %v3880, %v3966
    %v3968 = vpop.f32.mrb[0].mxu0
    %3969 = vdwg.mxu0
    %v3970 = vmul.f32 %v3324, 0.9
    %v3971 = vadd.f32 %v3970, %v3967
    %vm3972 = vcmp.le.s32.totalorder %v41, 5
    %vm3973 = vcmp.gt.s32.totalorder %v41, 4294967293
    %vm3974 = vmand %vm3972, %vm3973
    %vm3975 = vcmp.ge.f32.partialorder %v3971, 1.0
    %vm3976 = vmand %vm3975, %vm3974
    %v3977 = vsel %vm3976, 1, 0
    %v3978 = vcvt.s32.f32 %v3977
    %v3979 = vsel %vm3976, 0.0, %v3971
    %v3980 = vsel %vm3974, %v3979, %v3324
    %v3981 = vadd.f32 %v3325, %v3978
    %s3982 = scalar_lea.vmem %s0, 48
    %v3983 = vld [vmem:[%s3982] sm:$0xff]
    %v3984 = vadd.f32 %v3978, %v3983
    %3985 = vmatprep.subr.mxu0 0.0
    %v3986 = vand.u32 %v15, 4294901760
    %3987 = vmatpush1.msra.mxu0 %v3986
    %3988 = vmatprep.subr.mxu0 0.0
    %v3989 = vand.u32 %v16, 4294901760
    %3990 = vmatpush1.msra.mxu0 %v3989
    %3991 = vmatprep.subr.mxu0 0.0
    %v3992 = vand.u32 %v17, 4294901760
    %3993 = vmatpush1.msra.mxu0 %v3992
    %3994 = vmatprep.subr.mxu0 0.0
    %v3995 = vand.u32 %v18, 4294901760
    %3996 = vmatpush1.msra.mxu0 %v3995
    %3997 = vmatprep.subr.mxu0 0.0
    %v3998 = vand.u32 %v19, 4294901760
    %3999 = vmatpush1.msra.mxu0 %v3998
    %4000 = vmatprep.subr.mxu0 0.0
    %v4001 = vand.u32 %v20, 4294901760
    %4002 = vmatpush1.msra.mxu0 %v4001
    %4003 = vmatprep.subr.mxu0 0.0
    %v4004 = vand.u32 %v21, 4294901760
    %4005 = vmatpush1.msra.mxu0 %v4004
    %4006 = vmatprep.subr.mxu0 0.0
    %v4007 = vand.u32 %v22, 4294901760
    %4008 = vmatpush1.msra.mxu0 %v4007
    %4009 = vmatprep.subr.mxu0 0.0
    %v4010 = vand.u32 %v23, 4294901760
    %4011 = vmatpush1.msra.mxu0 %v4010
    %4012 = vmatprep.subr.mxu0 0.0
    %v4013 = vand.u32 %v24, 4294901760
    %4014 = vmatpush1.msra.mxu0 %v4013
    %4015 = vmatprep.subr.mxu0 0.0
    %v4016 = vand.u32 %v25, 4294901760
    %4017 = vmatpush1.msra.mxu0 %v4016
    %4018 = vmatprep.subr.mxu0 0.0
    %v4019 = vand.u32 %v26, 4294901760
    %4020 = vmatpush1.msra.mxu0 %v4019
    %4021 = vmatprep.subr.mxu0 0.0
    %v4022 = vand.u32 %v27, 4294901760
    %4023 = vmatpush1.msra.mxu0 %v4022
    %4024 = vmatprep.subr.mxu0 0.0
    %v4025 = vand.u32 %v28, 4294901760
    %4026 = vmatpush1.msra.mxu0 %v4025
    %4027 = vmatprep.subr.mxu0 0.0
    %v4028 = vand.u32 %v29, 4294901760
    %4029 = vmatpush1.msra.mxu0 %v4028
    %4030 = vmatprep.subr.mxu0 0.0
    %v4031 = vand.u32 %v30, 4294901760
    %4032 = vmatpush1.msra.mxu0 %v4031
    %4033 = vmatprep.subr.mxu0 0.0
    %4034 = vmatpush1.msra.mxu0 0.0
    %4035 = vmatprep.subr.mxu0 0.0
    %4036 = vmatpush1.msra.mxu0 0.0
    %4037 = vmatprep.subr.mxu0 0.0
    %4038 = vmatpush1.msra.mxu0 0.0
    %4039 = vmatprep.subr.mxu0 0.0
    %4040 = vmatpush1.msra.mxu0 0.0
    %4041 = vmatprep.subr.mxu0 0.0
    %4042 = vmatpush1.msra.mxu0 0.0
    %4043 = vmatprep.subr.mxu0 0.0
    %4044 = vmatpush1.msra.mxu0 0.0
    %4045 = vmatprep.subr.mxu0 0.0
    %4046 = vmatpush1.msra.mxu0 0.0
    %4047 = vmatprep.subr.mxu0 0.0
    %4048 = vmatpush1.msra.mxu0 0.0
    %4049 = vmatprep.subr.mxu0 0.0
    %4050 = vmatpush1.msra.mxu0 0.0
    %4051 = vmatprep.subr.mxu0 0.0
    %4052 = vmatpush1.msra.mxu0 0.0
    %4053 = vmatprep.subr.mxu0 0.0
    %4054 = vmatpush1.msra.mxu0 0.0
    %4055 = vmatprep.subr.mxu0 0.0
    %4056 = vmatpush1.msra.mxu0 0.0
    %4057 = vmatprep.subr.mxu0 0.0
    %4058 = vmatpush1.msra.mxu0 0.0
    %4059 = vmatprep.subr.mxu0 0.0
    %4060 = vmatpush1.msra.mxu0 0.0
    %4061 = vmatprep.subr.mxu0 0.0
    %4062 = vmatpush1.msra.mxu0 0.0
    %4063 = vmatprep.subr.mxu0 0.0
    %4064 = vmatpush1.msra.mxu0 0.0
    %4065 = vmatprep.mubr.f32.mxu0 0.0
    %v4066 = vand.u32 %v3984, 4294901760
    %v4067 = vsub.f32 %v3984, %v4066
    %v4068 = vand.u32 %v4067, 4294901760
    %v4069 = vsub.f32 %v4067, %v4068
    %v4070 = vand.u32 %v4069, 4294901760
    %4071 = vmatmul.mubr.f32.gmra.mrb[0].mxu0 %v4070
    %v4072 = vpop.f32.mrb[0].mxu0
    %v4073 = vadd.f32 %v48, %v4072
    %v4074 = vpop.f32.mrb[0].mxu0
    %4075 = vdwg.mxu0
    %4076 = vmatprep.subr.mxu0 0.0
    %v4077 = vand.u32 %v15, 4294901760
    %v4078 = vsub.f32 %v15, %v4077
    %v4079 = vand.u32 %v4078, 4294901760
    %v4080 = vsub.f32 %v4078, %v4079
    %v4081 = vand.u32 %v4080, 4294901760
    %4082 = vmatpush1.msra.mxu0 %v4081
    %4083 = vmatprep.subr.mxu0 0.0
    %v4084 = vand.u32 %v16, 4294901760
    %v4085 = vsub.f32 %v16, %v4084
    %v4086 = vand.u32 %v4085, 4294901760
    %v4087 = vsub.f32 %v4085, %v4086
    %v4088 = vand.u32 %v4087, 4294901760
    %4089 = vmatpush1.msra.mxu0 %v4088
    %4090 = vmatprep.subr.mxu0 0.0
    %v4091 = vand.u32 %v17, 4294901760
    %v4092 = vsub.f32 %v17, %v4091
    %v4093 = vand.u32 %v4092, 4294901760
    %v4094 = vsub.f32 %v4092, %v4093
    %v4095 = vand.u32 %v4094, 4294901760
    %4096 = vmatpush1.msra.mxu0 %v4095
    %4097 = vmatprep.subr.mxu0 0.0
    %v4098 = vand.u32 %v18, 4294901760
    %v4099 = vsub.f32 %v18, %v4098
    %v4100 = vand.u32 %v4099, 4294901760
    %v4101 = vsub.f32 %v4099, %v4100
    %v4102 = vand.u32 %v4101, 4294901760
    %4103 = vmatpush1.msra.mxu0 %v4102
    %4104 = vmatprep.subr.mxu0 0.0
    %v4105 = vand.u32 %v19, 4294901760
    %v4106 = vsub.f32 %v19, %v4105
    %v4107 = vand.u32 %v4106, 4294901760
    %v4108 = vsub.f32 %v4106, %v4107
    %v4109 = vand.u32 %v4108, 4294901760
    %4110 = vmatpush1.msra.mxu0 %v4109
    %4111 = vmatprep.subr.mxu0 0.0
    %v4112 = vand.u32 %v20, 4294901760
    %v4113 = vsub.f32 %v20, %v4112
    %v4114 = vand.u32 %v4113, 4294901760
    %v4115 = vsub.f32 %v4113, %v4114
    %v4116 = vand.u32 %v4115, 4294901760
    %4117 = vmatpush1.msra.mxu0 %v4116
    %4118 = vmatprep.subr.mxu0 0.0
    %v4119 = vand.u32 %v21, 4294901760
    %v4120 = vsub.f32 %v21, %v4119
    %v4121 = vand.u32 %v4120, 4294901760
    %v4122 = vsub.f32 %v4120, %v4121
    %v4123 = vand.u32 %v4122, 4294901760
    %4124 = vmatpush1.msra.mxu0 %v4123
    %4125 = vmatprep.subr.mxu0 0.0
    %v4126 = vand.u32 %v22, 4294901760
    %v4127 = vsub.f32 %v22, %v4126
    %v4128 = vand.u32 %v4127, 4294901760
    %v4129 = vsub.f32 %v4127, %v4128
    %v4130 = vand.u32 %v4129, 4294901760
    %4131 = vmatpush1.msra.mxu0 %v4130
    %4132 = vmatprep.subr.mxu0 0.0
    %v4133 = vand.u32 %v23, 4294901760
    %v4134 = vsub.f32 %v23, %v4133
    %v4135 = vand.u32 %v4134, 4294901760
    %v4136 = vsub.f32 %v4134, %v4135
    %v4137 = vand.u32 %v4136, 4294901760
    %4138 = vmatpush1.msra.mxu0 %v4137
    %4139 = vmatprep.subr.mxu0 0.0
    %v4140 = vand.u32 %v24, 4294901760
    %v4141 = vsub.f32 %v24, %v4140
    %v4142 = vand.u32 %v4141, 4294901760
    %v4143 = vsub.f32 %v4141, %v4142
    %v4144 = vand.u32 %v4143, 4294901760
    %4145 = vmatpush1.msra.mxu0 %v4144
    %4146 = vmatprep.subr.mxu0 0.0
    %v4147 = vand.u32 %v25, 4294901760
    %v4148 = vsub.f32 %v25, %v4147
    %v4149 = vand.u32 %v4148, 4294901760
    %v4150 = vsub.f32 %v4148, %v4149
    %v4151 = vand.u32 %v4150, 4294901760
    %4152 = vmatpush1.msra.mxu0 %v4151
    %4153 = vmatprep.subr.mxu0 0.0
    %v4154 = vand.u32 %v26, 4294901760
    %v4155 = vsub.f32 %v26, %v4154
    %v4156 = vand.u32 %v4155, 4294901760
    %v4157 = vsub.f32 %v4155, %v4156
    %v4158 = vand.u32 %v4157, 4294901760
    %4159 = vmatpush1.msra.mxu0 %v4158
    %4160 = vmatprep.subr.mxu0 0.0
    %v4161 = vand.u32 %v27, 4294901760
    %v4162 = vsub.f32 %v27, %v4161
    %v4163 = vand.u32 %v4162, 4294901760
    %v4164 = vsub.f32 %v4162, %v4163
    %v4165 = vand.u32 %v4164, 4294901760
    %4166 = vmatpush1.msra.mxu0 %v4165
    %4167 = vmatprep.subr.mxu0 0.0
    %v4168 = vand.u32 %v28, 4294901760
    %v4169 = vsub.f32 %v28, %v4168
    %v4170 = vand.u32 %v4169, 4294901760
    %v4171 = vsub.f32 %v4169, %v4170
    %v4172 = vand.u32 %v4171, 4294901760
    %4173 = vmatpush1.msra.mxu0 %v4172
    %4174 = vmatprep.subr.mxu0 0.0
    %v4175 = vand.u32 %v29, 4294901760
    %v4176 = vsub.f32 %v29, %v4175
    %v4177 = vand.u32 %v4176, 4294901760
    %v4178 = vsub.f32 %v4176, %v4177
    %v4179 = vand.u32 %v4178, 4294901760
    %4180 = vmatpush1.msra.mxu0 %v4179
    %4181 = vmatprep.subr.mxu0 0.0
    %v4182 = vand.u32 %v30, 4294901760
    %v4183 = vsub.f32 %v30, %v4182
    %v4184 = vand.u32 %v4183, 4294901760
    %v4185 = vsub.f32 %v4183, %v4184
    %v4186 = vand.u32 %v4185, 4294901760
    %4187 = vmatpush1.msra.mxu0 %v4186
    %4188 = vmatprep.subr.mxu0 0.0
    %4189 = vmatpush1.msra.mxu0 0.0
    %4190 = vmatprep.subr.mxu0 0.0
    %4191 = vmatpush1.msra.mxu0 0.0
    %4192 = vmatprep.subr.mxu0 0.0
    %4193 = vmatpush1.msra.mxu0 0.0
    %4194 = vmatprep.subr.mxu0 0.0
    %4195 = vmatpush1.msra.mxu0 0.0
    %4196 = vmatprep.subr.mxu0 0.0
    %4197 = vmatpush1.msra.mxu0 0.0
    %4198 = vmatprep.subr.mxu0 0.0
    %4199 = vmatpush1.msra.mxu0 0.0
    %4200 = vmatprep.subr.mxu0 0.0
    %4201 = vmatpush1.msra.mxu0 0.0
    %4202 = vmatprep.subr.mxu0 0.0
    %4203 = vmatpush1.msra.mxu0 0.0
    %4204 = vmatprep.subr.mxu0 0.0
    %4205 = vmatpush1.msra.mxu0 0.0
    %4206 = vmatprep.subr.mxu0 0.0
    %4207 = vmatpush1.msra.mxu0 0.0
    %4208 = vmatprep.subr.mxu0 0.0
    %4209 = vmatpush1.msra.mxu0 0.0
    %4210 = vmatprep.subr.mxu0 0.0
    %4211 = vmatpush1.msra.mxu0 0.0
    %4212 = vmatprep.subr.mxu0 0.0
    %4213 = vmatpush1.msra.mxu0 0.0
    %4214 = vmatprep.subr.mxu0 0.0
    %4215 = vmatpush1.msra.mxu0 0.0
    %4216 = vmatprep.subr.mxu0 0.0
    %4217 = vmatpush1.msra.mxu0 0.0
    %4218 = vmatprep.subr.mxu0 0.0
    %4219 = vmatpush1.msra.mxu0 0.0
    %4220 = vmatprep.mubr.f32.mxu0 0.0
    %v4221 = vand.u32 %v3984, 4294901760
    %4222 = vmatmul.mubr.f32.gmra.mrb[0].mxu0 %v4221
    %v4223 = vpop.f32.mrb[0].mxu0
    %v4224 = vadd.f32 %v4073, %v4223
    %v4225 = vpop.f32.mrb[0].mxu0
    %4226 = vdwg.mxu0
    %4227 = vmatprep.subr.mxu0 0.0
    %v4228 = vand.u32 %v15, 4294901760
    %v4229 = vsub.f32 %v15, %v4228
    %4230 = vmatpush1.msra.mxu0 %v4229
    %4231 = vmatprep.subr.mxu0 0.0
    %v4232 = vand.u32 %v16, 4294901760
    %v4233 = vsub.f32 %v16, %v4232
    %4234 = vmatpush1.msra.mxu0 %v4233
    %4235 = vmatprep.subr.mxu0 0.0
    %v4236 = vand.u32 %v17, 4294901760
    %v4237 = vsub.f32 %v17, %v4236
    %4238 = vmatpush1.msra.mxu0 %v4237
    %4239 = vmatprep.subr.mxu0 0.0
    %v4240 = vand.u32 %v18, 4294901760
    %v4241 = vsub.f32 %v18, %v4240
    %4242 = vmatpush1.msra.mxu0 %v4241
    %4243 = vmatprep.subr.mxu0 0.0
    %v4244 = vand.u32 %v19, 4294901760
    %v4245 = vsub.f32 %v19, %v4244
    %4246 = vmatpush1.msra.mxu0 %v4245
    %4247 = vmatprep.subr.mxu0 0.0
    %v4248 = vand.u32 %v20, 4294901760
    %v4249 = vsub.f32 %v20, %v4248
    %4250 = vmatpush1.msra.mxu0 %v4249
    %4251 = vmatprep.subr.mxu0 0.0
    %v4252 = vand.u32 %v21, 4294901760
    %v4253 = vsub.f32 %v21, %v4252
    %4254 = vmatpush1.msra.mxu0 %v4253
    %4255 = vmatprep.subr.mxu0 0.0
    %v4256 = vand.u32 %v22, 4294901760
    %v4257 = vsub.f32 %v22, %v4256
    %4258 = vmatpush1.msra.mxu0 %v4257
    %4259 = vmatprep.subr.mxu0 0.0
    %v4260 = vand.u32 %v23, 4294901760
    %v4261 = vsub.f32 %v23, %v4260
    %4262 = vmatpush1.msra.mxu0 %v4261
    %4263 = vmatprep.subr.mxu0 0.0
    %v4264 = vand.u32 %v24, 4294901760
    %v4265 = vsub.f32 %v24, %v4264
    %4266 = vmatpush1.msra.mxu0 %v4265
    %4267 = vmatprep.subr.mxu0 0.0
    %v4268 = vand.u32 %v25, 4294901760
    %v4269 = vsub.f32 %v25, %v4268
    %4270 = vmatpush1.msra.mxu0 %v4269
    %4271 = vmatprep.subr.mxu0 0.0
    %v4272 = vand.u32 %v26, 4294901760
    %v4273 = vsub.f32 %v26, %v4272
    %4274 = vmatpush1.msra.mxu0 %v4273
    %4275 = vmatprep.subr.mxu0 0.0
    %v4276 = vand.u32 %v27, 4294901760
    %v4277 = vsub.f32 %v27, %v4276
    %4278 = vmatpush1.msra.mxu0 %v4277
    %4279 = vmatprep.subr.mxu0 0.0
    %v4280 = vand.u32 %v28, 4294901760
    %v4281 = vsub.f32 %v28, %v4280
    %4282 = vmatpush1.msra.mxu0 %v4281
    %4283 = vmatprep.subr.mxu0 0.0
    %v4284 = vand.u32 %v29, 4294901760
    %v4285 = vsub.f32 %v29, %v4284
    %4286 = vmatpush1.msra.mxu0 %v4285
    %4287 = vmatprep.subr.mxu0 0.0
    %v4288 = vand.u32 %v30, 4294901760
    %v4289 = vsub.f32 %v30, %v4288
    %4290 = vmatpush1.msra.mxu0 %v4289
    %4291 = vmatprep.subr.mxu0 0.0
    %4292 = vmatpush1.msra.mxu0 0.0
    %4293 = vmatprep.subr.mxu0 0.0
    %4294 = vmatpush1.msra.mxu0 0.0
    %4295 = vmatprep.subr.mxu0 0.0
    %4296 = vmatpush1.msra.mxu0 0.0
    %4297 = vmatprep.subr.mxu0 0.0
    %4298 = vmatpush1.msra.mxu0 0.0
    %4299 = vmatprep.subr.mxu0 0.0
    %4300 = vmatpush1.msra.mxu0 0.0
    %4301 = vmatprep.subr.mxu0 0.0
    %4302 = vmatpush1.msra.mxu0 0.0
    %4303 = vmatprep.subr.mxu0 0.0
    %4304 = vmatpush1.msra.mxu0 0.0
    %4305 = vmatprep.subr.mxu0 0.0
    %4306 = vmatpush1.msra.mxu0 0.0
    %4307 = vmatprep.subr.mxu0 0.0
    %4308 = vmatpush1.msra.mxu0 0.0
    %4309 = vmatprep.subr.mxu0 0.0
    %4310 = vmatpush1.msra.mxu0 0.0
    %4311 = vmatprep.subr.mxu0 0.0
    %4312 = vmatpush1.msra.mxu0 0.0
    %4313 = vmatprep.subr.mxu0 0.0
    %4314 = vmatpush1.msra.mxu0 0.0
    %4315 = vmatprep.subr.mxu0 0.0
    %4316 = vmatpush1.msra.mxu0 0.0
    %4317 = vmatprep.subr.mxu0 0.0
    %4318 = vmatpush1.msra.mxu0 0.0
    %4319 = vmatprep.subr.mxu0 0.0
    %4320 = vmatpush1.msra.mxu0 0.0
    %4321 = vmatprep.subr.mxu0 0.0
    %4322 = vmatpush1.msra.mxu0 0.0
    %4323 = vmatprep.mubr.f32.mxu0 0.0
    %v4324 = vand.u32 %v3984, 4294901760
    %v4325 = vsub.f32 %v3984, %v4324
    %4326 = vmatmul.mubr.f32.gmra.mrb[0].mxu0 %v4325
    %v4327 = vpop.f32.mrb[0].mxu0
    %v4328 = vadd.f32 %v4224, %v4327
    %v4329 = vpop.f32.mrb[0].mxu0
    %4330 = vdwg.mxu0
    %4331 = vmatprep.subr.mxu0 0.0
    %v4332 = vand.u32 %v15, 4294901760
    %4333 = vmatpush1.msra.mxu0 %v4332
    %4334 = vmatprep.subr.mxu0 0.0
    %v4335 = vand.u32 %v16, 4294901760
    %4336 = vmatpush1.msra.mxu0 %v4335
    %4337 = vmatprep.subr.mxu0 0.0
    %v4338 = vand.u32 %v17, 4294901760
    %4339 = vmatpush1.msra.mxu0 %v4338
    %4340 = vmatprep.subr.mxu0 0.0
    %v4341 = vand.u32 %v18, 4294901760
    %4342 = vmatpush1.msra.mxu0 %v4341
    %4343 = vmatprep.subr.mxu0 0.0
    %v4344 = vand.u32 %v19, 4294901760
    %4345 = vmatpush1.msra.mxu0 %v4344
    %4346 = vmatprep.subr.mxu0 0.0
    %v4347 = vand.u32 %v20, 4294901760
    %4348 = vmatpush1.msra.mxu0 %v4347
    %4349 = vmatprep.subr.mxu0 0.0
    %v4350 = vand.u32 %v21, 4294901760
    %4351 = vmatpush1.msra.mxu0 %v4350
    %4352 = vmatprep.subr.mxu0 0.0
    %v4353 = vand.u32 %v22, 4294901760
    %4354 = vmatpush1.msra.mxu0 %v4353
    %4355 = vmatprep.subr.mxu0 0.0
    %v4356 = vand.u32 %v23, 4294901760
    %4357 = vmatpush1.msra.mxu0 %v4356
    %4358 = vmatprep.subr.mxu0 0.0
    %v4359 = vand.u32 %v24, 4294901760
    %4360 = vmatpush1.msra.mxu0 %v4359
    %4361 = vmatprep.subr.mxu0 0.0
    %v4362 = vand.u32 %v25, 4294901760
    %4363 = vmatpush1.msra.mxu0 %v4362
    %4364 = vmatprep.subr.mxu0 0.0
    %v4365 = vand.u32 %v26, 4294901760
    %4366 = vmatpush1.msra.mxu0 %v4365
    %4367 = vmatprep.subr.mxu0 0.0
    %v4368 = vand.u32 %v27, 4294901760
    %4369 = vmatpush1.msra.mxu0 %v4368
    %4370 = vmatprep.subr.mxu0 0.0
    %v4371 = vand.u32 %v28, 4294901760
    %4372 = vmatpush1.msra.mxu0 %v4371
    %4373 = vmatprep.subr.mxu0 0.0
    %v4374 = vand.u32 %v29, 4294901760
    %4375 = vmatpush1.msra.mxu0 %v4374
    %4376 = vmatprep.subr.mxu0 0.0
    %v4377 = vand.u32 %v30, 4294901760
    %4378 = vmatpush1.msra.mxu0 %v4377
    %4379 = vmatprep.subr.mxu0 0.0
    %4380 = vmatpush1.msra.mxu0 0.0
    %4381 = vmatprep.subr.mxu0 0.0
    %4382 = vmatpush1.msra.mxu0 0.0
    %4383 = vmatprep.subr.mxu0 0.0
    %4384 = vmatpush1.msra.mxu0 0.0
    %4385 = vmatprep.subr.mxu0 0.0
    %4386 = vmatpush1.msra.mxu0 0.0
    %4387 = vmatprep.subr.mxu0 0.0
    %4388 = vmatpush1.msra.mxu0 0.0
    %4389 = vmatprep.subr.mxu0 0.0
    %4390 = vmatpush1.msra.mxu0 0.0
    %4391 = vmatprep.subr.mxu0 0.0
    %4392 = vmatpush1.msra.mxu0 0.0
    %4393 = vmatprep.subr.mxu0 0.0
    %4394 = vmatpush1.msra.mxu0 0.0
    %4395 = vmatprep.subr.mxu0 0.0
    %4396 = vmatpush1.msra.mxu0 0.0
    %4397 = vmatprep.subr.mxu0 0.0
    %4398 = vmatpush1.msra.mxu0 0.0
    %4399 = vmatprep.subr.mxu0 0.0
    %4400 = vmatpush1.msra.mxu0 0.0
    %4401 = vmatprep.subr.mxu0 0.0
    %4402 = vmatpush1.msra.mxu0 0.0
    %4403 = vmatprep.subr.mxu0 0.0
    %4404 = vmatpush1.msra.mxu0 0.0
    %4405 = vmatprep.subr.mxu0 0.0
    %4406 = vmatpush1.msra.mxu0 0.0
    %4407 = vmatprep.subr.mxu0 0.0
    %4408 = vmatpush1.msra.mxu0 0.0
    %4409 = vmatprep.subr.mxu0 0.0
    %4410 = vmatpush1.msra.mxu0 0.0
    %4411 = vmatprep.mubr.f32.mxu0 0.0
    %v4412 = vand.u32 %v3984, 4294901760
    %v4413 = vsub.f32 %v3984, %v4412
    %v4414 = vand.u32 %v4413, 4294901760
    %4415 = vmatmul.mubr.f32.gmra.mrb[0].mxu0 %v4414
    %v4416 = vpop.f32.mrb[0].mxu0
    %v4417 = vadd.f32 %v4328, %v4416
    %v4418 = vpop.f32.mrb[0].mxu0
    %4419 = vdwg.mxu0
    %4420 = vmatprep.subr.mxu0 0.0
    %v4421 = vand.u32 %v15, 4294901760
    %v4422 = vsub.f32 %v15, %v4421
    %v4423 = vand.u32 %v4422, 4294901760
    %4424 = vmatpush1.msra.mxu0 %v4423
    %4425 = vmatprep.subr.mxu0 0.0
    %v4426 = vand.u32 %v16, 4294901760
    %v4427 = vsub.f32 %v16, %v4426
    %v4428 = vand.u32 %v4427, 4294901760
    %4429 = vmatpush1.msra.mxu0 %v4428
    %4430 = vmatprep.subr.mxu0 0.0
    %v4431 = vand.u32 %v17, 4294901760
    %v4432 = vsub.f32 %v17, %v4431
    %v4433 = vand.u32 %v4432, 4294901760
    %4434 = vmatpush1.msra.mxu0 %v4433
    %4435 = vmatprep.subr.mxu0 0.0
    %v4436 = vand.u32 %v18, 4294901760
    %v4437 = vsub.f32 %v18, %v4436
    %v4438 = vand.u32 %v4437, 4294901760
    %4439 = vmatpush1.msra.mxu0 %v4438
    %4440 = vmatprep.subr.mxu0 0.0
    %v4441 = vand.u32 %v19, 4294901760
    %v4442 = vsub.f32 %v19, %v4441
    %v4443 = vand.u32 %v4442, 4294901760
    %4444 = vmatpush1.msra.mxu0 %v4443
    %4445 = vmatprep.subr.mxu0 0.0
    %v4446 = vand.u32 %v20, 4294901760
    %v4447 = vsub.f32 %v20, %v4446
    %v4448 = vand.u32 %v4447, 4294901760
    %4449 = vmatpush1.msra.mxu0 %v4448
    %4450 = vmatprep.subr.mxu0 0.0
    %v4451 = vand.u32 %v21, 4294901760
    %v4452 = vsub.f32 %v21, %v4451
    %v4453 = vand.u32 %v4452, 4294901760
    %4454 = vmatpush1.msra.mxu0 %v4453
    %4455 = vmatprep.subr.mxu0 0.0
    %v4456 = vand.u32 %v22, 4294901760
    %v4457 = vsub.f32 %v22, %v4456
    %v4458 = vand.u32 %v4457, 4294901760
    %4459 = vmatpush1.msra.mxu0 %v4458
    %4460 = vmatprep.subr.mxu0 0.0
    %v4461 = vand.u32 %v23, 4294901760
    %v4462 = vsub.f32 %v23, %v4461
    %v4463 = vand.u32 %v4462, 4294901760
    %4464 = vmatpush1.msra.mxu0 %v4463
    %4465 = vmatprep.subr.mxu0 0.0
    %v4466 = vand.u32 %v24, 4294901760
    %v4467 = vsub.f32 %v24, %v4466
    %v4468 = vand.u32 %v4467, 4294901760
    %4469 = vmatpush1.msra.mxu0 %v4468
    %4470 = vmatprep.subr.mxu0 0.0
    %v4471 = vand.u32 %v25, 4294901760
    %v4472 = vsub.f32 %v25, %v4471
    %v4473 = vand.u32 %v4472, 4294901760
    %4474 = vmatpush1.msra.mxu0 %v4473
    %4475 = vmatprep.subr.mxu0 0.0
    %v4476 = vand.u32 %v26, 4294901760
    %v4477 = vsub.f32 %v26, %v4476
    %v4478 = vand.u32 %v4477, 4294901760
    %4479 = vmatpush1.msra.mxu0 %v4478
    %4480 = vmatprep.subr.mxu0 0.0
    %v4481 = vand.u32 %v27, 4294901760
    %v4482 = vsub.f32 %v27, %v4481
    %v4483 = vand.u32 %v4482, 4294901760
    %4484 = vmatpush1.msra.mxu0 %v4483
    %4485 = vmatprep.subr.mxu0 0.0
    %v4486 = vand.u32 %v28, 4294901760
    %v4487 = vsub.f32 %v28, %v4486
    %v4488 = vand.u32 %v4487, 4294901760
    %4489 = vmatpush1.msra.mxu0 %v4488
    %4490 = vmatprep.subr.mxu0 0.0
    %v4491 = vand.u32 %v29, 4294901760
    %v4492 = vsub.f32 %v29, %v4491
    %v4493 = vand.u32 %v4492, 4294901760
    %4494 = vmatpush1.msra.mxu0 %v4493
    %4495 = vmatprep.subr.mxu0 0.0
    %v4496 = vand.u32 %v30, 4294901760
    %v4497 = vsub.f32 %v30, %v4496
    %v4498 = vand.u32 %v4497, 4294901760
    %4499 = vmatpush1.msra.mxu0 %v4498
    %4500 = vmatprep.subr.mxu0 0.0
    %4501 = vmatpush1.msra.mxu0 0.0
    %4502 = vmatprep.subr.mxu0 0.0
    %4503 = vmatpush1.msra.mxu0 0.0
    %4504 = vmatprep.subr.mxu0 0.0
    %4505 = vmatpush1.msra.mxu0 0.0
    %4506 = vmatprep.subr.mxu0 0.0
    %4507 = vmatpush1.msra.mxu0 0.0
    %4508 = vmatprep.subr.mxu0 0.0
    %4509 = vmatpush1.msra.mxu0 0.0
    %4510 = vmatprep.subr.mxu0 0.0
    %4511 = vmatpush1.msra.mxu0 0.0
    %4512 = vmatprep.subr.mxu0 0.0
    %4513 = vmatpush1.msra.mxu0 0.0
    %4514 = vmatprep.subr.mxu0 0.0
    %4515 = vmatpush1.msra.mxu0 0.0
    %4516 = vmatprep.subr.mxu0 0.0
    %4517 = vmatpush1.msra.mxu0 0.0
    %4518 = vmatprep.subr.mxu0 0.0
    %4519 = vmatpush1.msra.mxu0 0.0
    %4520 = vmatprep.subr.mxu0 0.0
    %4521 = vmatpush1.msra.mxu0 0.0
    %4522 = vmatprep.subr.mxu0 0.0
    %4523 = vmatpush1.msra.mxu0 0.0
    %4524 = vmatprep.subr.mxu0 0.0
    %4525 = vmatpush1.msra.mxu0 0.0
    %4526 = vmatprep.subr.mxu0 0.0
    %4527 = vmatpush1.msra.mxu0 0.0
    %4528 = vmatprep.subr.mxu0 0.0
    %4529 = vmatpush1.msra.mxu0 0.0
    %4530 = vmatprep.subr.mxu0 0.0
    %4531 = vmatpush1.msra.mxu0 0.0
    %4532 = vmatprep.mubr.f32.mxu0 0.0
    %v4533 = vand.u32 %v3984, 4294901760
    %4534 = vmatmul.mubr.f32.gmra.mrb[0].mxu0 %v4533
    %v4535 = vpop.f32.mrb[0].mxu0
    %v4536 = vadd.f32 %v4417, %v4535
    %v4537 = vpop.f32.mrb[0].mxu0
    %4538 = vdwg.mxu0
    %4539 = vmatprep.subr.mxu0 0.0
    %v4540 = vand.u32 %v15, 4294901760
    %4541 = vmatpush1.msra.mxu0 %v4540
    %4542 = vmatprep.subr.mxu0 0.0
    %v4543 = vand.u32 %v16, 4294901760
    %4544 = vmatpush1.msra.mxu0 %v4543
    %4545 = vmatprep.subr.mxu0 0.0
    %v4546 = vand.u32 %v17, 4294901760
    %4547 = vmatpush1.msra.mxu0 %v4546
    %4548 = vmatprep.subr.mxu0 0.0
    %v4549 = vand.u32 %v18, 4294901760
    %4550 = vmatpush1.msra.mxu0 %v4549
    %4551 = vmatprep.subr.mxu0 0.0
    %v4552 = vand.u32 %v19, 4294901760
    %4553 = vmatpush1.msra.mxu0 %v4552
    %4554 = vmatprep.subr.mxu0 0.0
    %v4555 = vand.u32 %v20, 4294901760
    %4556 = vmatpush1.msra.mxu0 %v4555
    %4557 = vmatprep.subr.mxu0 0.0
    %v4558 = vand.u32 %v21, 4294901760
    %4559 = vmatpush1.msra.mxu0 %v4558
    %4560 = vmatprep.subr.mxu0 0.0
    %v4561 = vand.u32 %v22, 4294901760
    %4562 = vmatpush1.msra.mxu0 %v4561
    %4563 = vmatprep.subr.mxu0 0.0
    %v4564 = vand.u32 %v23, 4294901760
    %4565 = vmatpush1.msra.mxu0 %v4564
    %4566 = vmatprep.subr.mxu0 0.0
    %v4567 = vand.u32 %v24, 4294901760
    %4568 = vmatpush1.msra.mxu0 %v4567
    %4569 = vmatprep.subr.mxu0 0.0
    %v4570 = vand.u32 %v25, 4294901760
    %4571 = vmatpush1.msra.mxu0 %v4570
    %4572 = vmatprep.subr.mxu0 0.0
    %v4573 = vand.u32 %v26, 4294901760
    %4574 = vmatpush1.msra.mxu0 %v4573
    %4575 = vmatprep.subr.mxu0 0.0
    %v4576 = vand.u32 %v27, 4294901760
    %4577 = vmatpush1.msra.mxu0 %v4576
    %4578 = vmatprep.subr.mxu0 0.0
    %v4579 = vand.u32 %v28, 4294901760
    %4580 = vmatpush1.msra.mxu0 %v4579
    %4581 = vmatprep.subr.mxu0 0.0
    %v4582 = vand.u32 %v29, 4294901760
    %4583 = vmatpush1.msra.mxu0 %v4582
    %4584 = vmatprep.subr.mxu0 0.0
    %v4585 = vand.u32 %v30, 4294901760
    %4586 = vmatpush1.msra.mxu0 %v4585
    %4587 = vmatprep.subr.mxu0 0.0
    %4588 = vmatpush1.msra.mxu0 0.0
    %4589 = vmatprep.subr.mxu0 0.0
    %4590 = vmatpush1.msra.mxu0 0.0
    %4591 = vmatprep.subr.mxu0 0.0
    %4592 = vmatpush1.msra.mxu0 0.0
    %4593 = vmatprep.subr.mxu0 0.0
    %4594 = vmatpush1.msra.mxu0 0.0
    %4595 = vmatprep.subr.mxu0 0.0
    %4596 = vmatpush1.msra.mxu0 0.0
    %4597 = vmatprep.subr.mxu0 0.0
    %4598 = vmatpush1.msra.mxu0 0.0
    %4599 = vmatprep.subr.mxu0 0.0
    %4600 = vmatpush1.msra.mxu0 0.0
    %4601 = vmatprep.subr.mxu0 0.0
    %4602 = vmatpush1.msra.mxu0 0.0
    %4603 = vmatprep.subr.mxu0 0.0
    %4604 = vmatpush1.msra.mxu0 0.0
    %4605 = vmatprep.subr.mxu0 0.0
    %4606 = vmatpush1.msra.mxu0 0.0
    %4607 = vmatprep.subr.mxu0 0.0
    %4608 = vmatpush1.msra.mxu0 0.0
    %4609 = vmatprep.subr.mxu0 0.0
    %4610 = vmatpush1.msra.mxu0 0.0
    %4611 = vmatprep.subr.mxu0 0.0
    %4612 = vmatpush1.msra.mxu0 0.0
    %4613 = vmatprep.subr.mxu0 0.0
    %4614 = vmatpush1.msra.mxu0 0.0
    %4615 = vmatprep.subr.mxu0 0.0
    %4616 = vmatpush1.msra.mxu0 0.0
    %4617 = vmatprep.subr.mxu0 0.0
    %4618 = vmatpush1.msra.mxu0 0.0
    %4619 = vmatprep.mubr.f32.mxu0 0.0
    %v4620 = vand.u32 %v3984, 4294901760
    %4621 = vmatmul.mubr.f32.gmra.mrb[0].mxu0 %v4620
    %v4622 = vpop.f32.mrb[0].mxu0
    %v4623 = vadd.f32 %v4536, %v4622
    %v4624 = vpop.f32.mrb[0].mxu0
    %4625 = vdwg.mxu0
    %v4626 = vmul.f32 %v3980, 0.9
    %v4627 = vadd.f32 %v4626, %v4623
    %vm4628 = vcmp.le.s32.totalorder %v41, 6
    %vm4629 = vcmp.gt.s32.totalorder %v41, 4294967294
    %vm4630 = vmand %vm4628, %vm4629
    %vm4631 = vcmp.ge.f32.partialorder %v4627, 1.0
    %vm4632 = vmand %vm4631, %vm4630
    %v4633 = vsel %vm4632, 1, 0
    %v4634 = vcvt.s32.f32 %v4633
    %v4635 = vsel %vm4632, 0.0, %v4627
    %v4636 = vsel %vm4630, %v4635, %v3980
    %v4637 = vadd.f32 %v3981, %v4634
    %s4638 = scalar_lea.vmem %s0, 56
    %v4639 = vld [vmem:[%s4638] sm:$0xff]
    %v4640 = vadd.f32 %v4634, %v4639
    %4641 = vmatprep.subr.mxu0 0.0
    %v4642 = vand.u32 %v15, 4294901760
    %4643 = vmatpush1.msra.mxu0 %v4642
    %4644 = vmatprep.subr.mxu0 0.0
    %v4645 = vand.u32 %v16, 4294901760
    %4646 = vmatpush1.msra.mxu0 %v4645
    %4647 = vmatprep.subr.mxu0 0.0
    %v4648 = vand.u32 %v17, 4294901760
    %4649 = vmatpush1.msra.mxu0 %v4648
    %4650 = vmatprep.subr.mxu0 0.0
    %v4651 = vand.u32 %v18, 4294901760
    %4652 = vmatpush1.msra.mxu0 %v4651
    %4653 = vmatprep.subr.mxu0 0.0
    %v4654 = vand.u32 %v19, 4294901760
    %4655 = vmatpush1.msra.mxu0 %v4654
    %4656 = vmatprep.subr.mxu0 0.0
    %v4657 = vand.u32 %v20, 4294901760
    %4658 = vmatpush1.msra.mxu0 %v4657
    %4659 = vmatprep.subr.mxu0 0.0
    %v4660 = vand.u32 %v21, 4294901760
    %4661 = vmatpush1.msra.mxu0 %v4660
    %4662 = vmatprep.subr.mxu0 0.0
    %v4663 = vand.u32 %v22, 4294901760
    %4664 = vmatpush1.msra.mxu0 %v4663
    %4665 = vmatprep.subr.mxu0 0.0
    %v4666 = vand.u32 %v23, 4294901760
    %4667 = vmatpush1.msra.mxu0 %v4666
    %4668 = vmatprep.subr.mxu0 0.0
    %v4669 = vand.u32 %v24, 4294901760
    %4670 = vmatpush1.msra.mxu0 %v4669
    %4671 = vmatprep.subr.mxu0 0.0
    %v4672 = vand.u32 %v25, 4294901760
    %4673 = vmatpush1.msra.mxu0 %v4672
    %4674 = vmatprep.subr.mxu0 0.0
    %v4675 = vand.u32 %v26, 4294901760
    %4676 = vmatpush1.msra.mxu0 %v4675
    %4677 = vmatprep.subr.mxu0 0.0
    %v4678 = vand.u32 %v27, 4294901760
    %4679 = vmatpush1.msra.mxu0 %v4678
    %4680 = vmatprep.subr.mxu0 0.0
    %v4681 = vand.u32 %v28, 4294901760
    %4682 = vmatpush1.msra.mxu0 %v4681
    %4683 = vmatprep.subr.mxu0 0.0
    %v4684 = vand.u32 %v29, 4294901760
    %4685 = vmatpush1.msra.mxu0 %v4684
    %4686 = vmatprep.subr.mxu0 0.0
    %v4687 = vand.u32 %v30, 4294901760
    %4688 = vmatpush1.msra.mxu0 %v4687
    %4689 = vmatprep.subr.mxu0 0.0
    %4690 = vmatpush1.msra.mxu0 0.0
    %4691 = vmatprep.subr.mxu0 0.0
    %4692 = vmatpush1.msra.mxu0 0.0
    %4693 = vmatprep.subr.mxu0 0.0
    %4694 = vmatpush1.msra.mxu0 0.0
    %4695 = vmatprep.subr.mxu0 0.0
    %4696 = vmatpush1.msra.mxu0 0.0
    %4697 = vmatprep.subr.mxu0 0.0
    %4698 = vmatpush1.msra.mxu0 0.0
    %4699 = vmatprep.subr.mxu0 0.0
    %4700 = vmatpush1.msra.mxu0 0.0
    %4701 = vmatprep.subr.mxu0 0.0
    %4702 = vmatpush1.msra.mxu0 0.0
    %4703 = vmatprep.subr.mxu0 0.0
    %4704 = vmatpush1.msra.mxu0 0.0
    %4705 = vmatprep.subr.mxu0 0.0
    %4706 = vmatpush1.msra.mxu0 0.0
    %4707 = vmatprep.subr.mxu0 0.0
    %4708 = vmatpush1.msra.mxu0 0.0
    %4709 = vmatprep.subr.mxu0 0.0
    %4710 = vmatpush1.msra.mxu0 0.0
    %4711 = vmatprep.subr.mxu0 0.0
    %4712 = vmatpush1.msra.mxu0 0.0
    %4713 = vmatprep.subr.mxu0 0.0
    %4714 = vmatpush1.msra.mxu0 0.0
    %4715 = vmatprep.subr.mxu0 0.0
    %4716 = vmatpush1.msra.mxu0 0.0
    %4717 = vmatprep.subr.mxu0 0.0
    %4718 = vmatpush1.msra.mxu0 0.0
    %4719 = vmatprep.subr.mxu0 0.0
    %4720 = vmatpush1.msra.mxu0 0.0
    %4721 = vmatprep.mubr.f32.mxu0 0.0
    %v4722 = vand.u32 %v4640, 4294901760
    %v4723 = vsub.f32 %v4640, %v4722
    %v4724 = vand.u32 %v4723, 4294901760
    %v4725 = vsub.f32 %v4723, %v4724
    %v4726 = vand.u32 %v4725, 4294901760
    %4727 = vmatmul.mubr.f32.gmra.mrb[0].mxu0 %v4726
    %v4728 = vpop.f32.mrb[0].mxu0
    %v4729 = vadd.f32 %v48, %v4728
    %v4730 = vpop.f32.mrb[0].mxu0
    %4731 = vdwg.mxu0
    %4732 = vmatprep.subr.mxu0 0.0
    %v4733 = vand.u32 %v15, 4294901760
    %v4734 = vsub.f32 %v15, %v4733
    %v4735 = vand.u32 %v4734, 4294901760
    %v4736 = vsub.f32 %v4734, %v4735
    %v4737 = vand.u32 %v4736, 4294901760
    %4738 = vmatpush1.msra.mxu0 %v4737
    %4739 = vmatprep.subr.mxu0 0.0
    %v4740 = vand.u32 %v16, 4294901760
    %v4741 = vsub.f32 %v16, %v4740
    %v4742 = vand.u32 %v4741, 4294901760
    %v4743 = vsub.f32 %v4741, %v4742
    %v4744 = vand.u32 %v4743, 4294901760
    %4745 = vmatpush1.msra.mxu0 %v4744
    %4746 = vmatprep.subr.mxu0 0.0
    %v4747 = vand.u32 %v17, 4294901760
    %v4748 = vsub.f32 %v17, %v4747
    %v4749 = vand.u32 %v4748, 4294901760
    %v4750 = vsub.f32 %v4748, %v4749
    %v4751 = vand.u32 %v4750, 4294901760
    %4752 = vmatpush1.msra.mxu0 %v4751
    %4753 = vmatprep.subr.mxu0 0.0
    %v4754 = vand.u32 %v18, 4294901760
    %v4755 = vsub.f32 %v18, %v4754
    %v4756 = vand.u32 %v4755, 4294901760
    %v4757 = vsub.f32 %v4755, %v4756
    %v4758 = vand.u32 %v4757, 4294901760
    %4759 = vmatpush1.msra.mxu0 %v4758
    %4760 = vmatprep.subr.mxu0 0.0
    %v4761 = vand.u32 %v19, 4294901760
    %v4762 = vsub.f32 %v19, %v4761
    %v4763 = vand.u32 %v4762, 4294901760
    %v4764 = vsub.f32 %v4762, %v4763
    %v4765 = vand.u32 %v4764, 4294901760
    %4766 = vmatpush1.msra.mxu0 %v4765
    %4767 = vmatprep.subr.mxu0 0.0
    %v4768 = vand.u32 %v20, 4294901760
    %v4769 = vsub.f32 %v20, %v4768
    %v4770 = vand.u32 %v4769, 4294901760
    %v4771 = vsub.f32 %v4769, %v4770
    %v4772 = vand.u32 %v4771, 4294901760
    %4773 = vmatpush1.msra.mxu0 %v4772
    %4774 = vmatprep.subr.mxu0 0.0
    %v4775 = vand.u32 %v21, 4294901760
    %v4776 = vsub.f32 %v21, %v4775
    %v4777 = vand.u32 %v4776, 4294901760
    %v4778 = vsub.f32 %v4776, %v4777
    %v4779 = vand.u32 %v4778, 4294901760
    %4780 = vmatpush1.msra.mxu0 %v4779
    %4781 = vmatprep.subr.mxu0 0.0
    %v4782 = vand.u32 %v22, 4294901760
    %v4783 = vsub.f32 %v22, %v4782
    %v4784 = vand.u32 %v4783, 4294901760
    %v4785 = vsub.f32 %v4783, %v4784
    %v4786 = vand.u32 %v4785, 4294901760
    %4787 = vmatpush1.msra.mxu0 %v4786
    %4788 = vmatprep.subr.mxu0 0.0
    %v4789 = vand.u32 %v23, 4294901760
    %v4790 = vsub.f32 %v23, %v4789
    %v4791 = vand.u32 %v4790, 4294901760
    %v4792 = vsub.f32 %v4790, %v4791
    %v4793 = vand.u32 %v4792, 4294901760
    %4794 = vmatpush1.msra.mxu0 %v4793
    %4795 = vmatprep.subr.mxu0 0.0
    %v4796 = vand.u32 %v24, 4294901760
    %v4797 = vsub.f32 %v24, %v4796
    %v4798 = vand.u32 %v4797, 4294901760
    %v4799 = vsub.f32 %v4797, %v4798
    %v4800 = vand.u32 %v4799, 4294901760
    %4801 = vmatpush1.msra.mxu0 %v4800
    %4802 = vmatprep.subr.mxu0 0.0
    %v4803 = vand.u32 %v25, 4294901760
    %v4804 = vsub.f32 %v25, %v4803
    %v4805 = vand.u32 %v4804, 4294901760
    %v4806 = vsub.f32 %v4804, %v4805
    %v4807 = vand.u32 %v4806, 4294901760
    %4808 = vmatpush1.msra.mxu0 %v4807
    %4809 = vmatprep.subr.mxu0 0.0
    %v4810 = vand.u32 %v26, 4294901760
    %v4811 = vsub.f32 %v26, %v4810
    %v4812 = vand.u32 %v4811, 4294901760
    %v4813 = vsub.f32 %v4811, %v4812
    %v4814 = vand.u32 %v4813, 4294901760
    %4815 = vmatpush1.msra.mxu0 %v4814
    %4816 = vmatprep.subr.mxu0 0.0
    %v4817 = vand.u32 %v27, 4294901760
    %v4818 = vsub.f32 %v27, %v4817
    %v4819 = vand.u32 %v4818, 4294901760
    %v4820 = vsub.f32 %v4818, %v4819
    %v4821 = vand.u32 %v4820, 4294901760
    %4822 = vmatpush1.msra.mxu0 %v4821
    %4823 = vmatprep.subr.mxu0 0.0
    %v4824 = vand.u32 %v28, 4294901760
    %v4825 = vsub.f32 %v28, %v4824
    %v4826 = vand.u32 %v4825, 4294901760
    %v4827 = vsub.f32 %v4825, %v4826
    %v4828 = vand.u32 %v4827, 4294901760
    %4829 = vmatpush1.msra.mxu0 %v4828
    %4830 = vmatprep.subr.mxu0 0.0
    %v4831 = vand.u32 %v29, 4294901760
    %v4832 = vsub.f32 %v29, %v4831
    %v4833 = vand.u32 %v4832, 4294901760
    %v4834 = vsub.f32 %v4832, %v4833
    %v4835 = vand.u32 %v4834, 4294901760
    %4836 = vmatpush1.msra.mxu0 %v4835
    %4837 = vmatprep.subr.mxu0 0.0
    %v4838 = vand.u32 %v30, 4294901760
    %v4839 = vsub.f32 %v30, %v4838
    %v4840 = vand.u32 %v4839, 4294901760
    %v4841 = vsub.f32 %v4839, %v4840
    %v4842 = vand.u32 %v4841, 4294901760
    %4843 = vmatpush1.msra.mxu0 %v4842
    %4844 = vmatprep.subr.mxu0 0.0
    %4845 = vmatpush1.msra.mxu0 0.0
    %4846 = vmatprep.subr.mxu0 0.0
    %4847 = vmatpush1.msra.mxu0 0.0
    %4848 = vmatprep.subr.mxu0 0.0
    %4849 = vmatpush1.msra.mxu0 0.0
    %4850 = vmatprep.subr.mxu0 0.0
    %4851 = vmatpush1.msra.mxu0 0.0
    %4852 = vmatprep.subr.mxu0 0.0
    %4853 = vmatpush1.msra.mxu0 0.0
    %4854 = vmatprep.subr.mxu0 0.0
    %4855 = vmatpush1.msra.mxu0 0.0
    %4856 = vmatprep.subr.mxu0 0.0
    %4857 = vmatpush1.msra.mxu0 0.0
    %4858 = vmatprep.subr.mxu0 0.0
    %4859 = vmatpush1.msra.mxu0 0.0
    %4860 = vmatprep.subr.mxu0 0.0
    %4861 = vmatpush1.msra.mxu0 0.0
    %4862 = vmatprep.subr.mxu0 0.0
    %4863 = vmatpush1.msra.mxu0 0.0
    %4864 = vmatprep.subr.mxu0 0.0
    %4865 = vmatpush1.msra.mxu0 0.0
    %4866 = vmatprep.subr.mxu0 0.0
    %4867 = vmatpush1.msra.mxu0 0.0
    %4868 = vmatprep.subr.mxu0 0.0
    %4869 = vmatpush1.msra.mxu0 0.0
    %4870 = vmatprep.subr.mxu0 0.0
    %4871 = vmatpush1.msra.mxu0 0.0
    %4872 = vmatprep.subr.mxu0 0.0
    %4873 = vmatpush1.msra.mxu0 0.0
    %4874 = vmatprep.subr.mxu0 0.0
    %4875 = vmatpush1.msra.mxu0 0.0
    %4876 = vmatprep.mubr.f32.mxu0 0.0
    %v4877 = vand.u32 %v4640, 4294901760
    %4878 = vmatmul.mubr.f32.gmra.mrb[0].mxu0 %v4877
    %v4879 = vpop.f32.mrb[0].mxu0
    %v4880 = vadd.f32 %v4729, %v4879
    %v4881 = vpop.f32.mrb[0].mxu0
    %4882 = vdwg.mxu0
    %4883 = vmatprep.subr.mxu0 0.0
    %v4884 = vand.u32 %v15, 4294901760
    %v4885 = vsub.f32 %v15, %v4884
    %4886 = vmatpush1.msra.mxu0 %v4885
    %4887 = vmatprep.subr.mxu0 0.0
    %v4888 = vand.u32 %v16, 4294901760
    %v4889 = vsub.f32 %v16, %v4888
    %4890 = vmatpush1.msra.mxu0 %v4889
    %4891 = vmatprep.subr.mxu0 0.0
    %v4892 = vand.u32 %v17, 4294901760
    %v4893 = vsub.f32 %v17, %v4892
    %4894 = vmatpush1.msra.mxu0 %v4893
    %4895 = vmatprep.subr.mxu0 0.0
    %v4896 = vand.u32 %v18, 4294901760
    %v4897 = vsub.f32 %v18, %v4896
    %4898 = vmatpush1.msra.mxu0 %v4897
    %4899 = vmatprep.subr.mxu0 0.0
    %v4900 = vand.u32 %v19, 4294901760
    %v4901 = vsub.f32 %v19, %v4900
    %4902 = vmatpush1.msra.mxu0 %v4901
    %4903 = vmatprep.subr.mxu0 0.0
    %v4904 = vand.u32 %v20, 4294901760
    %v4905 = vsub.f32 %v20, %v4904
    %4906 = vmatpush1.msra.mxu0 %v4905
    %4907 = vmatprep.subr.mxu0 0.0
    %v4908 = vand.u32 %v21, 4294901760
    %v4909 = vsub.f32 %v21, %v4908
    %4910 = vmatpush1.msra.mxu0 %v4909
    %4911 = vmatprep.subr.mxu0 0.0
    %v4912 = vand.u32 %v22, 4294901760
    %v4913 = vsub.f32 %v22, %v4912
    %4914 = vmatpush1.msra.mxu0 %v4913
    %4915 = vmatprep.subr.mxu0 0.0
    %v4916 = vand.u32 %v23, 4294901760
    %v4917 = vsub.f32 %v23, %v4916
    %4918 = vmatpush1.msra.mxu0 %v4917
    %4919 = vmatprep.subr.mxu0 0.0
    %v4920 = vand.u32 %v24, 4294901760
    %v4921 = vsub.f32 %v24, %v4920
    %4922 = vmatpush1.msra.mxu0 %v4921
    %4923 = vmatprep.subr.mxu0 0.0
    %v4924 = vand.u32 %v25, 4294901760
    %v4925 = vsub.f32 %v25, %v4924
    %4926 = vmatpush1.msra.mxu0 %v4925
    %4927 = vmatprep.subr.mxu0 0.0
    %v4928 = vand.u32 %v26, 4294901760
    %v4929 = vsub.f32 %v26, %v4928
    %4930 = vmatpush1.msra.mxu0 %v4929
    %4931 = vmatprep.subr.mxu0 0.0
    %v4932 = vand.u32 %v27, 4294901760
    %v4933 = vsub.f32 %v27, %v4932
    %4934 = vmatpush1.msra.mxu0 %v4933
    %4935 = vmatprep.subr.mxu0 0.0
    %v4936 = vand.u32 %v28, 4294901760
    %v4937 = vsub.f32 %v28, %v4936
    %4938 = vmatpush1.msra.mxu0 %v4937
    %4939 = vmatprep.subr.mxu0 0.0
    %v4940 = vand.u32 %v29, 4294901760
    %v4941 = vsub.f32 %v29, %v4940
    %4942 = vmatpush1.msra.mxu0 %v4941
    %4943 = vmatprep.subr.mxu0 0.0
    %v4944 = vand.u32 %v30, 4294901760
    %v4945 = vsub.f32 %v30, %v4944
    %4946 = vmatpush1.msra.mxu0 %v4945
    %4947 = vmatprep.subr.mxu0 0.0
    %4948 = vmatpush1.msra.mxu0 0.0
    %4949 = vmatprep.subr.mxu0 0.0
    %4950 = vmatpush1.msra.mxu0 0.0
    %4951 = vmatprep.subr.mxu0 0.0
    %4952 = vmatpush1.msra.mxu0 0.0
    %4953 = vmatprep.subr.mxu0 0.0
    %4954 = vmatpush1.msra.mxu0 0.0
    %4955 = vmatprep.subr.mxu0 0.0
    %4956 = vmatpush1.msra.mxu0 0.0
    %4957 = vmatprep.subr.mxu0 0.0
    %4958 = vmatpush1.msra.mxu0 0.0
    %4959 = vmatprep.subr.mxu0 0.0
    %4960 = vmatpush1.msra.mxu0 0.0
    %4961 = vmatprep.subr.mxu0 0.0
    %4962 = vmatpush1.msra.mxu0 0.0
    %4963 = vmatprep.subr.mxu0 0.0
    %4964 = vmatpush1.msra.mxu0 0.0
    %4965 = vmatprep.subr.mxu0 0.0
    %4966 = vmatpush1.msra.mxu0 0.0
    %4967 = vmatprep.subr.mxu0 0.0
    %4968 = vmatpush1.msra.mxu0 0.0
    %4969 = vmatprep.subr.mxu0 0.0
    %4970 = vmatpush1.msra.mxu0 0.0
    %4971 = vmatprep.subr.mxu0 0.0
    %4972 = vmatpush1.msra.mxu0 0.0
    %4973 = vmatprep.subr.mxu0 0.0
    %4974 = vmatpush1.msra.mxu0 0.0
    %4975 = vmatprep.subr.mxu0 0.0
    %4976 = vmatpush1.msra.mxu0 0.0
    %4977 = vmatprep.subr.mxu0 0.0
    %4978 = vmatpush1.msra.mxu0 0.0
    %4979 = vmatprep.mubr.f32.mxu0 0.0
    %v4980 = vand.u32 %v4640, 4294901760
    %v4981 = vsub.f32 %v4640, %v4980
    %4982 = vmatmul.mubr.f32.gmra.mrb[0].mxu0 %v4981
    %v4983 = vpop.f32.mrb[0].mxu0
    %v4984 = vadd.f32 %v4880, %v4983
    %v4985 = vpop.f32.mrb[0].mxu0
    %4986 = vdwg.mxu0
    %4987 = vmatprep.subr.mxu0 0.0
    %v4988 = vand.u32 %v15, 4294901760
    %4989 = vmatpush1.msra.mxu0 %v4988
    %4990 = vmatprep.subr.mxu0 0.0
    %v4991 = vand.u32 %v16, 4294901760
    %4992 = vmatpush1.msra.mxu0 %v4991
    %4993 = vmatprep.subr.mxu0 0.0
    %v4994 = vand.u32 %v17, 4294901760
    %4995 = vmatpush1.msra.mxu0 %v4994
    %4996 = vmatprep.subr.mxu0 0.0
    %v4997 = vand.u32 %v18, 4294901760
    %4998 = vmatpush1.msra.mxu0 %v4997
    %4999 = vmatprep.subr.mxu0 0.0
    %v5000 = vand.u32 %v19, 4294901760
    %5001 = vmatpush1.msra.mxu0 %v5000
    %5002 = vmatprep.subr.mxu0 0.0
    %v5003 = vand.u32 %v20, 4294901760
    %5004 = vmatpush1.msra.mxu0 %v5003
    %5005 = vmatprep.subr.mxu0 0.0
    %v5006 = vand.u32 %v21, 4294901760
    %5007 = vmatpush1.msra.mxu0 %v5006
    %5008 = vmatprep.subr.mxu0 0.0
    %v5009 = vand.u32 %v22, 4294901760
    %5010 = vmatpush1.msra.mxu0 %v5009
    %5011 = vmatprep.subr.mxu0 0.0
    %v5012 = vand.u32 %v23, 4294901760
    %5013 = vmatpush1.msra.mxu0 %v5012
    %5014 = vmatprep.subr.mxu0 0.0
    %v5015 = vand.u32 %v24, 4294901760
    %5016 = vmatpush1.msra.mxu0 %v5015
    %5017 = vmatprep.subr.mxu0 0.0
    %v5018 = vand.u32 %v25, 4294901760
    %5019 = vmatpush1.msra.mxu0 %v5018
    %5020 = vmatprep.subr.mxu0 0.0
    %v5021 = vand.u32 %v26, 4294901760
    %5022 = vmatpush1.msra.mxu0 %v5021
    %5023 = vmatprep.subr.mxu0 0.0
    %v5024 = vand.u32 %v27, 4294901760
    %5025 = vmatpush1.msra.mxu0 %v5024
    %5026 = vmatprep.subr.mxu0 0.0
    %v5027 = vand.u32 %v28, 4294901760
    %5028 = vmatpush1.msra.mxu0 %v5027
    %5029 = vmatprep.subr.mxu0 0.0
    %v5030 = vand.u32 %v29, 4294901760
    %5031 = vmatpush1.msra.mxu0 %v5030
    %5032 = vmatprep.subr.mxu0 0.0
    %v5033 = vand.u32 %v30, 4294901760
    %5034 = vmatpush1.msra.mxu0 %v5033
    %5035 = vmatprep.subr.mxu0 0.0
    %5036 = vmatpush1.msra.mxu0 0.0
    %5037 = vmatprep.subr.mxu0 0.0
    %5038 = vmatpush1.msra.mxu0 0.0
    %5039 = vmatprep.subr.mxu0 0.0
    %5040 = vmatpush1.msra.mxu0 0.0
    %5041 = vmatprep.subr.mxu0 0.0
    %5042 = vmatpush1.msra.mxu0 0.0
    %5043 = vmatprep.subr.mxu0 0.0
    %5044 = vmatpush1.msra.mxu0 0.0
    %5045 = vmatprep.subr.mxu0 0.0
    %5046 = vmatpush1.msra.mxu0 0.0
    %5047 = vmatprep.subr.mxu0 0.0
    %5048 = vmatpush1.msra.mxu0 0.0
    %5049 = vmatprep.subr.mxu0 0.0
    %5050 = vmatpush1.msra.mxu0 0.0
    %5051 = vmatprep.subr.mxu0 0.0
    %5052 = vmatpush1.msra.mxu0 0.0
    %5053 = vmatprep.subr.mxu0 0.0
    %5054 = vmatpush1.msra.mxu0 0.0
    %5055 = vmatprep.subr.mxu0 0.0
    %5056 = vmatpush1.msra.mxu0 0.0
    %5057 = vmatprep.subr.mxu0 0.0
    %5058 = vmatpush1.msra.mxu0 0.0
    %5059 = vmatprep.subr.mxu0 0.0
    %5060 = vmatpush1.msra.mxu0 0.0
    %5061 = vmatprep.subr.mxu0 0.0
    %5062 = vmatpush1.msra.mxu0 0.0
    %5063 = vmatprep.subr.mxu0 0.0
    %5064 = vmatpush1.msra.mxu0 0.0
    %5065 = vmatprep.subr.mxu0 0.0
    %5066 = vmatpush1.msra.mxu0 0.0
    %5067 = vmatprep.mubr.f32.mxu0 0.0
    %v5068 = vand.u32 %v4640, 4294901760
    %v5069 = vsub.f32 %v4640, %v5068
    %v5070 = vand.u32 %v5069, 4294901760
    %5071 = vmatmul.mubr.f32.gmra.mrb[0].mxu0 %v5070
    %v5072 = vpop.f32.mrb[0].mxu0
    %v5073 = vadd.f32 %v4984, %v5072
    %v5074 = vpop.f32.mrb[0].mxu0
    %5075 = vdwg.mxu0
    %5076 = vmatprep.subr.mxu0 0.0
    %v5077 = vand.u32 %v15, 4294901760
    %v5078 = vsub.f32 %v15, %v5077
    %v5079 = vand.u32 %v5078, 4294901760
    %5080 = vmatpush1.msra.mxu0 %v5079
    %5081 = vmatprep.subr.mxu0 0.0
    %v5082 = vand.u32 %v16, 4294901760
    %v5083 = vsub.f32 %v16, %v5082
    %v5084 = vand.u32 %v5083, 4294901760
    %5085 = vmatpush1.msra.mxu0 %v5084
    %5086 = vmatprep.subr.mxu0 0.0
    %v5087 = vand.u32 %v17, 4294901760
    %v5088 = vsub.f32 %v17, %v5087
    %v5089 = vand.u32 %v5088, 4294901760
    %5090 = vmatpush1.msra.mxu0 %v5089
    %5091 = vmatprep.subr.mxu0 0.0
    %v5092 = vand.u32 %v18, 4294901760
    %v5093 = vsub.f32 %v18, %v5092
    %v5094 = vand.u32 %v5093, 4294901760
    %5095 = vmatpush1.msra.mxu0 %v5094
    %5096 = vmatprep.subr.mxu0 0.0
    %v5097 = vand.u32 %v19, 4294901760
    %v5098 = vsub.f32 %v19, %v5097
    %v5099 = vand.u32 %v5098, 4294901760
    %5100 = vmatpush1.msra.mxu0 %v5099
    %5101 = vmatprep.subr.mxu0 0.0
    %v5102 = vand.u32 %v20, 4294901760
    %v5103 = vsub.f32 %v20, %v5102
    %v5104 = vand.u32 %v5103, 4294901760
    %5105 = vmatpush1.msra.mxu0 %v5104
    %5106 = vmatprep.subr.mxu0 0.0
    %v5107 = vand.u32 %v21, 4294901760
    %v5108 = vsub.f32 %v21, %v5107
    %v5109 = vand.u32 %v5108, 4294901760
    %5110 = vmatpush1.msra.mxu0 %v5109
    %5111 = vmatprep.subr.mxu0 0.0
    %v5112 = vand.u32 %v22, 4294901760
    %v5113 = vsub.f32 %v22, %v5112
    %v5114 = vand.u32 %v5113, 4294901760
    %5115 = vmatpush1.msra.mxu0 %v5114
    %5116 = vmatprep.subr.mxu0 0.0
    %v5117 = vand.u32 %v23, 4294901760
    %v5118 = vsub.f32 %v23, %v5117
    %v5119 = vand.u32 %v5118, 4294901760
    %5120 = vmatpush1.msra.mxu0 %v5119
    %5121 = vmatprep.subr.mxu0 0.0
    %v5122 = vand.u32 %v24, 4294901760
    %v5123 = vsub.f32 %v24, %v5122
    %v5124 = vand.u32 %v5123, 4294901760
    %5125 = vmatpush1.msra.mxu0 %v5124
    %5126 = vmatprep.subr.mxu0 0.0
    %v5127 = vand.u32 %v25, 4294901760
    %v5128 = vsub.f32 %v25, %v5127
    %v5129 = vand.u32 %v5128, 4294901760
    %5130 = vmatpush1.msra.mxu0 %v5129
    %5131 = vmatprep.subr.mxu0 0.0
    %v5132 = vand.u32 %v26, 4294901760
    %v5133 = vsub.f32 %v26, %v5132
    %v5134 = vand.u32 %v5133, 4294901760
    %5135 = vmatpush1.msra.mxu0 %v5134
    %5136 = vmatprep.subr.mxu0 0.0
    %v5137 = vand.u32 %v27, 4294901760
    %v5138 = vsub.f32 %v27, %v5137
    %v5139 = vand.u32 %v5138, 4294901760
    %5140 = vmatpush1.msra.mxu0 %v5139
    %5141 = vmatprep.subr.mxu0 0.0
    %v5142 = vand.u32 %v28, 4294901760
    %v5143 = vsub.f32 %v28, %v5142
    %v5144 = vand.u32 %v5143, 4294901760
    %5145 = vmatpush1.msra.mxu0 %v5144
    %5146 = vmatprep.subr.mxu0 0.0
    %v5147 = vand.u32 %v29, 4294901760
    %v5148 = vsub.f32 %v29, %v5147
    %v5149 = vand.u32 %v5148, 4294901760
    %5150 = vmatpush1.msra.mxu0 %v5149
    %5151 = vmatprep.subr.mxu0 0.0
    %v5152 = vand.u32 %v30, 4294901760
    %v5153 = vsub.f32 %v30, %v5152
    %v5154 = vand.u32 %v5153, 4294901760
    %5155 = vmatpush1.msra.mxu0 %v5154
    %5156 = vmatprep.subr.mxu0 0.0
    %5157 = vmatpush1.msra.mxu0 0.0
    %5158 = vmatprep.subr.mxu0 0.0
    %5159 = vmatpush1.msra.mxu0 0.0
    %5160 = vmatprep.subr.mxu0 0.0
    %5161 = vmatpush1.msra.mxu0 0.0
    %5162 = vmatprep.subr.mxu0 0.0
    %5163 = vmatpush1.msra.mxu0 0.0
    %5164 = vmatprep.subr.mxu0 0.0
    %5165 = vmatpush1.msra.mxu0 0.0
    %5166 = vmatprep.subr.mxu0 0.0
    %5167 = vmatpush1.msra.mxu0 0.0
    %5168 = vmatprep.subr.mxu0 0.0
    %5169 = vmatpush1.msra.mxu0 0.0
    %5170 = vmatprep.subr.mxu0 0.0
    %5171 = vmatpush1.msra.mxu0 0.0
    %5172 = vmatprep.subr.mxu0 0.0
    %5173 = vmatpush1.msra.mxu0 0.0
    %5174 = vmatprep.subr.mxu0 0.0
    %5175 = vmatpush1.msra.mxu0 0.0
    %5176 = vmatprep.subr.mxu0 0.0
    %5177 = vmatpush1.msra.mxu0 0.0
    %5178 = vmatprep.subr.mxu0 0.0
    %5179 = vmatpush1.msra.mxu0 0.0
    %5180 = vmatprep.subr.mxu0 0.0
    %5181 = vmatpush1.msra.mxu0 0.0
    %5182 = vmatprep.subr.mxu0 0.0
    %5183 = vmatpush1.msra.mxu0 0.0
    %5184 = vmatprep.subr.mxu0 0.0
    %5185 = vmatpush1.msra.mxu0 0.0
    %5186 = vmatprep.subr.mxu0 0.0
    %5187 = vmatpush1.msra.mxu0 0.0
    %5188 = vmatprep.mubr.f32.mxu0 0.0
    %v5189 = vand.u32 %v4640, 4294901760
    %5190 = vmatmul.mubr.f32.gmra.mrb[0].mxu0 %v5189
    %v5191 = vpop.f32.mrb[0].mxu0
    %v5192 = vadd.f32 %v5073, %v5191
    %v5193 = vpop.f32.mrb[0].mxu0
    %5194 = vdwg.mxu0
    %5195 = vmatprep.subr.mxu0 0.0
    %v5196 = vand.u32 %v15, 4294901760
    %5197 = vmatpush1.msra.mxu0 %v5196
    %5198 = vmatprep.subr.mxu0 0.0
    %v5199 = vand.u32 %v16, 4294901760
    %5200 = vmatpush1.msra.mxu0 %v5199
    %5201 = vmatprep.subr.mxu0 0.0
    %v5202 = vand.u32 %v17, 4294901760
    %5203 = vmatpush1.msra.mxu0 %v5202
    %5204 = vmatprep.subr.mxu0 0.0
    %v5205 = vand.u32 %v18, 4294901760
    %5206 = vmatpush1.msra.mxu0 %v5205
    %5207 = vmatprep.subr.mxu0 0.0
    %v5208 = vand.u32 %v19, 4294901760
    %5209 = vmatpush1.msra.mxu0 %v5208
    %5210 = vmatprep.subr.mxu0 0.0
    %v5211 = vand.u32 %v20, 4294901760
    %5212 = vmatpush1.msra.mxu0 %v5211
    %5213 = vmatprep.subr.mxu0 0.0
    %v5214 = vand.u32 %v21, 4294901760
    %5215 = vmatpush1.msra.mxu0 %v5214
    %5216 = vmatprep.subr.mxu0 0.0
    %v5217 = vand.u32 %v22, 4294901760
    %5218 = vmatpush1.msra.mxu0 %v5217
    %5219 = vmatprep.subr.mxu0 0.0
    %v5220 = vand.u32 %v23, 4294901760
    %5221 = vmatpush1.msra.mxu0 %v5220
    %5222 = vmatprep.subr.mxu0 0.0
    %v5223 = vand.u32 %v24, 4294901760
    %5224 = vmatpush1.msra.mxu0 %v5223
    %5225 = vmatprep.subr.mxu0 0.0
    %v5226 = vand.u32 %v25, 4294901760
    %5227 = vmatpush1.msra.mxu0 %v5226
    %5228 = vmatprep.subr.mxu0 0.0
    %v5229 = vand.u32 %v26, 4294901760
    %5230 = vmatpush1.msra.mxu0 %v5229
    %5231 = vmatprep.subr.mxu0 0.0
    %v5232 = vand.u32 %v27, 4294901760
    %5233 = vmatpush1.msra.mxu0 %v5232
    %5234 = vmatprep.subr.mxu0 0.0
    %v5235 = vand.u32 %v28, 4294901760
    %5236 = vmatpush1.msra.mxu0 %v5235
    %5237 = vmatprep.subr.mxu0 0.0
    %v5238 = vand.u32 %v29, 4294901760
    %5239 = vmatpush1.msra.mxu0 %v5238
    %5240 = vmatprep.subr.mxu0 0.0
    %v5241 = vand.u32 %v30, 4294901760
    %5242 = vmatpush1.msra.mxu0 %v5241
    %5243 = vmatprep.subr.mxu0 0.0
    %5244 = vmatpush1.msra.mxu0 0.0
    %5245 = vmatprep.subr.mxu0 0.0
    %5246 = vmatpush1.msra.mxu0 0.0
    %5247 = vmatprep.subr.mxu0 0.0
    %5248 = vmatpush1.msra.mxu0 0.0
    %5249 = vmatprep.subr.mxu0 0.0
    %5250 = vmatpush1.msra.mxu0 0.0
    %5251 = vmatprep.subr.mxu0 0.0
    %5252 = vmatpush1.msra.mxu0 0.0
    %5253 = vmatprep.subr.mxu0 0.0
    %5254 = vmatpush1.msra.mxu0 0.0
    %5255 = vmatprep.subr.mxu0 0.0
    %5256 = vmatpush1.msra.mxu0 0.0
    %5257 = vmatprep.subr.mxu0 0.0
    %5258 = vmatpush1.msra.mxu0 0.0
    %5259 = vmatprep.subr.mxu0 0.0
    %5260 = vmatpush1.msra.mxu0 0.0
    %5261 = vmatprep.subr.mxu0 0.0
    %5262 = vmatpush1.msra.mxu0 0.0
    %5263 = vmatprep.subr.mxu0 0.0
    %5264 = vmatpush1.msra.mxu0 0.0
    %5265 = vmatprep.subr.mxu0 0.0
    %5266 = vmatpush1.msra.mxu0 0.0
    %5267 = vmatprep.subr.mxu0 0.0
    %5268 = vmatpush1.msra.mxu0 0.0
    %5269 = vmatprep.subr.mxu0 0.0
    %5270 = vmatpush1.msra.mxu0 0.0
    %5271 = vmatprep.subr.mxu0 0.0
    %5272 = vmatpush1.msra.mxu0 0.0
    %5273 = vmatprep.subr.mxu0 0.0
    %5274 = vmatpush1.msra.mxu0 0.0
    %5275 = vmatprep.mubr.f32.mxu0 0.0
    %v5276 = vand.u32 %v4640, 4294901760
    %5277 = vmatmul.mubr.f32.gmra.mrb[0].mxu0 %v5276
    %v5278 = vpop.f32.mrb[0].mxu0
    %v5279 = vadd.f32 %v5192, %v5278
    %v5280 = vpop.f32.mrb[0].mxu0
    %5281 = vdwg.mxu0
    %v5282 = vmul.f32 %v4636, 0.9
    %v5283 = vadd.f32 %v5282, %v5279
    %vm5284 = vcmp.le.s32.totalorder %v41, 7
    %vm5285 = vcmp.gt.s32.totalorder %v41, 4294967295
    %vm5286 = vmand %vm5284, %vm5285
    %vm5287 = vcmp.ge.f32.partialorder %v5283, 1.0
    %vm5288 = vmand %vm5287, %vm5286
    %v5289 = vsel %vm5288, 1, 0
    %v5290 = vcvt.s32.f32 %v5289
    %v5291 = vsel %vm5288, 0.0, %v5283
    %v5292 = vsel %vm5286, %v5291, %v4636
    %v5293 = vadd.f32 %v4637, %v5290
    %5294 = vmatprep.subr.mxu0 0.0
    %v5295 = vand.u32 %v15, 4294901760
    %5296 = vmatpush1.msra.mxu0 %v5295
    %5297 = vmatprep.subr.mxu0 0.0
    %v5298 = vand.u32 %v16, 4294901760
    %5299 = vmatpush1.msra.mxu0 %v5298
    %5300 = vmatprep.subr.mxu0 0.0
    %v5301 = vand.u32 %v17, 4294901760
    %5302 = vmatpush1.msra.mxu0 %v5301
    %5303 = vmatprep.subr.mxu0 0.0
    %v5304 = vand.u32 %v18, 4294901760
    %5305 = vmatpush1.msra.mxu0 %v5304
    %5306 = vmatprep.subr.mxu0 0.0
    %v5307 = vand.u32 %v19, 4294901760
    %5308 = vmatpush1.msra.mxu0 %v5307
    %5309 = vmatprep.subr.mxu0 0.0
    %v5310 = vand.u32 %v20, 4294901760
    %5311 = vmatpush1.msra.mxu0 %v5310
    %5312 = vmatprep.subr.mxu0 0.0
    %v5313 = vand.u32 %v21, 4294901760
    %5314 = vmatpush1.msra.mxu0 %v5313
    %5315 = vmatprep.subr.mxu0 0.0
    %v5316 = vand.u32 %v22, 4294901760
    %5317 = vmatpush1.msra.mxu0 %v5316
    %5318 = vmatprep.subr.mxu0 0.0
    %v5319 = vand.u32 %v23, 4294901760
    %5320 = vmatpush1.msra.mxu0 %v5319
    %5321 = vmatprep.subr.mxu0 0.0
    %v5322 = vand.u32 %v24, 4294901760
    %5323 = vmatpush1.msra.mxu0 %v5322
    %5324 = vmatprep.subr.mxu0 0.0
    %v5325 = vand.u32 %v25, 4294901760
    %5326 = vmatpush1.msra.mxu0 %v5325
    %5327 = vmatprep.subr.mxu0 0.0
    %v5328 = vand.u32 %v26, 4294901760
    %5329 = vmatpush1.msra.mxu0 %v5328
    %5330 = vmatprep.subr.mxu0 0.0
    %v5331 = vand.u32 %v27, 4294901760
    %5332 = vmatpush1.msra.mxu0 %v5331
    %5333 = vmatprep.subr.mxu0 0.0
    %v5334 = vand.u32 %v28, 4294901760
    %5335 = vmatpush1.msra.mxu0 %v5334
    %5336 = vmatprep.subr.mxu0 0.0
    %v5337 = vand.u32 %v29, 4294901760
    %5338 = vmatpush1.msra.mxu0 %v5337
    %5339 = vmatprep.subr.mxu0 0.0
    %v5340 = vand.u32 %v30, 4294901760
    %5341 = vmatpush1.msra.mxu0 %v5340
    %5342 = vmatprep.subr.mxu0 0.0
    %5343 = vmatpush1.msra.mxu0 0.0
    %5344 = vmatprep.subr.mxu0 0.0
    %5345 = vmatpush1.msra.mxu0 0.0
    %5346 = vmatprep.subr.mxu0 0.0
    %5347 = vmatpush1.msra.mxu0 0.0
    %5348 = vmatprep.subr.mxu0 0.0
    %5349 = vmatpush1.msra.mxu0 0.0
    %5350 = vmatprep.subr.mxu0 0.0
    %5351 = vmatpush1.msra.mxu0 0.0
    %5352 = vmatprep.subr.mxu0 0.0
    %5353 = vmatpush1.msra.mxu0 0.0
    %5354 = vmatprep.subr.mxu0 0.0
    %5355 = vmatpush1.msra.mxu0 0.0
    %5356 = vmatprep.subr.mxu0 0.0
    %5357 = vmatpush1.msra.mxu0 0.0
    %5358 = vmatprep.subr.mxu0 0.0
    %5359 = vmatpush1.msra.mxu0 0.0
    %5360 = vmatprep.subr.mxu0 0.0
    %5361 = vmatpush1.msra.mxu0 0.0
    %5362 = vmatprep.subr.mxu0 0.0
    %5363 = vmatpush1.msra.mxu0 0.0
    %5364 = vmatprep.subr.mxu0 0.0
    %5365 = vmatpush1.msra.mxu0 0.0
    %5366 = vmatprep.subr.mxu0 0.0
    %5367 = vmatpush1.msra.mxu0 0.0
    %5368 = vmatprep.subr.mxu0 0.0
    %5369 = vmatpush1.msra.mxu0 0.0
    %5370 = vmatprep.subr.mxu0 0.0
    %5371 = vmatpush1.msra.mxu0 0.0
    %5372 = vmatprep.subr.mxu0 0.0
    %5373 = vmatpush1.msra.mxu0 0.0
    %5374 = vmatprep.mubr.f32.mxu0 0.0
    %v5375 = vand.u32 %v5290, 4294901760
    %v5376 = vsub.f32 %v5290, %v5375
    %v5377 = vand.u32 %v5376, 4294901760
    %v5378 = vsub.f32 %v5376, %v5377
    %v5379 = vand.u32 %v5378, 4294901760
    %5380 = vmatmul.mubr.f32.gmra.mrb[0].mxu0 %v5379
    %v5381 = vpop.f32.mrb[0].mxu0
    %v5382 = vadd.f32 %v48, %v5381
    %v5383 = vpop.f32.mrb[0].mxu0
    %5384 = vdwg.mxu0
    %5385 = vmatprep.subr.mxu0 0.0
    %v5386 = vand.u32 %v15, 4294901760
    %v5387 = vsub.f32 %v15, %v5386
    %v5388 = vand.u32 %v5387, 4294901760
    %v5389 = vsub.f32 %v5387, %v5388
    %v5390 = vand.u32 %v5389, 4294901760
    %5391 = vmatpush1.msra.mxu0 %v5390
    %5392 = vmatprep.subr.mxu0 0.0
    %v5393 = vand.u32 %v16, 4294901760
    %v5394 = vsub.f32 %v16, %v5393
    %v5395 = vand.u32 %v5394, 4294901760
    %v5396 = vsub.f32 %v5394, %v5395
    %v5397 = vand.u32 %v5396, 4294901760
    %5398 = vmatpush1.msra.mxu0 %v5397
    %5399 = vmatprep.subr.mxu0 0.0
    %v5400 = vand.u32 %v17, 4294901760
    %v5401 = vsub.f32 %v17, %v5400
    %v5402 = vand.u32 %v5401, 4294901760
    %v5403 = vsub.f32 %v5401, %v5402
    %v5404 = vand.u32 %v5403, 4294901760
    %5405 = vmatpush1.msra.mxu0 %v5404
    %5406 = vmatprep.subr.mxu0 0.0
    %v5407 = vand.u32 %v18, 4294901760
    %v5408 = vsub.f32 %v18, %v5407
    %v5409 = vand.u32 %v5408, 4294901760
    %v5410 = vsub.f32 %v5408, %v5409
    %v5411 = vand.u32 %v5410, 4294901760
    %5412 = vmatpush1.msra.mxu0 %v5411
    %5413 = vmatprep.subr.mxu0 0.0
    %v5414 = vand.u32 %v19, 4294901760
    %v5415 = vsub.f32 %v19, %v5414
    %v5416 = vand.u32 %v5415, 4294901760
    %v5417 = vsub.f32 %v5415, %v5416
    %v5418 = vand.u32 %v5417, 4294901760
    %5419 = vmatpush1.msra.mxu0 %v5418
    %5420 = vmatprep.subr.mxu0 0.0
    %v5421 = vand.u32 %v20, 4294901760
    %v5422 = vsub.f32 %v20, %v5421
    %v5423 = vand.u32 %v5422, 4294901760
    %v5424 = vsub.f32 %v5422, %v5423
    %v5425 = vand.u32 %v5424, 4294901760
    %5426 = vmatpush1.msra.mxu0 %v5425
    %5427 = vmatprep.subr.mxu0 0.0
    %v5428 = vand.u32 %v21, 4294901760
    %v5429 = vsub.f32 %v21, %v5428
    %v5430 = vand.u32 %v5429, 4294901760
    %v5431 = vsub.f32 %v5429, %v5430
    %v5432 = vand.u32 %v5431, 4294901760
    %5433 = vmatpush1.msra.mxu0 %v5432
    %5434 = vmatprep.subr.mxu0 0.0
    %v5435 = vand.u32 %v22, 4294901760
    %v5436 = vsub.f32 %v22, %v5435
    %v5437 = vand.u32 %v5436, 4294901760
    %v5438 = vsub.f32 %v5436, %v5437
    %v5439 = vand.u32 %v5438, 4294901760
    %5440 = vmatpush1.msra.mxu0 %v5439
    %5441 = vmatprep.subr.mxu0 0.0
    %v5442 = vand.u32 %v23, 4294901760
    %v5443 = vsub.f32 %v23, %v5442
    %v5444 = vand.u32 %v5443, 4294901760
    %v5445 = vsub.f32 %v5443, %v5444
    %v5446 = vand.u32 %v5445, 4294901760
    %5447 = vmatpush1.msra.mxu0 %v5446
    %5448 = vmatprep.subr.mxu0 0.0
    %v5449 = vand.u32 %v24, 4294901760
    %v5450 = vsub.f32 %v24, %v5449
    %v5451 = vand.u32 %v5450, 4294901760
    %v5452 = vsub.f32 %v5450, %v5451
    %v5453 = vand.u32 %v5452, 4294901760
    %5454 = vmatpush1.msra.mxu0 %v5453
    %5455 = vmatprep.subr.mxu0 0.0
    %v5456 = vand.u32 %v25, 4294901760
    %v5457 = vsub.f32 %v25, %v5456
    %v5458 = vand.u32 %v5457, 4294901760
    %v5459 = vsub.f32 %v5457, %v5458
    %v5460 = vand.u32 %v5459, 4294901760
    %5461 = vmatpush1.msra.mxu0 %v5460
    %5462 = vmatprep.subr.mxu0 0.0
    %v5463 = vand.u32 %v26, 4294901760
    %v5464 = vsub.f32 %v26, %v5463
    %v5465 = vand.u32 %v5464, 4294901760
    %v5466 = vsub.f32 %v5464, %v5465
    %v5467 = vand.u32 %v5466, 4294901760
    %5468 = vmatpush1.msra.mxu0 %v5467
    %5469 = vmatprep.subr.mxu0 0.0
    %v5470 = vand.u32 %v27, 4294901760
    %v5471 = vsub.f32 %v27, %v5470
    %v5472 = vand.u32 %v5471, 4294901760
    %v5473 = vsub.f32 %v5471, %v5472
    %v5474 = vand.u32 %v5473, 4294901760
    %5475 = vmatpush1.msra.mxu0 %v5474
    %5476 = vmatprep.subr.mxu0 0.0
    %v5477 = vand.u32 %v28, 4294901760
    %v5478 = vsub.f32 %v28, %v5477
    %v5479 = vand.u32 %v5478, 4294901760
    %v5480 = vsub.f32 %v5478, %v5479
    %v5481 = vand.u32 %v5480, 4294901760
    %5482 = vmatpush1.msra.mxu0 %v5481
    %5483 = vmatprep.subr.mxu0 0.0
    %v5484 = vand.u32 %v29, 4294901760
    %v5485 = vsub.f32 %v29, %v5484
    %v5486 = vand.u32 %v5485, 4294901760
    %v5487 = vsub.f32 %v5485, %v5486
    %v5488 = vand.u32 %v5487, 4294901760
    %5489 = vmatpush1.msra.mxu0 %v5488
    %5490 = vmatprep.subr.mxu0 0.0
    %v5491 = vand.u32 %v30, 4294901760
    %v5492 = vsub.f32 %v30, %v5491
    %v5493 = vand.u32 %v5492, 4294901760
    %v5494 = vsub.f32 %v5492, %v5493
    %v5495 = vand.u32 %v5494, 4294901760
    %5496 = vmatpush1.msra.mxu0 %v5495
    %5497 = vmatprep.subr.mxu0 0.0
    %5498 = vmatpush1.msra.mxu0 0.0
    %5499 = vmatprep.subr.mxu0 0.0
    %5500 = vmatpush1.msra.mxu0 0.0
    %5501 = vmatprep.subr.mxu0 0.0
    %5502 = vmatpush1.msra.mxu0 0.0
    %5503 = vmatprep.subr.mxu0 0.0
    %5504 = vmatpush1.msra.mxu0 0.0
    %5505 = vmatprep.subr.mxu0 0.0
    %5506 = vmatpush1.msra.mxu0 0.0
    %5507 = vmatprep.subr.mxu0 0.0
    %5508 = vmatpush1.msra.mxu0 0.0
    %5509 = vmatprep.subr.mxu0 0.0
    %5510 = vmatpush1.msra.mxu0 0.0
    %5511 = vmatprep.subr.mxu0 0.0
    %5512 = vmatpush1.msra.mxu0 0.0
    %5513 = vmatprep.subr.mxu0 0.0
    %5514 = vmatpush1.msra.mxu0 0.0
    %5515 = vmatprep.subr.mxu0 0.0
    %5516 = vmatpush1.msra.mxu0 0.0
    %5517 = vmatprep.subr.mxu0 0.0
    %5518 = vmatpush1.msra.mxu0 0.0
    %5519 = vmatprep.subr.mxu0 0.0
    %5520 = vmatpush1.msra.mxu0 0.0
    %5521 = vmatprep.subr.mxu0 0.0
    %5522 = vmatpush1.msra.mxu0 0.0
    %5523 = vmatprep.subr.mxu0 0.0
    %5524 = vmatpush1.msra.mxu0 0.0
    %5525 = vmatprep.subr.mxu0 0.0
    %5526 = vmatpush1.msra.mxu0 0.0
    %5527 = vmatprep.subr.mxu0 0.0
    %5528 = vmatpush1.msra.mxu0 0.0
    %5529 = vmatprep.mubr.f32.mxu0 0.0
    %v5530 = vand.u32 %v5290, 4294901760
    %5531 = vmatmul.mubr.f32.gmra.mrb[0].mxu0 %v5530
    %v5532 = vpop.f32.mrb[0].mxu0
    %v5533 = vadd.f32 %v5382, %v5532
    %v5534 = vpop.f32.mrb[0].mxu0
    %5535 = vdwg.mxu0
    %5536 = vmatprep.subr.mxu0 0.0
    %v5537 = vand.u32 %v15, 4294901760
    %v5538 = vsub.f32 %v15, %v5537
    %5539 = vmatpush1.msra.mxu0 %v5538
    %5540 = vmatprep.subr.mxu0 0.0
    %v5541 = vand.u32 %v16, 4294901760
    %v5542 = vsub.f32 %v16, %v5541
    %5543 = vmatpush1.msra.mxu0 %v5542
    %5544 = vmatprep.subr.mxu0 0.0
    %v5545 = vand.u32 %v17, 4294901760
    %v5546 = vsub.f32 %v17, %v5545
    %5547 = vmatpush1.msra.mxu0 %v5546
    %5548 = vmatprep.subr.mxu0 0.0
    %v5549 = vand.u32 %v18, 4294901760
    %v5550 = vsub.f32 %v18, %v5549
    %5551 = vmatpush1.msra.mxu0 %v5550
    %5552 = vmatprep.subr.mxu0 0.0
    %v5553 = vand.u32 %v19, 4294901760
    %v5554 = vsub.f32 %v19, %v5553
    %5555 = vmatpush1.msra.mxu0 %v5554
    %5556 = vmatprep.subr.mxu0 0.0
    %v5557 = vand.u32 %v20, 4294901760
    %v5558 = vsub.f32 %v20, %v5557
    %5559 = vmatpush1.msra.mxu0 %v5558
    %5560 = vmatprep.subr.mxu0 0.0
    %v5561 = vand.u32 %v21, 4294901760
    %v5562 = vsub.f32 %v21, %v5561
    %5563 = vmatpush1.msra.mxu0 %v5562
    %5564 = vmatprep.subr.mxu0 0.0
    %v5565 = vand.u32 %v22, 4294901760
    %v5566 = vsub.f32 %v22, %v5565
    %5567 = vmatpush1.msra.mxu0 %v5566
    %5568 = vmatprep.subr.mxu0 0.0
    %v5569 = vand.u32 %v23, 4294901760
    %v5570 = vsub.f32 %v23, %v5569
    %5571 = vmatpush1.msra.mxu0 %v5570
    %5572 = vmatprep.subr.mxu0 0.0
    %v5573 = vand.u32 %v24, 4294901760
    %v5574 = vsub.f32 %v24, %v5573
    %5575 = vmatpush1.msra.mxu0 %v5574
    %5576 = vmatprep.subr.mxu0 0.0
    %v5577 = vand.u32 %v25, 4294901760
    %v5578 = vsub.f32 %v25, %v5577
    %5579 = vmatpush1.msra.mxu0 %v5578
    %5580 = vmatprep.subr.mxu0 0.0
    %v5581 = vand.u32 %v26, 4294901760
    %v5582 = vsub.f32 %v26, %v5581
    %5583 = vmatpush1.msra.mxu0 %v5582
    %5584 = vmatprep.subr.mxu0 0.0
    %v5585 = vand.u32 %v27, 4294901760
    %v5586 = vsub.f32 %v27, %v5585
    %5587 = vmatpush1.msra.mxu0 %v5586
    %5588 = vmatprep.subr.mxu0 0.0
    %v5589 = vand.u32 %v28, 4294901760
    %v5590 = vsub.f32 %v28, %v5589
    %5591 = vmatpush1.msra.mxu0 %v5590
    %5592 = vmatprep.subr.mxu0 0.0
    %v5593 = vand.u32 %v29, 4294901760
    %v5594 = vsub.f32 %v29, %v5593
    %5595 = vmatpush1.msra.mxu0 %v5594
    %5596 = vmatprep.subr.mxu0 0.0
    %v5597 = vand.u32 %v30, 4294901760
    %v5598 = vsub.f32 %v30, %v5597
    %5599 = vmatpush1.msra.mxu0 %v5598
    %5600 = vmatprep.subr.mxu0 0.0
    %5601 = vmatpush1.msra.mxu0 0.0
    %5602 = vmatprep.subr.mxu0 0.0
    %5603 = vmatpush1.msra.mxu0 0.0
    %5604 = vmatprep.subr.mxu0 0.0
    %5605 = vmatpush1.msra.mxu0 0.0
    %5606 = vmatprep.subr.mxu0 0.0
    %5607 = vmatpush1.msra.mxu0 0.0
    %5608 = vmatprep.subr.mxu0 0.0
    %5609 = vmatpush1.msra.mxu0 0.0
    %5610 = vmatprep.subr.mxu0 0.0
    %5611 = vmatpush1.msra.mxu0 0.0
    %5612 = vmatprep.subr.mxu0 0.0
    %5613 = vmatpush1.msra.mxu0 0.0
    %5614 = vmatprep.subr.mxu0 0.0
    %5615 = vmatpush1.msra.mxu0 0.0
    %5616 = vmatprep.subr.mxu0 0.0
    %5617 = vmatpush1.msra.mxu0 0.0
    %5618 = vmatprep.subr.mxu0 0.0
    %5619 = vmatpush1.msra.mxu0 0.0
    %5620 = vmatprep.subr.mxu0 0.0
    %5621 = vmatpush1.msra.mxu0 0.0
    %5622 = vmatprep.subr.mxu0 0.0
    %5623 = vmatpush1.msra.mxu0 0.0
    %5624 = vmatprep.subr.mxu0 0.0
    %5625 = vmatpush1.msra.mxu0 0.0
    %5626 = vmatprep.subr.mxu0 0.0
    %5627 = vmatpush1.msra.mxu0 0.0
    %5628 = vmatprep.subr.mxu0 0.0
    %5629 = vmatpush1.msra.mxu0 0.0
    %5630 = vmatprep.subr.mxu0 0.0
    %5631 = vmatpush1.msra.mxu0 0.0
    %5632 = vmatprep.mubr.f32.mxu0 0.0
    %v5633 = vand.u32 %v5290, 4294901760
    %v5634 = vsub.f32 %v5290, %v5633
    %5635 = vmatmul.mubr.f32.gmra.mrb[0].mxu0 %v5634
    %v5636 = vpop.f32.mrb[0].mxu0
    %v5637 = vadd.f32 %v5533, %v5636
    %v5638 = vpop.f32.mrb[0].mxu0
    %5639 = vdwg.mxu0
    %5640 = vmatprep.subr.mxu0 0.0
    %v5641 = vand.u32 %v15, 4294901760
    %5642 = vmatpush1.msra.mxu0 %v5641
    %5643 = vmatprep.subr.mxu0 0.0
    %v5644 = vand.u32 %v16, 4294901760
    %5645 = vmatpush1.msra.mxu0 %v5644
    %5646 = vmatprep.subr.mxu0 0.0
    %v5647 = vand.u32 %v17, 4294901760
    %5648 = vmatpush1.msra.mxu0 %v5647
    %5649 = vmatprep.subr.mxu0 0.0
    %v5650 = vand.u32 %v18, 4294901760
    %5651 = vmatpush1.msra.mxu0 %v5650
    %5652 = vmatprep.subr.mxu0 0.0
    %v5653 = vand.u32 %v19, 4294901760
    %5654 = vmatpush1.msra.mxu0 %v5653
    %5655 = vmatprep.subr.mxu0 0.0
    %v5656 = vand.u32 %v20, 4294901760
    %5657 = vmatpush1.msra.mxu0 %v5656
    %5658 = vmatprep.subr.mxu0 0.0
    %v5659 = vand.u32 %v21, 4294901760
    %5660 = vmatpush1.msra.mxu0 %v5659
    %5661 = vmatprep.subr.mxu0 0.0
    %v5662 = vand.u32 %v22, 4294901760
    %5663 = vmatpush1.msra.mxu0 %v5662
    %5664 = vmatprep.subr.mxu0 0.0
    %v5665 = vand.u32 %v23, 4294901760
    %5666 = vmatpush1.msra.mxu0 %v5665
    %5667 = vmatprep.subr.mxu0 0.0
    %v5668 = vand.u32 %v24, 4294901760
    %5669 = vmatpush1.msra.mxu0 %v5668
    %5670 = vmatprep.subr.mxu0 0.0
    %v5671 = vand.u32 %v25, 4294901760
    %5672 = vmatpush1.msra.mxu0 %v5671
    %5673 = vmatprep.subr.mxu0 0.0
    %v5674 = vand.u32 %v26, 4294901760
    %5675 = vmatpush1.msra.mxu0 %v5674
    %5676 = vmatprep.subr.mxu0 0.0
    %v5677 = vand.u32 %v27, 4294901760
    %5678 = vmatpush1.msra.mxu0 %v5677
    %5679 = vmatprep.subr.mxu0 0.0
    %v5680 = vand.u32 %v28, 4294901760
    %5681 = vmatpush1.msra.mxu0 %v5680
    %5682 = vmatprep.subr.mxu0 0.0
    %v5683 = vand.u32 %v29, 4294901760
    %5684 = vmatpush1.msra.mxu0 %v5683
    %5685 = vmatprep.subr.mxu0 0.0
    %v5686 = vand.u32 %v30, 4294901760
    %5687 = vmatpush1.msra.mxu0 %v5686
    %5688 = vmatprep.subr.mxu0 0.0
    %5689 = vmatpush1.msra.mxu0 0.0
    %5690 = vmatprep.subr.mxu0 0.0
    %5691 = vmatpush1.msra.mxu0 0.0
    %5692 = vmatprep.subr.mxu0 0.0
    %5693 = vmatpush1.msra.mxu0 0.0
    %5694 = vmatprep.subr.mxu0 0.0
    %5695 = vmatpush1.msra.mxu0 0.0
    %5696 = vmatprep.subr.mxu0 0.0
    %5697 = vmatpush1.msra.mxu0 0.0
    %5698 = vmatprep.subr.mxu0 0.0
    %5699 = vmatpush1.msra.mxu0 0.0
    %5700 = vmatprep.subr.mxu0 0.0
    %5701 = vmatpush1.msra.mxu0 0.0
    %5702 = vmatprep.subr.mxu0 0.0
    %5703 = vmatpush1.msra.mxu0 0.0
    %5704 = vmatprep.subr.mxu0 0.0
    %5705 = vmatpush1.msra.mxu0 0.0
    %5706 = vmatprep.subr.mxu0 0.0
    %5707 = vmatpush1.msra.mxu0 0.0
    %5708 = vmatprep.subr.mxu0 0.0
    %5709 = vmatpush1.msra.mxu0 0.0
    %5710 = vmatprep.subr.mxu0 0.0
    %5711 = vmatpush1.msra.mxu0 0.0
    %5712 = vmatprep.subr.mxu0 0.0
    %5713 = vmatpush1.msra.mxu0 0.0
    %5714 = vmatprep.subr.mxu0 0.0
    %5715 = vmatpush1.msra.mxu0 0.0
    %5716 = vmatprep.subr.mxu0 0.0
    %5717 = vmatpush1.msra.mxu0 0.0
    %5718 = vmatprep.subr.mxu0 0.0
    %5719 = vmatpush1.msra.mxu0 0.0
    %5720 = vmatprep.mubr.f32.mxu0 0.0
    %v5721 = vand.u32 %v5290, 4294901760
    %v5722 = vsub.f32 %v5290, %v5721
    %v5723 = vand.u32 %v5722, 4294901760
    %5724 = vmatmul.mubr.f32.gmra.mrb[0].mxu0 %v5723
    %v5725 = vpop.f32.mrb[0].mxu0
    %v5726 = vadd.f32 %v5637, %v5725
    %v5727 = vpop.f32.mrb[0].mxu0
    %5728 = vdwg.mxu0
    %5729 = vmatprep.subr.mxu0 0.0
    %v5730 = vand.u32 %v15, 4294901760
    %v5731 = vsub.f32 %v15, %v5730
    %v5732 = vand.u32 %v5731, 4294901760
    %5733 = vmatpush1.msra.mxu0 %v5732
    %5734 = vmatprep.subr.mxu0 0.0
    %v5735 = vand.u32 %v16, 4294901760
    %v5736 = vsub.f32 %v16, %v5735
    %v5737 = vand.u32 %v5736, 4294901760
    %5738 = vmatpush1.msra.mxu0 %v5737
    %5739 = vmatprep.subr.mxu0 0.0
    %v5740 = vand.u32 %v17, 4294901760
    %v5741 = vsub.f32 %v17, %v5740
    %v5742 = vand.u32 %v5741, 4294901760
    %5743 = vmatpush1.msra.mxu0 %v5742
    %5744 = vmatprep.subr.mxu0 0.0
    %v5745 = vand.u32 %v18, 4294901760
    %v5746 = vsub.f32 %v18, %v5745
    %v5747 = vand.u32 %v5746, 4294901760
    %5748 = vmatpush1.msra.mxu0 %v5747
    %5749 = vmatprep.subr.mxu0 0.0
    %v5750 = vand.u32 %v19, 4294901760
    %v5751 = vsub.f32 %v19, %v5750
    %v5752 = vand.u32 %v5751, 4294901760
    %5753 = vmatpush1.msra.mxu0 %v5752
    %5754 = vmatprep.subr.mxu0 0.0
    %v5755 = vand.u32 %v20, 4294901760
    %v5756 = vsub.f32 %v20, %v5755
    %v5757 = vand.u32 %v5756, 4294901760
    %5758 = vmatpush1.msra.mxu0 %v5757
    %5759 = vmatprep.subr.mxu0 0.0
    %v5760 = vand.u32 %v21, 4294901760
    %v5761 = vsub.f32 %v21, %v5760
    %v5762 = vand.u32 %v5761, 4294901760
    %5763 = vmatpush1.msra.mxu0 %v5762
    %5764 = vmatprep.subr.mxu0 0.0
    %v5765 = vand.u32 %v22, 4294901760
    %v5766 = vsub.f32 %v22, %v5765
    %v5767 = vand.u32 %v5766, 4294901760
    %5768 = vmatpush1.msra.mxu0 %v5767
    %5769 = vmatprep.subr.mxu0 0.0
    %v5770 = vand.u32 %v23, 4294901760
    %v5771 = vsub.f32 %v23, %v5770
    %v5772 = vand.u32 %v5771, 4294901760
    %5773 = vmatpush1.msra.mxu0 %v5772
    %5774 = vmatprep.subr.mxu0 0.0
    %v5775 = vand.u32 %v24, 4294901760
    %v5776 = vsub.f32 %v24, %v5775
    %v5777 = vand.u32 %v5776, 4294901760
    %5778 = vmatpush1.msra.mxu0 %v5777
    %5779 = vmatprep.subr.mxu0 0.0
    %v5780 = vand.u32 %v25, 4294901760
    %v5781 = vsub.f32 %v25, %v5780
    %v5782 = vand.u32 %v5781, 4294901760
    %5783 = vmatpush1.msra.mxu0 %v5782
    %5784 = vmatprep.subr.mxu0 0.0
    %v5785 = vand.u32 %v26, 4294901760
    %v5786 = vsub.f32 %v26, %v5785
    %v5787 = vand.u32 %v5786, 4294901760
    %5788 = vmatpush1.msra.mxu0 %v5787
    %5789 = vmatprep.subr.mxu0 0.0
    %v5790 = vand.u32 %v27, 4294901760
    %v5791 = vsub.f32 %v27, %v5790
    %v5792 = vand.u32 %v5791, 4294901760
    %5793 = vmatpush1.msra.mxu0 %v5792
    %5794 = vmatprep.subr.mxu0 0.0
    %v5795 = vand.u32 %v28, 4294901760
    %v5796 = vsub.f32 %v28, %v5795
    %v5797 = vand.u32 %v5796, 4294901760
    %5798 = vmatpush1.msra.mxu0 %v5797
    %5799 = vmatprep.subr.mxu0 0.0
    %v5800 = vand.u32 %v29, 4294901760
    %v5801 = vsub.f32 %v29, %v5800
    %v5802 = vand.u32 %v5801, 4294901760
    %5803 = vmatpush1.msra.mxu0 %v5802
    %5804 = vmatprep.subr.mxu0 0.0
    %v5805 = vand.u32 %v30, 4294901760
    %v5806 = vsub.f32 %v30, %v5805
    %v5807 = vand.u32 %v5806, 4294901760
    %5808 = vmatpush1.msra.mxu0 %v5807
    %5809 = vmatprep.subr.mxu0 0.0
    %5810 = vmatpush1.msra.mxu0 0.0
    %5811 = vmatprep.subr.mxu0 0.0
    %5812 = vmatpush1.msra.mxu0 0.0
    %5813 = vmatprep.subr.mxu0 0.0
    %5814 = vmatpush1.msra.mxu0 0.0
    %5815 = vmatprep.subr.mxu0 0.0
    %5816 = vmatpush1.msra.mxu0 0.0
    %5817 = vmatprep.subr.mxu0 0.0
    %5818 = vmatpush1.msra.mxu0 0.0
    %5819 = vmatprep.subr.mxu0 0.0
    %5820 = vmatpush1.msra.mxu0 0.0
    %5821 = vmatprep.subr.mxu0 0.0
    %5822 = vmatpush1.msra.mxu0 0.0
    %5823 = vmatprep.subr.mxu0 0.0
    %5824 = vmatpush1.msra.mxu0 0.0
    %5825 = vmatprep.subr.mxu0 0.0
    %5826 = vmatpush1.msra.mxu0 0.0
    %5827 = vmatprep.subr.mxu0 0.0
    %5828 = vmatpush1.msra.mxu0 0.0
    %5829 = vmatprep.subr.mxu0 0.0
    %5830 = vmatpush1.msra.mxu0 0.0
    %5831 = vmatprep.subr.mxu0 0.0
    %5832 = vmatpush1.msra.mxu0 0.0
    %5833 = vmatprep.subr.mxu0 0.0
    %5834 = vmatpush1.msra.mxu0 0.0
    %5835 = vmatprep.subr.mxu0 0.0
    %5836 = vmatpush1.msra.mxu0 0.0
    %5837 = vmatprep.subr.mxu0 0.0
    %5838 = vmatpush1.msra.mxu0 0.0
    %5839 = vmatprep.subr.mxu0 0.0
    %5840 = vmatpush1.msra.mxu0 0.0
    %5841 = vmatprep.mubr.f32.mxu0 0.0
    %v5842 = vand.u32 %v5290, 4294901760
    %5843 = vmatmul.mubr.f32.gmra.mrb[0].mxu0 %v5842
    %v5844 = vpop.f32.mrb[0].mxu0
    %v5845 = vadd.f32 %v5726, %v5844
    %v5846 = vpop.f32.mrb[0].mxu0
    %5847 = vdwg.mxu0
    %5848 = vmatprep.subr.mxu0 0.0
    %v5849 = vand.u32 %v15, 4294901760
    %5850 = vmatpush1.msra.mxu0 %v5849
    %5851 = vmatprep.subr.mxu0 0.0
    %v5852 = vand.u32 %v16, 4294901760
    %5853 = vmatpush1.msra.mxu0 %v5852
    %5854 = vmatprep.subr.mxu0 0.0
    %v5855 = vand.u32 %v17, 4294901760
    %5856 = vmatpush1.msra.mxu0 %v5855
    %5857 = vmatprep.subr.mxu0 0.0
    %v5858 = vand.u32 %v18, 4294901760
    %5859 = vmatpush1.msra.mxu0 %v5858
    %5860 = vmatprep.subr.mxu0 0.0
    %v5861 = vand.u32 %v19, 4294901760
    %5862 = vmatpush1.msra.mxu0 %v5861
    %5863 = vmatprep.subr.mxu0 0.0
    %v5864 = vand.u32 %v20, 4294901760
    %5865 = vmatpush1.msra.mxu0 %v5864
    %5866 = vmatprep.subr.mxu0 0.0
    %v5867 = vand.u32 %v21, 4294901760
    %5868 = vmatpush1.msra.mxu0 %v5867
    %5869 = vmatprep.subr.mxu0 0.0
    %v5870 = vand.u32 %v22, 4294901760
    %5871 = vmatpush1.msra.mxu0 %v5870
    %5872 = vmatprep.subr.mxu0 0.0
    %v5873 = vand.u32 %v23, 4294901760
    %5874 = vmatpush1.msra.mxu0 %v5873
    %5875 = vmatprep.subr.mxu0 0.0
    %v5876 = vand.u32 %v24, 4294901760
    %5877 = vmatpush1.msra.mxu0 %v5876
    %5878 = vmatprep.subr.mxu0 0.0
    %v5879 = vand.u32 %v25, 4294901760
    %5880 = vmatpush1.msra.mxu0 %v5879
    %5881 = vmatprep.subr.mxu0 0.0
    %v5882 = vand.u32 %v26, 4294901760
    %5883 = vmatpush1.msra.mxu0 %v5882
    %5884 = vmatprep.subr.mxu0 0.0
    %v5885 = vand.u32 %v27, 4294901760
    %5886 = vmatpush1.msra.mxu0 %v5885
    %5887 = vmatprep.subr.mxu0 0.0
    %v5888 = vand.u32 %v28, 4294901760
    %5889 = vmatpush1.msra.mxu0 %v5888
    %5890 = vmatprep.subr.mxu0 0.0
    %v5891 = vand.u32 %v29, 4294901760
    %5892 = vmatpush1.msra.mxu0 %v5891
    %5893 = vmatprep.subr.mxu0 0.0
    %v5894 = vand.u32 %v30, 4294901760
    %5895 = vmatpush1.msra.mxu0 %v5894
    %5896 = vmatprep.subr.mxu0 0.0
    %5897 = vmatpush1.msra.mxu0 0.0
    %5898 = vmatprep.subr.mxu0 0.0
    %5899 = vmatpush1.msra.mxu0 0.0
    %5900 = vmatprep.subr.mxu0 0.0
    %5901 = vmatpush1.msra.mxu0 0.0
    %5902 = vmatprep.subr.mxu0 0.0
    %5903 = vmatpush1.msra.mxu0 0.0
    %5904 = vmatprep.subr.mxu0 0.0
    %5905 = vmatpush1.msra.mxu0 0.0
    %5906 = vmatprep.subr.mxu0 0.0
    %5907 = vmatpush1.msra.mxu0 0.0
    %5908 = vmatprep.subr.mxu0 0.0
    %5909 = vmatpush1.msra.mxu0 0.0
    %5910 = vmatprep.subr.mxu0 0.0
    %5911 = vmatpush1.msra.mxu0 0.0
    %5912 = vmatprep.subr.mxu0 0.0
    %5913 = vmatpush1.msra.mxu0 0.0
    %5914 = vmatprep.subr.mxu0 0.0
    %5915 = vmatpush1.msra.mxu0 0.0
    %5916 = vmatprep.subr.mxu0 0.0
    %5917 = vmatpush1.msra.mxu0 0.0
    %5918 = vmatprep.subr.mxu0 0.0
    %5919 = vmatpush1.msra.mxu0 0.0
    %5920 = vmatprep.subr.mxu0 0.0
    %5921 = vmatpush1.msra.mxu0 0.0
    %5922 = vmatprep.subr.mxu0 0.0
    %5923 = vmatpush1.msra.mxu0 0.0
    %5924 = vmatprep.subr.mxu0 0.0
    %5925 = vmatpush1.msra.mxu0 0.0
    %5926 = vmatprep.subr.mxu0 0.0
    %5927 = vmatpush1.msra.mxu0 0.0
    %5928 = vmatprep.mubr.f32.mxu0 0.0
    %v5929 = vand.u32 %v5290, 4294901760
    %5930 = vmatmul.mubr.f32.gmra.mrb[0].mxu0 %v5929
    %v5931 = vpop.f32.mrb[0].mxu0
    %v5932 = vadd.f32 %v5845, %v5931
    %v5933 = vpop.f32.mrb[0].mxu0
    %5934 = vdwg.mxu0
    %v5935 = vmul.f32 %v5292, 0.9
    %v5936 = vadd.f32 %v5935, %v5932
    %vm5937 = vcmp.le.s32.totalorder %v41, 8
    %vm5938 = vcmp.gt.s32.totalorder %v41, 0
    %vm5939 = vmand %vm5937, %vm5938
    %vm5940 = vcmp.ge.f32.partialorder %v5936, 1.0
    %vm5941 = vmand %vm5940, %vm5939
    %v5942 = vsel %vm5941, 1, 0
    %v5943 = vcvt.s32.f32 %v5942
    %v5944 = vsel %vm5941, 0.0, %v5936
    %v5945 = vsel %vm5939, %v5944, %v5292
    %v5946 = vadd.f32 %v5293, %v5943
    %5947 = vmatprep.subr.mxu0 0.0
    %v5948 = vand.u32 %v15, 4294901760
    %5949 = vmatpush1.msra.mxu0 %v5948
    %5950 = vmatprep.subr.mxu0 0.0
    %v5951 = vand.u32 %v16, 4294901760
    %5952 = vmatpush1.msra.mxu0 %v5951
    %5953 = vmatprep.subr.mxu0 0.0
    %v5954 = vand.u32 %v17, 4294901760
    %5955 = vmatpush1.msra.mxu0 %v5954
    %5956 = vmatprep.subr.mxu0 0.0
    %v5957 = vand.u32 %v18, 4294901760
    %5958 = vmatpush1.msra.mxu0 %v5957
    %5959 = vmatprep.subr.mxu0 0.0
    %v5960 = vand.u32 %v19, 4294901760
    %5961 = vmatpush1.msra.mxu0 %v5960
    %5962 = vmatprep.subr.mxu0 0.0
    %v5963 = vand.u32 %v20, 4294901760
    %5964 = vmatpush1.msra.mxu0 %v5963
    %5965 = vmatprep.subr.mxu0 0.0
    %v5966 = vand.u32 %v21, 4294901760
    %5967 = vmatpush1.msra.mxu0 %v5966
    %5968 = vmatprep.subr.mxu0 0.0
    %v5969 = vand.u32 %v22, 4294901760
    %5970 = vmatpush1.msra.mxu0 %v5969
    %5971 = vmatprep.subr.mxu0 0.0
    %v5972 = vand.u32 %v23, 4294901760
    %5973 = vmatpush1.msra.mxu0 %v5972
    %5974 = vmatprep.subr.mxu0 0.0
    %v5975 = vand.u32 %v24, 4294901760
    %5976 = vmatpush1.msra.mxu0 %v5975
    %5977 = vmatprep.subr.mxu0 0.0
    %v5978 = vand.u32 %v25, 4294901760
    %5979 = vmatpush1.msra.mxu0 %v5978
    %5980 = vmatprep.subr.mxu0 0.0
    %v5981 = vand.u32 %v26, 4294901760
    %5982 = vmatpush1.msra.mxu0 %v5981
    %5983 = vmatprep.subr.mxu0 0.0
    %v5984 = vand.u32 %v27, 4294901760
    %5985 = vmatpush1.msra.mxu0 %v5984
    %5986 = vmatprep.subr.mxu0 0.0
    %v5987 = vand.u32 %v28, 4294901760
    %5988 = vmatpush1.msra.mxu0 %v5987
    %5989 = vmatprep.subr.mxu0 0.0
    %v5990 = vand.u32 %v29, 4294901760
    %5991 = vmatpush1.msra.mxu0 %v5990
    %5992 = vmatprep.subr.mxu0 0.0
    %v5993 = vand.u32 %v30, 4294901760
    %5994 = vmatpush1.msra.mxu0 %v5993
    %5995 = vmatprep.subr.mxu0 0.0
    %5996 = vmatpush1.msra.mxu0 0.0
    %5997 = vmatprep.subr.mxu0 0.0
    %5998 = vmatpush1.msra.mxu0 0.0
    %5999 = vmatprep.subr.mxu0 0.0
    %6000 = vmatpush1.msra.mxu0 0.0
    %6001 = vmatprep.subr.mxu0 0.0
    %6002 = vmatpush1.msra.mxu0 0.0
    %6003 = vmatprep.subr.mxu0 0.0
    %6004 = vmatpush1.msra.mxu0 0.0
    %6005 = vmatprep.subr.mxu0 0.0
    %6006 = vmatpush1.msra.mxu0 0.0
    %6007 = vmatprep.subr.mxu0 0.0
    %6008 = vmatpush1.msra.mxu0 0.0
    %6009 = vmatprep.subr.mxu0 0.0
    %6010 = vmatpush1.msra.mxu0 0.0
    %6011 = vmatprep.subr.mxu0 0.0
    %6012 = vmatpush1.msra.mxu0 0.0
    %6013 = vmatprep.subr.mxu0 0.0
    %6014 = vmatpush1.msra.mxu0 0.0
    %6015 = vmatprep.subr.mxu0 0.0
    %6016 = vmatpush1.msra.mxu0 0.0
    %6017 = vmatprep.subr.mxu0 0.0
    %6018 = vmatpush1.msra.mxu0 0.0
    %6019 = vmatprep.subr.mxu0 0.0
    %6020 = vmatpush1.msra.mxu0 0.0
    %6021 = vmatprep.subr.mxu0 0.0
    %6022 = vmatpush1.msra.mxu0 0.0
    %6023 = vmatprep.subr.mxu0 0.0
    %6024 = vmatpush1.msra.mxu0 0.0
    %6025 = vmatprep.subr.mxu0 0.0
    %6026 = vmatpush1.msra.mxu0 0.0
    %6027 = vmatprep.mubr.f32.mxu0 0.0
    %v6028 = vand.u32 %v5943, 4294901760
    %v6029 = vsub.f32 %v5943, %v6028
    %v6030 = vand.u32 %v6029, 4294901760
    %v6031 = vsub.f32 %v6029, %v6030
    %v6032 = vand.u32 %v6031, 4294901760
    %6033 = vmatmul.mubr.f32.gmra.mrb[0].mxu0 %v6032
    %v6034 = vpop.f32.mrb[0].mxu0
    %v6035 = vadd.f32 %v48, %v6034
    %v6036 = vpop.f32.mrb[0].mxu0
    %6037 = vdwg.mxu0
    %6038 = vmatprep.subr.mxu0 0.0
    %v6039 = vand.u32 %v15, 4294901760
    %v6040 = vsub.f32 %v15, %v6039
    %v6041 = vand.u32 %v6040, 4294901760
    %v6042 = vsub.f32 %v6040, %v6041
    %v6043 = vand.u32 %v6042, 4294901760
    %6044 = vmatpush1.msra.mxu0 %v6043
    %6045 = vmatprep.subr.mxu0 0.0
    %v6046 = vand.u32 %v16, 4294901760
    %v6047 = vsub.f32 %v16, %v6046
    %v6048 = vand.u32 %v6047, 4294901760
    %v6049 = vsub.f32 %v6047, %v6048
    %v6050 = vand.u32 %v6049, 4294901760
    %6051 = vmatpush1.msra.mxu0 %v6050
    %6052 = vmatprep.subr.mxu0 0.0
    %v6053 = vand.u32 %v17, 4294901760
    %v6054 = vsub.f32 %v17, %v6053
    %v6055 = vand.u32 %v6054, 4294901760
    %v6056 = vsub.f32 %v6054, %v6055
    %v6057 = vand.u32 %v6056, 4294901760
    %6058 = vmatpush1.msra.mxu0 %v6057
    %6059 = vmatprep.subr.mxu0 0.0
    %v6060 = vand.u32 %v18, 4294901760
    %v6061 = vsub.f32 %v18, %v6060
    %v6062 = vand.u32 %v6061, 4294901760
    %v6063 = vsub.f32 %v6061, %v6062
    %v6064 = vand.u32 %v6063, 4294901760
    %6065 = vmatpush1.msra.mxu0 %v6064
    %6066 = vmatprep.subr.mxu0 0.0
    %v6067 = vand.u32 %v19, 4294901760
    %v6068 = vsub.f32 %v19, %v6067
    %v6069 = vand.u32 %v6068, 4294901760
    %v6070 = vsub.f32 %v6068, %v6069
    %v6071 = vand.u32 %v6070, 4294901760
    %6072 = vmatpush1.msra.mxu0 %v6071
    %6073 = vmatprep.subr.mxu0 0.0
    %v6074 = vand.u32 %v20, 4294901760
    %v6075 = vsub.f32 %v20, %v6074
    %v6076 = vand.u32 %v6075, 4294901760
    %v6077 = vsub.f32 %v6075, %v6076
    %v6078 = vand.u32 %v6077, 4294901760
    %6079 = vmatpush1.msra.mxu0 %v6078
    %6080 = vmatprep.subr.mxu0 0.0
    %v6081 = vand.u32 %v21, 4294901760
    %v6082 = vsub.f32 %v21, %v6081
    %v6083 = vand.u32 %v6082, 4294901760
    %v6084 = vsub.f32 %v6082, %v6083
    %v6085 = vand.u32 %v6084, 4294901760
    %6086 = vmatpush1.msra.mxu0 %v6085
    %6087 = vmatprep.subr.mxu0 0.0
    %v6088 = vand.u32 %v22, 4294901760
    %v6089 = vsub.f32 %v22, %v6088
    %v6090 = vand.u32 %v6089, 4294901760
    %v6091 = vsub.f32 %v6089, %v6090
    %v6092 = vand.u32 %v6091, 4294901760
    %6093 = vmatpush1.msra.mxu0 %v6092
    %6094 = vmatprep.subr.mxu0 0.0
    %v6095 = vand.u32 %v23, 4294901760
    %v6096 = vsub.f32 %v23, %v6095
    %v6097 = vand.u32 %v6096, 4294901760
    %v6098 = vsub.f32 %v6096, %v6097
    %v6099 = vand.u32 %v6098, 4294901760
    %6100 = vmatpush1.msra.mxu0 %v6099
    %6101 = vmatprep.subr.mxu0 0.0
    %v6102 = vand.u32 %v24, 4294901760
    %v6103 = vsub.f32 %v24, %v6102
    %v6104 = vand.u32 %v6103, 4294901760
    %v6105 = vsub.f32 %v6103, %v6104
    %v6106 = vand.u32 %v6105, 4294901760
    %6107 = vmatpush1.msra.mxu0 %v6106
    %6108 = vmatprep.subr.mxu0 0.0
    %v6109 = vand.u32 %v25, 4294901760
    %v6110 = vsub.f32 %v25, %v6109
    %v6111 = vand.u32 %v6110, 4294901760
    %v6112 = vsub.f32 %v6110, %v6111
    %v6113 = vand.u32 %v6112, 4294901760
    %6114 = vmatpush1.msra.mxu0 %v6113
    %6115 = vmatprep.subr.mxu0 0.0
    %v6116 = vand.u32 %v26, 4294901760
    %v6117 = vsub.f32 %v26, %v6116
    %v6118 = vand.u32 %v6117, 4294901760
    %v6119 = vsub.f32 %v6117, %v6118
    %v6120 = vand.u32 %v6119, 4294901760
    %6121 = vmatpush1.msra.mxu0 %v6120
    %6122 = vmatprep.subr.mxu0 0.0
    %v6123 = vand.u32 %v27, 4294901760
    %v6124 = vsub.f32 %v27, %v6123
    %v6125 = vand.u32 %v6124, 4294901760
    %v6126 = vsub.f32 %v6124, %v6125
    %v6127 = vand.u32 %v6126, 4294901760
    %6128 = vmatpush1.msra.mxu0 %v6127
    %6129 = vmatprep.subr.mxu0 0.0
    %v6130 = vand.u32 %v28, 4294901760
    %v6131 = vsub.f32 %v28, %v6130
    %v6132 = vand.u32 %v6131, 4294901760
    %v6133 = vsub.f32 %v6131, %v6132
    %v6134 = vand.u32 %v6133, 4294901760
    %6135 = vmatpush1.msra.mxu0 %v6134
    %6136 = vmatprep.subr.mxu0 0.0
    %v6137 = vand.u32 %v29, 4294901760
    %v6138 = vsub.f32 %v29, %v6137
    %v6139 = vand.u32 %v6138, 4294901760
    %v6140 = vsub.f32 %v6138, %v6139
    %v6141 = vand.u32 %v6140, 4294901760
    %6142 = vmatpush1.msra.mxu0 %v6141
    %6143 = vmatprep.subr.mxu0 0.0
    %v6144 = vand.u32 %v30, 4294901760
    %v6145 = vsub.f32 %v30, %v6144
    %v6146 = vand.u32 %v6145, 4294901760
    %v6147 = vsub.f32 %v6145, %v6146
    %v6148 = vand.u32 %v6147, 4294901760
    %6149 = vmatpush1.msra.mxu0 %v6148
    %6150 = vmatprep.subr.mxu0 0.0
    %6151 = vmatpush1.msra.mxu0 0.0
    %6152 = vmatprep.subr.mxu0 0.0
    %6153 = vmatpush1.msra.mxu0 0.0
    %6154 = vmatprep.subr.mxu0 0.0
    %6155 = vmatpush1.msra.mxu0 0.0
    %6156 = vmatprep.subr.mxu0 0.0
    %6157 = vmatpush1.msra.mxu0 0.0
    %6158 = vmatprep.subr.mxu0 0.0
    %6159 = vmatpush1.msra.mxu0 0.0
    %6160 = vmatprep.subr.mxu0 0.0
    %6161 = vmatpush1.msra.mxu0 0.0
    %6162 = vmatprep.subr.mxu0 0.0
    %6163 = vmatpush1.msra.mxu0 0.0
    %6164 = vmatprep.subr.mxu0 0.0
    %6165 = vmatpush1.msra.mxu0 0.0
    %6166 = vmatprep.subr.mxu0 0.0
    %6167 = vmatpush1.msra.mxu0 0.0
    %6168 = vmatprep.subr.mxu0 0.0
    %6169 = vmatpush1.msra.mxu0 0.0
    %6170 = vmatprep.subr.mxu0 0.0
    %6171 = vmatpush1.msra.mxu0 0.0
    %6172 = vmatprep.subr.mxu0 0.0
    %6173 = vmatpush1.msra.mxu0 0.0
    %6174 = vmatprep.subr.mxu0 0.0
    %6175 = vmatpush1.msra.mxu0 0.0
    %6176 = vmatprep.subr.mxu0 0.0
    %6177 = vmatpush1.msra.mxu0 0.0
    %6178 = vmatprep.subr.mxu0 0.0
    %6179 = vmatpush1.msra.mxu0 0.0
    %6180 = vmatprep.subr.mxu0 0.0
    %6181 = vmatpush1.msra.mxu0 0.0
    %6182 = vmatprep.mubr.f32.mxu0 0.0
    %v6183 = vand.u32 %v5943, 4294901760
    %6184 = vmatmul.mubr.f32.gmra.mrb[0].mxu0 %v6183
    %v6185 = vpop.f32.mrb[0].mxu0
    %v6186 = vadd.f32 %v6035, %v6185
    %v6187 = vpop.f32.mrb[0].mxu0
    %6188 = vdwg.mxu0
    %6189 = vmatprep.subr.mxu0 0.0
    %v6190 = vand.u32 %v15, 4294901760
    %v6191 = vsub.f32 %v15, %v6190
    %6192 = vmatpush1.msra.mxu0 %v6191
    %6193 = vmatprep.subr.mxu0 0.0
    %v6194 = vand.u32 %v16, 4294901760
    %v6195 = vsub.f32 %v16, %v6194
    %6196 = vmatpush1.msra.mxu0 %v6195
    %6197 = vmatprep.subr.mxu0 0.0
    %v6198 = vand.u32 %v17, 4294901760
    %v6199 = vsub.f32 %v17, %v6198
    %6200 = vmatpush1.msra.mxu0 %v6199
    %6201 = vmatprep.subr.mxu0 0.0
    %v6202 = vand.u32 %v18, 4294901760
    %v6203 = vsub.f32 %v18, %v6202
    %6204 = vmatpush1.msra.mxu0 %v6203
    %6205 = vmatprep.subr.mxu0 0.0
    %v6206 = vand.u32 %v19, 4294901760
    %v6207 = vsub.f32 %v19, %v6206
    %6208 = vmatpush1.msra.mxu0 %v6207
    %6209 = vmatprep.subr.mxu0 0.0
    %v6210 = vand.u32 %v20, 4294901760
    %v6211 = vsub.f32 %v20, %v6210
    %6212 = vmatpush1.msra.mxu0 %v6211
    %6213 = vmatprep.subr.mxu0 0.0
    %v6214 = vand.u32 %v21, 4294901760
    %v6215 = vsub.f32 %v21, %v6214
    %6216 = vmatpush1.msra.mxu0 %v6215
    %6217 = vmatprep.subr.mxu0 0.0
    %v6218 = vand.u32 %v22, 4294901760
    %v6219 = vsub.f32 %v22, %v6218
    %6220 = vmatpush1.msra.mxu0 %v6219
    %6221 = vmatprep.subr.mxu0 0.0
    %v6222 = vand.u32 %v23, 4294901760
    %v6223 = vsub.f32 %v23, %v6222
    %6224 = vmatpush1.msra.mxu0 %v6223
    %6225 = vmatprep.subr.mxu0 0.0
    %v6226 = vand.u32 %v24, 4294901760
    %v6227 = vsub.f32 %v24, %v6226
    %6228 = vmatpush1.msra.mxu0 %v6227
    %6229 = vmatprep.subr.mxu0 0.0
    %v6230 = vand.u32 %v25, 4294901760
    %v6231 = vsub.f32 %v25, %v6230
    %6232 = vmatpush1.msra.mxu0 %v6231
    %6233 = vmatprep.subr.mxu0 0.0
    %v6234 = vand.u32 %v26, 4294901760
    %v6235 = vsub.f32 %v26, %v6234
    %6236 = vmatpush1.msra.mxu0 %v6235
    %6237 = vmatprep.subr.mxu0 0.0
    %v6238 = vand.u32 %v27, 4294901760
    %v6239 = vsub.f32 %v27, %v6238
    %6240 = vmatpush1.msra.mxu0 %v6239
    %6241 = vmatprep.subr.mxu0 0.0
    %v6242 = vand.u32 %v28, 4294901760
    %v6243 = vsub.f32 %v28, %v6242
    %6244 = vmatpush1.msra.mxu0 %v6243
    %6245 = vmatprep.subr.mxu0 0.0
    %v6246 = vand.u32 %v29, 4294901760
    %v6247 = vsub.f32 %v29, %v6246
    %6248 = vmatpush1.msra.mxu0 %v6247
    %6249 = vmatprep.subr.mxu0 0.0
    %v6250 = vand.u32 %v30, 4294901760
    %v6251 = vsub.f32 %v30, %v6250
    %6252 = vmatpush1.msra.mxu0 %v6251
    %6253 = vmatprep.subr.mxu0 0.0
    %6254 = vmatpush1.msra.mxu0 0.0
    %6255 = vmatprep.subr.mxu0 0.0
    %6256 = vmatpush1.msra.mxu0 0.0
    %6257 = vmatprep.subr.mxu0 0.0
    %6258 = vmatpush1.msra.mxu0 0.0
    %6259 = vmatprep.subr.mxu0 0.0
    %6260 = vmatpush1.msra.mxu0 0.0
    %6261 = vmatprep.subr.mxu0 0.0
    %6262 = vmatpush1.msra.mxu0 0.0
    %6263 = vmatprep.subr.mxu0 0.0
    %6264 = vmatpush1.msra.mxu0 0.0
    %6265 = vmatprep.subr.mxu0 0.0
    %6266 = vmatpush1.msra.mxu0 0.0
    %6267 = vmatprep.subr.mxu0 0.0
    %6268 = vmatpush1.msra.mxu0 0.0
    %6269 = vmatprep.subr.mxu0 0.0
    %6270 = vmatpush1.msra.mxu0 0.0
    %6271 = vmatprep.subr.mxu0 0.0
    %6272 = vmatpush1.msra.mxu0 0.0
    %6273 = vmatprep.subr.mxu0 0.0
    %6274 = vmatpush1.msra.mxu0 0.0
    %6275 = vmatprep.subr.mxu0 0.0
    %6276 = vmatpush1.msra.mxu0 0.0
    %6277 = vmatprep.subr.mxu0 0.0
    %6278 = vmatpush1.msra.mxu0 0.0
    %6279 = vmatprep.subr.mxu0 0.0
    %6280 = vmatpush1.msra.mxu0 0.0
    %6281 = vmatprep.subr.mxu0 0.0
    %6282 = vmatpush1.msra.mxu0 0.0
    %6283 = vmatprep.subr.mxu0 0.0
    %6284 = vmatpush1.msra.mxu0 0.0
    %6285 = vmatprep.mubr.f32.mxu0 0.0
    %v6286 = vand.u32 %v5943, 4294901760
    %v6287 = vsub.f32 %v5943, %v6286
    %6288 = vmatmul.mubr.f32.gmra.mrb[0].mxu0 %v6287
    %v6289 = vpop.f32.mrb[0].mxu0
    %v6290 = vadd.f32 %v6186, %v6289
    %v6291 = vpop.f32.mrb[0].mxu0
    %6292 = vdwg.mxu0
    %6293 = vmatprep.subr.mxu0 0.0
    %v6294 = vand.u32 %v15, 4294901760
    %6295 = vmatpush1.msra.mxu0 %v6294
    %6296 = vmatprep.subr.mxu0 0.0
    %v6297 = vand.u32 %v16, 4294901760
    %6298 = vmatpush1.msra.mxu0 %v6297
    %6299 = vmatprep.subr.mxu0 0.0
    %v6300 = vand.u32 %v17, 4294901760
    %6301 = vmatpush1.msra.mxu0 %v6300
    %6302 = vmatprep.subr.mxu0 0.0
    %v6303 = vand.u32 %v18, 4294901760
    %6304 = vmatpush1.msra.mxu0 %v6303
    %6305 = vmatprep.subr.mxu0 0.0
    %v6306 = vand.u32 %v19, 4294901760
    %6307 = vmatpush1.msra.mxu0 %v6306
    %6308 = vmatprep.subr.mxu0 0.0
    %v6309 = vand.u32 %v20, 4294901760
    %6310 = vmatpush1.msra.mxu0 %v6309
    %6311 = vmatprep.subr.mxu0 0.0
    %v6312 = vand.u32 %v21, 4294901760
    %6313 = vmatpush1.msra.mxu0 %v6312
    %6314 = vmatprep.subr.mxu0 0.0
    %v6315 = vand.u32 %v22, 4294901760
    %6316 = vmatpush1.msra.mxu0 %v6315
    %6317 = vmatprep.subr.mxu0 0.0
    %v6318 = vand.u32 %v23, 4294901760
    %6319 = vmatpush1.msra.mxu0 %v6318
    %6320 = vmatprep.subr.mxu0 0.0
    %v6321 = vand.u32 %v24, 4294901760
    %6322 = vmatpush1.msra.mxu0 %v6321
    %6323 = vmatprep.subr.mxu0 0.0
    %v6324 = vand.u32 %v25, 4294901760
    %6325 = vmatpush1.msra.mxu0 %v6324
    %6326 = vmatprep.subr.mxu0 0.0
    %v6327 = vand.u32 %v26, 4294901760
    %6328 = vmatpush1.msra.mxu0 %v6327
    %6329 = vmatprep.subr.mxu0 0.0
    %v6330 = vand.u32 %v27, 4294901760
    %6331 = vmatpush1.msra.mxu0 %v6330
    %6332 = vmatprep.subr.mxu0 0.0
    %v6333 = vand.u32 %v28, 4294901760
    %6334 = vmatpush1.msra.mxu0 %v6333
    %6335 = vmatprep.subr.mxu0 0.0
    %v6336 = vand.u32 %v29, 4294901760
    %6337 = vmatpush1.msra.mxu0 %v6336
    %6338 = vmatprep.subr.mxu0 0.0
    %v6339 = vand.u32 %v30, 4294901760
    %6340 = vmatpush1.msra.mxu0 %v6339
    %6341 = vmatprep.subr.mxu0 0.0
    %6342 = vmatpush1.msra.mxu0 0.0
    %6343 = vmatprep.subr.mxu0 0.0
    %6344 = vmatpush1.msra.mxu0 0.0
    %6345 = vmatprep.subr.mxu0 0.0
    %6346 = vmatpush1.msra.mxu0 0.0
    %6347 = vmatprep.subr.mxu0 0.0
    %6348 = vmatpush1.msra.mxu0 0.0
    %6349 = vmatprep.subr.mxu0 0.0
    %6350 = vmatpush1.msra.mxu0 0.0
    %6351 = vmatprep.subr.mxu0 0.0
    %6352 = vmatpush1.msra.mxu0 0.0
    %6353 = vmatprep.subr.mxu0 0.0
    %6354 = vmatpush1.msra.mxu0 0.0
    %6355 = vmatprep.subr.mxu0 0.0
    %6356 = vmatpush1.msra.mxu0 0.0
    %6357 = vmatprep.subr.mxu0 0.0
    %6358 = vmatpush1.msra.mxu0 0.0
    %6359 = vmatprep.subr.mxu0 0.0
    %6360 = vmatpush1.msra.mxu0 0.0
    %6361 = vmatprep.subr.mxu0 0.0
    %6362 = vmatpush1.msra.mxu0 0.0
    %6363 = vmatprep.subr.mxu0 0.0
    %6364 = vmatpush1.msra.mxu0 0.0
    %6365 = vmatprep.subr.mxu0 0.0
    %6366 = vmatpush1.msra.mxu0 0.0
    %6367 = vmatprep.subr.mxu0 0.0
    %6368 = vmatpush1.msra.mxu0 0.0
    %6369 = vmatprep.subr.mxu0 0.0
    %6370 = vmatpush1.msra.mxu0 0.0
    %6371 = vmatprep.subr.mxu0 0.0
    %6372 = vmatpush1.msra.mxu0 0.0
    %6373 = vmatprep.mubr.f32.mxu0 0.0
    %v6374 = vand.u32 %v5943, 4294901760
    %v6375 = vsub.f32 %v5943, %v6374
    %v6376 = vand.u32 %v6375, 4294901760
    %6377 = vmatmul.mubr.f32.gmra.mrb[0].mxu0 %v6376
    %v6378 = vpop.f32.mrb[0].mxu0
    %v6379 = vadd.f32 %v6290, %v6378
    %v6380 = vpop.f32.mrb[0].mxu0
    %6381 = vdwg.mxu0
    %6382 = vmatprep.subr.mxu0 0.0
    %v6383 = vand.u32 %v15, 4294901760
    %v6384 = vsub.f32 %v15, %v6383
    %v6385 = vand.u32 %v6384, 4294901760
    %6386 = vmatpush1.msra.mxu0 %v6385
    %6387 = vmatprep.subr.mxu0 0.0
    %v6388 = vand.u32 %v16, 4294901760
    %v6389 = vsub.f32 %v16, %v6388
    %v6390 = vand.u32 %v6389, 4294901760
    %6391 = vmatpush1.msra.mxu0 %v6390
    %6392 = vmatprep.subr.mxu0 0.0
    %v6393 = vand.u32 %v17, 4294901760
    %v6394 = vsub.f32 %v17, %v6393
    %v6395 = vand.u32 %v6394, 4294901760
    %6396 = vmatpush1.msra.mxu0 %v6395
    %6397 = vmatprep.subr.mxu0 0.0
    %v6398 = vand.u32 %v18, 4294901760
    %v6399 = vsub.f32 %v18, %v6398
    %v6400 = vand.u32 %v6399, 4294901760
    %6401 = vmatpush1.msra.mxu0 %v6400
    %6402 = vmatprep.subr.mxu0 0.0
    %v6403 = vand.u32 %v19, 4294901760
    %v6404 = vsub.f32 %v19, %v6403
    %v6405 = vand.u32 %v6404, 4294901760
    %6406 = vmatpush1.msra.mxu0 %v6405
    %6407 = vmatprep.subr.mxu0 0.0
    %v6408 = vand.u32 %v20, 4294901760
    %v6409 = vsub.f32 %v20, %v6408
    %v6410 = vand.u32 %v6409, 4294901760
    %6411 = vmatpush1.msra.mxu0 %v6410
    %6412 = vmatprep.subr.mxu0 0.0
    %v6413 = vand.u32 %v21, 4294901760
    %v6414 = vsub.f32 %v21, %v6413
    %v6415 = vand.u32 %v6414, 4294901760
    %6416 = vmatpush1.msra.mxu0 %v6415
    %6417 = vmatprep.subr.mxu0 0.0
    %v6418 = vand.u32 %v22, 4294901760
    %v6419 = vsub.f32 %v22, %v6418
    %v6420 = vand.u32 %v6419, 4294901760
    %6421 = vmatpush1.msra.mxu0 %v6420
    %6422 = vmatprep.subr.mxu0 0.0
    %v6423 = vand.u32 %v23, 4294901760
    %v6424 = vsub.f32 %v23, %v6423
    %v6425 = vand.u32 %v6424, 4294901760
    %6426 = vmatpush1.msra.mxu0 %v6425
    %6427 = vmatprep.subr.mxu0 0.0
    %v6428 = vand.u32 %v24, 4294901760
    %v6429 = vsub.f32 %v24, %v6428
    %v6430 = vand.u32 %v6429, 4294901760
    %6431 = vmatpush1.msra.mxu0 %v6430
    %6432 = vmatprep.subr.mxu0 0.0
    %v6433 = vand.u32 %v25, 4294901760
    %v6434 = vsub.f32 %v25, %v6433
    %v6435 = vand.u32 %v6434, 4294901760
    %6436 = vmatpush1.msra.mxu0 %v6435
    %6437 = vmatprep.subr.mxu0 0.0
    %v6438 = vand.u32 %v26, 4294901760
    %v6439 = vsub.f32 %v26, %v6438
    %v6440 = vand.u32 %v6439, 4294901760
    %6441 = vmatpush1.msra.mxu0 %v6440
    %6442 = vmatprep.subr.mxu0 0.0
    %v6443 = vand.u32 %v27, 4294901760
    %v6444 = vsub.f32 %v27, %v6443
    %v6445 = vand.u32 %v6444, 4294901760
    %6446 = vmatpush1.msra.mxu0 %v6445
    %6447 = vmatprep.subr.mxu0 0.0
    %v6448 = vand.u32 %v28, 4294901760
    %v6449 = vsub.f32 %v28, %v6448
    %v6450 = vand.u32 %v6449, 4294901760
    %6451 = vmatpush1.msra.mxu0 %v6450
    %6452 = vmatprep.subr.mxu0 0.0
    %v6453 = vand.u32 %v29, 4294901760
    %v6454 = vsub.f32 %v29, %v6453
    %v6455 = vand.u32 %v6454, 4294901760
    %6456 = vmatpush1.msra.mxu0 %v6455
    %6457 = vmatprep.subr.mxu0 0.0
    %v6458 = vand.u32 %v30, 4294901760
    %v6459 = vsub.f32 %v30, %v6458
    %v6460 = vand.u32 %v6459, 4294901760
    %6461 = vmatpush1.msra.mxu0 %v6460
    %6462 = vmatprep.subr.mxu0 0.0
    %6463 = vmatpush1.msra.mxu0 0.0
    %6464 = vmatprep.subr.mxu0 0.0
    %6465 = vmatpush1.msra.mxu0 0.0
    %6466 = vmatprep.subr.mxu0 0.0
    %6467 = vmatpush1.msra.mxu0 0.0
    %6468 = vmatprep.subr.mxu0 0.0
    %6469 = vmatpush1.msra.mxu0 0.0
    %6470 = vmatprep.subr.mxu0 0.0
    %6471 = vmatpush1.msra.mxu0 0.0
    %6472 = vmatprep.subr.mxu0 0.0
    %6473 = vmatpush1.msra.mxu0 0.0
    %6474 = vmatprep.subr.mxu0 0.0
    %6475 = vmatpush1.msra.mxu0 0.0
    %6476 = vmatprep.subr.mxu0 0.0
    %6477 = vmatpush1.msra.mxu0 0.0
    %6478 = vmatprep.subr.mxu0 0.0
    %6479 = vmatpush1.msra.mxu0 0.0
    %6480 = vmatprep.subr.mxu0 0.0
    %6481 = vmatpush1.msra.mxu0 0.0
    %6482 = vmatprep.subr.mxu0 0.0
    %6483 = vmatpush1.msra.mxu0 0.0
    %6484 = vmatprep.subr.mxu0 0.0
    %6485 = vmatpush1.msra.mxu0 0.0
    %6486 = vmatprep.subr.mxu0 0.0
    %6487 = vmatpush1.msra.mxu0 0.0
    %6488 = vmatprep.subr.mxu0 0.0
    %6489 = vmatpush1.msra.mxu0 0.0
    %6490 = vmatprep.subr.mxu0 0.0
    %6491 = vmatpush1.msra.mxu0 0.0
    %6492 = vmatprep.subr.mxu0 0.0
    %6493 = vmatpush1.msra.mxu0 0.0
    %6494 = vmatprep.mubr.f32.mxu0 0.0
    %v6495 = vand.u32 %v5943, 4294901760
    %6496 = vmatmul.mubr.f32.gmra.mrb[0].mxu0 %v6495
    %v6497 = vpop.f32.mrb[0].mxu0
    %v6498 = vadd.f32 %v6379, %v6497
    %v6499 = vpop.f32.mrb[0].mxu0
    %6500 = vdwg.mxu0
    %6501 = vmatprep.subr.mxu0 0.0
    %v6502 = vand.u32 %v15, 4294901760
    %6503 = vmatpush1.msra.mxu0 %v6502
    %6504 = vmatprep.subr.mxu0 0.0
    %v6505 = vand.u32 %v16, 4294901760
    %6506 = vmatpush1.msra.mxu0 %v6505
    %6507 = vmatprep.subr.mxu0 0.0
    %v6508 = vand.u32 %v17, 4294901760
    %6509 = vmatpush1.msra.mxu0 %v6508
    %6510 = vmatprep.subr.mxu0 0.0
    %v6511 = vand.u32 %v18, 4294901760
    %6512 = vmatpush1.msra.mxu0 %v6511
    %6513 = vmatprep.subr.mxu0 0.0
    %v6514 = vand.u32 %v19, 4294901760
    %6515 = vmatpush1.msra.mxu0 %v6514
    %6516 = vmatprep.subr.mxu0 0.0
    %v6517 = vand.u32 %v20, 4294901760
    %6518 = vmatpush1.msra.mxu0 %v6517
    %6519 = vmatprep.subr.mxu0 0.0
    %v6520 = vand.u32 %v21, 4294901760
    %6521 = vmatpush1.msra.mxu0 %v6520
    %6522 = vmatprep.subr.mxu0 0.0
    %v6523 = vand.u32 %v22, 4294901760
    %6524 = vmatpush1.msra.mxu0 %v6523
    %6525 = vmatprep.subr.mxu0 0.0
    %v6526 = vand.u32 %v23, 4294901760
    %6527 = vmatpush1.msra.mxu0 %v6526
    %6528 = vmatprep.subr.mxu0 0.0
    %v6529 = vand.u32 %v24, 4294901760
    %6530 = vmatpush1.msra.mxu0 %v6529
    %6531 = vmatprep.subr.mxu0 0.0
    %v6532 = vand.u32 %v25, 4294901760
    %6533 = vmatpush1.msra.mxu0 %v6532
    %6534 = vmatprep.subr.mxu0 0.0
    %v6535 = vand.u32 %v26, 4294901760
    %6536 = vmatpush1.msra.mxu0 %v6535
    %6537 = vmatprep.subr.mxu0 0.0
    %v6538 = vand.u32 %v27, 4294901760
    %6539 = vmatpush1.msra.mxu0 %v6538
    %6540 = vmatprep.subr.mxu0 0.0
    %v6541 = vand.u32 %v28, 4294901760
    %6542 = vmatpush1.msra.mxu0 %v6541
    %6543 = vmatprep.subr.mxu0 0.0
    %v6544 = vand.u32 %v29, 4294901760
    %6545 = vmatpush1.msra.mxu0 %v6544
    %6546 = vmatprep.subr.mxu0 0.0
    %v6547 = vand.u32 %v30, 4294901760
    %6548 = vmatpush1.msra.mxu0 %v6547
    %6549 = vmatprep.subr.mxu0 0.0
    %6550 = vmatpush1.msra.mxu0 0.0
    %6551 = vmatprep.subr.mxu0 0.0
    %6552 = vmatpush1.msra.mxu0 0.0
    %6553 = vmatprep.subr.mxu0 0.0
    %6554 = vmatpush1.msra.mxu0 0.0
    %6555 = vmatprep.subr.mxu0 0.0
    %6556 = vmatpush1.msra.mxu0 0.0
    %6557 = vmatprep.subr.mxu0 0.0
    %6558 = vmatpush1.msra.mxu0 0.0
    %6559 = vmatprep.subr.mxu0 0.0
    %6560 = vmatpush1.msra.mxu0 0.0
    %6561 = vmatprep.subr.mxu0 0.0
    %6562 = vmatpush1.msra.mxu0 0.0
    %6563 = vmatprep.subr.mxu0 0.0
    %6564 = vmatpush1.msra.mxu0 0.0
    %6565 = vmatprep.subr.mxu0 0.0
    %6566 = vmatpush1.msra.mxu0 0.0
    %6567 = vmatprep.subr.mxu0 0.0
    %6568 = vmatpush1.msra.mxu0 0.0
    %6569 = vmatprep.subr.mxu0 0.0
    %6570 = vmatpush1.msra.mxu0 0.0
    %6571 = vmatprep.subr.mxu0 0.0
    %6572 = vmatpush1.msra.mxu0 0.0
    %6573 = vmatprep.subr.mxu0 0.0
    %6574 = vmatpush1.msra.mxu0 0.0
    %6575 = vmatprep.subr.mxu0 0.0
    %6576 = vmatpush1.msra.mxu0 0.0
    %6577 = vmatprep.subr.mxu0 0.0
    %6578 = vmatpush1.msra.mxu0 0.0
    %6579 = vmatprep.subr.mxu0 0.0
    %6580 = vmatpush1.msra.mxu0 0.0
    %6581 = vmatprep.mubr.f32.mxu0 0.0
    %v6582 = vand.u32 %v5943, 4294901760
    %6583 = vmatmul.mubr.f32.gmra.mrb[0].mxu0 %v6582
    %v6584 = vpop.f32.mrb[0].mxu0
    %v6585 = vadd.f32 %v6498, %v6584
    %v6586 = vpop.f32.mrb[0].mxu0
    %6587 = vdwg.mxu0
    %v6588 = vmul.f32 %v5945, 0.9
    %v6589 = vadd.f32 %v6588, %v6585
    %vm6590 = vcmp.le.s32.totalorder %v41, 9
    %vm6591 = vcmp.gt.s32.totalorder %v41, 1
    %vm6592 = vmand %vm6590, %vm6591
    %vm6593 = vcmp.ge.f32.partialorder %v6589, 1.0
    %vm6594 = vmand %vm6593, %vm6592
    %v6595 = vsel %vm6594, 1, 0
    %v6596 = vcvt.s32.f32 %v6595
    %v6597 = vsel %vm6594, 0.0, %v6589
    %v6598 = vsel %vm6592, %v6597, %v5945
    %v6599 = vadd.f32 %v5946, %v6596
    %6600 = vmatprep.subr.mxu0 0.0
    %v6601 = vand.u32 %v15, 4294901760
    %6602 = vmatpush1.msra.mxu0 %v6601
    %6603 = vmatprep.subr.mxu0 0.0
    %v6604 = vand.u32 %v16, 4294901760
    %6605 = vmatpush1.msra.mxu0 %v6604
    %6606 = vmatprep.subr.mxu0 0.0
    %v6607 = vand.u32 %v17, 4294901760
    %6608 = vmatpush1.msra.mxu0 %v6607
    %6609 = vmatprep.subr.mxu0 0.0
    %v6610 = vand.u32 %v18, 4294901760
    %6611 = vmatpush1.msra.mxu0 %v6610
    %6612 = vmatprep.subr.mxu0 0.0
    %v6613 = vand.u32 %v19, 4294901760
    %6614 = vmatpush1.msra.mxu0 %v6613
    %6615 = vmatprep.subr.mxu0 0.0
    %v6616 = vand.u32 %v20, 4294901760
    %6617 = vmatpush1.msra.mxu0 %v6616
    %6618 = vmatprep.subr.mxu0 0.0
    %v6619 = vand.u32 %v21, 4294901760
    %6620 = vmatpush1.msra.mxu0 %v6619
    %6621 = vmatprep.subr.mxu0 0.0
    %v6622 = vand.u32 %v22, 4294901760
    %6623 = vmatpush1.msra.mxu0 %v6622
    %6624 = vmatprep.subr.mxu0 0.0
    %v6625 = vand.u32 %v23, 4294901760
    %6626 = vmatpush1.msra.mxu0 %v6625
    %6627 = vmatprep.subr.mxu0 0.0
    %v6628 = vand.u32 %v24, 4294901760
    %6629 = vmatpush1.msra.mxu0 %v6628
    %6630 = vmatprep.subr.mxu0 0.0
    %v6631 = vand.u32 %v25, 4294901760
    %6632 = vmatpush1.msra.mxu0 %v6631
    %6633 = vmatprep.subr.mxu0 0.0
    %v6634 = vand.u32 %v26, 4294901760
    %6635 = vmatpush1.msra.mxu0 %v6634
    %6636 = vmatprep.subr.mxu0 0.0
    %v6637 = vand.u32 %v27, 4294901760
    %6638 = vmatpush1.msra.mxu0 %v6637
    %6639 = vmatprep.subr.mxu0 0.0
    %v6640 = vand.u32 %v28, 4294901760
    %6641 = vmatpush1.msra.mxu0 %v6640
    %6642 = vmatprep.subr.mxu0 0.0
    %v6643 = vand.u32 %v29, 4294901760
    %6644 = vmatpush1.msra.mxu0 %v6643
    %6645 = vmatprep.subr.mxu0 0.0
    %v6646 = vand.u32 %v30, 4294901760
    %6647 = vmatpush1.msra.mxu0 %v6646
    %6648 = vmatprep.subr.mxu0 0.0
    %6649 = vmatpush1.msra.mxu0 0.0
    %6650 = vmatprep.subr.mxu0 0.0
    %6651 = vmatpush1.msra.mxu0 0.0
    %6652 = vmatprep.subr.mxu0 0.0
    %6653 = vmatpush1.msra.mxu0 0.0
    %6654 = vmatprep.subr.mxu0 0.0
    %6655 = vmatpush1.msra.mxu0 0.0
    %6656 = vmatprep.subr.mxu0 0.0
    %6657 = vmatpush1.msra.mxu0 0.0
    %6658 = vmatprep.subr.mxu0 0.0
    %6659 = vmatpush1.msra.mxu0 0.0
    %6660 = vmatprep.subr.mxu0 0.0
    %6661 = vmatpush1.msra.mxu0 0.0
    %6662 = vmatprep.subr.mxu0 0.0
    %6663 = vmatpush1.msra.mxu0 0.0
    %6664 = vmatprep.subr.mxu0 0.0
    %6665 = vmatpush1.msra.mxu0 0.0
    %6666 = vmatprep.subr.mxu0 0.0
    %6667 = vmatpush1.msra.mxu0 0.0
    %6668 = vmatprep.subr.mxu0 0.0
    %6669 = vmatpush1.msra.mxu0 0.0
    %6670 = vmatprep.subr.mxu0 0.0
    %6671 = vmatpush1.msra.mxu0 0.0
    %6672 = vmatprep.subr.mxu0 0.0
    %6673 = vmatpush1.msra.mxu0 0.0
    %6674 = vmatprep.subr.mxu0 0.0
    %6675 = vmatpush1.msra.mxu0 0.0
    %6676 = vmatprep.subr.mxu0 0.0
    %6677 = vmatpush1.msra.mxu0 0.0
    %6678 = vmatprep.subr.mxu0 0.0
    %6679 = vmatpush1.msra.mxu0 0.0
    %6680 = vmatprep.mubr.f32.mxu0 0.0
    %v6681 = vand.u32 %v6596, 4294901760
    %v6682 = vsub.f32 %v6596, %v6681
    %v6683 = vand.u32 %v6682, 4294901760
    %v6684 = vsub.f32 %v6682, %v6683
    %v6685 = vand.u32 %v6684, 4294901760
    %6686 = vmatmul.mubr.f32.gmra.mrb[0].mxu0 %v6685
    %v6687 = vpop.f32.mrb[0].mxu0
    %v6688 = vadd.f32 %v48, %v6687
    %v6689 = vpop.f32.mrb[0].mxu0
    %6690 = vdwg.mxu0
    %6691 = vmatprep.subr.mxu0 0.0
    %v6692 = vand.u32 %v15, 4294901760
    %v6693 = vsub.f32 %v15, %v6692
    %v6694 = vand.u32 %v6693, 4294901760
    %v6695 = vsub.f32 %v6693, %v6694
    %v6696 = vand.u32 %v6695, 4294901760
    %6697 = vmatpush1.msra.mxu0 %v6696
    %6698 = vmatprep.subr.mxu0 0.0
    %v6699 = vand.u32 %v16, 4294901760
    %v6700 = vsub.f32 %v16, %v6699
    %v6701 = vand.u32 %v6700, 4294901760
    %v6702 = vsub.f32 %v6700, %v6701
    %v6703 = vand.u32 %v6702, 4294901760
    %6704 = vmatpush1.msra.mxu0 %v6703
    %6705 = vmatprep.subr.mxu0 0.0
    %v6706 = vand.u32 %v17, 4294901760
    %v6707 = vsub.f32 %v17, %v6706
    %v6708 = vand.u32 %v6707, 4294901760
    %v6709 = vsub.f32 %v6707, %v6708
    %v6710 = vand.u32 %v6709, 4294901760
    %6711 = vmatpush1.msra.mxu0 %v6710
    %6712 = vmatprep.subr.mxu0 0.0
    %v6713 = vand.u32 %v18, 4294901760
    %v6714 = vsub.f32 %v18, %v6713
    %v6715 = vand.u32 %v6714, 4294901760
    %v6716 = vsub.f32 %v6714, %v6715
    %v6717 = vand.u32 %v6716, 4294901760
    %6718 = vmatpush1.msra.mxu0 %v6717
    %6719 = vmatprep.subr.mxu0 0.0
    %v6720 = vand.u32 %v19, 4294901760
    %v6721 = vsub.f32 %v19, %v6720
    %v6722 = vand.u32 %v6721, 4294901760
    %v6723 = vsub.f32 %v6721, %v6722
    %v6724 = vand.u32 %v6723, 4294901760
    %6725 = vmatpush1.msra.mxu0 %v6724
    %6726 = vmatprep.subr.mxu0 0.0
    %v6727 = vand.u32 %v20, 4294901760
    %v6728 = vsub.f32 %v20, %v6727
    %v6729 = vand.u32 %v6728, 4294901760
    %v6730 = vsub.f32 %v6728, %v6729
    %v6731 = vand.u32 %v6730, 4294901760
    %6732 = vmatpush1.msra.mxu0 %v6731
    %6733 = vmatprep.subr.mxu0 0.0
    %v6734 = vand.u32 %v21, 4294901760
    %v6735 = vsub.f32 %v21, %v6734
    %v6736 = vand.u32 %v6735, 4294901760
    %v6737 = vsub.f32 %v6735, %v6736
    %v6738 = vand.u32 %v6737, 4294901760
    %6739 = vmatpush1.msra.mxu0 %v6738
    %6740 = vmatprep.subr.mxu0 0.0
    %v6741 = vand.u32 %v22, 4294901760
    %v6742 = vsub.f32 %v22, %v6741
    %v6743 = vand.u32 %v6742, 4294901760
    %v6744 = vsub.f32 %v6742, %v6743
    %v6745 = vand.u32 %v6744, 4294901760
    %6746 = vmatpush1.msra.mxu0 %v6745
    %6747 = vmatprep.subr.mxu0 0.0
    %v6748 = vand.u32 %v23, 4294901760
    %v6749 = vsub.f32 %v23, %v6748
    %v6750 = vand.u32 %v6749, 4294901760
    %v6751 = vsub.f32 %v6749, %v6750
    %v6752 = vand.u32 %v6751, 4294901760
    %6753 = vmatpush1.msra.mxu0 %v6752
    %6754 = vmatprep.subr.mxu0 0.0
    %v6755 = vand.u32 %v24, 4294901760
    %v6756 = vsub.f32 %v24, %v6755
    %v6757 = vand.u32 %v6756, 4294901760
    %v6758 = vsub.f32 %v6756, %v6757
    %v6759 = vand.u32 %v6758, 4294901760
    %6760 = vmatpush1.msra.mxu0 %v6759
    %6761 = vmatprep.subr.mxu0 0.0
    %v6762 = vand.u32 %v25, 4294901760
    %v6763 = vsub.f32 %v25, %v6762
    %v6764 = vand.u32 %v6763, 4294901760
    %v6765 = vsub.f32 %v6763, %v6764
    %v6766 = vand.u32 %v6765, 4294901760
    %6767 = vmatpush1.msra.mxu0 %v6766
    %6768 = vmatprep.subr.mxu0 0.0
    %v6769 = vand.u32 %v26, 4294901760
    %v6770 = vsub.f32 %v26, %v6769
    %v6771 = vand.u32 %v6770, 4294901760
    %v6772 = vsub.f32 %v6770, %v6771
    %v6773 = vand.u32 %v6772, 4294901760
    %6774 = vmatpush1.msra.mxu0 %v6773
    %6775 = vmatprep.subr.mxu0 0.0
    %v6776 = vand.u32 %v27, 4294901760
    %v6777 = vsub.f32 %v27, %v6776
    %v6778 = vand.u32 %v6777, 4294901760
    %v6779 = vsub.f32 %v6777, %v6778
    %v6780 = vand.u32 %v6779, 4294901760
    %6781 = vmatpush1.msra.mxu0 %v6780
    %6782 = vmatprep.subr.mxu0 0.0
    %v6783 = vand.u32 %v28, 4294901760
    %v6784 = vsub.f32 %v28, %v6783
    %v6785 = vand.u32 %v6784, 4294901760
    %v6786 = vsub.f32 %v6784, %v6785
    %v6787 = vand.u32 %v6786, 4294901760
    %6788 = vmatpush1.msra.mxu0 %v6787
    %6789 = vmatprep.subr.mxu0 0.0
    %v6790 = vand.u32 %v29, 4294901760
    %v6791 = vsub.f32 %v29, %v6790
    %v6792 = vand.u32 %v6791, 4294901760
    %v6793 = vsub.f32 %v6791, %v6792
    %v6794 = vand.u32 %v6793, 4294901760
    %6795 = vmatpush1.msra.mxu0 %v6794
    %6796 = vmatprep.subr.mxu0 0.0
    %v6797 = vand.u32 %v30, 4294901760
    %v6798 = vsub.f32 %v30, %v6797
    %v6799 = vand.u32 %v6798, 4294901760
    %v6800 = vsub.f32 %v6798, %v6799
    %v6801 = vand.u32 %v6800, 4294901760
    %6802 = vmatpush1.msra.mxu0 %v6801
    %6803 = vmatprep.subr.mxu0 0.0
    %6804 = vmatpush1.msra.mxu0 0.0
    %6805 = vmatprep.subr.mxu0 0.0
    %6806 = vmatpush1.msra.mxu0 0.0
    %6807 = vmatprep.subr.mxu0 0.0
    %6808 = vmatpush1.msra.mxu0 0.0
    %6809 = vmatprep.subr.mxu0 0.0
    %6810 = vmatpush1.msra.mxu0 0.0
    %6811 = vmatprep.subr.mxu0 0.0
    %6812 = vmatpush1.msra.mxu0 0.0
    %6813 = vmatprep.subr.mxu0 0.0
    %6814 = vmatpush1.msra.mxu0 0.0
    %6815 = vmatprep.subr.mxu0 0.0
    %6816 = vmatpush1.msra.mxu0 0.0
    %6817 = vmatprep.subr.mxu0 0.0
    %6818 = vmatpush1.msra.mxu0 0.0
    %6819 = vmatprep.subr.mxu0 0.0
    %6820 = vmatpush1.msra.mxu0 0.0
    %6821 = vmatprep.subr.mxu0 0.0
    %6822 = vmatpush1.msra.mxu0 0.0
    %6823 = vmatprep.subr.mxu0 0.0
    %6824 = vmatpush1.msra.mxu0 0.0
    %6825 = vmatprep.subr.mxu0 0.0
    %6826 = vmatpush1.msra.mxu0 0.0
    %6827 = vmatprep.subr.mxu0 0.0
    %6828 = vmatpush1.msra.mxu0 0.0
    %6829 = vmatprep.subr.mxu0 0.0
    %6830 = vmatpush1.msra.mxu0 0.0
    %6831 = vmatprep.subr.mxu0 0.0
    %6832 = vmatpush1.msra.mxu0 0.0
    %6833 = vmatprep.subr.mxu0 0.0
    %6834 = vmatpush1.msra.mxu0 0.0
    %6835 = vmatprep.mubr.f32.mxu0 0.0
    %v6836 = vand.u32 %v6596, 4294901760
    %6837 = vmatmul.mubr.f32.gmra.mrb[0].mxu0 %v6836
    %v6838 = vpop.f32.mrb[0].mxu0
    %v6839 = vadd.f32 %v6688, %v6838
    %v6840 = vpop.f32.mrb[0].mxu0
    %6841 = vdwg.mxu0
    %6842 = vmatprep.subr.mxu0 0.0
    %v6843 = vand.u32 %v15, 4294901760
    %v6844 = vsub.f32 %v15, %v6843
    %6845 = vmatpush1.msra.mxu0 %v6844
    %6846 = vmatprep.subr.mxu0 0.0
    %v6847 = vand.u32 %v16, 4294901760
    %v6848 = vsub.f32 %v16, %v6847
    %6849 = vmatpush1.msra.mxu0 %v6848
    %6850 = vmatprep.subr.mxu0 0.0
    %v6851 = vand.u32 %v17, 4294901760
    %v6852 = vsub.f32 %v17, %v6851
    %6853 = vmatpush1.msra.mxu0 %v6852
    %6854 = vmatprep.subr.mxu0 0.0
    %v6855 = vand.u32 %v18, 4294901760
    %v6856 = vsub.f32 %v18, %v6855
    %6857 = vmatpush1.msra.mxu0 %v6856
    %6858 = vmatprep.subr.mxu0 0.0
    %v6859 = vand.u32 %v19, 4294901760
    %v6860 = vsub.f32 %v19, %v6859
    %6861 = vmatpush1.msra.mxu0 %v6860
    %6862 = vmatprep.subr.mxu0 0.0
    %v6863 = vand.u32 %v20, 4294901760
    %v6864 = vsub.f32 %v20, %v6863
    %6865 = vmatpush1.msra.mxu0 %v6864
    %6866 = vmatprep.subr.mxu0 0.0
    %v6867 = vand.u32 %v21, 4294901760
    %v6868 = vsub.f32 %v21, %v6867
    %6869 = vmatpush1.msra.mxu0 %v6868
    %6870 = vmatprep.subr.mxu0 0.0
    %v6871 = vand.u32 %v22, 4294901760
    %v6872 = vsub.f32 %v22, %v6871
    %6873 = vmatpush1.msra.mxu0 %v6872
    %6874 = vmatprep.subr.mxu0 0.0
    %v6875 = vand.u32 %v23, 4294901760
    %v6876 = vsub.f32 %v23, %v6875
    %6877 = vmatpush1.msra.mxu0 %v6876
    %6878 = vmatprep.subr.mxu0 0.0
    %v6879 = vand.u32 %v24, 4294901760
    %v6880 = vsub.f32 %v24, %v6879
    %6881 = vmatpush1.msra.mxu0 %v6880
    %6882 = vmatprep.subr.mxu0 0.0
    %v6883 = vand.u32 %v25, 4294901760
    %v6884 = vsub.f32 %v25, %v6883
    %6885 = vmatpush1.msra.mxu0 %v6884
    %6886 = vmatprep.subr.mxu0 0.0
    %v6887 = vand.u32 %v26, 4294901760
    %v6888 = vsub.f32 %v26, %v6887
    %6889 = vmatpush1.msra.mxu0 %v6888
    %6890 = vmatprep.subr.mxu0 0.0
    %v6891 = vand.u32 %v27, 4294901760
    %v6892 = vsub.f32 %v27, %v6891
    %6893 = vmatpush1.msra.mxu0 %v6892
    %6894 = vmatprep.subr.mxu0 0.0
    %v6895 = vand.u32 %v28, 4294901760
    %v6896 = vsub.f32 %v28, %v6895
    %6897 = vmatpush1.msra.mxu0 %v6896
    %6898 = vmatprep.subr.mxu0 0.0
    %v6899 = vand.u32 %v29, 4294901760
    %v6900 = vsub.f32 %v29, %v6899
    %6901 = vmatpush1.msra.mxu0 %v6900
    %6902 = vmatprep.subr.mxu0 0.0
    %v6903 = vand.u32 %v30, 4294901760
    %v6904 = vsub.f32 %v30, %v6903
    %6905 = vmatpush1.msra.mxu0 %v6904
    %6906 = vmatprep.subr.mxu0 0.0
    %6907 = vmatpush1.msra.mxu0 0.0
    %6908 = vmatprep.subr.mxu0 0.0
    %6909 = vmatpush1.msra.mxu0 0.0
    %6910 = vmatprep.subr.mxu0 0.0
    %6911 = vmatpush1.msra.mxu0 0.0
    %6912 = vmatprep.subr.mxu0 0.0
    %6913 = vmatpush1.msra.mxu0 0.0
    %6914 = vmatprep.subr.mxu0 0.0
    %6915 = vmatpush1.msra.mxu0 0.0
    %6916 = vmatprep.subr.mxu0 0.0
    %6917 = vmatpush1.msra.mxu0 0.0
    %6918 = vmatprep.subr.mxu0 0.0
    %6919 = vmatpush1.msra.mxu0 0.0
    %6920 = vmatprep.subr.mxu0 0.0
    %6921 = vmatpush1.msra.mxu0 0.0
    %6922 = vmatprep.subr.mxu0 0.0
    %6923 = vmatpush1.msra.mxu0 0.0
    %6924 = vmatprep.subr.mxu0 0.0
    %6925 = vmatpush1.msra.mxu0 0.0
    %6926 = vmatprep.subr.mxu0 0.0
    %6927 = vmatpush1.msra.mxu0 0.0
    %6928 = vmatprep.subr.mxu0 0.0
    %6929 = vmatpush1.msra.mxu0 0.0
    %6930 = vmatprep.subr.mxu0 0.0
    %6931 = vmatpush1.msra.mxu0 0.0
    %6932 = vmatprep.subr.mxu0 0.0
    %6933 = vmatpush1.msra.mxu0 0.0
    %6934 = vmatprep.subr.mxu0 0.0
    %6935 = vmatpush1.msra.mxu0 0.0
    %6936 = vmatprep.subr.mxu0 0.0
    %6937 = vmatpush1.msra.mxu0 0.0
    %6938 = vmatprep.mubr.f32.mxu0 0.0
    %v6939 = vand.u32 %v6596, 4294901760
    %v6940 = vsub.f32 %v6596, %v6939
    %6941 = vmatmul.mubr.f32.gmra.mrb[0].mxu0 %v6940
    %v6942 = vpop.f32.mrb[0].mxu0
    %v6943 = vadd.f32 %v6839, %v6942
    %v6944 = vpop.f32.mrb[0].mxu0
    %6945 = vdwg.mxu0
    %6946 = vmatprep.subr.mxu0 0.0
    %v6947 = vand.u32 %v15, 4294901760
    %6948 = vmatpush1.msra.mxu0 %v6947
    %6949 = vmatprep.subr.mxu0 0.0
    %v6950 = vand.u32 %v16, 4294901760
    %6951 = vmatpush1.msra.mxu0 %v6950
    %6952 = vmatprep.subr.mxu0 0.0
    %v6953 = vand.u32 %v17, 4294901760
    %6954 = vmatpush1.msra.mxu0 %v6953
    %6955 = vmatprep.subr.mxu0 0.0
    %v6956 = vand.u32 %v18, 4294901760
    %6957 = vmatpush1.msra.mxu0 %v6956
    %6958 = vmatprep.subr.mxu0 0.0
    %v6959 = vand.u32 %v19, 4294901760
    %6960 = vmatpush1.msra.mxu0 %v6959
    %6961 = vmatprep.subr.mxu0 0.0
    %v6962 = vand.u32 %v20, 4294901760
    %6963 = vmatpush1.msra.mxu0 %v6962
    %6964 = vmatprep.subr.mxu0 0.0
    %v6965 = vand.u32 %v21, 4294901760
    %6966 = vmatpush1.msra.mxu0 %v6965
    %6967 = vmatprep.subr.mxu0 0.0
    %v6968 = vand.u32 %v22, 4294901760
    %6969 = vmatpush1.msra.mxu0 %v6968
    %6970 = vmatprep.subr.mxu0 0.0
    %v6971 = vand.u32 %v23, 4294901760
    %6972 = vmatpush1.msra.mxu0 %v6971
    %6973 = vmatprep.subr.mxu0 0.0
    %v6974 = vand.u32 %v24, 4294901760
    %6975 = vmatpush1.msra.mxu0 %v6974
    %6976 = vmatprep.subr.mxu0 0.0
    %v6977 = vand.u32 %v25, 4294901760
    %6978 = vmatpush1.msra.mxu0 %v6977
    %6979 = vmatprep.subr.mxu0 0.0
    %v6980 = vand.u32 %v26, 4294901760
    %6981 = vmatpush1.msra.mxu0 %v6980
    %6982 = vmatprep.subr.mxu0 0.0
    %v6983 = vand.u32 %v27, 4294901760
    %6984 = vmatpush1.msra.mxu0 %v6983
    %6985 = vmatprep.subr.mxu0 0.0
    %v6986 = vand.u32 %v28, 4294901760
    %6987 = vmatpush1.msra.mxu0 %v6986
    %6988 = vmatprep.subr.mxu0 0.0
    %v6989 = vand.u32 %v29, 4294901760
    %6990 = vmatpush1.msra.mxu0 %v6989
    %6991 = vmatprep.subr.mxu0 0.0
    %v6992 = vand.u32 %v30, 4294901760
    %6993 = vmatpush1.msra.mxu0 %v6992
    %6994 = vmatprep.subr.mxu0 0.0
    %6995 = vmatpush1.msra.mxu0 0.0
    %6996 = vmatprep.subr.mxu0 0.0
    %6997 = vmatpush1.msra.mxu0 0.0
    %6998 = vmatprep.subr.mxu0 0.0
    %6999 = vmatpush1.msra.mxu0 0.0
    %7000 = vmatprep.subr.mxu0 0.0
    %7001 = vmatpush1.msra.mxu0 0.0
    %7002 = vmatprep.subr.mxu0 0.0
    %7003 = vmatpush1.msra.mxu0 0.0
    %7004 = vmatprep.subr.mxu0 0.0
    %7005 = vmatpush1.msra.mxu0 0.0
    %7006 = vmatprep.subr.mxu0 0.0
    %7007 = vmatpush1.msra.mxu0 0.0
    %7008 = vmatprep.subr.mxu0 0.0
    %7009 = vmatpush1.msra.mxu0 0.0
    %7010 = vmatprep.subr.mxu0 0.0
    %7011 = vmatpush1.msra.mxu0 0.0
    %7012 = vmatprep.subr.mxu0 0.0
    %7013 = vmatpush1.msra.mxu0 0.0
    %7014 = vmatprep.subr.mxu0 0.0
    %7015 = vmatpush1.msra.mxu0 0.0
    %7016 = vmatprep.subr.mxu0 0.0
    %7017 = vmatpush1.msra.mxu0 0.0
    %7018 = vmatprep.subr.mxu0 0.0
    %7019 = vmatpush1.msra.mxu0 0.0
    %7020 = vmatprep.subr.mxu0 0.0
    %7021 = vmatpush1.msra.mxu0 0.0
    %7022 = vmatprep.subr.mxu0 0.0
    %7023 = vmatpush1.msra.mxu0 0.0
    %7024 = vmatprep.subr.mxu0 0.0
    %7025 = vmatpush1.msra.mxu0 0.0
    %7026 = vmatprep.mubr.f32.mxu0 0.0
    %v7027 = vand.u32 %v6596, 4294901760
    %v7028 = vsub.f32 %v6596, %v7027
    %v7029 = vand.u32 %v7028, 4294901760
    %7030 = vmatmul.mubr.f32.gmra.mrb[0].mxu0 %v7029
    %v7031 = vpop.f32.mrb[0].mxu0
    %v7032 = vadd.f32 %v6943, %v7031
    %v7033 = vpop.f32.mrb[0].mxu0
    %7034 = vdwg.mxu0
    %7035 = vmatprep.subr.mxu0 0.0
    %v7036 = vand.u32 %v15, 4294901760
    %v7037 = vsub.f32 %v15, %v7036
    %v7038 = vand.u32 %v7037, 4294901760
    %7039 = vmatpush1.msra.mxu0 %v7038
    %7040 = vmatprep.subr.mxu0 0.0
    %v7041 = vand.u32 %v16, 4294901760
    %v7042 = vsub.f32 %v16, %v7041
    %v7043 = vand.u32 %v7042, 4294901760
    %7044 = vmatpush1.msra.mxu0 %v7043
    %7045 = vmatprep.subr.mxu0 0.0
    %v7046 = vand.u32 %v17, 4294901760
    %v7047 = vsub.f32 %v17, %v7046
    %v7048 = vand.u32 %v7047, 4294901760
    %7049 = vmatpush1.msra.mxu0 %v7048
    %7050 = vmatprep.subr.mxu0 0.0
    %v7051 = vand.u32 %v18, 4294901760
    %v7052 = vsub.f32 %v18, %v7051
    %v7053 = vand.u32 %v7052, 4294901760
    %7054 = vmatpush1.msra.mxu0 %v7053
    %7055 = vmatprep.subr.mxu0 0.0
    %v7056 = vand.u32 %v19, 4294901760
    %v7057 = vsub.f32 %v19, %v7056
    %v7058 = vand.u32 %v7057, 4294901760
    %7059 = vmatpush1.msra.mxu0 %v7058
    %7060 = vmatprep.subr.mxu0 0.0
    %v7061 = vand.u32 %v20, 4294901760
    %v7062 = vsub.f32 %v20, %v7061
    %v7063 = vand.u32 %v7062, 4294901760
    %7064 = vmatpush1.msra.mxu0 %v7063
    %7065 = vmatprep.subr.mxu0 0.0
    %v7066 = vand.u32 %v21, 4294901760
    %v7067 = vsub.f32 %v21, %v7066
    %v7068 = vand.u32 %v7067, 4294901760
    %7069 = vmatpush1.msra.mxu0 %v7068
    %7070 = vmatprep.subr.mxu0 0.0
    %v7071 = vand.u32 %v22, 4294901760
    %v7072 = vsub.f32 %v22, %v7071
    %v7073 = vand.u32 %v7072, 4294901760
    %7074 = vmatpush1.msra.mxu0 %v7073
    %7075 = vmatprep.subr.mxu0 0.0
    %v7076 = vand.u32 %v23, 4294901760
    %v7077 = vsub.f32 %v23, %v7076
    %v7078 = vand.u32 %v7077, 4294901760
    %7079 = vmatpush1.msra.mxu0 %v7078
    %7080 = vmatprep.subr.mxu0 0.0
    %v7081 = vand.u32 %v24, 4294901760
    %v7082 = vsub.f32 %v24, %v7081
    %v7083 = vand.u32 %v7082, 4294901760
    %7084 = vmatpush1.msra.mxu0 %v7083
    %7085 = vmatprep.subr.mxu0 0.0
    %v7086 = vand.u32 %v25, 4294901760
    %v7087 = vsub.f32 %v25, %v7086
    %v7088 = vand.u32 %v7087, 4294901760
    %7089 = vmatpush1.msra.mxu0 %v7088
    %7090 = vmatprep.subr.mxu0 0.0
    %v7091 = vand.u32 %v26, 4294901760
    %v7092 = vsub.f32 %v26, %v7091
    %v7093 = vand.u32 %v7092, 4294901760
    %7094 = vmatpush1.msra.mxu0 %v7093
    %7095 = vmatprep.subr.mxu0 0.0
    %v7096 = vand.u32 %v27, 4294901760
    %v7097 = vsub.f32 %v27, %v7096
    %v7098 = vand.u32 %v7097, 4294901760
    %7099 = vmatpush1.msra.mxu0 %v7098
    %7100 = vmatprep.subr.mxu0 0.0
    %v7101 = vand.u32 %v28, 4294901760
    %v7102 = vsub.f32 %v28, %v7101
    %v7103 = vand.u32 %v7102, 4294901760
    %7104 = vmatpush1.msra.mxu0 %v7103
    %7105 = vmatprep.subr.mxu0 0.0
    %v7106 = vand.u32 %v29, 4294901760
    %v7107 = vsub.f32 %v29, %v7106
    %v7108 = vand.u32 %v7107, 4294901760
    %7109 = vmatpush1.msra.mxu0 %v7108
    %7110 = vmatprep.subr.mxu0 0.0
    %v7111 = vand.u32 %v30, 4294901760
    %v7112 = vsub.f32 %v30, %v7111
    %v7113 = vand.u32 %v7112, 4294901760
    %7114 = vmatpush1.msra.mxu0 %v7113
    %7115 = vmatprep.subr.mxu0 0.0
    %7116 = vmatpush1.msra.mxu0 0.0
    %7117 = vmatprep.subr.mxu0 0.0
    %7118 = vmatpush1.msra.mxu0 0.0
    %7119 = vmatprep.subr.mxu0 0.0
    %7120 = vmatpush1.msra.mxu0 0.0
    %7121 = vmatprep.subr.mxu0 0.0
    %7122 = vmatpush1.msra.mxu0 0.0
    %7123 = vmatprep.subr.mxu0 0.0
    %7124 = vmatpush1.msra.mxu0 0.0
    %7125 = vmatprep.subr.mxu0 0.0
    %7126 = vmatpush1.msra.mxu0 0.0
    %7127 = vmatprep.subr.mxu0 0.0
    %7128 = vmatpush1.msra.mxu0 0.0
    %7129 = vmatprep.subr.mxu0 0.0
    %7130 = vmatpush1.msra.mxu0 0.0
    %7131 = vmatprep.subr.mxu0 0.0
    %7132 = vmatpush1.msra.mxu0 0.0
    %7133 = vmatprep.subr.mxu0 0.0
    %7134 = vmatpush1.msra.mxu0 0.0
    %7135 = vmatprep.subr.mxu0 0.0
    %7136 = vmatpush1.msra.mxu0 0.0
    %7137 = vmatprep.subr.mxu0 0.0
    %7138 = vmatpush1.msra.mxu0 0.0
    %7139 = vmatprep.subr.mxu0 0.0
    %7140 = vmatpush1.msra.mxu0 0.0
    %7141 = vmatprep.subr.mxu0 0.0
    %7142 = vmatpush1.msra.mxu0 0.0
    %7143 = vmatprep.subr.mxu0 0.0
    %7144 = vmatpush1.msra.mxu0 0.0
    %7145 = vmatprep.subr.mxu0 0.0
    %7146 = vmatpush1.msra.mxu0 0.0
    %7147 = vmatprep.mubr.f32.mxu0 0.0
    %v7148 = vand.u32 %v6596, 4294901760
    %7149 = vmatmul.mubr.f32.gmra.mrb[0].mxu0 %v7148
    %v7150 = vpop.f32.mrb[0].mxu0
    %v7151 = vadd.f32 %v7032, %v7150
    %v7152 = vpop.f32.mrb[0].mxu0
    %7153 = vdwg.mxu0
    %7154 = vmatprep.subr.mxu0 0.0
    %v7155 = vand.u32 %v15, 4294901760
    %7156 = vmatpush1.msra.mxu0 %v7155
    %7157 = vmatprep.subr.mxu0 0.0
    %v7158 = vand.u32 %v16, 4294901760
    %7159 = vmatpush1.msra.mxu0 %v7158
    %7160 = vmatprep.subr.mxu0 0.0
    %v7161 = vand.u32 %v17, 4294901760
    %7162 = vmatpush1.msra.mxu0 %v7161
    %7163 = vmatprep.subr.mxu0 0.0
    %v7164 = vand.u32 %v18, 4294901760
    %7165 = vmatpush1.msra.mxu0 %v7164
    %7166 = vmatprep.subr.mxu0 0.0
    %v7167 = vand.u32 %v19, 4294901760
    %7168 = vmatpush1.msra.mxu0 %v7167
    %7169 = vmatprep.subr.mxu0 0.0
    %v7170 = vand.u32 %v20, 4294901760
    %7171 = vmatpush1.msra.mxu0 %v7170
    %7172 = vmatprep.subr.mxu0 0.0
    %v7173 = vand.u32 %v21, 4294901760
    %7174 = vmatpush1.msra.mxu0 %v7173
    %7175 = vmatprep.subr.mxu0 0.0
    %v7176 = vand.u32 %v22, 4294901760
    %7177 = vmatpush1.msra.mxu0 %v7176
    %7178 = vmatprep.subr.mxu0 0.0
    %v7179 = vand.u32 %v23, 4294901760
    %7180 = vmatpush1.msra.mxu0 %v7179
    %7181 = vmatprep.subr.mxu0 0.0
    %v7182 = vand.u32 %v24, 4294901760
    %7183 = vmatpush1.msra.mxu0 %v7182
    %7184 = vmatprep.subr.mxu0 0.0
    %v7185 = vand.u32 %v25, 4294901760
    %7186 = vmatpush1.msra.mxu0 %v7185
    %7187 = vmatprep.subr.mxu0 0.0
    %v7188 = vand.u32 %v26, 4294901760
    %7189 = vmatpush1.msra.mxu0 %v7188
    %7190 = vmatprep.subr.mxu0 0.0
    %v7191 = vand.u32 %v27, 4294901760
    %7192 = vmatpush1.msra.mxu0 %v7191
    %7193 = vmatprep.subr.mxu0 0.0
    %v7194 = vand.u32 %v28, 4294901760
    %7195 = vmatpush1.msra.mxu0 %v7194
    %7196 = vmatprep.subr.mxu0 0.0
    %v7197 = vand.u32 %v29, 4294901760
    %7198 = vmatpush1.msra.mxu0 %v7197
    %7199 = vmatprep.subr.mxu0 0.0
    %v7200 = vand.u32 %v30, 4294901760
    %7201 = vmatpush1.msra.mxu0 %v7200
    %7202 = vmatprep.subr.mxu0 0.0
    %7203 = vmatpush1.msra.mxu0 0.0
    %7204 = vmatprep.subr.mxu0 0.0
    %7205 = vmatpush1.msra.mxu0 0.0
    %7206 = vmatprep.subr.mxu0 0.0
    %7207 = vmatpush1.msra.mxu0 0.0
    %7208 = vmatprep.subr.mxu0 0.0
    %7209 = vmatpush1.msra.mxu0 0.0
    %7210 = vmatprep.subr.mxu0 0.0
    %7211 = vmatpush1.msra.mxu0 0.0
    %7212 = vmatprep.subr.mxu0 0.0
    %7213 = vmatpush1.msra.mxu0 0.0
    %7214 = vmatprep.subr.mxu0 0.0
    %7215 = vmatpush1.msra.mxu0 0.0
    %7216 = vmatprep.subr.mxu0 0.0
    %7217 = vmatpush1.msra.mxu0 0.0
    %7218 = vmatprep.subr.mxu0 0.0
    %7219 = vmatpush1.msra.mxu0 0.0
    %7220 = vmatprep.subr.mxu0 0.0
    %7221 = vmatpush1.msra.mxu0 0.0
    %7222 = vmatprep.subr.mxu0 0.0
    %7223 = vmatpush1.msra.mxu0 0.0
    %7224 = vmatprep.subr.mxu0 0.0
    %7225 = vmatpush1.msra.mxu0 0.0
    %7226 = vmatprep.subr.mxu0 0.0
    %7227 = vmatpush1.msra.mxu0 0.0
    %7228 = vmatprep.subr.mxu0 0.0
    %7229 = vmatpush1.msra.mxu0 0.0
    %7230 = vmatprep.subr.mxu0 0.0
    %7231 = vmatpush1.msra.mxu0 0.0
    %7232 = vmatprep.subr.mxu0 0.0
    %7233 = vmatpush1.msra.mxu0 0.0
    %7234 = vmatprep.mubr.f32.mxu0 0.0
    %v7235 = vand.u32 %v6596, 4294901760
    %7236 = vmatmul.mubr.f32.gmra.mrb[0].mxu0 %v7235
    %v7237 = vpop.f32.mrb[0].mxu0
    %v7238 = vadd.f32 %v7151, %v7237
    %v7239 = vpop.f32.mrb[0].mxu0
    %7240 = vdwg.mxu0
    %v7241 = vmul.f32 %v6598, 0.9
    %v7242 = vadd.f32 %v7241, %v7238
    %vm7243 = vcmp.le.s32.totalorder %v41, 10
    %vm7244 = vcmp.gt.s32.totalorder %v41, 2
    %vm7245 = vmand %vm7243, %vm7244
    %vm7246 = vcmp.ge.f32.partialorder %v7242, 1.0
    %vm7247 = vmand %vm7246, %vm7245
    %v7248 = vsel %vm7247, 1, 0
    %v7249 = vcvt.s32.f32 %v7248
    %v7250 = vadd.f32 %v6599, %v7249
    %7252 = vrot.lane.b32.xlu0 %v7250, 32
    %v7253 = vpop.permute.xlu0 %7252
    %vm7255 = vcmask 80896
    %7256 = vst.msk [vmem:[#allocation2] sm:$0xff] %vm7255, %v7253
    // Predicated region
    $region14: #{simple_snn_forward.1} parent=1 // pred_check
      _
    $region15: #{simple_snn_forward.1} parent=1 // pred_check_branch
      %7258 = sbr.rel (0) target = $region17
    $region16: #{simple_snn_forward.1} parent=1 // pred_region
      %s7260 = ssub.s32 128, 128
      %7261 = vsyncadd [#allocation3], %s7260
      %s7263 = sshll.u32 [#allocation2], 4
      %s7264 = int_to_ptr.vmem [resolvable:$true] %s7263
      %7266 = dma.vmem_to_hbm [thread:$0]  %s7264, 128, %s3, [#allocation3]
    $region17: #{simple_snn_forward.1} parent=1 // pred_fallthru
      _
    // Predicated region
    $region18: #{simple_snn_forward.1} parent=1 // pred_check
      _
    $region19: #{simple_snn_forward.1} parent=1 // pred_check_branch
      %7268 = sbr.rel (0) target = $region21
    $region20: #{simple_snn_forward.1} parent=1 // pred_region
      %7269 = dma.done [#allocation3], 128
    $region21: #{simple_snn_forward.1} parent=1 // pred_fallthru
      _
    %7270 = vsyncpa [#allocation3], 1

</llo_original>
